<compile_context>
chip_gen: v7x
topology: tpu7x:2x2x1
jax: 0.10.0
libtpu: 0.0.40
codegen_flags: <defaults>
</compile_context>

<pallas_src>
import functools
import math

import numpy as np
import jax
import jax.numpy as jnp
from jax.experimental import pallas as pl
from jax.experimental.pallas import tpu as pltpu

LN_EPS = 1e-5
_VMEM_LIMIT = 48 * 1024 * 1024      # explicit scoped-VMEM request (fits v5e/v6e/v7x)
_TILE_BUDGET = 16 * 1024 * 1024     # activation budget used when sizing tiles
_MIN_ROWS_PER_STEP = 256            # keep >=2 grid steps only above this row count

# Inter-kernel activation dtype.  bf16 would halve HBM traffic (memory-bound
# passes) at the cost of extra drift vs. the f32 PyTorch reference.
ACT_DTYPE = jnp.float32


# ----------------------------------------------------------------------------- kernels
def _layernorm(x, g, b):
    mu = jnp.mean(x, axis=-1, keepdims=True)
    var = jnp.mean(jnp.square(x - mu), axis=-1, keepdims=True)
    return (x - mu) * jax.lax.rsqrt(var + LN_EPS) * g + b


def _merge_kernel(x_ref, ln_g_ref, ln_b_ref, w_ref, o_ref):
    # x_ref: (TR, 4C) ; w_ref: (4C, 2C) bf16
    x = x_ref[...].astype(jnp.float32)
    xn = _layernorm(x, ln_g_ref[...], ln_b_ref[...])
    o_ref[...] = jnp.dot(xn.astype(jnp.bfloat16), w_ref[...],
                         preferred_element_type=jnp.float32).astype(o_ref.dtype)


def _swin_block_kernel(*refs, num_heads, head_dim, has_mask):
    # Fully fused Swin block on a batch of WB windows in window order:
    #   out = h1 + MLP(LN2(h1)),   h1 = x + Attn(LN1(x))
    # (roll + window_partition is a token permutation, so both residuals are
    #  exact in this layout).
    if has_mask:
        (x_ref, mask_ref, ln1_g_ref, ln1_b_ref, wqkv_ref, bqkv_ref,
         wout_ref, bout_ref, relb_ref, ln2_g_ref, ln2_b_ref,
         w1_ref, b1_ref, w2_ref, b2_ref, o_ref) = refs
    else:
        (x_ref, ln1_g_ref, ln1_b_ref, wqkv_ref, bqkv_ref,
         wout_ref, bout_ref, relb_ref, ln2_g_ref, ln2_b_ref,
         w1_ref, b1_ref, w2_ref, b2_ref, o_ref) = refs
        mask_ref = None

    wb, S, C = x_ref.shape
    rows = wb * S
    scale = 1.0 / math.sqrt(head_dim)

    # ---------------- attention sublayer (pre-norm) ----------------
    xn = _layernorm(x_ref[...].astype(jnp.float32).reshape(rows, C),
                    ln1_g_ref[...], ln1_b_ref[...])
    # qkv projection: one large MXU matmul over all WB*S rows.
    # Channel order of the output is (three, head, head_dim), matching torch.
    qkv = jnp.dot(xn.astype(jnp.bfloat16), wqkv_ref[...],
                  preferred_element_type=jnp.float32) + bqkv_ref[...]   # (rows, 3C)

    relb = relb_ref[...]                                   # (num_heads, S, S) f32
    mask = mask_ref[...].astype(jnp.float32) if has_mask else None

    # Per-head attention.  The output projection is accumulated per head into a
    # full-lane-width (rows, C) value -> no narrow ctx scratch stores/readback.
    y = jnp.broadcast_to(bout_ref[...].astype(jnp.float32), (rows, C))
    for h in range(num_heads):                             # small static loop
        lo = h * head_dim
        qh = qkv[:, lo:lo + head_dim].reshape(wb, S, head_dim)
        kh = qkv[:, C + lo:C + lo + head_dim].reshape(wb, S, head_dim)
        vh = qkv[:, 2 * C + lo:2 * C + lo + head_dim].reshape(wb, S, head_dim)

        # batched over the window dim (single batch dim): (WB, S, S)
        logits = jax.lax.dot_general(
            qh.astype(jnp.bfloat16), kh.astype(jnp.bfloat16),
            dimension_numbers=(((2,), (2,)), ((0,), (0,))),
            preferred_element_type=jnp.float32) * scale
        logits = logits + relb[h][None, :, :]
        if has_mask:
            logits = logits + mask
        logits = logits - jnp.max(logits, axis=-1, keepdims=True)
        p = jnp.exp(logits)
        p = p * pl.reciprocal(jnp.sum(p, axis=-1, keepdims=True), approx=True)

        ctxh = jax.lax.dot_general(
            p.astype(jnp.bfloat16), vh.astype(jnp.bfloat16),
            dimension_numbers=(((2,), (1,)), ((0,), (0,))),
            preferred_element_type=jnp.float32)            # (WB, S, head_dim)

        # wout row slice is a static, sublane-aligned ref slice (head_dim rows).
        y = y + jnp.dot(ctxh.reshape(rows, head_dim).astype(jnp.bfloat16),
                        wout_ref[lo:lo + head_dim, :],
                        preferred_element_type=jnp.float32)

    # residual 1: re-read x from the (still-resident) input buffer instead of
    # holding an f32 copy live across both big matmuls.
    h1 = x_ref[...].astype(jnp.float32).reshape(rows, C) + y

    # ---------------- MLP sublayer (pre-norm), still in window order ----------
    h1n = _layernorm(h1, ln2_g_ref[...], ln2_b_ref[...])
    m = jnp.dot(h1n.astype(jnp.bfloat16), w1_ref[...],
                preferred_element_type=jnp.float32) + b1_ref[...]
    m = 0.5 * m * (1.0 + jax.lax.erf(m * (1.0 / math.sqrt(2.0))))   # exact GELU
    y2 = jnp.dot(m.astype(jnp.bfloat16), w2_ref[...],
                 preferred_element_type=jnp.float32) + b2_ref[...]

    o_ref[...] = (h1 + y2).reshape(wb, S, C).astype(o_ref.dtype)


# ----------------------------------------------------------------------------- tiling helpers
def _pick_row_tile(n, bytes_per_row, fixed_bytes=0,
                   budget=_TILE_BUDGET, min_rows=_MIN_ROWS_PER_STEP):
    """Largest multiple-of-8 row tile dividing n within the VMEM budget; keep a
    multi-step grid (v7x megacore) only when each step still has >= min_rows."""
    if n <= 8 or n % 8 != 0:
        return n
    cands = [t for t in range(8, n + 1, 8) if n % t == 0]
    avail = max(budget - fixed_bytes, 8 * bytes_per_row)
    fit = [t for t in cands if t * bytes_per_row <= avail] or [cands[0]]
    multi = [t for t in fit if n // t >= 2 and t >= min_rows]
    return max(multi) if multi else max(fit)


def _pick_window_batch(num_windows, seq, bytes_per_row, fixed_bytes,
                       mask_windows=None, budget=_TILE_BUDGET,
                       min_rows=_MIN_ROWS_PER_STEP):
    """Windows per grid step: divides num_windows (and the mask window count so a
    step never straddles a batch/mask boundary), fits the VMEM budget, and only
    keeps >=2 grid steps when each step still carries >= min_rows rows."""
    cands = [d for d in range(1, num_windows + 1)
             if num_windows % d == 0
             and (mask_windows is None or mask_windows % d == 0)]
    avail = max(budget - fixed_bytes, seq * bytes_per_row)
    fit = [d for d in cands if d * seq * bytes_per_row <= avail] or [cands[0]]
    multi = [d for d in fit if num_windows // d >= 2 and d * seq >= min_rows]
    return max(multi) if multi else max(fit)


def _block_bytes_per_row(C, Dh, S, has_mask):
    # activation footprint per token row (f32): in/out double-buffered, qkv,
    # LN/attn/MLP intermediates, per-head logits rows, mask rows.
    b = 4 * (2 * C + 2 * C)          # x in + out, double-buffered
    b += 4 * (3 * C)                 # qkv f32
    b += 4 * (3 * C)                 # xn / h1 / y live values
    b += 4 * Dh                      # MLP hidden f32
    b += 4 * (2 * S)                 # logits + probs (per row of the S x S block)
    if has_mask:
        b += 4 * (2 * S)             # mask block, double-buffered
    return b


def _block_fixed_bytes(C, Dh, S, num_heads):
    # grid-invariant operands (double-buffered by the auto-pipeline).
    wbytes = 2 * (C * 3 * C + C * C + C * Dh + Dh * C)       # bf16 weights
    bbytes = 4 * (3 * C + C + Dh + C + 4 * C)                # biases + LN params
    rbytes = 4 * num_heads * S * S
    return 2 * (wbytes + bbytes + rbytes)


# ----------------------------------------------------------------------------- wrappers
def patch_merge(x, p):
    B, H, W, C = x.shape
    hh, ww = H // 2, W // 2
    # 'B (hh h1) (ww h2) C -> B hh ww (h1 h2 C)'
    xm = (x.reshape(B, hh, 2, ww, 2, C)
           .transpose(0, 1, 3, 2, 4, 5)
           .reshape(B * hh * ww, 4 * C))
    n = B * hh * ww
    n_pad = -(-n // 8) * 8
    if n_pad != n:
        xm = jnp.pad(xm, ((0, n_pad - n), (0, 0)))
    bpr = 4 * (2 * 4 * C + 2 * 2 * C + 4 * C)               # in/out dbl-buffered + xn
    fixed = 2 * (2 * 4 * C * 2 * C + 4 * 8 * C)
    tr = _pick_row_tile(n_pad, bpr, fixed)
    out = pl.pallas_call(
        _merge_kernel,
        out_shape=jax.ShapeDtypeStruct((n_pad, 2 * C), ACT_DTYPE),
        grid=(n_pad // tr,),
        in_specs=[
            pl.BlockSpec((tr, 4 * C), lambda i: (i, 0)),
            pl.BlockSpec((1, 4 * C), lambda i: (0, 0)),
            pl.BlockSpec((1, 4 * C), lambda i: (0, 0)),
            pl.BlockSpec((4 * C, 2 * C), lambda i: (0, 0)),
        ],
        out_specs=pl.BlockSpec((tr, 2 * C), lambda i: (i, 0)),
        compiler_params=pltpu.CompilerParams(
            dimension_semantics=("parallel",), vmem_limit_bytes=_VMEM_LIMIT),
    )(xm, p["ln_g"], p["ln_b"], p["w"])
    if n_pad != n:
        out = out[:n]
    return out.reshape(B, hh, ww, 2 * C)


def swin_block(x, blk, num_heads, window_size):
    """One full Swin block (attention + MLP sublayers) as a single pallas_call."""
    B, H, W, C = x.shape
    ws = window_size
    shift = blk["shift_size"]
    nWh, nWw = H // ws, W // ws
    nW = nWh * nWw
    S = ws * ws
    NW = B * nW
    head_dim = C // num_heads
    Dh = blk["mlp"]["w1"].shape[1]
    has_mask = blk["mask"] is not None

    # roll + window partition (token permutation) as XLA glue; the inverse
    # permutation of block i and the permutation of block i+1 are adjacent XLA
    # ops between pallas_calls and fuse into one copy pass.
    xs = jnp.roll(x, (-shift, -shift), axis=(1, 2)) if shift > 0 else x
    xw = (xs.reshape(B, nWh, ws, nWw, ws, C)
            .transpose(0, 1, 3, 2, 4, 5)
            .reshape(NW, S, C))

    bpr = _block_bytes_per_row(C, Dh, S, has_mask)
    fixed = _block_fixed_bytes(C, Dh, S, num_heads)
    wb = _pick_window_batch(NW, S, bpr, fixed, nW if has_mask else None)

    kernel = functools.partial(_swin_block_kernel, num_heads=num_heads,
                               head_dim=head_dim, has_mask=has_mask)

    in_specs = [pl.BlockSpec((wb, S, C), lambda i: (i, 0, 0))]
    inputs = [xw]
    if has_mask:
        mask_blocks = nW // wb
        # mask passed once as (nW, S, S) — wb divides nW, so a window batch never
        # straddles a batch boundary and `i % mask_blocks` picks the right slab.
        in_specs.append(pl.BlockSpec((wb, S, S),
                                     lambda i, nb=mask_blocks: (i % nb, 0, 0)))
        inputs.append(blk["mask"])
    a, m = blk["attn"], blk["mlp"]
    in_specs += [
        pl.BlockSpec((1, C), lambda i: (0, 0)),              # ln1 g
        pl.BlockSpec((1, C), lambda i: (0, 0)),              # ln1 b
        pl.BlockSpec((C, 3 * C), lambda i: (0, 0)),          # w_qkv
        pl.BlockSpec((1, 3 * C), lambda i: (0, 0)),          # b_qkv
        pl.BlockSpec((C, C), lambda i: (0, 0)),              # w_out
        pl.BlockSpec((1, C), lambda i: (0, 0)),              # b_out
        pl.BlockSpec((num_heads, S, S), lambda i: (0, 0, 0)),  # rel bias
        pl.BlockSpec((1, C), lambda i: (0, 0)),              # ln2 g
        pl.BlockSpec((1, C), lambda i: (0, 0)),              # ln2 b
        pl.BlockSpec((C, Dh), lambda i: (0, 0)),             # w1
        pl.BlockSpec((1, Dh), lambda i: (0, 0)),             # b1
        pl.BlockSpec((Dh, C), lambda i: (0, 0)),             # w2
        pl.BlockSpec((1, C), lambda i: (0, 0)),              # b2
    ]
    inputs += [a["ln_g"], a["ln_b"], a["w_qkv"], a["b_qkv"], a["w_out"],
               a["b_out"], a["rel_bias"], m["ln_g"], m["ln_b"],
               m["w1"], m["b1"], m["w2"], m["b2"]]

    out = pl.pallas_call(
        kernel,
        out_shape=jax.ShapeDtypeStruct((NW, S, C), ACT_DTYPE),
        grid=(NW // wb,),
        in_specs=in_specs,
        out_specs=pl.BlockSpec((wb, S, C), lambda i: (i, 0, 0)),
        compiler_params=pltpu.CompilerParams(
            dimension_semantics=("parallel",), vmem_limit_bytes=_VMEM_LIMIT),
    )(*inputs)

    y = (out.reshape(B, nWh, nWw, ws, ws, C)
            .transpose(0, 1, 3, 2, 4, 5)
            .reshape(B, H, W, C))
    if shift > 0:
        y = jnp.roll(y, (shift, shift), axis=(1, 2))
    return y


def basic_layer_forward(x, params, cfg):
    if cfg["patch_merge"]:
        x = patch_merge(x, params["merge"])
    for blk in params["blocks"]:
        x = swin_block(x, blk, cfg["num_heads"], cfg["window_size"])
    return x


# ----------------------------------------------------------------------------- params
def _relative_position_index(ws):
    coords = np.stack(np.meshgrid(np.arange(ws), np.arange(ws), indexing="ij"))
    coords_flatten = coords.reshape(2, -1)
    rel = coords_flatten[:, :, None] - coords_flatten[:, None, :]
    rel = rel.transpose(1, 2, 0).copy()
    rel[:, :, 0] += ws - 1
    rel[:, :, 1] += ws - 1
    rel[:, :, 0] *= 2 * ws - 1
    return rel.sum(-1)                        # (S, S)


def _attn_mask(H, W, ws, shift):
    img = np.zeros((H, W))
    slices = (slice(0, -ws), slice(-ws, -shift), slice(-shift, None))
    cnt = 0
    for hs in slices:
        for wsl in slices:
            img[hs, wsl] = cnt
            cnt += 1
    mw = (img.reshape(H // ws, ws, W // ws, ws)
             .transpose(0, 2, 1, 3)
             .reshape(H // ws, W // ws, ws * ws))
    am = mw[:, :, :, None] - mw[:, :, None, :]
    am = np.where(am != 0, -100.0, 0.0).astype(np.float32)
    return am.reshape(-1, ws * ws, ws * ws)   # (nW, S, S)


def _linear(key, din, dout, bias=True, std=0.02):
    kw, kb = jax.random.split(key)
    # weights stored bf16 (MXU operands / halved DMA); biases kept f32.
    w = (jax.random.normal(kw, (din, dout), jnp.float32) * std).astype(jnp.bfloat16)
    b = jax.random.normal(kb, (1, dout), jnp.float32) * std if bias else None
    return w, b


def init_basic_layer(key, embed_dim, input_resolution, depth, num_heads,
                     window_size, mlp_ratio=4, patch_merge=False):
    params = {}
    if patch_merge:
        kmw, key = jax.random.split(key)
        w, _ = _linear(kmw, 4 * embed_dim, 2 * embed_dim, bias=False)
        params["merge"] = {
            "ln_g": jnp.ones((1, 4 * embed_dim), jnp.float32),
            "ln_b": jnp.zeros((1, 4 * embed_dim), jnp.float32),
            "w": w,
        }
        resolution = (input_resolution[0] // 2, input_resolution[1] // 2)
        C = embed_dim * 2
    else:
        params["merge"] = None
        resolution = input_resolution
        C = embed_dim

    # SwinTransformerBlock's window_size / shift_size adjustment
    ws = window_size
    if min(resolution) <= ws:
        ws = min(resolution)
    S = ws * ws
    rel_idx = _relative_position_index(ws)

    blocks = []
    for i in range(depth):
        shift = 0 if i % 2 == 0 else ws // 2
        if min(resolution) <= window_size:
            shift = 0
        kqkv, kout, ktab, k1, k2, key = jax.random.split(key, 6)
        w_qkv, b_qkv = _linear(kqkv, C, 3 * C)
        w_out, b_out = _linear(kout, C, C)
        table = jax.random.normal(ktab, ((2 * ws - 1) ** 2, num_heads), jnp.float32) * 0.02
        rel_bias = table[np.asarray(rel_idx).reshape(-1)].reshape(S, S, num_heads)
        rel_bias = jnp.transpose(rel_bias, (2, 0, 1))          # (num_heads, S, S)
        w1, b1 = _linear(k1, C, int(C * mlp_ratio))
        w2, b2 = _linear(k2, int(C * mlp_ratio), C)
        mask = (jnp.asarray(_attn_mask(resolution[0], resolution[1], ws, shift))
                if shift > 0 else None)
        blocks.append({
            "shift_size": shift,
            "mask": mask,
            "attn": {
                "ln_g": jnp.ones((1, C), jnp.float32),
                "ln_b": jnp.zeros((1, C), jnp.float32),
                "w_qkv": w_qkv, "b_qkv": b_qkv,
                "w_out": w_out, "b_out": b_out,
                "rel_bias": rel_bias,
            },
            "mlp": {
                "ln_g": jnp.ones((1, C), jnp.float32),
                "ln_b": jnp.zeros((1, C), jnp.float32),
                "w1": w1, "b1": b1, "w2": w2, "b2": b2,
            },
        })
    params["blocks"] = blocks
    cfg = {
        "patch_merge": patch_merge,
        "num_heads": num_heads,
        "window_size": ws,
        "resolution": resolution,
    }
    return params, cfg


# ----------------------------------------------------------------------------- main
if __name__ == "__main__":
    # TODO(synk): dropout (rate 0.0 here) is treated as identity (inference semantics).
    embed_dim = 16
    input_resolution = (16, 16)
    depth = 2
    num_heads = 4
    window_size = 4
    B = 2

    key = jax.random.PRNGKey(0)
    kx, kp = jax.random.split(key)
    x = jax.random.normal(kx, (B, input_resolution[0], input_resolution[1], embed_dim),
                          jnp.float32)
    params, cfg = init_basic_layer(kp, embed_dim, input_resolution, depth, num_heads,
                                   window_size, mlp_ratio=4, patch_merge=True)

    # jit over x with params/cfg closed over (keeps shift_size / mask as Python
    # constants and lets XLA fuse the roll / window-partition glue passes).
    fwd = jax.jit(lambda inp: basic_layer_forward(inp, params, cfg))
    y = fwd(x)
    jax.block_until_ready(y)
    assert y.shape == (B, input_resolution[0] // 2, input_resolution[1] // 2, 2 * embed_dim)
    print("KERNEL_OK")
</pallas_src>

<mosaic_0001>
module attributes {stable_mosaic.version = 11 : i64} {
  func.func @_merge_kernel(%arg0: i32, %arg1: memref<128x64xf32, #tpu.memory_space<vmem>>, %arg2: memref<1x64xf32, #tpu.memory_space<vmem>>, %arg3: memref<1x64xf32, #tpu.memory_space<vmem>>, %arg4: memref<64x32xbf16, #tpu.memory_space<vmem>>, %arg5: memref<128x32xf32, #tpu.memory_space<vmem>>) attributes {dimension_semantics = [#tpu.dimension_semantics<parallel>], iteration_bounds = array<i64: 1>, scalar_prefetch = 0 : i64, scratch_operands = 0 : i64, tpu.core_type = #tpu.core_type<tc>, window_params = [{transform_indices = @transform_0, window_bounds = array<i64: 128, 64>}, {pipeline_mode = #tpu.pipeline_mode<synchronous>, transform_indices = @transform_1, window_bounds = array<i64: 1, 64>}, {pipeline_mode = #tpu.pipeline_mode<synchronous>, transform_indices = @transform_2, window_bounds = array<i64: 1, 64>}, {pipeline_mode = #tpu.pipeline_mode<synchronous>, transform_indices = @transform_3, window_bounds = array<i64: 64, 32>}, {transform_indices = @transform_4, window_bounds = array<i64: 128, 32>}]} {
    %c0 = arith.constant 0 : index
    %c0_0 = arith.constant 0 : index
    %0 = vector.load %arg1[%c0, %c0_0] : memref<128x64xf32, #tpu.memory_space<vmem>>, vector<128x64xf32>
    %c0_1 = arith.constant 0 : index
    %c0_2 = arith.constant 0 : index
    %1 = vector.load %arg2[%c0_1, %c0_2] : memref<1x64xf32, #tpu.memory_space<vmem>>, vector<1x64xf32>
    %c0_3 = arith.constant 0 : index
    %c0_4 = arith.constant 0 : index
    %2 = vector.load %arg3[%c0_3, %c0_4] : memref<1x64xf32, #tpu.memory_space<vmem>>, vector<1x64xf32>
    %cst = arith.constant dense<0.000000e+00> : vector<128xf32>
    %3 = vector.multi_reduction <add>, %0, %cst [1] : vector<128x64xf32> to vector<128xf32>
    %4 = vector.shape_cast %3 : vector<128xf32> to vector<128x1xf32>
    %cst_5 = arith.constant 6.400000e+01 : f32
    %5 = vector.broadcast %cst_5 : f32 to vector<128x1xf32>
    %6 = arith.divf %4, %5 : vector<128x1xf32>
    %7 = vector.broadcast %6 : vector<128x1xf32> to vector<128x64xf32>
    %8 = arith.subf %0, %7 : vector<128x64xf32>
    %9 = arith.mulf %8, %8 : vector<128x64xf32>
    %cst_6 = arith.constant dense<0.000000e+00> : vector<128xf32>
    %10 = vector.multi_reduction <add>, %9, %cst_6 [1] : vector<128x64xf32> to vector<128xf32>
    %11 = vector.shape_cast %10 : vector<128xf32> to vector<128x1xf32>
    %cst_7 = arith.constant 6.400000e+01 : f32
    %12 = vector.broadcast %cst_7 : f32 to vector<128x1xf32>
    %13 = arith.divf %11, %12 : vector<128x1xf32>
    %14 = vector.broadcast %6 : vector<128x1xf32> to vector<128x64xf32>
    %15 = arith.subf %0, %14 : vector<128x64xf32>
    %cst_8 = arith.constant 9.99999974E-6 : f32
    %16 = vector.broadcast %cst_8 : f32 to vector<128x1xf32>
    %17 = arith.addf %13, %16 : vector<128x1xf32>
    %18 = math.rsqrt %17 : vector<128x1xf32>
    %19 = vector.broadcast %18 : vector<128x1xf32> to vector<128x64xf32>
    %20 = arith.mulf %15, %19 : vector<128x64xf32>
    %21 = vector.broadcast %1 : vector<1x64xf32> to vector<128x64xf32>
    %22 = arith.mulf %20, %21 : vector<128x64xf32>
    %23 = vector.broadcast %2 : vector<1x64xf32> to vector<128x64xf32>
    %24 = arith.addf %22, %23 : vector<128x64xf32>
    %25 = arith.truncf %24 : vector<128x64xf32> to vector<128x64xbf16>
    %c0_9 = arith.constant 0 : index
    %c0_10 = arith.constant 0 : index
    %26 = vector.load %arg4[%c0_9, %c0_10] : memref<64x32xbf16, #tpu.memory_space<vmem>>, vector<64x32xbf16>
    %cst_11 = arith.constant dense<0.000000e+00> : vector<128x32xf32>
    %27 = tpu.matmul %25, %26, %cst_11 {dimension_numbers = #tpu.dot_dimension_numbers<[1], [0], [0], [1], [0, 0, 1, 1], [], []>} : vector<128x64xbf16>, vector<64x32xbf16>, vector<128x32xf32> -> vector<128x32xf32>
    %c0_12 = arith.constant 0 : index
    %c0_13 = arith.constant 0 : index
    %28 = vector.load %arg5[%c0_12, %c0_13] : memref<128x32xf32, #tpu.memory_space<vmem>>, vector<128x32xf32>
    tpu.vector_store %arg5[%c0_12, %c0_13], %27 {strides = array<i32>} : memref<128x32xf32, #tpu.memory_space<vmem>>, vector<128x32xf32>,
    return
  }
  func.func @transform_0(%arg0: i32) -> (i32, i32) {
    %c0_i32 = arith.constant 0 : i32
    %c0_i32_0 = arith.constant 0 : i32
    return %arg0, %c0_i32 : i32, i32
  }
  func.func @transform_1(%arg0: i32) -> (i32, i32) {
    %c0_i32 = arith.constant 0 : i32
    %c0_i32_0 = arith.constant 0 : i32
    %c0_i32_1 = arith.constant 0 : i32
    return %c0_i32, %c0_i32_0 : i32, i32
  }
  func.func @transform_2(%arg0: i32) -> (i32, i32) {
    %c0_i32 = arith.constant 0 : i32
    %c0_i32_0 = arith.constant 0 : i32
    %c0_i32_1 = arith.constant 0 : i32
    return %c0_i32, %c0_i32_0 : i32, i32
  }
  func.func @transform_3(%arg0: i32) -> (i32, i32) {
    %c0_i32 = arith.constant 0 : i32
    %c0_i32_0 = arith.constant 0 : i32
    %c0_i32_1 = arith.constant 0 : i32
    return %c0_i32, %c0_i32_0 : i32, i32
  }
  func.func @transform_4(%arg0: i32) -> (i32, i32) {
    %c0_i32 = arith.constant 0 : i32
    %c0_i32_0 = arith.constant 0 : i32
    return %arg0, %c0_i32 : i32, i32
  }
}

module attributes {stable_mosaic.version = 11 : i64} {
  func.func @_swin_block_kernel(%arg0: i32, %arg1: memref<8x16x32xf32, #tpu.memory_space<vmem>>, %arg2: memref<1x32xf32, #tpu.memory_space<vmem>>, %arg3: memref<1x32xf32, #tpu.memory_space<vmem>>, %arg4: memref<32x96xbf16, #tpu.memory_space<vmem>>, %arg5: memref<1x96xf32, #tpu.memory_space<vmem>>, %arg6: memref<32x32xbf16, #tpu.memory_space<vmem>>, %arg7: memref<1x32xf32, #tpu.memory_space<vmem>>, %arg8: memref<4x16x16xf32, #tpu.memory_space<vmem>>, %arg9: memref<1x32xf32, #tpu.memory_space<vmem>>, %arg10: memref<1x32xf32, #tpu.memory_space<vmem>>, %arg11: memref<32x128xbf16, #tpu.memory_space<vmem>>, %arg12: memref<1x128xf32, #tpu.memory_space<vmem>>, %arg13: memref<128x32xbf16, #tpu.memory_space<vmem>>, %arg14: memref<1x32xf32, #tpu.memory_space<vmem>>, %arg15: memref<8x16x32xf32, #tpu.memory_space<vmem>>) attributes {dimension_semantics = [#tpu.dimension_semantics<parallel>], iteration_bounds = array<i64: 1>, scalar_prefetch = 0 : i64, scratch_operands = 0 : i64, tpu.core_type = #tpu.core_type<tc>, window_params = [{transform_indices = @transform_0, window_bounds = array<i64: 8, 16, 32>}, {pipeline_mode = #tpu.pipeline_mode<synchronous>, transform_indices = @transform_1, window_bounds = array<i64: 1, 32>}, {pipeline_mode = #tpu.pipeline_mode<synchronous>, transform_indices = @transform_2, window_bounds = array<i64: 1, 32>}, {pipeline_mode = #tpu.pipeline_mode<synchronous>, transform_indices = @transform_3, window_bounds = array<i64: 32, 96>}, {pipeline_mode = #tpu.pipeline_mode<synchronous>, transform_indices = @transform_4, window_bounds = array<i64: 1, 96>}, {pipeline_mode = #tpu.pipeline_mode<synchronous>, transform_indices = @transform_5, window_bounds = array<i64: 32, 32>}, {pipeline_mode = #tpu.pipeline_mode<synchronous>, transform_indices = @transform_6, window_bounds = array<i64: 1, 32>}, {pipeline_mode = #tpu.pipeline_mode<synchronous>, transform_indices = @transform_7, window_bounds = array<i64: 4, 16, 16>}, {pipeline_mode = #tpu.pipeline_mode<synchronous>, transform_indices = @transform_8, window_bounds = array<i64: 1, 32>}, {pipeline_mode = #tpu.pipeline_mode<synchronous>, transform_indices = @transform_9, window_bounds = array<i64: 1, 32>}, {pipeline_mode = #tpu.pipeline_mode<synchronous>, transform_indices = @transform_10, window_bounds = array<i64: 32, 128>}, {pipeline_mode = #tpu.pipeline_mode<synchronous>, transform_indices = @transform_11, window_bounds = array<i64: 1, 128>}, {pipeline_mode = #tpu.pipeline_mode<synchronous>, transform_indices = @transform_12, window_bounds = array<i64: 128, 32>}, {pipeline_mode = #tpu.pipeline_mode<synchronous>, transform_indices = @transform_13, window_bounds = array<i64: 1, 32>}, {transform_indices = @transform_14, window_bounds = array<i64: 8, 16, 32>}]} {
    %c0 = arith.constant 0 : index
    %c0_0 = arith.constant 0 : index
    %c0_1 = arith.constant 0 : index
    %0 = vector.load %arg1[%c0, %c0_0, %c0_1] : memref<8x16x32xf32, #tpu.memory_space<vmem>>, vector<8x16x32xf32>
    %1 = vector.shape_cast %0 : vector<8x16x32xf32> to vector<128x32xf32>
    %c0_2 = arith.constant 0 : index
    %c0_3 = arith.constant 0 : index
    %2 = vector.load %arg2[%c0_2, %c0_3] : memref<1x32xf32, #tpu.memory_space<vmem>>, vector<1x32xf32>
    %c0_4 = arith.constant 0 : index
    %c0_5 = arith.constant 0 : index
    %3 = vector.load %arg3[%c0_4, %c0_5] : memref<1x32xf32, #tpu.memory_space<vmem>>, vector<1x32xf32>
    %cst = arith.constant dense<0.000000e+00> : vector<128xf32>
    %4 = vector.multi_reduction <add>, %1, %cst [1] : vector<128x32xf32> to vector<128xf32>
    %5 = vector.shape_cast %4 : vector<128xf32> to vector<128x1xf32>
    %cst_6 = arith.constant 3.200000e+01 : f32
    %6 = vector.broadcast %cst_6 : f32 to vector<128x1xf32>
    %7 = arith.divf %5, %6 : vector<128x1xf32>
    %8 = vector.broadcast %7 : vector<128x1xf32> to vector<128x32xf32>
    %9 = arith.subf %1, %8 : vector<128x32xf32>
    %10 = arith.mulf %9, %9 : vector<128x32xf32>
    %cst_7 = arith.constant dense<0.000000e+00> : vector<128xf32>
    %11 = vector.multi_reduction <add>, %10, %cst_7 [1] : vector<128x32xf32> to vector<128xf32>
    %12 = vector.shape_cast %11 : vector<128xf32> to vector<128x1xf32>
    %cst_8 = arith.constant 3.200000e+01 : f32
    %13 = vector.broadcast %cst_8 : f32 to vector<128x1xf32>
    %14 = arith.divf %12, %13 : vector<128x1xf32>
    %15 = vector.broadcast %7 : vector<128x1xf32> to vector<128x32xf32>
    %16 = arith.subf %1, %15 : vector<128x32xf32>
    %cst_9 = arith.constant 9.99999974E-6 : f32
    %17 = vector.broadcast %cst_9 : f32 to vector<128x1xf32>
    %18 = arith.addf %14, %17 : vector<128x1xf32>
    %19 = math.rsqrt %18 : vector<128x1xf32>
    %20 = vector.broadcast %19 : vector<128x1xf32> to vector<128x32xf32>
    %21 = arith.mulf %16, %20 : vector<128x32xf32>
    %22 = vector.broadcast %2 : vector<1x32xf32> to vector<128x32xf32>
    %23 = arith.mulf %21, %22 : vector<128x32xf32>
    %24 = vector.broadcast %3 : vector<1x32xf32> to vector<128x32xf32>
    %25 = arith.addf %23, %24 : vector<128x32xf32>
    %26 = arith.truncf %25 : vector<128x32xf32> to vector<128x32xbf16>
    %c0_10 = arith.constant 0 : index
    %c0_11 = arith.constant 0 : index
    %27 = vector.load %arg4[%c0_10, %c0_11] : memref<32x96xbf16, #tpu.memory_space<vmem>>, vector<32x96xbf16>
    %cst_12 = arith.constant dense<0.000000e+00> : vector<128x96xf32>
    %28 = tpu.matmul %26, %27, %cst_12 {dimension_numbers = #tpu.dot_dimension_numbers<[1], [0], [0], [1], [0, 0, 1, 1], [], []>} : vector<128x32xbf16>, vector<32x96xbf16>, vector<128x96xf32> -> vector<128x96xf32>
    %c0_13 = arith.constant 0 : index
    %c0_14 = arith.constant 0 : index
    %29 = vector.load %arg5[%c0_13, %c0_14] : memref<1x96xf32, #tpu.memory_space<vmem>>, vector<1x96xf32>
    %30 = vector.broadcast %29 : vector<1x96xf32> to vector<128x96xf32>
    %31 = arith.addf %28, %30 : vector<128x96xf32>
    %c0_15 = arith.constant 0 : index
    %c0_16 = arith.constant 0 : index
    %c0_17 = arith.constant 0 : index
    %32 = vector.load %arg8[%c0_15, %c0_16, %c0_17] : memref<4x16x16xf32, #tpu.memory_space<vmem>>, vector<4x16x16xf32>
    %c0_18 = arith.constant 0 : index
    %c0_19 = arith.constant 0 : index
    %33 = vector.load %arg7[%c0_18, %c0_19] : memref<1x32xf32, #tpu.memory_space<vmem>>, vector<1x32xf32>
    %34 = vector.shape_cast %33 : vector<1x32xf32> to vector<1x32xf32>
    %35 = vector.broadcast %34 : vector<1x32xf32> to vector<128x32xf32>
    %36 = vector.extract_strided_slice %31 {offsets = [0, 0], sizes = [128, 8], strides = [1, 1]} : vector<128x96xf32> to vector<128x8xf32>
    %37 = vector.shape_cast %36 : vector<128x8xf32> to vector<8x16x8xf32>
    %38 = vector.extract_strided_slice %31 {offsets = [0, 32], sizes = [128, 8], strides = [1, 1]} : vector<128x96xf32> to vector<128x8xf32>
    %39 = vector.shape_cast %38 : vector<128x8xf32> to vector<8x16x8xf32>
    %40 = vector.extract_strided_slice %31 {offsets = [0, 64], sizes = [128, 8], strides = [1, 1]} : vector<128x96xf32> to vector<128x8xf32>
    %41 = vector.shape_cast %40 : vector<128x8xf32> to vector<8x16x8xf32>
    %42 = arith.truncf %37 : vector<8x16x8xf32> to vector<8x16x8xbf16>
    %43 = arith.truncf %39 : vector<8x16x8xf32> to vector<8x16x8xbf16>
    %cst_20 = arith.constant dense<0.000000e+00> : vector<8x16x16xf32>
    %44 = tpu.matmul %42, %43, %cst_20 {dimension_numbers = #tpu.dot_dimension_numbers<[2], [2], [1], [1], [0, 0, 0, 1, 1, 1], [0], [0]>} : vector<8x16x8xbf16>, vector<8x16x8xbf16>, vector<8x16x16xf32> -> vector<8x16x16xf32>
    %cst_21 = arith.constant 0.353553385 : f32
    %45 = vector.broadcast %cst_21 : f32 to vector<8x16x16xf32>
    %46 = arith.mulf %44, %45 : vector<8x16x16xf32>
    %47 = vector.extract_strided_slice %32 {offsets = [0, 0, 0], sizes = [1, 16, 16], strides = [1, 1, 1]} : vector<4x16x16xf32> to vector<1x16x16xf32>
    %48 = vector.shape_cast %47 : vector<1x16x16xf32> to vector<16x16xf32>
    %49 = vector.shape_cast %48 : vector<16x16xf32> to vector<1x16x16xf32>
    %50 = vector.broadcast %49 : vector<1x16x16xf32> to vector<8x16x16xf32>
    %51 = arith.addf %46, %50 : vector<8x16x16xf32>
    %cst_22 = arith.constant dense<0xFF800000> : vector<8x16xf32>
    %52 = vector.multi_reduction <maximumf>, %51, %cst_22 [2] : vector<8x16x16xf32> to vector<8x16xf32>
    %53 = vector.shape_cast %52 : vector<8x16xf32> to vector<8x16x1xf32>
    %54 = vector.broadcast %53 : vector<8x16x1xf32> to vector<8x16x16xf32>
    %55 = arith.subf %51, %54 : vector<8x16x16xf32>
    %56 = math.exp %55 : vector<8x16x16xf32>
    %cst_23 = arith.constant dense<0.000000e+00> : vector<8x16xf32>
    %57 = vector.multi_reduction <add>, %56, %cst_23 [2] : vector<8x16x16xf32> to vector<8x16xf32>
    %58 = vector.shape_cast %57 : vector<8x16xf32> to vector<8x16x1xf32>
    %59 = tpu.reciprocal %58 {approx = true} : vector<8x16x1xf32> -> vector<8x16x1xf32>
    %60 = vector.broadcast %59 : vector<8x16x1xf32> to vector<8x16x16xf32>
    %61 = arith.mulf %56, %60 : vector<8x16x16xf32>
    %62 = arith.truncf %61 : vector<8x16x16xf32> to vector<8x16x16xbf16>
    %63 = arith.truncf %41 : vector<8x16x8xf32> to vector<8x16x8xbf16>
    %cst_24 = arith.constant dense<0.000000e+00> : vector<8x16x8xf32>
    %64 = tpu.matmul %62, %63, %cst_24 {dimension_numbers = #tpu.dot_dimension_numbers<[2], [1], [1], [2], [0, 0, 0, 1, 1, 2], [0], [0]>} : vector<8x16x16xbf16>, vector<8x16x8xbf16>, vector<8x16x8xf32> -> vector<8x16x8xf32>
    %65 = vector.shape_cast %64 : vector<8x16x8xf32> to vector<128x8xf32>
    %66 = arith.truncf %65 : vector<128x8xf32> to vector<128x8xbf16>
    %c0_25 = arith.constant 0 : index
    %c0_26 = arith.constant 0 : index
    %67 = vector.load %arg6[%c0_25, %c0_26] : memref<32x32xbf16, #tpu.memory_space<vmem>>, vector<8x32xbf16>
    %cst_27 = arith.constant dense<0.000000e+00> : vector<128x32xf32>
    %68 = tpu.matmul %66, %67, %cst_27 {dimension_numbers = #tpu.dot_dimension_numbers<[1], [0], [0], [1], [0, 0, 1, 1], [], []>} : vector<128x8xbf16>, vector<8x32xbf16>, vector<128x32xf32> -> vector<128x32xf32>
    %69 = arith.addf %35, %68 : vector<128x32xf32>
    %70 = vector.extract_strided_slice %31 {offsets = [0, 8], sizes = [128, 8], strides = [1, 1]} : vector<128x96xf32> to vector<128x8xf32>
    %71 = vector.shape_cast %70 : vector<128x8xf32> to vector<8x16x8xf32>
    %72 = vector.extract_strided_slice %31 {offsets = [0, 40], sizes = [128, 8], strides = [1, 1]} : vector<128x96xf32> to vector<128x8xf32>
    %73 = vector.shape_cast %72 : vector<128x8xf32> to vector<8x16x8xf32>
    %74 = vector.extract_strided_slice %31 {offsets = [0, 72], sizes = [128, 8], strides = [1, 1]} : vector<128x96xf32> to vector<128x8xf32>
    %75 = vector.shape_cast %74 : vector<128x8xf32> to vector<8x16x8xf32>
    %76 = arith.truncf %71 : vector<8x16x8xf32> to vector<8x16x8xbf16>
    %77 = arith.truncf %73 : vector<8x16x8xf32> to vector<8x16x8xbf16>
    %cst_28 = arith.constant dense<0.000000e+00> : vector<8x16x16xf32>
    %78 = tpu.matmul %76, %77, %cst_28 {dimension_numbers = #tpu.dot_dimension_numbers<[2], [2], [1], [1], [0, 0, 0, 1, 1, 1], [0], [0]>} : vector<8x16x8xbf16>, vector<8x16x8xbf16>, vector<8x16x16xf32> -> vector<8x16x16xf32>
    %cst_29 = arith.constant 0.353553385 : f32
    %79 = vector.broadcast %cst_29 : f32 to vector<8x16x16xf32>
    %80 = arith.mulf %78, %79 : vector<8x16x16xf32>
    %81 = vector.extract_strided_slice %32 {offsets = [1, 0, 0], sizes = [1, 16, 16], strides = [1, 1, 1]} : vector<4x16x16xf32> to vector<1x16x16xf32>
    %82 = vector.shape_cast %81 : vector<1x16x16xf32> to vector<16x16xf32>
    %83 = vector.shape_cast %82 : vector<16x16xf32> to vector<1x16x16xf32>
    %84 = vector.broadcast %83 : vector<1x16x16xf32> to vector<8x16x16xf32>
    %85 = arith.addf %80, %84 : vector<8x16x16xf32>
    %cst_30 = arith.constant dense<0xFF800000> : vector<8x16xf32>
    %86 = vector.multi_reduction <maximumf>, %85, %cst_30 [2] : vector<8x16x16xf32> to vector<8x16xf32>
    %87 = vector.shape_cast %86 : vector<8x16xf32> to vector<8x16x1xf32>
    %88 = vector.broadcast %87 : vector<8x16x1xf32> to vector<8x16x16xf32>
    %89 = arith.subf %85, %88 : vector<8x16x16xf32>
    %90 = math.exp %89 : vector<8x16x16xf32>
    %cst_31 = arith.constant dense<0.000000e+00> : vector<8x16xf32>
    %91 = vector.multi_reduction <add>, %90, %cst_31 [2] : vector<8x16x16xf32> to vector<8x16xf32>
    %92 = vector.shape_cast %91 : vector<8x16xf32> to vector<8x16x1xf32>
    %93 = tpu.reciprocal %92 {approx = true} : vector<8x16x1xf32> -> vector<8x16x1xf32>
    %94 = vector.broadcast %93 : vector<8x16x1xf32> to vector<8x16x16xf32>
    %95 = arith.mulf %90, %94 : vector<8x16x16xf32>
    %96 = arith.truncf %95 : vector<8x16x16xf32> to vector<8x16x16xbf16>
    %97 = arith.truncf %75 : vector<8x16x8xf32> to vector<8x16x8xbf16>
    %cst_32 = arith.constant dense<0.000000e+00> : vector<8x16x8xf32>
    %98 = tpu.matmul %96, %97, %cst_32 {dimension_numbers = #tpu.dot_dimension_numbers<[2], [1], [1], [2], [0, 0, 0, 1, 1, 2], [0], [0]>} : vector<8x16x16xbf16>, vector<8x16x8xbf16>, vector<8x16x8xf32> -> vector<8x16x8xf32>
    %99 = vector.shape_cast %98 : vector<8x16x8xf32> to vector<128x8xf32>
    %100 = arith.truncf %99 : vector<128x8xf32> to vector<128x8xbf16>
    %c8 = arith.constant 8 : index
    %c0_33 = arith.constant 0 : index
    %101 = vector.load %arg6[%c8, %c0_33] : memref<32x32xbf16, #tpu.memory_space<vmem>>, vector<8x32xbf16>
    %cst_34 = arith.constant dense<0.000000e+00> : vector<128x32xf32>
    %102 = tpu.matmul %100, %101, %cst_34 {dimension_numbers = #tpu.dot_dimension_numbers<[1], [0], [0], [1], [0, 0, 1, 1], [], []>} : vector<128x8xbf16>, vector<8x32xbf16>, vector<128x32xf32> -> vector<128x32xf32>
    %103 = arith.addf %69, %102 : vector<128x32xf32>
    %104 = vector.extract_strided_slice %31 {offsets = [0, 16], sizes = [128, 8], strides = [1, 1]} : vector<128x96xf32> to vector<128x8xf32>
    %105 = vector.shape_cast %104 : vector<128x8xf32> to vector<8x16x8xf32>
    %106 = vector.extract_strided_slice %31 {offsets = [0, 48], sizes = [128, 8], strides = [1, 1]} : vector<128x96xf32> to vector<128x8xf32>
    %107 = vector.shape_cast %106 : vector<128x8xf32> to vector<8x16x8xf32>
    %108 = vector.extract_strided_slice %31 {offsets = [0, 80], sizes = [128, 8], strides = [1, 1]} : vector<128x96xf32> to vector<128x8xf32>
    %109 = vector.shape_cast %108 : vector<128x8xf32> to vector<8x16x8xf32>
    %110 = arith.truncf %105 : vector<8x16x8xf32> to vector<8x16x8xbf16>
    %111 = arith.truncf %107 : vector<8x16x8xf32> to vector<8x16x8xbf16>
    %cst_35 = arith.constant dense<0.000000e+00> : vector<8x16x16xf32>
    %112 = tpu.matmul %110, %111, %cst_35 {dimension_numbers = #tpu.dot_dimension_numbers<[2], [2], [1], [1], [0, 0, 0, 1, 1, 1], [0], [0]>} : vector<8x16x8xbf16>, vector<8x16x8xbf16>, vector<8x16x16xf32> -> vector<8x16x16xf32>
    %cst_36 = arith.constant 0.353553385 : f32
    %113 = vector.broadcast %cst_36 : f32 to vector<8x16x16xf32>
    %114 = arith.mulf %112, %113 : vector<8x16x16xf32>
    %115 = vector.extract_strided_slice %32 {offsets = [2, 0, 0], sizes = [1, 16, 16], strides = [1, 1, 1]} : vector<4x16x16xf32> to vector<1x16x16xf32>
    %116 = vector.shape_cast %115 : vector<1x16x16xf32> to vector<16x16xf32>
    %117 = vector.shape_cast %116 : vector<16x16xf32> to vector<1x16x16xf32>
    %118 = vector.broadcast %117 : vector<1x16x16xf32> to vector<8x16x16xf32>
    %119 = arith.addf %114, %118 : vector<8x16x16xf32>
    %cst_37 = arith.constant dense<0xFF800000> : vector<8x16xf32>
    %120 = vector.multi_reduction <maximumf>, %119, %cst_37 [2] : vector<8x16x16xf32> to vector<8x16xf32>
    %121 = vector.shape_cast %120 : vector<8x16xf32> to vector<8x16x1xf32>
    %122 = vector.broadcast %121 : vector<8x16x1xf32> to vector<8x16x16xf32>
    %123 = arith.subf %119, %122 : vector<8x16x16xf32>
    %124 = math.exp %123 : vector<8x16x16xf32>
    %cst_38 = arith.constant dense<0.000000e+00> : vector<8x16xf32>
    %125 = vector.multi_reduction <add>, %124, %cst_38 [2] : vector<8x16x16xf32> to vector<8x16xf32>
    %126 = vector.shape_cast %125 : vector<8x16xf32> to vector<8x16x1xf32>
    %127 = tpu.reciprocal %126 {approx = true} : vector<8x16x1xf32> -> vector<8x16x1xf32>
    %128 = vector.broadcast %127 : vector<8x16x1xf32> to vector<8x16x16xf32>
    %129 = arith.mulf %124, %128 : vector<8x16x16xf32>
    %130 = arith.truncf %129 : vector<8x16x16xf32> to vector<8x16x16xbf16>
    %131 = arith.truncf %109 : vector<8x16x8xf32> to vector<8x16x8xbf16>
    %cst_39 = arith.constant dense<0.000000e+00> : vector<8x16x8xf32>
    %132 = tpu.matmul %130, %131, %cst_39 {dimension_numbers = #tpu.dot_dimension_numbers<[2], [1], [1], [2], [0, 0, 0, 1, 1, 2], [0], [0]>} : vector<8x16x16xbf16>, vector<8x16x8xbf16>, vector<8x16x8xf32> -> vector<8x16x8xf32>
    %133 = vector.shape_cast %132 : vector<8x16x8xf32> to vector<128x8xf32>
    %134 = arith.truncf %133 : vector<128x8xf32> to vector<128x8xbf16>
    %c16 = arith.constant 16 : index
    %c0_40 = arith.constant 0 : index
    %135 = vector.load %arg6[%c16, %c0_40] : memref<32x32xbf16, #tpu.memory_space<vmem>>, vector<8x32xbf16>
    %cst_41 = arith.constant dense<0.000000e+00> : vector<128x32xf32>
    %136 = tpu.matmul %134, %135, %cst_41 {dimension_numbers = #tpu.dot_dimension_numbers<[1], [0], [0], [1], [0, 0, 1, 1], [], []>} : vector<128x8xbf16>, vector<8x32xbf16>, vector<128x32xf32> -> vector<128x32xf32>
    %137 = arith.addf %103, %136 : vector<128x32xf32>
    %138 = vector.extract_strided_slice %31 {offsets = [0, 24], sizes = [128, 8], strides = [1, 1]} : vector<128x96xf32> to vector<128x8xf32>
    %139 = vector.shape_cast %138 : vector<128x8xf32> to vector<8x16x8xf32>
    %140 = vector.extract_strided_slice %31 {offsets = [0, 56], sizes = [128, 8], strides = [1, 1]} : vector<128x96xf32> to vector<128x8xf32>
    %141 = vector.shape_cast %140 : vector<128x8xf32> to vector<8x16x8xf32>
    %142 = vector.extract_strided_slice %31 {offsets = [0, 88], sizes = [128, 8], strides = [1, 1]} : vector<128x96xf32> to vector<128x8xf32>
    %143 = vector.shape_cast %142 : vector<128x8xf32> to vector<8x16x8xf32>
    %144 = arith.truncf %139 : vector<8x16x8xf32> to vector<8x16x8xbf16>
    %145 = arith.truncf %141 : vector<8x16x8xf32> to vector<8x16x8xbf16>
    %cst_42 = arith.constant dense<0.000000e+00> : vector<8x16x16xf32>
    %146 = tpu.matmul %144, %145, %cst_42 {dimension_numbers = #tpu.dot_dimension_numbers<[2], [2], [1], [1], [0, 0, 0, 1, 1, 1], [0], [0]>} : vector<8x16x8xbf16>, vector<8x16x8xbf16>, vector<8x16x16xf32> -> vector<8x16x16xf32>
    %cst_43 = arith.constant 0.353553385 : f32
    %147 = vector.broadcast %cst_43 : f32 to vector<8x16x16xf32>
    %148 = arith.mulf %146, %147 : vector<8x16x16xf32>
    %149 = vector.extract_strided_slice %32 {offsets = [3, 0, 0], sizes = [1, 16, 16], strides = [1, 1, 1]} : vector<4x16x16xf32> to vector<1x16x16xf32>
    %150 = vector.shape_cast %149 : vector<1x16x16xf32> to vector<16x16xf32>
    %151 = vector.shape_cast %150 : vector<16x16xf32> to vector<1x16x16xf32>
    %152 = vector.broadcast %151 : vector<1x16x16xf32> to vector<8x16x16xf32>
    %153 = arith.addf %148, %152 : vector<8x16x16xf32>
    %cst_44 = arith.constant dense<0xFF800000> : vector<8x16xf32>
    %154 = vector.multi_reduction <maximumf>, %153, %cst_44 [2] : vector<8x16x16xf32> to vector<8x16xf32>
    %155 = vector.shape_cast %154 : vector<8x16xf32> to vector<8x16x1xf32>
    %156 = vector.broadcast %155 : vector<8x16x1xf32> to vector<8x16x16xf32>
    %157 = arith.subf %153, %156 : vector<8x16x16xf32>
    %158 = math.exp %157 : vector<8x16x16xf32>
    %cst_45 = arith.constant dense<0.000000e+00> : vector<8x16xf32>
    %159 = vector.multi_reduction <add>, %158, %cst_45 [2] : vector<8x16x16xf32> to vector<8x16xf32>
    %160 = vector.shape_cast %159 : vector<8x16xf32> to vector<8x16x1xf32>
    %161 = tpu.reciprocal %160 {approx = true} : vector<8x16x1xf32> -> vector<8x16x1xf32>
    %162 = vector.broadcast %161 : vector<8x16x1xf32> to vector<8x16x16xf32>
    %163 = arith.mulf %158, %162 : vector<8x16x16xf32>
    %164 = arith.truncf %163 : vector<8x16x16xf32> to vector<8x16x16xbf16>
    %165 = arith.truncf %143 : vector<8x16x8xf32> to vector<8x16x8xbf16>
    %cst_46 = arith.constant dense<0.000000e+00> : vector<8x16x8xf32>
    %166 = tpu.matmul %164, %165, %cst_46 {dimension_numbers = #tpu.dot_dimension_numbers<[2], [1], [1], [2], [0, 0, 0, 1, 1, 2], [0], [0]>} : vector<8x16x16xbf16>, vector<8x16x8xbf16>, vector<8x16x8xf32> -> vector<8x16x8xf32>
    %167 = vector.shape_cast %166 : vector<8x16x8xf32> to vector<128x8xf32>
    %168 = arith.truncf %167 : vector<128x8xf32> to vector<128x8xbf16>
    %c24 = arith.constant 24 : index
    %c0_47 = arith.constant 0 : index
    %169 = vector.load %arg6[%c24, %c0_47] : memref<32x32xbf16, #tpu.memory_space<vmem>>, vector<8x32xbf16>
    %cst_48 = arith.constant dense<0.000000e+00> : vector<128x32xf32>
    %170 = tpu.matmul %168, %169, %cst_48 {dimension_numbers = #tpu.dot_dimension_numbers<[1], [0], [0], [1], [0, 0, 1, 1], [], []>} : vector<128x8xbf16>, vector<8x32xbf16>, vector<128x32xf32> -> vector<128x32xf32>
    %171 = arith.addf %137, %170 : vector<128x32xf32>
    %c0_49 = arith.constant 0 : index
    %c0_50 = arith.constant 0 : index
    %c0_51 = arith.constant 0 : index
    %172 = vector.load %arg1[%c0_49, %c0_50, %c0_51] : memref<8x16x32xf32, #tpu.memory_space<vmem>>, vector<8x16x32xf32>
    %173 = vector.shape_cast %172 : vector<8x16x32xf32> to vector<128x32xf32>
    %174 = arith.addf %173, %171 : vector<128x32xf32>
    %c0_52 = arith.constant 0 : index
    %c0_53 = arith.constant 0 : index
    %175 = vector.load %arg9[%c0_52, %c0_53] : memref<1x32xf32, #tpu.memory_space<vmem>>, vector<1x32xf32>
    %c0_54 = arith.constant 0 : index
    %c0_55 = arith.constant 0 : index
    %176 = vector.load %arg10[%c0_54, %c0_55] : memref<1x32xf32, #tpu.memory_space<vmem>>, vector<1x32xf32>
    %cst_56 = arith.constant dense<0.000000e+00> : vector<128xf32>
    %177 = vector.multi_reduction <add>, %174, %cst_56 [1] : vector<128x32xf32> to vector<128xf32>
    %178 = vector.shape_cast %177 : vector<128xf32> to vector<128x1xf32>
    %cst_57 = arith.constant 3.200000e+01 : f32
    %179 = vector.broadcast %cst_57 : f32 to vector<128x1xf32>
    %180 = arith.divf %178, %179 : vector<128x1xf32>
    %181 = vector.broadcast %180 : vector<128x1xf32> to vector<128x32xf32>
    %182 = arith.subf %174, %181 : vector<128x32xf32>
    %183 = arith.mulf %182, %182 : vector<128x32xf32>
    %cst_58 = arith.constant dense<0.000000e+00> : vector<128xf32>
    %184 = vector.multi_reduction <add>, %183, %cst_58 [1] : vector<128x32xf32> to vector<128xf32>
    %185 = vector.shape_cast %184 : vector<128xf32> to vector<128x1xf32>
    %cst_59 = arith.constant 3.200000e+01 : f32
    %186 = vector.broadcast %cst_59 : f32 to vector<128x1xf32>
    %187 = arith.divf %185, %186 : vector<128x1xf32>
    %188 = vector.broadcast %180 : vector<128x1xf32> to vector<128x32xf32>
    %189 = arith.subf %174, %188 : vector<128x32xf32>
    %cst_60 = arith.constant 9.99999974E-6 : f32
    %190 = vector.broadcast %cst_60 : f32 to vector<128x1xf32>
    %191 = arith.addf %187, %190 : vector<128x1xf32>
    %192 = math.rsqrt %191 : vector<128x1xf32>
    %193 = vector.broadcast %192 : vector<128x1xf32> to vector<128x32xf32>
    %194 = arith.mulf %189, %193 : vector<128x32xf32>
    %195 = vector.broadcast %175 : vector<1x32xf32> to vector<128x32xf32>
    %196 = arith.mulf %194, %195 : vector<128x32xf32>
    %197 = vector.broadcast %176 : vector<1x32xf32> to vector<128x32xf32>
    %198 = arith.addf %196, %197 : vector<128x32xf32>
    %199 = arith.truncf %198 : vector<128x32xf32> to vector<128x32xbf16>
    %c0_61 = arith.constant 0 : index
    %c0_62 = arith.constant 0 : index
    %200 = vector.load %arg11[%c0_61, %c0_62] : memref<32x128xbf16, #tpu.memory_space<vmem>>, vector<32x128xbf16>
    %cst_63 = arith.constant dense<0.000000e+00> : vector<128x128xf32>
    %201 = tpu.matmul %199, %200, %cst_63 {dimension_numbers = #tpu.dot_dimension_numbers<[1], [0], [0], [1], [0, 0, 1, 1], [], []>} : vector<128x32xbf16>, vector<32x128xbf16>, vector<128x128xf32> -> vector<128x128xf32>
    %c0_64 = arith.constant 0 : index
    %c0_65 = arith.constant 0 : index
    %202 = vector.load %arg12[%c0_64, %c0_65] : memref<1x128xf32, #tpu.memory_space<vmem>>, vector<1x128xf32>
    %203 = vector.broadcast %202 : vector<1x128xf32> to vector<128x128xf32>
    %204 = arith.addf %201, %203 : vector<128x128xf32>
    %cst_66 = arith.constant 5.000000e-01 : f32
    %205 = vector.broadcast %cst_66 : f32 to vector<128x128xf32>
    %206 = arith.mulf %205, %204 : vector<128x128xf32>
    %cst_67 = arith.constant 0.707106769 : f32
    %207 = vector.broadcast %cst_67 : f32 to vector<128x128xf32>
    %208 = arith.mulf %204, %207 : vector<128x128xf32>
    %209 = math.erf %208 : vector<128x128xf32>
    %cst_68 = arith.constant 1.000000e+00 : f32
    %210 = vector.broadcast %cst_68 : f32 to vector<128x128xf32>
    %211 = arith.addf %210, %209 : vector<128x128xf32>
    %212 = arith.mulf %206, %211 : vector<128x128xf32>
    %213 = arith.truncf %212 : vector<128x128xf32> to vector<128x128xbf16>
    %c0_69 = arith.constant 0 : index
    %c0_70 = arith.constant 0 : index
    %214 = vector.load %arg13[%c0_69, %c0_70] : memref<128x32xbf16, #tpu.memory_space<vmem>>, vector<128x32xbf16>
    %cst_71 = arith.constant dense<0.000000e+00> : vector<128x32xf32>
    %215 = tpu.matmul %213, %214, %cst_71 {dimension_numbers = #tpu.dot_dimension_numbers<[1], [0], [0], [1], [0, 0, 1, 1], [], []>} : vector<128x128xbf16>, vector<128x32xbf16>, vector<128x32xf32> -> vector<128x32xf32>
    %c0_72 = arith.constant 0 : index
    %c0_73 = arith.constant 0 : index
    %216 = vector.load %arg14[%c0_72, %c0_73] : memref<1x32xf32, #tpu.memory_space<vmem>>, vector<1x32xf32>
    %217 = vector.broadcast %216 : vector<1x32xf32> to vector<128x32xf32>
    %218 = arith.addf %215, %217 : vector<128x32xf32>
    %219 = arith.addf %174, %218 : vector<128x32xf32>
    %220 = vector.shape_cast %219 : vector<128x32xf32> to vector<8x16x32xf32>
    %c0_74 = arith.constant 0 : index
    %c0_75 = arith.constant 0 : index
    %c0_76 = arith.constant 0 : index
    %221 = vector.load %arg15[%c0_74, %c0_75, %c0_76] : memref<8x16x32xf32, #tpu.memory_space<vmem>>, vector<8x16x32xf32>
    tpu.vector_store %arg15[%c0_74, %c0_75, %c0_76], %220 {strides = array<i32>} : memref<8x16x32xf32, #tpu.memory_space<vmem>>, vector<8x16x32xf32>,
    return
  }
  func.func @transform_0(%arg0: i32) -> (i32, i32, i32) {
    %c0_i32 = arith.constant 0 : i32
    %c0_i32_0 = arith.constant 0 : i32
    %c0_i32_1 = arith.constant 0 : i32
    return %arg0, %c0_i32, %c0_i32_0 : i32, i32, i32
  }
  func.func @transform_1(%arg0: i32) -> (i32, i32) {
    %c0_i32 = arith.constant 0 : i32
    %c0_i32_0 = arith.constant 0 : i32
    %c0_i32_1 = arith.constant 0 : i32
    return %c0_i32, %c0_i32_0 : i32, i32
  }
  func.func @transform_2(%arg0: i32) -> (i32, i32) {
    %c0_i32 = arith.constant 0 : i32
    %c0_i32_0 = arith.constant 0 : i32
    %c0_i32_1 = arith.constant 0 : i32
    return %c0_i32, %c0_i32_0 : i32, i32
  }
  func.func @transform_3(%arg0: i32) -> (i32, i32) {
    %c0_i32 = arith.constant 0 : i32
    %c0_i32_0 = arith.constant 0 : i32
    %c0_i32_1 = arith.constant 0 : i32
    return %c0_i32, %c0_i32_0 : i32, i32
  }
  func.func @transform_4(%arg0: i32) -> (i32, i32) {
    %c0_i32 = arith.constant 0 : i32
    %c0_i32_0 = arith.constant 0 : i32
    %c0_i32_1 = arith.constant 0 : i32
    return %c0_i32, %c0_i32_0 : i32, i32
  }
  func.func @transform_5(%arg0: i32) -> (i32, i32) {
    %c0_i32 = arith.constant 0 : i32
    %c0_i32_0 = arith.constant 0 : i32
    %c0_i32_1 = arith.constant 0 : i32
    return %c0_i32, %c0_i32_0 : i32, i32
  }
  func.func @transform_6(%arg0: i32) -> (i32, i32) {
    %c0_i32 = arith.constant 0 : i32
    %c0_i32_0 = arith.constant 0 : i32
    %c0_i32_1 = arith.constant 0 : i32
    return %c0_i32, %c0_i32_0 : i32, i32
  }
  func.func @transform_7(%arg0: i32) -> (i32, i32, i32) {
    %c0_i32 = arith.constant 0 : i32
    %c0_i32_0 = arith.constant 0 : i32
    %c0_i32_1 = arith.constant 0 : i32
    %c0_i32_2 = arith.constant 0 : i32
    return %c0_i32, %c0_i32_0, %c0_i32_1 : i32, i32, i32
  }
  func.func @transform_8(%arg0: i32) -> (i32, i32) {
    %c0_i32 = arith.constant 0 : i32
    %c0_i32_0 = arith.constant 0 : i32
    %c0_i32_1 = arith.constant 0 : i32
    return %c0_i32, %c0_i32_0 : i32, i32
  }
  func.func @transform_9(%arg0: i32) -> (i32, i32) {
    %c0_i32 = arith.constant 0 : i32
    %c0_i32_0 = arith.constant 0 : i32
    %c0_i32_1 = arith.constant 0 : i32
    return %c0_i32, %c0_i32_0 : i32, i32
  }
  func.func @transform_10(%arg0: i32) -> (i32, i32) {
    %c0_i32 = arith.constant 0 : i32
    %c0_i32_0 = arith.constant 0 : i32
    %c0_i32_1 = arith.constant 0 : i32
    return %c0_i32, %c0_i32_0 : i32, i32
  }
  func.func @transform_11(%arg0: i32) -> (i32, i32) {
    %c0_i32 = arith.constant 0 : i32
    %c0_i32_0 = arith.constant 0 : i32
    %c0_i32_1 = arith.constant 0 : i32
    return %c0_i32, %c0_i32_0 : i32, i32
  }
  func.func @transform_12(%arg0: i32) -> (i32, i32) {
    %c0_i32 = arith.constant 0 : i32
    %c0_i32_0 = arith.constant 0 : i32
    %c0_i32_1 = arith.constant 0 : i32
    return %c0_i32, %c0_i32_0 : i32, i32
  }
  func.func @transform_13(%arg0: i32) -> (i32, i32) {
    %c0_i32 = arith.constant 0 : i32
    %c0_i32_0 = arith.constant 0 : i32
    %c0_i32_1 = arith.constant 0 : i32
    return %c0_i32, %c0_i32_0 : i32, i32
  }
  func.func @transform_14(%arg0: i32) -> (i32, i32, i32) {
    %c0_i32 = arith.constant 0 : i32
    %c0_i32_0 = arith.constant 0 : i32
    %c0_i32_1 = arith.constant 0 : i32
    return %arg0, %c0_i32, %c0_i32_0 : i32, i32, i32
  }
}

module attributes {stable_mosaic.version = 11 : i64} {
  func.func @_swin_block_kernel(%arg0: i32, %arg1: memref<4x16x32xf32, #tpu.memory_space<vmem>>, %arg2: memref<4x16x16xf32, #tpu.memory_space<vmem>>, %arg3: memref<1x32xf32, #tpu.memory_space<vmem>>, %arg4: memref<1x32xf32, #tpu.memory_space<vmem>>, %arg5: memref<32x96xbf16, #tpu.memory_space<vmem>>, %arg6: memref<1x96xf32, #tpu.memory_space<vmem>>, %arg7: memref<32x32xbf16, #tpu.memory_space<vmem>>, %arg8: memref<1x32xf32, #tpu.memory_space<vmem>>, %arg9: memref<4x16x16xf32, #tpu.memory_space<vmem>>, %arg10: memref<1x32xf32, #tpu.memory_space<vmem>>, %arg11: memref<1x32xf32, #tpu.memory_space<vmem>>, %arg12: memref<32x128xbf16, #tpu.memory_space<vmem>>, %arg13: memref<1x128xf32, #tpu.memory_space<vmem>>, %arg14: memref<128x32xbf16, #tpu.memory_space<vmem>>, %arg15: memref<1x32xf32, #tpu.memory_space<vmem>>, %arg16: memref<4x16x32xf32, #tpu.memory_space<vmem>>) attributes {dimension_semantics = [#tpu.dimension_semantics<parallel>], iteration_bounds = array<i64: 2>, scalar_prefetch = 0 : i64, scratch_operands = 0 : i64, tpu.core_type = #tpu.core_type<tc>, window_params = [{transform_indices = @transform_0, window_bounds = array<i64: 4, 16, 32>}, {transform_indices = @transform_1, window_bounds = array<i64: 4, 16, 16>}, {pipeline_mode = #tpu.pipeline_mode<synchronous>, transform_indices = @transform_2, window_bounds = array<i64: 1, 32>}, {pipeline_mode = #tpu.pipeline_mode<synchronous>, transform_indices = @transform_3, window_bounds = array<i64: 1, 32>}, {pipeline_mode = #tpu.pipeline_mode<synchronous>, transform_indices = @transform_4, window_bounds = array<i64: 32, 96>}, {pipeline_mode = #tpu.pipeline_mode<synchronous>, transform_indices = @transform_5, window_bounds = array<i64: 1, 96>}, {pipeline_mode = #tpu.pipeline_mode<synchronous>, transform_indices = @transform_6, window_bounds = array<i64: 32, 32>}, {pipeline_mode = #tpu.pipeline_mode<synchronous>, transform_indices = @transform_7, window_bounds = array<i64: 1, 32>}, {pipeline_mode = #tpu.pipeline_mode<synchronous>, transform_indices = @transform_8, window_bounds = array<i64: 4, 16, 16>}, {pipeline_mode = #tpu.pipeline_mode<synchronous>, transform_indices = @transform_9, window_bounds = array<i64: 1, 32>}, {pipeline_mode = #tpu.pipeline_mode<synchronous>, transform_indices = @transform_10, window_bounds = array<i64: 1, 32>}, {pipeline_mode = #tpu.pipeline_mode<synchronous>, transform_indices = @transform_11, window_bounds = array<i64: 32, 128>}, {pipeline_mode = #tpu.pipeline_mode<synchronous>, transform_indices = @transform_12, window_bounds = array<i64: 1, 128>}, {pipeline_mode = #tpu.pipeline_mode<synchronous>, transform_indices = @transform_13, window_bounds = array<i64: 128, 32>}, {pipeline_mode = #tpu.pipeline_mode<synchronous>, transform_indices = @transform_14, window_bounds = array<i64: 1, 32>}, {transform_indices = @transform_15, window_bounds = array<i64: 4, 16, 32>}]} {
    %c0 = arith.constant 0 : index
    %c0_0 = arith.constant 0 : index
    %c0_1 = arith.constant 0 : index
    %0 = vector.load %arg1[%c0, %c0_0, %c0_1] : memref<4x16x32xf32, #tpu.memory_space<vmem>>, vector<4x16x32xf32>
    %1 = vector.shape_cast %0 : vector<4x16x32xf32> to vector<64x32xf32>
    %c0_2 = arith.constant 0 : index
    %c0_3 = arith.constant 0 : index
    %2 = vector.load %arg3[%c0_2, %c0_3] : memref<1x32xf32, #tpu.memory_space<vmem>>, vector<1x32xf32>
    %c0_4 = arith.constant 0 : index
    %c0_5 = arith.constant 0 : index
    %3 = vector.load %arg4[%c0_4, %c0_5] : memref<1x32xf32, #tpu.memory_space<vmem>>, vector<1x32xf32>
    %cst = arith.constant dense<0.000000e+00> : vector<64xf32>
    %4 = vector.multi_reduction <add>, %1, %cst [1] : vector<64x32xf32> to vector<64xf32>
    %5 = vector.shape_cast %4 : vector<64xf32> to vector<64x1xf32>
    %cst_6 = arith.constant 3.200000e+01 : f32
    %6 = vector.broadcast %cst_6 : f32 to vector<64x1xf32>
    %7 = arith.divf %5, %6 : vector<64x1xf32>
    %8 = vector.broadcast %7 : vector<64x1xf32> to vector<64x32xf32>
    %9 = arith.subf %1, %8 : vector<64x32xf32>
    %10 = arith.mulf %9, %9 : vector<64x32xf32>
    %cst_7 = arith.constant dense<0.000000e+00> : vector<64xf32>
    %11 = vector.multi_reduction <add>, %10, %cst_7 [1] : vector<64x32xf32> to vector<64xf32>
    %12 = vector.shape_cast %11 : vector<64xf32> to vector<64x1xf32>
    %cst_8 = arith.constant 3.200000e+01 : f32
    %13 = vector.broadcast %cst_8 : f32 to vector<64x1xf32>
    %14 = arith.divf %12, %13 : vector<64x1xf32>
    %15 = vector.broadcast %7 : vector<64x1xf32> to vector<64x32xf32>
    %16 = arith.subf %1, %15 : vector<64x32xf32>
    %cst_9 = arith.constant 9.99999974E-6 : f32
    %17 = vector.broadcast %cst_9 : f32 to vector<64x1xf32>
    %18 = arith.addf %14, %17 : vector<64x1xf32>
    %19 = math.rsqrt %18 : vector<64x1xf32>
    %20 = vector.broadcast %19 : vector<64x1xf32> to vector<64x32xf32>
    %21 = arith.mulf %16, %20 : vector<64x32xf32>
    %22 = vector.broadcast %2 : vector<1x32xf32> to vector<64x32xf32>
    %23 = arith.mulf %21, %22 : vector<64x32xf32>
    %24 = vector.broadcast %3 : vector<1x32xf32> to vector<64x32xf32>
    %25 = arith.addf %23, %24 : vector<64x32xf32>
    %26 = arith.truncf %25 : vector<64x32xf32> to vector<64x32xbf16>
    %c0_10 = arith.constant 0 : index
    %c0_11 = arith.constant 0 : index
    %27 = vector.load %arg5[%c0_10, %c0_11] : memref<32x96xbf16, #tpu.memory_space<vmem>>, vector<32x96xbf16>
    %cst_12 = arith.constant dense<0.000000e+00> : vector<64x96xf32>
    %28 = tpu.matmul %26, %27, %cst_12 {dimension_numbers = #tpu.dot_dimension_numbers<[1], [0], [0], [1], [0, 0, 1, 1], [], []>} : vector<64x32xbf16>, vector<32x96xbf16>, vector<64x96xf32> -> vector<64x96xf32>
    %c0_13 = arith.constant 0 : index
    %c0_14 = arith.constant 0 : index
    %29 = vector.load %arg6[%c0_13, %c0_14] : memref<1x96xf32, #tpu.memory_space<vmem>>, vector<1x96xf32>
    %30 = vector.broadcast %29 : vector<1x96xf32> to vector<64x96xf32>
    %31 = arith.addf %28, %30 : vector<64x96xf32>
    %c0_15 = arith.constant 0 : index
    %c0_16 = arith.constant 0 : index
    %c0_17 = arith.constant 0 : index
    %32 = vector.load %arg9[%c0_15, %c0_16, %c0_17] : memref<4x16x16xf32, #tpu.memory_space<vmem>>, vector<4x16x16xf32>
    %c0_18 = arith.constant 0 : index
    %c0_19 = arith.constant 0 : index
    %c0_20 = arith.constant 0 : index
    %33 = vector.load %arg2[%c0_18, %c0_19, %c0_20] : memref<4x16x16xf32, #tpu.memory_space<vmem>>, vector<4x16x16xf32>
    %c0_21 = arith.constant 0 : index
    %c0_22 = arith.constant 0 : index
    %34 = vector.load %arg8[%c0_21, %c0_22] : memref<1x32xf32, #tpu.memory_space<vmem>>, vector<1x32xf32>
    %35 = vector.shape_cast %34 : vector<1x32xf32> to vector<1x32xf32>
    %36 = vector.broadcast %35 : vector<1x32xf32> to vector<64x32xf32>
    %37 = vector.extract_strided_slice %31 {offsets = [0, 0], sizes = [64, 8], strides = [1, 1]} : vector<64x96xf32> to vector<64x8xf32>
    %38 = vector.shape_cast %37 : vector<64x8xf32> to vector<4x16x8xf32>
    %39 = vector.extract_strided_slice %31 {offsets = [0, 32], sizes = [64, 8], strides = [1, 1]} : vector<64x96xf32> to vector<64x8xf32>
    %40 = vector.shape_cast %39 : vector<64x8xf32> to vector<4x16x8xf32>
    %41 = vector.extract_strided_slice %31 {offsets = [0, 64], sizes = [64, 8], strides = [1, 1]} : vector<64x96xf32> to vector<64x8xf32>
    %42 = vector.shape_cast %41 : vector<64x8xf32> to vector<4x16x8xf32>
    %43 = arith.truncf %38 : vector<4x16x8xf32> to vector<4x16x8xbf16>
    %44 = arith.truncf %40 : vector<4x16x8xf32> to vector<4x16x8xbf16>
    %cst_23 = arith.constant dense<0.000000e+00> : vector<4x16x16xf32>
    %45 = tpu.matmul %43, %44, %cst_23 {dimension_numbers = #tpu.dot_dimension_numbers<[2], [2], [1], [1], [0, 0, 0, 1, 1, 1], [0], [0]>} : vector<4x16x8xbf16>, vector<4x16x8xbf16>, vector<4x16x16xf32> -> vector<4x16x16xf32>
    %cst_24 = arith.constant 0.353553385 : f32
    %46 = vector.broadcast %cst_24 : f32 to vector<4x16x16xf32>
    %47 = arith.mulf %45, %46 : vector<4x16x16xf32>
    %48 = vector.extract_strided_slice %32 {offsets = [0, 0, 0], sizes = [1, 16, 16], strides = [1, 1, 1]} : vector<4x16x16xf32> to vector<1x16x16xf32>
    %49 = vector.shape_cast %48 : vector<1x16x16xf32> to vector<16x16xf32>
    %50 = vector.shape_cast %49 : vector<16x16xf32> to vector<1x16x16xf32>
    %51 = vector.broadcast %50 : vector<1x16x16xf32> to vector<4x16x16xf32>
    %52 = arith.addf %47, %51 : vector<4x16x16xf32>
    %53 = arith.addf %52, %33 : vector<4x16x16xf32>
    %cst_25 = arith.constant dense<0xFF800000> : vector<4x16xf32>
    %54 = vector.multi_reduction <maximumf>, %53, %cst_25 [2] : vector<4x16x16xf32> to vector<4x16xf32>
    %55 = vector.shape_cast %54 : vector<4x16xf32> to vector<4x16x1xf32>
    %56 = vector.broadcast %55 : vector<4x16x1xf32> to vector<4x16x16xf32>
    %57 = arith.subf %53, %56 : vector<4x16x16xf32>
    %58 = math.exp %57 : vector<4x16x16xf32>
    %cst_26 = arith.constant dense<0.000000e+00> : vector<4x16xf32>
    %59 = vector.multi_reduction <add>, %58, %cst_26 [2] : vector<4x16x16xf32> to vector<4x16xf32>
    %60 = vector.shape_cast %59 : vector<4x16xf32> to vector<4x16x1xf32>
    %61 = tpu.reciprocal %60 {approx = true} : vector<4x16x1xf32> -> vector<4x16x1xf32>
    %62 = vector.broadcast %61 : vector<4x16x1xf32> to vector<4x16x16xf32>
    %63 = arith.mulf %58, %62 : vector<4x16x16xf32>
    %64 = arith.truncf %63 : vector<4x16x16xf32> to vector<4x16x16xbf16>
    %65 = arith.truncf %42 : vector<4x16x8xf32> to vector<4x16x8xbf16>
    %cst_27 = arith.constant dense<0.000000e+00> : vector<4x16x8xf32>
    %66 = tpu.matmul %64, %65, %cst_27 {dimension_numbers = #tpu.dot_dimension_numbers<[2], [1], [1], [2], [0, 0, 0, 1, 1, 2], [0], [0]>} : vector<4x16x16xbf16>, vector<4x16x8xbf16>, vector<4x16x8xf32> -> vector<4x16x8xf32>
    %67 = vector.shape_cast %66 : vector<4x16x8xf32> to vector<64x8xf32>
    %68 = arith.truncf %67 : vector<64x8xf32> to vector<64x8xbf16>
    %c0_28 = arith.constant 0 : index
    %c0_29 = arith.constant 0 : index
    %69 = vector.load %arg7[%c0_28, %c0_29] : memref<32x32xbf16, #tpu.memory_space<vmem>>, vector<8x32xbf16>
    %cst_30 = arith.constant dense<0.000000e+00> : vector<64x32xf32>
    %70 = tpu.matmul %68, %69, %cst_30 {dimension_numbers = #tpu.dot_dimension_numbers<[1], [0], [0], [1], [0, 0, 1, 1], [], []>} : vector<64x8xbf16>, vector<8x32xbf16>, vector<64x32xf32> -> vector<64x32xf32>
    %71 = arith.addf %36, %70 : vector<64x32xf32>
    %72 = vector.extract_strided_slice %31 {offsets = [0, 8], sizes = [64, 8], strides = [1, 1]} : vector<64x96xf32> to vector<64x8xf32>
    %73 = vector.shape_cast %72 : vector<64x8xf32> to vector<4x16x8xf32>
    %74 = vector.extract_strided_slice %31 {offsets = [0, 40], sizes = [64, 8], strides = [1, 1]} : vector<64x96xf32> to vector<64x8xf32>
    %75 = vector.shape_cast %74 : vector<64x8xf32> to vector<4x16x8xf32>
    %76 = vector.extract_strided_slice %31 {offsets = [0, 72], sizes = [64, 8], strides = [1, 1]} : vector<64x96xf32> to vector<64x8xf32>
    %77 = vector.shape_cast %76 : vector<64x8xf32> to vector<4x16x8xf32>
    %78 = arith.truncf %73 : vector<4x16x8xf32> to vector<4x16x8xbf16>
    %79 = arith.truncf %75 : vector<4x16x8xf32> to vector<4x16x8xbf16>
    %cst_31 = arith.constant dense<0.000000e+00> : vector<4x16x16xf32>
    %80 = tpu.matmul %78, %79, %cst_31 {dimension_numbers = #tpu.dot_dimension_numbers<[2], [2], [1], [1], [0, 0, 0, 1, 1, 1], [0], [0]>} : vector<4x16x8xbf16>, vector<4x16x8xbf16>, vector<4x16x16xf32> -> vector<4x16x16xf32>
    %cst_32 = arith.constant 0.353553385 : f32
    %81 = vector.broadcast %cst_32 : f32 to vector<4x16x16xf32>
    %82 = arith.mulf %80, %81 : vector<4x16x16xf32>
    %83 = vector.extract_strided_slice %32 {offsets = [1, 0, 0], sizes = [1, 16, 16], strides = [1, 1, 1]} : vector<4x16x16xf32> to vector<1x16x16xf32>
    %84 = vector.shape_cast %83 : vector<1x16x16xf32> to vector<16x16xf32>
    %85 = vector.shape_cast %84 : vector<16x16xf32> to vector<1x16x16xf32>
    %86 = vector.broadcast %85 : vector<1x16x16xf32> to vector<4x16x16xf32>
    %87 = arith.addf %82, %86 : vector<4x16x16xf32>
    %88 = arith.addf %87, %33 : vector<4x16x16xf32>
    %cst_33 = arith.constant dense<0xFF800000> : vector<4x16xf32>
    %89 = vector.multi_reduction <maximumf>, %88, %cst_33 [2] : vector<4x16x16xf32> to vector<4x16xf32>
    %90 = vector.shape_cast %89 : vector<4x16xf32> to vector<4x16x1xf32>
    %91 = vector.broadcast %90 : vector<4x16x1xf32> to vector<4x16x16xf32>
    %92 = arith.subf %88, %91 : vector<4x16x16xf32>
    %93 = math.exp %92 : vector<4x16x16xf32>
    %cst_34 = arith.constant dense<0.000000e+00> : vector<4x16xf32>
    %94 = vector.multi_reduction <add>, %93, %cst_34 [2] : vector<4x16x16xf32> to vector<4x16xf32>
    %95 = vector.shape_cast %94 : vector<4x16xf32> to vector<4x16x1xf32>
    %96 = tpu.reciprocal %95 {approx = true} : vector<4x16x1xf32> -> vector<4x16x1xf32>
    %97 = vector.broadcast %96 : vector<4x16x1xf32> to vector<4x16x16xf32>
    %98 = arith.mulf %93, %97 : vector<4x16x16xf32>
    %99 = arith.truncf %98 : vector<4x16x16xf32> to vector<4x16x16xbf16>
    %100 = arith.truncf %77 : vector<4x16x8xf32> to vector<4x16x8xbf16>
    %cst_35 = arith.constant dense<0.000000e+00> : vector<4x16x8xf32>
    %101 = tpu.matmul %99, %100, %cst_35 {dimension_numbers = #tpu.dot_dimension_numbers<[2], [1], [1], [2], [0, 0, 0, 1, 1, 2], [0], [0]>} : vector<4x16x16xbf16>, vector<4x16x8xbf16>, vector<4x16x8xf32> -> vector<4x16x8xf32>
    %102 = vector.shape_cast %101 : vector<4x16x8xf32> to vector<64x8xf32>
    %103 = arith.truncf %102 : vector<64x8xf32> to vector<64x8xbf16>
    %c8 = arith.constant 8 : index
    %c0_36 = arith.constant 0 : index
    %104 = vector.load %arg7[%c8, %c0_36] : memref<32x32xbf16, #tpu.memory_space<vmem>>, vector<8x32xbf16>
    %cst_37 = arith.constant dense<0.000000e+00> : vector<64x32xf32>
    %105 = tpu.matmul %103, %104, %cst_37 {dimension_numbers = #tpu.dot_dimension_numbers<[1], [0], [0], [1], [0, 0, 1, 1], [], []>} : vector<64x8xbf16>, vector<8x32xbf16>, vector<64x32xf32> -> vector<64x32xf32>
    %106 = arith.addf %71, %105 : vector<64x32xf32>
    %107 = vector.extract_strided_slice %31 {offsets = [0, 16], sizes = [64, 8], strides = [1, 1]} : vector<64x96xf32> to vector<64x8xf32>
    %108 = vector.shape_cast %107 : vector<64x8xf32> to vector<4x16x8xf32>
    %109 = vector.extract_strided_slice %31 {offsets = [0, 48], sizes = [64, 8], strides = [1, 1]} : vector<64x96xf32> to vector<64x8xf32>
    %110 = vector.shape_cast %109 : vector<64x8xf32> to vector<4x16x8xf32>
    %111 = vector.extract_strided_slice %31 {offsets = [0, 80], sizes = [64, 8], strides = [1, 1]} : vector<64x96xf32> to vector<64x8xf32>
    %112 = vector.shape_cast %111 : vector<64x8xf32> to vector<4x16x8xf32>
    %113 = arith.truncf %108 : vector<4x16x8xf32> to vector<4x16x8xbf16>
    %114 = arith.truncf %110 : vector<4x16x8xf32> to vector<4x16x8xbf16>
    %cst_38 = arith.constant dense<0.000000e+00> : vector<4x16x16xf32>
    %115 = tpu.matmul %113, %114, %cst_38 {dimension_numbers = #tpu.dot_dimension_numbers<[2], [2], [1], [1], [0, 0, 0, 1, 1, 1], [0], [0]>} : vector<4x16x8xbf16>, vector<4x16x8xbf16>, vector<4x16x16xf32> -> vector<4x16x16xf32>
    %cst_39 = arith.constant 0.353553385 : f32
    %116 = vector.broadcast %cst_39 : f32 to vector<4x16x16xf32>
    %117 = arith.mulf %115, %116 : vector<4x16x16xf32>
    %118 = vector.extract_strided_slice %32 {offsets = [2, 0, 0], sizes = [1, 16, 16], strides = [1, 1, 1]} : vector<4x16x16xf32> to vector<1x16x16xf32>
    %119 = vector.shape_cast %118 : vector<1x16x16xf32> to vector<16x16xf32>
    %120 = vector.shape_cast %119 : vector<16x16xf32> to vector<1x16x16xf32>
    %121 = vector.broadcast %120 : vector<1x16x16xf32> to vector<4x16x16xf32>
    %122 = arith.addf %117, %121 : vector<4x16x16xf32>
    %123 = arith.addf %122, %33 : vector<4x16x16xf32>
    %cst_40 = arith.constant dense<0xFF800000> : vector<4x16xf32>
    %124 = vector.multi_reduction <maximumf>, %123, %cst_40 [2] : vector<4x16x16xf32> to vector<4x16xf32>
    %125 = vector.shape_cast %124 : vector<4x16xf32> to vector<4x16x1xf32>
    %126 = vector.broadcast %125 : vector<4x16x1xf32> to vector<4x16x16xf32>
    %127 = arith.subf %123, %126 : vector<4x16x16xf32>
    %128 = math.exp %127 : vector<4x16x16xf32>
    %cst_41 = arith.constant dense<0.000000e+00> : vector<4x16xf32>
    %129 = vector.multi_reduction <add>, %128, %cst_41 [2] : vector<4x16x16xf32> to vector<4x16xf32>
    %130 = vector.shape_cast %129 : vector<4x16xf32> to vector<4x16x1xf32>
    %131 = tpu.reciprocal %130 {approx = true} : vector<4x16x1xf32> -> vector<4x16x1xf32>
    %132 = vector.broadcast %131 : vector<4x16x1xf32> to vector<4x16x16xf32>
    %133 = arith.mulf %128, %132 : vector<4x16x16xf32>
    %134 = arith.truncf %133 : vector<4x16x16xf32> to vector<4x16x16xbf16>
    %135 = arith.truncf %112 : vector<4x16x8xf32> to vector<4x16x8xbf16>
    %cst_42 = arith.constant dense<0.000000e+00> : vector<4x16x8xf32>
    %136 = tpu.matmul %134, %135, %cst_42 {dimension_numbers = #tpu.dot_dimension_numbers<[2], [1], [1], [2], [0, 0, 0, 1, 1, 2], [0], [0]>} : vector<4x16x16xbf16>, vector<4x16x8xbf16>, vector<4x16x8xf32> -> vector<4x16x8xf32>
    %137 = vector.shape_cast %136 : vector<4x16x8xf32> to vector<64x8xf32>
    %138 = arith.truncf %137 : vector<64x8xf32> to vector<64x8xbf16>
    %c16 = arith.constant 16 : index
    %c0_43 = arith.constant 0 : index
    %139 = vector.load %arg7[%c16, %c0_43] : memref<32x32xbf16, #tpu.memory_space<vmem>>, vector<8x32xbf16>
    %cst_44 = arith.constant dense<0.000000e+00> : vector<64x32xf32>
    %140 = tpu.matmul %138, %139, %cst_44 {dimension_numbers = #tpu.dot_dimension_numbers<[1], [0], [0], [1], [0, 0, 1, 1], [], []>} : vector<64x8xbf16>, vector<8x32xbf16>, vector<64x32xf32> -> vector<64x32xf32>
    %141 = arith.addf %106, %140 : vector<64x32xf32>
    %142 = vector.extract_strided_slice %31 {offsets = [0, 24], sizes = [64, 8], strides = [1, 1]} : vector<64x96xf32> to vector<64x8xf32>
    %143 = vector.shape_cast %142 : vector<64x8xf32> to vector<4x16x8xf32>
    %144 = vector.extract_strided_slice %31 {offsets = [0, 56], sizes = [64, 8], strides = [1, 1]} : vector<64x96xf32> to vector<64x8xf32>
    %145 = vector.shape_cast %144 : vector<64x8xf32> to vector<4x16x8xf32>
    %146 = vector.extract_strided_slice %31 {offsets = [0, 88], sizes = [64, 8], strides = [1, 1]} : vector<64x96xf32> to vector<64x8xf32>
    %147 = vector.shape_cast %146 : vector<64x8xf32> to vector<4x16x8xf32>
    %148 = arith.truncf %143 : vector<4x16x8xf32> to vector<4x16x8xbf16>
    %149 = arith.truncf %145 : vector<4x16x8xf32> to vector<4x16x8xbf16>
    %cst_45 = arith.constant dense<0.000000e+00> : vector<4x16x16xf32>
    %150 = tpu.matmul %148, %149, %cst_45 {dimension_numbers = #tpu.dot_dimension_numbers<[2], [2], [1], [1], [0, 0, 0, 1, 1, 1], [0], [0]>} : vector<4x16x8xbf16>, vector<4x16x8xbf16>, vector<4x16x16xf32> -> vector<4x16x16xf32>
    %cst_46 = arith.constant 0.353553385 : f32
    %151 = vector.broadcast %cst_46 : f32 to vector<4x16x16xf32>
    %152 = arith.mulf %150, %151 : vector<4x16x16xf32>
    %153 = vector.extract_strided_slice %32 {offsets = [3, 0, 0], sizes = [1, 16, 16], strides = [1, 1, 1]} : vector<4x16x16xf32> to vector<1x16x16xf32>
    %154 = vector.shape_cast %153 : vector<1x16x16xf32> to vector<16x16xf32>
    %155 = vector.shape_cast %154 : vector<16x16xf32> to vector<1x16x16xf32>
    %156 = vector.broadcast %155 : vector<1x16x16xf32> to vector<4x16x16xf32>
    %157 = arith.addf %152, %156 : vector<4x16x16xf32>
    %158 = arith.addf %157, %33 : vector<4x16x16xf32>
    %cst_47 = arith.constant dense<0xFF800000> : vector<4x16xf32>
    %159 = vector.multi_reduction <maximumf>, %158, %cst_47 [2] : vector<4x16x16xf32> to vector<4x16xf32>
    %160 = vector.shape_cast %159 : vector<4x16xf32> to vector<4x16x1xf32>
    %161 = vector.broadcast %160 : vector<4x16x1xf32> to vector<4x16x16xf32>
    %162 = arith.subf %158, %161 : vector<4x16x16xf32>
    %163 = math.exp %162 : vector<4x16x16xf32>
    %cst_48 = arith.constant dense<0.000000e+00> : vector<4x16xf32>
    %164 = vector.multi_reduction <add>, %163, %cst_48 [2] : vector<4x16x16xf32> to vector<4x16xf32>
    %165 = vector.shape_cast %164 : vector<4x16xf32> to vector<4x16x1xf32>
    %166 = tpu.reciprocal %165 {approx = true} : vector<4x16x1xf32> -> vector<4x16x1xf32>
    %167 = vector.broadcast %166 : vector<4x16x1xf32> to vector<4x16x16xf32>
    %168 = arith.mulf %163, %167 : vector<4x16x16xf32>
    %169 = arith.truncf %168 : vector<4x16x16xf32> to vector<4x16x16xbf16>
    %170 = arith.truncf %147 : vector<4x16x8xf32> to vector<4x16x8xbf16>
    %cst_49 = arith.constant dense<0.000000e+00> : vector<4x16x8xf32>
    %171 = tpu.matmul %169, %170, %cst_49 {dimension_numbers = #tpu.dot_dimension_numbers<[2], [1], [1], [2], [0, 0, 0, 1, 1, 2], [0], [0]>} : vector<4x16x16xbf16>, vector<4x16x8xbf16>, vector<4x16x8xf32> -> vector<4x16x8xf32>
    %172 = vector.shape_cast %171 : vector<4x16x8xf32> to vector<64x8xf32>
    %173 = arith.truncf %172 : vector<64x8xf32> to vector<64x8xbf16>
    %c24 = arith.constant 24 : index
    %c0_50 = arith.constant 0 : index
    %174 = vector.load %arg7[%c24, %c0_50] : memref<32x32xbf16, #tpu.memory_space<vmem>>, vector<8x32xbf16>
    %cst_51 = arith.constant dense<0.000000e+00> : vector<64x32xf32>
    %175 = tpu.matmul %173, %174, %cst_51 {dimension_numbers = #tpu.dot_dimension_numbers<[1], [0], [0], [1], [0, 0, 1, 1], [], []>} : vector<64x8xbf16>, vector<8x32xbf16>, vector<64x32xf32> -> vector<64x32xf32>
    %176 = arith.addf %141, %175 : vector<64x32xf32>
    %c0_52 = arith.constant 0 : index
    %c0_53 = arith.constant 0 : index
    %c0_54 = arith.constant 0 : index
    %177 = vector.load %arg1[%c0_52, %c0_53, %c0_54] : memref<4x16x32xf32, #tpu.memory_space<vmem>>, vector<4x16x32xf32>
    %178 = vector.shape_cast %177 : vector<4x16x32xf32> to vector<64x32xf32>
    %179 = arith.addf %178, %176 : vector<64x32xf32>
    %c0_55 = arith.constant 0 : index
    %c0_56 = arith.constant 0 : index
    %180 = vector.load %arg10[%c0_55, %c0_56] : memref<1x32xf32, #tpu.memory_space<vmem>>, vector<1x32xf32>
    %c0_57 = arith.constant 0 : index
    %c0_58 = arith.constant 0 : index
    %181 = vector.load %arg11[%c0_57, %c0_58] : memref<1x32xf32, #tpu.memory_space<vmem>>, vector<1x32xf32>
    %cst_59 = arith.constant dense<0.000000e+00> : vector<64xf32>
    %182 = vector.multi_reduction <add>, %179, %cst_59 [1] : vector<64x32xf32> to vector<64xf32>
    %183 = vector.shape_cast %182 : vector<64xf32> to vector<64x1xf32>
    %cst_60 = arith.constant 3.200000e+01 : f32
    %184 = vector.broadcast %cst_60 : f32 to vector<64x1xf32>
    %185 = arith.divf %183, %184 : vector<64x1xf32>
    %186 = vector.broadcast %185 : vector<64x1xf32> to vector<64x32xf32>
    %187 = arith.subf %179, %186 : vector<64x32xf32>
    %188 = arith.mulf %187, %187 : vector<64x32xf32>
    %cst_61 = arith.constant dense<0.000000e+00> : vector<64xf32>
    %189 = vector.multi_reduction <add>, %188, %cst_61 [1] : vector<64x32xf32> to vector<64xf32>
    %190 = vector.shape_cast %189 : vector<64xf32> to vector<64x1xf32>
    %cst_62 = arith.constant 3.200000e+01 : f32
    %191 = vector.broadcast %cst_62 : f32 to vector<64x1xf32>
    %192 = arith.divf %190, %191 : vector<64x1xf32>
    %193 = vector.broadcast %185 : vector<64x1xf32> to vector<64x32xf32>
    %194 = arith.subf %179, %193 : vector<64x32xf32>
    %cst_63 = arith.constant 9.99999974E-6 : f32
    %195 = vector.broadcast %cst_63 : f32 to vector<64x1xf32>
    %196 = arith.addf %192, %195 : vector<64x1xf32>
    %197 = math.rsqrt %196 : vector<64x1xf32>
    %198 = vector.broadcast %197 : vector<64x1xf32> to vector<64x32xf32>
    %199 = arith.mulf %194, %198 : vector<64x32xf32>
    %200 = vector.broadcast %180 : vector<1x32xf32> to vector<64x32xf32>
    %201 = arith.mulf %199, %200 : vector<64x32xf32>
    %202 = vector.broadcast %181 : vector<1x32xf32> to vector<64x32xf32>
    %203 = arith.addf %201, %202 : vector<64x32xf32>
    %204 = arith.truncf %203 : vector<64x32xf32> to vector<64x32xbf16>
    %c0_64 = arith.constant 0 : index
    %c0_65 = arith.constant 0 : index
    %205 = vector.load %arg12[%c0_64, %c0_65] : memref<32x128xbf16, #tpu.memory_space<vmem>>, vector<32x128xbf16>
    %cst_66 = arith.constant dense<0.000000e+00> : vector<64x128xf32>
    %206 = tpu.matmul %204, %205, %cst_66 {dimension_numbers = #tpu.dot_dimension_numbers<[1], [0], [0], [1], [0, 0, 1, 1], [], []>} : vector<64x32xbf16>, vector<32x128xbf16>, vector<64x128xf32> -> vector<64x128xf32>
    %c0_67 = arith.constant 0 : index
    %c0_68 = arith.constant 0 : index
    %207 = vector.load %arg13[%c0_67, %c0_68] : memref<1x128xf32, #tpu.memory_space<vmem>>, vector<1x128xf32>
    %208 = vector.broadcast %207 : vector<1x128xf32> to vector<64x128xf32>
    %209 = arith.addf %206, %208 : vector<64x128xf32>
    %cst_69 = arith.constant 5.000000e-01 : f32
    %210 = vector.broadcast %cst_69 : f32 to vector<64x128xf32>
    %211 = arith.mulf %210, %209 : vector<64x128xf32>
    %cst_70 = arith.constant 0.707106769 : f32
    %212 = vector.broadcast %cst_70 : f32 to vector<64x128xf32>
    %213 = arith.mulf %209, %212 : vector<64x128xf32>
    %214 = math.erf %213 : vector<64x128xf32>
    %cst_71 = arith.constant 1.000000e+00 : f32
    %215 = vector.broadcast %cst_71 : f32 to vector<64x128xf32>
    %216 = arith.addf %215, %214 : vector<64x128xf32>
    %217 = arith.mulf %211, %216 : vector<64x128xf32>
    %218 = arith.truncf %217 : vector<64x128xf32> to vector<64x128xbf16>
    %c0_72 = arith.constant 0 : index
    %c0_73 = arith.constant 0 : index
    %219 = vector.load %arg14[%c0_72, %c0_73] : memref<128x32xbf16, #tpu.memory_space<vmem>>, vector<128x32xbf16>
    %cst_74 = arith.constant dense<0.000000e+00> : vector<64x32xf32>
    %220 = tpu.matmul %218, %219, %cst_74 {dimension_numbers = #tpu.dot_dimension_numbers<[1], [0], [0], [1], [0, 0, 1, 1], [], []>} : vector<64x128xbf16>, vector<128x32xbf16>, vector<64x32xf32> -> vector<64x32xf32>
    %c0_75 = arith.constant 0 : index
    %c0_76 = arith.constant 0 : index
    %221 = vector.load %arg15[%c0_75, %c0_76] : memref<1x32xf32, #tpu.memory_space<vmem>>, vector<1x32xf32>
    %222 = vector.broadcast %221 : vector<1x32xf32> to vector<64x32xf32>
    %223 = arith.addf %220, %222 : vector<64x32xf32>
    %224 = arith.addf %179, %223 : vector<64x32xf32>
    %225 = vector.shape_cast %224 : vector<64x32xf32> to vector<4x16x32xf32>
    %c0_77 = arith.constant 0 : index
    %c0_78 = arith.constant 0 : index
    %c0_79 = arith.constant 0 : index
    %226 = vector.load %arg16[%c0_77, %c0_78, %c0_79] : memref<4x16x32xf32, #tpu.memory_space<vmem>>, vector<4x16x32xf32>
    tpu.vector_store %arg16[%c0_77, %c0_78, %c0_79], %225 {strides = array<i32>} : memref<4x16x32xf32, #tpu.memory_space<vmem>>, vector<4x16x32xf32>,
    return
  }
  func.func @transform_0(%arg0: i32) -> (i32, i32, i32) {
    %c0_i32 = arith.constant 0 : i32
    %c0_i32_0 = arith.constant 0 : i32
    %c0_i32_1 = arith.constant 0 : i32
    return %arg0, %c0_i32, %c0_i32_0 : i32, i32, i32
  }
  func.func @transform_1(%arg0: i32) -> (i32, i32, i32) {
    %c1_i32 = arith.constant 1 : i32
    %c0_i32 = arith.constant 0 : i32
    %0 = arith.cmpi eq, %c1_i32, %c0_i32 : i32
    %c1_i32_0 = arith.constant 1 : i32
    %1 = arith.select %0, %c1_i32_0, %c1_i32 : i32
    %2 = arith.remsi %arg0, %1 : i32
    %c0_i32_1 = arith.constant 0 : i32
    %3 = arith.cmpi ne, %2, %c0_i32_1 : i32
    %c0_i32_2 = arith.constant 0 : i32
    %4 = arith.cmpi slt, %2, %c0_i32_2 : i32
    %c0_i32_3 = arith.constant 0 : i32
    %5 = arith.cmpi slt, %1, %c0_i32_3 : i32
    %6 = arith.xori %4, %5 : i1
    %7 = arith.andi %6, %3 : i1
    %8 = arith.addi %2, %1 : i32
    %9 = arith.select %7, %8, %2 : i32
    %c0_i32_4 = arith.constant 0 : i32
    %c0_i32_5 = arith.constant 0 : i32
    %c0_i32_6 = arith.constant 0 : i32
    return %9, %c0_i32_4, %c0_i32_5 : i32, i32, i32
  }
  func.func @transform_2(%arg0: i32) -> (i32, i32) {
    %c0_i32 = arith.constant 0 : i32
    %c0_i32_0 = arith.constant 0 : i32
    %c0_i32_1 = arith.constant 0 : i32
    return %c0_i32, %c0_i32_0 : i32, i32
  }
  func.func @transform_3(%arg0: i32) -> (i32, i32) {
    %c0_i32 = arith.constant 0 : i32
    %c0_i32_0 = arith.constant 0 : i32
    %c0_i32_1 = arith.constant 0 : i32
    return %c0_i32, %c0_i32_0 : i32, i32
  }
  func.func @transform_4(%arg0: i32) -> (i32, i32) {
    %c0_i32 = arith.constant 0 : i32
    %c0_i32_0 = arith.constant 0 : i32
    %c0_i32_1 = arith.constant 0 : i32
    return %c0_i32, %c0_i32_0 : i32, i32
  }
  func.func @transform_5(%arg0: i32) -> (i32, i32) {
    %c0_i32 = arith.constant 0 : i32
    %c0_i32_0 = arith.constant 0 : i32
    %c0_i32_1 = arith.constant 0 : i32
    return %c0_i32, %c0_i32_0 : i32, i32
  }
  func.func @transform_6(%arg0: i32) -> (i32, i32) {
    %c0_i32 = arith.constant 0 : i32
    %c0_i32_0 = arith.constant 0 : i32
    %c0_i32_1 = arith.constant 0 : i32
    return %c0_i32, %c0_i32_0 : i32, i32
  }
  func.func @transform_7(%arg0: i32) -> (i32, i32) {
    %c0_i32 = arith.constant 0 : i32
    %c0_i32_0 = arith.constant 0 : i32
    %c0_i32_1 = arith.constant 0 : i32
    return %c0_i32, %c0_i32_0 : i32, i32
  }
  func.func @transform_8(%arg0: i32) -> (i32, i32, i32) {
    %c0_i32 = arith.constant 0 : i32
    %c0_i32_0 = arith.constant 0 : i32
    %c0_i32_1 = arith.constant 0 : i32
    %c0_i32_2 = arith.constant 0 : i32
    return %c0_i32, %c0_i32_0, %c0_i32_1 : i32, i32, i32
  }
  func.func @transform_9(%arg0: i32) -> (i32, i32) {
    %c0_i32 = arith.constant 0 : i32
    %c0_i32_0 = arith.constant 0 : i32
    %c0_i32_1 = arith.constant 0 : i32
    return %c0_i32, %c0_i32_0 : i32, i32
  }
  func.func @transform_10(%arg0: i32) -> (i32, i32) {
    %c0_i32 = arith.constant 0 : i32
    %c0_i32_0 = arith.constant 0 : i32
    %c0_i32_1 = arith.constant 0 : i32
    return %c0_i32, %c0_i32_0 : i32, i32
  }
  func.func @transform_11(%arg0: i32) -> (i32, i32) {
    %c0_i32 = arith.constant 0 : i32
    %c0_i32_0 = arith.constant 0 : i32
    %c0_i32_1 = arith.constant 0 : i32
    return %c0_i32, %c0_i32_0 : i32, i32
  }
  func.func @transform_12(%arg0: i32) -> (i32, i32) {
    %c0_i32 = arith.constant 0 : i32
    %c0_i32_0 = arith.constant 0 : i32
    %c0_i32_1 = arith.constant 0 : i32
    return %c0_i32, %c0_i32_0 : i32, i32
  }
  func.func @transform_13(%arg0: i32) -> (i32, i32) {
    %c0_i32 = arith.constant 0 : i32
    %c0_i32_0 = arith.constant 0 : i32
    %c0_i32_1 = arith.constant 0 : i32
    return %c0_i32, %c0_i32_0 : i32, i32
  }
  func.func @transform_14(%arg0: i32) -> (i32, i32) {
    %c0_i32 = arith.constant 0 : i32
    %c0_i32_0 = arith.constant 0 : i32
    %c0_i32_1 = arith.constant 0 : i32
    return %c0_i32, %c0_i32_0 : i32, i32
  }
  func.func @transform_15(%arg0: i32) -> (i32, i32, i32) {
    %c0_i32 = arith.constant 0 : i32
    %c0_i32_0 = arith.constant 0 : i32
    %c0_i32_1 = arith.constant 0 : i32
    return %arg0, %c0_i32, %c0_i32_0 : i32, i32, i32
  }
}

</mosaic_0001>

<llo_original>
// kernel: _lambda_.3
$region0: #{_lambda_.3}
  #allocation0 [shape = 'u32[]', space=smem, size = 0x4, offset = 0x4, fixed_abs, tag = 'smem constant byte address 0x4 - core index']
  #allocation1 [shape = 'u32[144,128]{1,0:T(1,128)}', space=vmem, size = 0x12000, scoped, tag = 'internal scratch']
  %s0 = inlined_call_operand.vmem [shape: f32[128,64], index: 0, kind: input, shape index: {}]
  %s1 = inlined_call_operand.vmem [shape: f32[1,64], index: 1, kind: input, shape index: {}]
  %s2 = inlined_call_operand.vmem [shape: f32[1,64], index: 2, kind: input, shape index: {}]
  %s3 = inlined_call_operand.vmem [shape: bf16[64,32], index: 3, kind: input, shape index: {}]
  %s4 = inlined_call_operand.vmem [shape: f32[128,32], index: 4, kind: output, shape index: {}]
  %s5 = sld [smem:[#allocation0]]
  $region26: #{_lambda_.3} parent=0
    _
  %s7 = ssub.s32 1, %s5
  %s8 = scalar_select 0, %s7, %s5
  // Predicated region
  $region2: #{_lambda_.3} parent=0 // pred_check
    _
  $region3: #{_lambda_.3} parent=0 // pred_check_branch
    %10 = sbr.rel (0) target = $region5
  $region4: #{_lambda_.3} parent=0 // pred_region
    _
  $region5: #{_lambda_.3} parent=0 // pred_fallthru
    _
  // Predicated region
  $region6: #{_lambda_.3} parent=0 // pred_check
    _
  $region7: #{_lambda_.3} parent=0 // pred_check_branch
    %12 = sbr.rel (0) target = $region9
  $region8: #{_lambda_.3} parent=0 // pred_region
    _
  $region9: #{_lambda_.3} parent=0 // pred_fallthru
    _
  // Predicated region
  $region10: #{_lambda_.3} parent=0 // pred_check
    _
  $region11: #{_lambda_.3} parent=0 // pred_check_branch
    %14 = sbr.rel (0) target = $region13
  $region12: #{_lambda_.3} parent=0 // pred_region
    _
  $region13: #{_lambda_.3} parent=0 // pred_fallthru
    _
  // Predicated region
  $region14: #{_lambda_.3} parent=0 // pred_check
    _
  $region15: #{_lambda_.3} parent=0 // pred_check_branch
    %16 = sbr.rel (0) target = $region17
  $region16: #{_lambda_.3} parent=0 // pred_region
    _
  $region17: #{_lambda_.3} parent=0 // pred_fallthru
    _
  %v18 = vld [vmem:[%s0] sm:$0xff]
  %v19 = vld [vmem:[%s0 + $0x8] sm:$0xff]
  %v20 = vld [vmem:[%s0 + $0x10] sm:$0xff]
  %v21 = vld [vmem:[%s0 + $0x18] sm:$0xff]
  %v22 = vld [vmem:[%s0 + $0x20] sm:$0xff]
  %v23 = vld [vmem:[%s0 + $0x28] sm:$0xff]
  %v24 = vld [vmem:[%s0 + $0x30] sm:$0xff]
  %v25 = vld [vmem:[%s0 + $0x38] sm:$0xff]
  %v26 = vld [vmem:[%s0 + $0x40] sm:$0xff]
  %v27 = vld [vmem:[%s0 + $0x48] sm:$0xff]
  %v28 = vld [vmem:[%s0 + $0x50] sm:$0xff]
  %v29 = vld [vmem:[%s0 + $0x58] sm:$0xff]
  %v30 = vld [vmem:[%s0 + $0x60] sm:$0xff]
  %v31 = vld [vmem:[%s0 + $0x68] sm:$0xff]
  %v32 = vld [vmem:[%s0 + $0x70] sm:$0xff]
  %v33 = vld [vmem:[%s0 + $0x78] sm:$0xff]
  %v34 = vld [vmem:[%s1] sm:$0x1]
  %v35 = vld [vmem:[%s2] sm:$0x1]
  %vm36 = vcmask 523264
  %v37 = vsel %vm36, %v18, 0.0
  %38 = vadd.xlane.f32.xlu0 %v37
  %v39 = vpop.xlane.xlu0 %38
  %v40 = vsel %vm36, %v19, 0.0
  %41 = vadd.xlane.f32.xlu0 %v40
  %v42 = vpop.xlane.xlu0 %41
  %v43 = vsel %vm36, %v20, 0.0
  %44 = vadd.xlane.f32.xlu0 %v43
  %v45 = vpop.xlane.xlu0 %44
  %v46 = vsel %vm36, %v21, 0.0
  %47 = vadd.xlane.f32.xlu0 %v46
  %v48 = vpop.xlane.xlu0 %47
  %v49 = vsel %vm36, %v22, 0.0
  %50 = vadd.xlane.f32.xlu0 %v49
  %v51 = vpop.xlane.xlu0 %50
  %v52 = vsel %vm36, %v23, 0.0
  %53 = vadd.xlane.f32.xlu0 %v52
  %v54 = vpop.xlane.xlu0 %53
  %v55 = vsel %vm36, %v24, 0.0
  %56 = vadd.xlane.f32.xlu0 %v55
  %v57 = vpop.xlane.xlu0 %56
  %v58 = vsel %vm36, %v25, 0.0
  %59 = vadd.xlane.f32.xlu0 %v58
  %v60 = vpop.xlane.xlu0 %59
  %v61 = vsel %vm36, %v26, 0.0
  %62 = vadd.xlane.f32.xlu0 %v61
  %v63 = vpop.xlane.xlu0 %62
  %v64 = vsel %vm36, %v27, 0.0
  %65 = vadd.xlane.f32.xlu0 %v64
  %v66 = vpop.xlane.xlu0 %65
  %v67 = vsel %vm36, %v28, 0.0
  %68 = vadd.xlane.f32.xlu0 %v67
  %v69 = vpop.xlane.xlu0 %68
  %v70 = vsel %vm36, %v29, 0.0
  %71 = vadd.xlane.f32.xlu0 %v70
  %v72 = vpop.xlane.xlu0 %71
  %v73 = vsel %vm36, %v30, 0.0
  %74 = vadd.xlane.f32.xlu0 %v73
  %v75 = vpop.xlane.xlu0 %74
  %v76 = vsel %vm36, %v31, 0.0
  %77 = vadd.xlane.f32.xlu0 %v76
  %v78 = vpop.xlane.xlu0 %77
  %v79 = vsel %vm36, %v32, 0.0
  %80 = vadd.xlane.f32.xlu0 %v79
  %v81 = vpop.xlane.xlu0 %80
  %v82 = vsel %vm36, %v33, 0.0
  %83 = vadd.xlane.f32.xlu0 %v82
  %v84 = vpop.xlane.xlu0 %83
  %v85 = vrcp.pop 64.0
  %v86 = vmul.f32 %v39, %v85
  %v87 = vmul.f32 %v42, %v85
  %v88 = vmul.f32 %v45, %v85
  %v89 = vmul.f32 %v48, %v85
  %v90 = vmul.f32 %v51, %v85
  %v91 = vmul.f32 %v54, %v85
  %v92 = vmul.f32 %v57, %v85
  %v93 = vmul.f32 %v60, %v85
  %v94 = vmul.f32 %v63, %v85
  %v95 = vmul.f32 %v66, %v85
  %v96 = vmul.f32 %v69, %v85
  %v97 = vmul.f32 %v72, %v85
  %v98 = vmul.f32 %v75, %v85
  %v99 = vmul.f32 %v78, %v85
  %v100 = vmul.f32 %v81, %v85
  %v101 = vmul.f32 %v84, %v85
  %v102 = vsub.f32 %v18, %v86
  %v103 = vsub.f32 %v19, %v87
  %v104 = vsub.f32 %v20, %v88
  %v105 = vsub.f32 %v21, %v89
  %v106 = vsub.f32 %v22, %v90
  %v107 = vsub.f32 %v23, %v91
  %v108 = vsub.f32 %v24, %v92
  %v109 = vsub.f32 %v25, %v93
  %v110 = vsub.f32 %v26, %v94
  %v111 = vsub.f32 %v27, %v95
  %v112 = vsub.f32 %v28, %v96
  %v113 = vsub.f32 %v29, %v97
  %v114 = vsub.f32 %v30, %v98
  %v115 = vsub.f32 %v31, %v99
  %v116 = vsub.f32 %v32, %v100
  %v117 = vsub.f32 %v33, %v101
  %v118 = vmul.f32 %v102, %v102
  %v119 = vmul.f32 %v103, %v103
  %v120 = vmul.f32 %v104, %v104
  %v121 = vmul.f32 %v105, %v105
  %v122 = vmul.f32 %v106, %v106
  %v123 = vmul.f32 %v107, %v107
  %v124 = vmul.f32 %v108, %v108
  %v125 = vmul.f32 %v109, %v109
  %v126 = vmul.f32 %v110, %v110
  %v127 = vmul.f32 %v111, %v111
  %v128 = vmul.f32 %v112, %v112
  %v129 = vmul.f32 %v113, %v113
  %v130 = vmul.f32 %v114, %v114
  %v131 = vmul.f32 %v115, %v115
  %v132 = vmul.f32 %v116, %v116
  %v133 = vmul.f32 %v117, %v117
  %v134 = vsel %vm36, %v118, 0.0
  %135 = vadd.xlane.f32.xlu0 %v134
  %v136 = vpop.xlane.xlu0 %135
  %v137 = vsel %vm36, %v119, 0.0
  %138 = vadd.xlane.f32.xlu0 %v137
  %v139 = vpop.xlane.xlu0 %138
  %v140 = vsel %vm36, %v120, 0.0
  %141 = vadd.xlane.f32.xlu0 %v140
  %v142 = vpop.xlane.xlu0 %141
  %v143 = vsel %vm36, %v121, 0.0
  %144 = vadd.xlane.f32.xlu0 %v143
  %v145 = vpop.xlane.xlu0 %144
  %v146 = vsel %vm36, %v122, 0.0
  %147 = vadd.xlane.f32.xlu0 %v146
  %v148 = vpop.xlane.xlu0 %147
  %v149 = vsel %vm36, %v123, 0.0
  %150 = vadd.xlane.f32.xlu0 %v149
  %v151 = vpop.xlane.xlu0 %150
  %v152 = vsel %vm36, %v124, 0.0
  %153 = vadd.xlane.f32.xlu0 %v152
  %v154 = vpop.xlane.xlu0 %153
  %v155 = vsel %vm36, %v125, 0.0
  %156 = vadd.xlane.f32.xlu0 %v155
  %v157 = vpop.xlane.xlu0 %156
  %v158 = vsel %vm36, %v126, 0.0
  %159 = vadd.xlane.f32.xlu0 %v158
  %v160 = vpop.xlane.xlu0 %159
  %v161 = vsel %vm36, %v127, 0.0
  %162 = vadd.xlane.f32.xlu0 %v161
  %v163 = vpop.xlane.xlu0 %162
  %v164 = vsel %vm36, %v128, 0.0
  %165 = vadd.xlane.f32.xlu0 %v164
  %v166 = vpop.xlane.xlu0 %165
  %v167 = vsel %vm36, %v129, 0.0
  %168 = vadd.xlane.f32.xlu0 %v167
  %v169 = vpop.xlane.xlu0 %168
  %v170 = vsel %vm36, %v130, 0.0
  %171 = vadd.xlane.f32.xlu0 %v170
  %v172 = vpop.xlane.xlu0 %171
  %v173 = vsel %vm36, %v131, 0.0
  %174 = vadd.xlane.f32.xlu0 %v173
  %v175 = vpop.xlane.xlu0 %174
  %v176 = vsel %vm36, %v132, 0.0
  %177 = vadd.xlane.f32.xlu0 %v176
  %v178 = vpop.xlane.xlu0 %177
  %v179 = vsel %vm36, %v133, 0.0
  %180 = vadd.xlane.f32.xlu0 %v179
  %v181 = vpop.xlane.xlu0 %180
  %v182 = vmul.f32 %v136, %v85
  %v183 = vmul.f32 %v139, %v85
  %v184 = vmul.f32 %v142, %v85
  %v185 = vmul.f32 %v145, %v85
  %v186 = vmul.f32 %v148, %v85
  %v187 = vmul.f32 %v151, %v85
  %v188 = vmul.f32 %v154, %v85
  %v189 = vmul.f32 %v157, %v85
  %v190 = vmul.f32 %v160, %v85
  %v191 = vmul.f32 %v163, %v85
  %v192 = vmul.f32 %v166, %v85
  %v193 = vmul.f32 %v169, %v85
  %v194 = vmul.f32 %v172, %v85
  %v195 = vmul.f32 %v175, %v85
  %v196 = vmul.f32 %v178, %v85
  %v197 = vmul.f32 %v181, %v85
  %v198 = vadd.f32 %v182, 1e-05
  %v199 = vadd.f32 %v183, 1e-05
  %v200 = vadd.f32 %v184, 1e-05
  %v201 = vadd.f32 %v185, 1e-05
  %v202 = vadd.f32 %v186, 1e-05
  %v203 = vadd.f32 %v187, 1e-05
  %v204 = vadd.f32 %v188, 1e-05
  %v205 = vadd.f32 %v189, 1e-05
  %v206 = vadd.f32 %v190, 1e-05
  %v207 = vadd.f32 %v191, 1e-05
  %v208 = vadd.f32 %v192, 1e-05
  %v209 = vadd.f32 %v193, 1e-05
  %v210 = vadd.f32 %v194, 1e-05
  %v211 = vadd.f32 %v195, 1e-05
  %v212 = vadd.f32 %v196, 1e-05
  %v213 = vadd.f32 %v197, 1e-05
  %v214 = vrsqrt.pop %v198
  %v215 = vrsqrt.pop %v199
  %v216 = vrsqrt.pop %v200
  %v217 = vrsqrt.pop %v201
  %v218 = vrsqrt.pop %v202
  %v219 = vrsqrt.pop %v203
  %v220 = vrsqrt.pop %v204
  %v221 = vrsqrt.pop %v205
  %v222 = vrsqrt.pop %v206
  %v223 = vrsqrt.pop %v207
  %v224 = vrsqrt.pop %v208
  %v225 = vrsqrt.pop %v209
  %v226 = vrsqrt.pop %v210
  %v227 = vrsqrt.pop %v211
  %v228 = vrsqrt.pop %v212
  %v229 = vrsqrt.pop %v213
  %v230 = vmul.f32 %v102, %v214
  %v231 = vmul.f32 %v103, %v215
  %v232 = vmul.f32 %v104, %v216
  %v233 = vmul.f32 %v105, %v217
  %v234 = vmul.f32 %v106, %v218
  %v235 = vmul.f32 %v107, %v219
  %v236 = vmul.f32 %v108, %v220
  %v237 = vmul.f32 %v109, %v221
  %v238 = vmul.f32 %v110, %v222
  %v239 = vmul.f32 %v111, %v223
  %v240 = vmul.f32 %v112, %v224
  %v241 = vmul.f32 %v113, %v225
  %v242 = vmul.f32 %v114, %v226
  %v243 = vmul.f32 %v115, %v227
  %v244 = vmul.f32 %v116, %v228
  %v245 = vmul.f32 %v117, %v229
  %v247 = vlaneseq
  %v248 = vshrl.u32 %v247, 7
  %v249 = vsub.s32 0, %v248
  %v250 = vrot.slane %v34, %v249
  %v252 = vmul.f32 %v230, %v250
  %v253 = vmul.f32 %v231, %v250
  %v254 = vmul.f32 %v232, %v250
  %v255 = vmul.f32 %v233, %v250
  %v256 = vmul.f32 %v234, %v250
  %v257 = vmul.f32 %v235, %v250
  %v258 = vmul.f32 %v236, %v250
  %v259 = vmul.f32 %v237, %v250
  %v260 = vmul.f32 %v238, %v250
  %v261 = vmul.f32 %v239, %v250
  %v262 = vmul.f32 %v240, %v250
  %v263 = vmul.f32 %v241, %v250
  %v264 = vmul.f32 %v242, %v250
  %v265 = vmul.f32 %v243, %v250
  %v266 = vmul.f32 %v244, %v250
  %v267 = vmul.f32 %v245, %v250
  %v269 = vlaneseq
  %v270 = vshrl.u32 %v269, 7
  %v271 = vsub.s32 0, %v270
  %v272 = vrot.slane %v35, %v271
  %v274 = vadd.f32 %v252, %v272
  %v275 = vadd.f32 %v253, %v272
  %v276 = vadd.f32 %v254, %v272
  %v277 = vadd.f32 %v255, %v272
  %v278 = vadd.f32 %v256, %v272
  %v279 = vadd.f32 %v257, %v272
  %v280 = vadd.f32 %v258, %v272
  %v281 = vadd.f32 %v259, %v272
  %v282 = vadd.f32 %v260, %v272
  %v283 = vadd.f32 %v261, %v272
  %v284 = vadd.f32 %v262, %v272
  %v285 = vadd.f32 %v263, %v272
  %v286 = vadd.f32 %v264, %v272
  %v287 = vadd.f32 %v265, %v272
  %v288 = vadd.f32 %v266, %v272
  %v289 = vadd.f32 %v267, %v272
  %v290 = vpack.c.bf16 %v275, %v274
  %v291 = vpack.c.bf16 %v277, %v276
  %v292 = vpack.c.bf16 %v279, %v278
  %v293 = vpack.c.bf16 %v281, %v280
  %v294 = vpack.c.bf16 %v283, %v282
  %v295 = vpack.c.bf16 %v285, %v284
  %v296 = vpack.c.bf16 %v287, %v286
  %v297 = vpack.c.bf16 %v289, %v288
  %v298 = vld [vmem:[%s3] sm:$0xf]
  %v299 = vld [vmem:[%s3 + $0x4] sm:$0xf]
  %v300 = vld [vmem:[%s3 + $0x8] sm:$0xf]
  %v301 = vld [vmem:[%s3 + $0xc] sm:$0xf]
  %v302 = vld [vmem:[%s3 + $0x10] sm:$0xf]
  %v303 = vld [vmem:[%s3 + $0x14] sm:$0xf]
  %v304 = vld [vmem:[%s3 + $0x18] sm:$0xf]
  %v305 = vld [vmem:[%s3 + $0x1c] sm:$0xf]
  %v314 = vunpack.c.l.b16 %v298
  %v315 = vunpack.c.l.b16 %v299
  %v316 = vunpack.c.l.b16 %v300
  %v317 = vunpack.c.l.b16 %v301
  %v318 = vunpack.c.l.b16 %v302
  %v319 = vunpack.c.l.b16 %v303
  %v320 = vunpack.c.l.b16 %v304
  %v321 = vunpack.c.l.b16 %v305
  %v322 = vpack.c.b16 %v315, %v314
  %v323 = vpack.c.b16 %v317, %v316
  %v324 = vpack.c.b16 %v319, %v318
  %v325 = vpack.c.b16 %v321, %v320
  %v331 = vsel %vm36, %v290, 0
  %v334 = vsel %vm36, %v291, 0
  %v337 = vsel %vm36, %v292, 0
  %v340 = vsel %vm36, %v293, 0
  %v343 = vsel %vm36, %v294, 0
  %v346 = vsel %vm36, %v295, 0
  %v349 = vsel %vm36, %v296, 0
  %v352 = vsel %vm36, %v297, 0
  %354 = vmatprep.subr.bf16.mxu0 0
  %355 = vmatpush1.bf16.msra.mxu0 %v322
  %356 = vmatprep.subr.bf16.mxu0 0
  %357 = vmatpush1.bf16.msra.mxu0 %v323
  %358 = vmatprep.subr.bf16.mxu0 0
  %359 = vmatpush1.bf16.msra.mxu0 %v324
  %360 = vmatprep.subr.bf16.mxu0 0
  %361 = vmatpush1.bf16.msra.mxu0 %v325
  %362 = vmatprep.subr.bf16.mxu0 0
  %363 = vmatpush1.bf16.msra.mxu0 0
  %364 = vmatprep.subr.bf16.mxu0 0
  %365 = vmatpush1.bf16.msra.mxu0 0
  %366 = vmatprep.subr.bf16.mxu0 0
  %367 = vmatpush1.bf16.msra.mxu0 0
  %368 = vmatprep.subr.bf16.mxu0 0
  %369 = vmatpush1.bf16.msra.mxu0 0
  %370 = vmatprep.subr.bf16.mxu0 0
  %371 = vmatpush1.bf16.msra.mxu0 0
  %372 = vmatprep.subr.bf16.mxu0 0
  %373 = vmatpush1.bf16.msra.mxu0 0
  %374 = vmatprep.subr.bf16.mxu0 0
  %375 = vmatpush1.bf16.msra.mxu0 0
  %376 = vmatprep.subr.bf16.mxu0 0
  %377 = vmatpush1.bf16.msra.mxu0 0
  %378 = vmatprep.subr.bf16.mxu0 0
  %379 = vmatpush1.bf16.msra.mxu0 0
  %380 = vmatprep.subr.bf16.mxu0 0
  %381 = vmatpush1.bf16.msra.mxu0 0
  %382 = vmatprep.subr.bf16.mxu0 0
  %383 = vmatpush1.bf16.msra.mxu0 0
  %384 = vmatprep.subr.bf16.mxu0 0
  %385 = vmatpush1.bf16.msra.mxu0 0
  %386 = vmatprep.mubr.bf16.mxu0 0
  %387 = vmatmul.mubr.bf16.gmra.mrb[0].mxu0 %v331
  %v388 = vpop.f32.mrb[0].mxu0
  %v389 = vadd.f32 0.0, %v388
  %v390 = vpop.f32.mrb[0].mxu0
  %v391 = vpop.f32.mrb[0].mxu0
  %v392 = vadd.f32 0.0, %v391
  %v393 = vpop.f32.mrb[0].mxu0
  %394 = vmatprep.mubr.bf16.mxu0 0
  %395 = vmatmul.mubr.bf16.gmra.mrb[0].mxu0 %v334
  %v396 = vpop.f32.mrb[0].mxu0
  %v397 = vadd.f32 0.0, %v396
  %v398 = vpop.f32.mrb[0].mxu0
  %v399 = vpop.f32.mrb[0].mxu0
  %v400 = vadd.f32 0.0, %v399
  %v401 = vpop.f32.mrb[0].mxu0
  %402 = vmatprep.mubr.bf16.mxu0 0
  %403 = vmatmul.mubr.bf16.gmra.mrb[0].mxu0 %v337
  %v404 = vpop.f32.mrb[0].mxu0
  %v405 = vadd.f32 0.0, %v404
  %v406 = vpop.f32.mrb[0].mxu0
  %v407 = vpop.f32.mrb[0].mxu0
  %v408 = vadd.f32 0.0, %v407
  %v409 = vpop.f32.mrb[0].mxu0
  %410 = vmatprep.mubr.bf16.mxu0 0
  %411 = vmatmul.mubr.bf16.gmra.mrb[0].mxu0 %v340
  %v412 = vpop.f32.mrb[0].mxu0
  %v413 = vadd.f32 0.0, %v412
  %v414 = vpop.f32.mrb[0].mxu0
  %v415 = vpop.f32.mrb[0].mxu0
  %v416 = vadd.f32 0.0, %v415
  %v417 = vpop.f32.mrb[0].mxu0
  %418 = vmatprep.mubr.bf16.mxu0 0
  %419 = vmatmul.mubr.bf16.gmra.mrb[0].mxu0 %v343
  %v420 = vpop.f32.mrb[0].mxu0
  %v421 = vadd.f32 0.0, %v420
  %v422 = vpop.f32.mrb[0].mxu0
  %v423 = vpop.f32.mrb[0].mxu0
  %v424 = vadd.f32 0.0, %v423
  %v425 = vpop.f32.mrb[0].mxu0
  %426 = vmatprep.mubr.bf16.mxu0 0
  %427 = vmatmul.mubr.bf16.gmra.mrb[0].mxu0 %v346
  %v428 = vpop.f32.mrb[0].mxu0
  %v429 = vadd.f32 0.0, %v428
  %v430 = vpop.f32.mrb[0].mxu0
  %v431 = vpop.f32.mrb[0].mxu0
  %v432 = vadd.f32 0.0, %v431
  %v433 = vpop.f32.mrb[0].mxu0
  %434 = vmatprep.mubr.bf16.mxu0 0
  %435 = vmatmul.mubr.bf16.gmra.mrb[0].mxu0 %v349
  %v436 = vpop.f32.mrb[0].mxu0
  %v437 = vadd.f32 0.0, %v436
  %v438 = vpop.f32.mrb[0].mxu0
  %v439 = vpop.f32.mrb[0].mxu0
  %v440 = vadd.f32 0.0, %v439
  %v441 = vpop.f32.mrb[0].mxu0
  %442 = vmatprep.mubr.bf16.mxu0 0
  %443 = vmatmul.mubr.bf16.gmra.mrb[0].mxu0 %v352
  %v444 = vpop.f32.mrb[0].mxu0
  %v445 = vadd.f32 0.0, %v444
  %v446 = vpop.f32.mrb[0].mxu0
  %v447 = vpop.f32.mrb[0].mxu0
  %v448 = vadd.f32 0.0, %v447
  %v449 = vpop.f32.mrb[0].mxu0
  %450 = vdwg.mxu0
  %vm451 = vcmask 261120
  %452 = vst.msk [vmem:[%s4] sm:$0xff] %vm451, %v389
  %453 = vst.msk [vmem:[%s4 + $0x8] sm:$0xff] %vm451, %v392
  %454 = vst.msk [vmem:[%s4 + $0x10] sm:$0xff] %vm451, %v397
  %455 = vst.msk [vmem:[%s4 + $0x18] sm:$0xff] %vm451, %v400
  %456 = vst.msk [vmem:[%s4 + $0x20] sm:$0xff] %vm451, %v405
  %457 = vst.msk [vmem:[%s4 + $0x28] sm:$0xff] %vm451, %v408
  %458 = vst.msk [vmem:[%s4 + $0x30] sm:$0xff] %vm451, %v413
  %459 = vst.msk [vmem:[%s4 + $0x38] sm:$0xff] %vm451, %v416
  %460 = vst.msk [vmem:[%s4 + $0x40] sm:$0xff] %vm451, %v421
  %461 = vst.msk [vmem:[%s4 + $0x48] sm:$0xff] %vm451, %v424
  %462 = vst.msk [vmem:[%s4 + $0x50] sm:$0xff] %vm451, %v429
  %463 = vst.msk [vmem:[%s4 + $0x58] sm:$0xff] %vm451, %v432
  %464 = vst.msk [vmem:[%s4 + $0x60] sm:$0xff] %vm451, %v437
  %465 = vst.msk [vmem:[%s4 + $0x68] sm:$0xff] %vm451, %v440
  %466 = vst.msk [vmem:[%s4 + $0x70] sm:$0xff] %vm451, %v445
  %467 = vst.msk [vmem:[%s4 + $0x78] sm:$0xff] %vm451, %v448
  // Predicated region
  $region18: #{_lambda_.3} parent=0 // pred_check
    _
  $region19: #{_lambda_.3} parent=0 // pred_check_branch
    %469 = sbr.rel (0) target = $region21
  $region20: #{_lambda_.3} parent=0 // pred_region
    _
  $region21: #{_lambda_.3} parent=0 // pred_fallthru
    _
  // Predicated region
  $region22: #{_lambda_.3} parent=0 // pred_check
    _
  $region23: #{_lambda_.3} parent=0 // pred_check_branch
    %471 = sbr.rel (0) target = $region25
  $region24: #{_lambda_.3} parent=0 // pred_region
    _
  $region25: #{_lambda_.3} parent=0 // pred_fallthru
    _

// kernel: _lambda_.5
$region0: #{_lambda_.5}
  #allocation0 [shape = 'u32[]', space=smem, size = 0x4, offset = 0x4, fixed_abs, tag = 'smem constant byte address 0x4 - core index']
  #allocation1 [shape = 'u32[144,128]{1,0:T(1,128)}', space=vmem, size = 0x12000, scoped, tag = 'internal scratch']
  %s0 = inlined_call_operand.vmem [shape: f32[8,16,32], index: 0, kind: input, shape index: {}]
  %s1 = inlined_call_operand.vmem [shape: f32[4,16,16], index: 1, kind: input, shape index: {}]
  %s2 = inlined_call_operand.vmem [shape: f32[1,32], index: 2, kind: input, shape index: {}, may-alias: {2,9}]
  %s3 = inlined_call_operand.vmem [shape: f32[1,32], index: 3, kind: input, shape index: {}, may-alias: {3,10}]
  %s4 = inlined_call_operand.vmem [shape: bf16[32,96], index: 4, kind: input, shape index: {}]
  %s5 = inlined_call_operand.vmem [shape: f32[1,96], index: 5, kind: input, shape index: {}]
  %s6 = inlined_call_operand.vmem [shape: bf16[32,32], index: 6, kind: input, shape index: {}]
  %s7 = inlined_call_operand.vmem [shape: f32[1,32], index: 7, kind: input, shape index: {}]
  %s8 = inlined_call_operand.vmem [shape: f32[4,16,16], index: 8, kind: input, shape index: {}]
  %s9 = inlined_call_operand.vmem [shape: f32[1,32], index: 9, kind: input, shape index: {}, may-alias: {2,9}]
  %s10 = inlined_call_operand.vmem [shape: f32[1,32], index: 10, kind: input, shape index: {}, may-alias: {3,10}]
  %s11 = inlined_call_operand.vmem [shape: bf16[32,128], index: 11, kind: input, shape index: {}]
  %s12 = inlined_call_operand.vmem [shape: f32[1,128], index: 12, kind: input, shape index: {}]
  %s13 = inlined_call_operand.vmem [shape: bf16[128,32], index: 13, kind: input, shape index: {}]
  %s14 = inlined_call_operand.vmem [shape: f32[1,32], index: 14, kind: input, shape index: {}]
  %s15 = inlined_call_operand.vmem [shape: f32[8,16,32], index: 15, kind: output, shape index: {}]
  %s16 = sld [smem:[#allocation0]]
  $region93: #{_lambda_.5} parent=0
    _
  %s18 = ssub.s32 1, %s16
  %s19 = scalar_select 0, %s18, %s16
  loop: start=0, step=1, limit=4
  $region2: #{_lambda_.5} parent=0 // loop_pre_header
    _
  $region3: #{_lambda_.5} parent=0 // loop_header
    %s21 = sphi 0, %s25
    %p22 = scmp.ge.s32.totalorder %s21, 4
    %s31 = sphi 0, %s33
    %s34 = sphi 0, %s31
    %s35 = sphi 0, %s34
    %s51 = sphi 0, %s35
    %s55 = sphi 0, %s55
    %s57 = sphi 0, %s55
    %s58 = sphi 0, %s57
    %s72 = sphi 0, %s58
    %s76 = sphi 0, %s76
    %s78 = sphi 0, %s76
    %s79 = sphi 0, %s78
    %s93 = sphi 0, %s79
    %s97 = sphi 0, %s97
    %s99 = sphi 0, %s97
    %s100 = sphi 0, %s99
    %s114 = sphi 0, %s100
    %s118 = sphi 0, %s118
    %s120 = sphi 0, %s118
    %s121 = sphi 0, %s120
    %s135 = sphi 0, %s121
    %s139 = sphi 0, %s139
    %s141 = sphi 0, %s139
    %s142 = sphi 0, %s141
    %s156 = sphi 0, %s142
    %s160 = sphi 0, %s160
    %s162 = sphi 0, %s160
    %s163 = sphi 0, %s162
    %s177 = sphi 0, %s163
    %s181 = sphi 0, %s181
    %s183 = sphi 0, %s181
    %s184 = sphi 0, %s183
    %s198 = sphi 0, %s184
    %s202 = sphi 0, %s202
    %s204 = sphi 0, %s202
    %s205 = sphi 0, %s204
    %s219 = sphi 0, %s205
    %s223 = sphi 0, %s223
    %s225 = sphi 0, %s223
    %s226 = sphi 0, %s225
    %s240 = sphi 0, %s226
    %s244 = sphi 0, %s244
    %s246 = sphi 0, %s244
    %s247 = sphi 0, %s246
    %s261 = sphi 0, %s247
    %s265 = sphi 0, %s265
    %s267 = sphi 0, %s265
    %s268 = sphi 0, %s267
    %s282 = sphi 0, %s268
    %s286 = sphi 0, %s286
    %s288 = sphi 0, %s286
    %s289 = sphi 0, %s288
    %s303 = sphi 0, %s289
    %s307 = sphi 0, %s307
    %s309 = sphi 0, %s307
    %s310 = sphi 0, %s309
    %s324 = sphi 0, %s310
    %s328 = sphi 0, %s328
    %s330 = sphi 0, %s328
    %s331 = sphi 0, %s330
    %s345 = sphi 0, %s331
    %s351 = sphi 0, %s353
    %s354 = sphi 0, %s351
    %s355 = sphi 0, %s354
    %s371 = sphi 0, %s355
  $region4: #{_lambda_.5} parent=0 // loop_header_branch
    %24 = sbr.rel (%p22) target = $region8
  $region5: #{_lambda_.5} parent=0 // loop_body
    %s26 = ssub.s32 %s21, 1
    %s27 = ssub.s32 %s21, 2
    %s28 = sadd.s32 %s21, 1
    %s29 = ssub.s32 %s21, %s28
    %p30 = scmp.eq.s32.totalorder %s29, 0
    %s32 = sadd.s32 %s31, 1
    %s33 = scalar_select %p30, %s31, %s32
    %p36 = pneg %p30
    %p37 = scmp.eq.s32.totalorder %s21, 1
    %p38 = por %p36, %p37
    %p39 = scmp.ne.s32.totalorder %s31, %s34
    %p40 = scmp.eq.s32.totalorder %s21, 0
    %p41 = por %p39, %p40
    %p42 = scmp.ne.s32.totalorder %s31, %s34
    %p43 = scmp.eq.s32.totalorder %s26, 1
    %p44 = por %p42, %p43
    %p45 = scmp.ne.s32.totalorder %s34, %s35
    %p46 = scmp.eq.s32.totalorder %s26, 0
    %p47 = por %p45, %p46
    %p48 = scmp.ne.s32.totalorder %s34, %s35
    %p49 = scmp.eq.s32.totalorder %s27, 1
    %p50 = por %p48, %p49
    %p52 = scmp.ne.s32.totalorder %s35, %s51
    %p53 = scmp.eq.s32.totalorder %s27, 0
    %p54 = por %p52, %p53
    %s56 = sadd.s32 %s55, 1
    %p59 = scmp.eq.s32.totalorder %s21, 1
    %p60 = scmp.ne.s32.totalorder %s55, %s57
    %p61 = scmp.eq.s32.totalorder %s21, 0
    %p62 = por %p60, %p61
    %p63 = scmp.ne.s32.totalorder %s55, %s57
    %p64 = scmp.eq.s32.totalorder %s26, 1
    %p65 = por %p63, %p64
    %p66 = scmp.ne.s32.totalorder %s57, %s58
    %p67 = scmp.eq.s32.totalorder %s26, 0
    %p68 = por %p66, %p67
    %p69 = scmp.ne.s32.totalorder %s57, %s58
    %p70 = scmp.eq.s32.totalorder %s27, 1
    %p71 = por %p69, %p70
    %p73 = scmp.ne.s32.totalorder %s58, %s72
    %p74 = scmp.eq.s32.totalorder %s27, 0
    %p75 = por %p73, %p74
    %s77 = sadd.s32 %s76, 1
    %p80 = scmp.eq.s32.totalorder %s21, 1
    %p81 = scmp.ne.s32.totalorder %s76, %s78
    %p82 = scmp.eq.s32.totalorder %s21, 0
    %p83 = por %p81, %p82
    %p84 = scmp.ne.s32.totalorder %s76, %s78
    %p85 = scmp.eq.s32.totalorder %s26, 1
    %p86 = por %p84, %p85
    %p87 = scmp.ne.s32.totalorder %s78, %s79
    %p88 = scmp.eq.s32.totalorder %s26, 0
    %p89 = por %p87, %p88
    %p90 = scmp.ne.s32.totalorder %s78, %s79
    %p91 = scmp.eq.s32.totalorder %s27, 1
    %p92 = por %p90, %p91
    %p94 = scmp.ne.s32.totalorder %s79, %s93
    %p95 = scmp.eq.s32.totalorder %s27, 0
    %p96 = por %p94, %p95
    %s98 = sadd.s32 %s97, 1
    %p101 = scmp.eq.s32.totalorder %s21, 1
    %p102 = scmp.ne.s32.totalorder %s97, %s99
    %p103 = scmp.eq.s32.totalorder %s21, 0
    %p104 = por %p102, %p103
    %p105 = scmp.ne.s32.totalorder %s97, %s99
    %p106 = scmp.eq.s32.totalorder %s26, 1
    %p107 = por %p105, %p106
    %p108 = scmp.ne.s32.totalorder %s99, %s100
    %p109 = scmp.eq.s32.totalorder %s26, 0
    %p110 = por %p108, %p109
    %p111 = scmp.ne.s32.totalorder %s99, %s100
    %p112 = scmp.eq.s32.totalorder %s27, 1
    %p113 = por %p111, %p112
    %p115 = scmp.ne.s32.totalorder %s100, %s114
    %p116 = scmp.eq.s32.totalorder %s27, 0
    %p117 = por %p115, %p116
    %s119 = sadd.s32 %s118, 1
    %p122 = scmp.eq.s32.totalorder %s21, 1
    %p123 = scmp.ne.s32.totalorder %s118, %s120
    %p124 = scmp.eq.s32.totalorder %s21, 0
    %p125 = por %p123, %p124
    %p126 = scmp.ne.s32.totalorder %s118, %s120
    %p127 = scmp.eq.s32.totalorder %s26, 1
    %p128 = por %p126, %p127
    %p129 = scmp.ne.s32.totalorder %s120, %s121
    %p130 = scmp.eq.s32.totalorder %s26, 0
    %p131 = por %p129, %p130
    %p132 = scmp.ne.s32.totalorder %s120, %s121
    %p133 = scmp.eq.s32.totalorder %s27, 1
    %p134 = por %p132, %p133
    %p136 = scmp.ne.s32.totalorder %s121, %s135
    %p137 = scmp.eq.s32.totalorder %s27, 0
    %p138 = por %p136, %p137
    %s140 = sadd.s32 %s139, 1
    %p143 = scmp.eq.s32.totalorder %s21, 1
    %p144 = scmp.ne.s32.totalorder %s139, %s141
    %p145 = scmp.eq.s32.totalorder %s21, 0
    %p146 = por %p144, %p145
    %p147 = scmp.ne.s32.totalorder %s139, %s141
    %p148 = scmp.eq.s32.totalorder %s26, 1
    %p149 = por %p147, %p148
    %p150 = scmp.ne.s32.totalorder %s141, %s142
    %p151 = scmp.eq.s32.totalorder %s26, 0
    %p152 = por %p150, %p151
    %p153 = scmp.ne.s32.totalorder %s141, %s142
    %p154 = scmp.eq.s32.totalorder %s27, 1
    %p155 = por %p153, %p154
    %p157 = scmp.ne.s32.totalorder %s142, %s156
    %p158 = scmp.eq.s32.totalorder %s27, 0
    %p159 = por %p157, %p158
    %s161 = sadd.s32 %s160, 1
    %p164 = scmp.eq.s32.totalorder %s21, 1
    %p165 = scmp.ne.s32.totalorder %s160, %s162
    %p166 = scmp.eq.s32.totalorder %s21, 0
    %p167 = por %p165, %p166
    %p168 = scmp.ne.s32.totalorder %s160, %s162
    %p169 = scmp.eq.s32.totalorder %s26, 1
    %p170 = por %p168, %p169
    %p171 = scmp.ne.s32.totalorder %s162, %s163
    %p172 = scmp.eq.s32.totalorder %s26, 0
    %p173 = por %p171, %p172
    %p174 = scmp.ne.s32.totalorder %s162, %s163
    %p175 = scmp.eq.s32.totalorder %s27, 1
    %p176 = por %p174, %p175
    %p178 = scmp.ne.s32.totalorder %s163, %s177
    %p179 = scmp.eq.s32.totalorder %s27, 0
    %p180 = por %p178, %p179
    %s182 = sadd.s32 %s181, 1
    %p185 = scmp.eq.s32.totalorder %s21, 1
    %p186 = scmp.ne.s32.totalorder %s181, %s183
    %p187 = scmp.eq.s32.totalorder %s21, 0
    %p188 = por %p186, %p187
    %p189 = scmp.ne.s32.totalorder %s181, %s183
    %p190 = scmp.eq.s32.totalorder %s26, 1
    %p191 = por %p189, %p190
    %p192 = scmp.ne.s32.totalorder %s183, %s184
    %p193 = scmp.eq.s32.totalorder %s26, 0
    %p194 = por %p192, %p193
    %p195 = scmp.ne.s32.totalorder %s183, %s184
    %p196 = scmp.eq.s32.totalorder %s27, 1
    %p197 = por %p195, %p196
    %p199 = scmp.ne.s32.totalorder %s184, %s198
    %p200 = scmp.eq.s32.totalorder %s27, 0
    %p201 = por %p199, %p200
    %s203 = sadd.s32 %s202, 1
    %p206 = scmp.eq.s32.totalorder %s21, 1
    %p207 = scmp.ne.s32.totalorder %s202, %s204
    %p208 = scmp.eq.s32.totalorder %s21, 0
    %p209 = por %p207, %p208
    %p210 = scmp.ne.s32.totalorder %s202, %s204
    %p211 = scmp.eq.s32.totalorder %s26, 1
    %p212 = por %p210, %p211
    %p213 = scmp.ne.s32.totalorder %s204, %s205
    %p214 = scmp.eq.s32.totalorder %s26, 0
    %p215 = por %p213, %p214
    %p216 = scmp.ne.s32.totalorder %s204, %s205
    %p217 = scmp.eq.s32.totalorder %s27, 1
    %p218 = por %p216, %p217
    %p220 = scmp.ne.s32.totalorder %s205, %s219
    %p221 = scmp.eq.s32.totalorder %s27, 0
    %p222 = por %p220, %p221
    %s224 = sadd.s32 %s223, 1
    %p227 = scmp.eq.s32.totalorder %s21, 1
    %p228 = scmp.ne.s32.totalorder %s223, %s225
    %p229 = scmp.eq.s32.totalorder %s21, 0
    %p230 = por %p228, %p229
    %p231 = scmp.ne.s32.totalorder %s223, %s225
    %p232 = scmp.eq.s32.totalorder %s26, 1
    %p233 = por %p231, %p232
    %p234 = scmp.ne.s32.totalorder %s225, %s226
    %p235 = scmp.eq.s32.totalorder %s26, 0
    %p236 = por %p234, %p235
    %p237 = scmp.ne.s32.totalorder %s225, %s226
    %p238 = scmp.eq.s32.totalorder %s27, 1
    %p239 = por %p237, %p238
    %p241 = scmp.ne.s32.totalorder %s226, %s240
    %p242 = scmp.eq.s32.totalorder %s27, 0
    %p243 = por %p241, %p242
    %s245 = sadd.s32 %s244, 1
    %p248 = scmp.eq.s32.totalorder %s21, 1
    %p249 = scmp.ne.s32.totalorder %s244, %s246
    %p250 = scmp.eq.s32.totalorder %s21, 0
    %p251 = por %p249, %p250
    %p252 = scmp.ne.s32.totalorder %s244, %s246
    %p253 = scmp.eq.s32.totalorder %s26, 1
    %p254 = por %p252, %p253
    %p255 = scmp.ne.s32.totalorder %s246, %s247
    %p256 = scmp.eq.s32.totalorder %s26, 0
    %p257 = por %p255, %p256
    %p258 = scmp.ne.s32.totalorder %s246, %s247
    %p259 = scmp.eq.s32.totalorder %s27, 1
    %p260 = por %p258, %p259
    %p262 = scmp.ne.s32.totalorder %s247, %s261
    %p263 = scmp.eq.s32.totalorder %s27, 0
    %p264 = por %p262, %p263
    %s266 = sadd.s32 %s265, 1
    %p269 = scmp.eq.s32.totalorder %s21, 1
    %p270 = scmp.ne.s32.totalorder %s265, %s267
    %p271 = scmp.eq.s32.totalorder %s21, 0
    %p272 = por %p270, %p271
    %p273 = scmp.ne.s32.totalorder %s265, %s267
    %p274 = scmp.eq.s32.totalorder %s26, 1
    %p275 = por %p273, %p274
    %p276 = scmp.ne.s32.totalorder %s267, %s268
    %p277 = scmp.eq.s32.totalorder %s26, 0
    %p278 = por %p276, %p277
    %p279 = scmp.ne.s32.totalorder %s267, %s268
    %p280 = scmp.eq.s32.totalorder %s27, 1
    %p281 = por %p279, %p280
    %p283 = scmp.ne.s32.totalorder %s268, %s282
    %p284 = scmp.eq.s32.totalorder %s27, 0
    %p285 = por %p283, %p284
    %s287 = sadd.s32 %s286, 1
    %p290 = scmp.eq.s32.totalorder %s21, 1
    %p291 = scmp.ne.s32.totalorder %s286, %s288
    %p292 = scmp.eq.s32.totalorder %s21, 0
    %p293 = por %p291, %p292
    %p294 = scmp.ne.s32.totalorder %s286, %s288
    %p295 = scmp.eq.s32.totalorder %s26, 1
    %p296 = por %p294, %p295
    %p297 = scmp.ne.s32.totalorder %s288, %s289
    %p298 = scmp.eq.s32.totalorder %s26, 0
    %p299 = por %p297, %p298
    %p300 = scmp.ne.s32.totalorder %s288, %s289
    %p301 = scmp.eq.s32.totalorder %s27, 1
    %p302 = por %p300, %p301
    %p304 = scmp.ne.s32.totalorder %s289, %s303
    %p305 = scmp.eq.s32.totalorder %s27, 0
    %p306 = por %p304, %p305
    %s308 = sadd.s32 %s307, 1
    %p311 = scmp.eq.s32.totalorder %s21, 1
    %p312 = scmp.ne.s32.totalorder %s307, %s309
    %p313 = scmp.eq.s32.totalorder %s21, 0
    %p314 = por %p312, %p313
    %p315 = scmp.ne.s32.totalorder %s307, %s309
    %p316 = scmp.eq.s32.totalorder %s26, 1
    %p317 = por %p315, %p316
    %p318 = scmp.ne.s32.totalorder %s309, %s310
    %p319 = scmp.eq.s32.totalorder %s26, 0
    %p320 = por %p318, %p319
    %p321 = scmp.ne.s32.totalorder %s309, %s310
    %p322 = scmp.eq.s32.totalorder %s27, 1
    %p323 = por %p321, %p322
    %p325 = scmp.ne.s32.totalorder %s310, %s324
    %p326 = scmp.eq.s32.totalorder %s27, 0
    %p327 = por %p325, %p326
    %s329 = sadd.s32 %s328, 1
    %p332 = scmp.eq.s32.totalorder %s21, 1
    %p333 = scmp.ne.s32.totalorder %s328, %s330
    %p334 = scmp.eq.s32.totalorder %s21, 0
    %p335 = por %p333, %p334
    %p336 = scmp.ne.s32.totalorder %s328, %s330
    %p337 = scmp.eq.s32.totalorder %s26, 1
    %p338 = por %p336, %p337
    %p339 = scmp.ne.s32.totalorder %s330, %s331
    %p340 = scmp.eq.s32.totalorder %s26, 0
    %p341 = por %p339, %p340
    %p342 = scmp.ne.s32.totalorder %s330, %s331
    %p343 = scmp.eq.s32.totalorder %s27, 1
    %p344 = por %p342, %p343
    %p346 = scmp.ne.s32.totalorder %s331, %s345
    %p347 = scmp.eq.s32.totalorder %s27, 0
    %p348 = por %p346, %p347
    %s349 = ssub.s32 %s21, %s28
    %p350 = scmp.eq.s32.totalorder %s349, 0
    %s352 = sadd.s32 %s351, 1
    %s353 = scalar_select %p350, %s351, %s352
    %p356 = pneg %p350
    %p357 = scmp.eq.s32.totalorder %s21, 1
    %p358 = por %p356, %p357
    %p359 = scmp.ne.s32.totalorder %s351, %s354
    %p360 = scmp.eq.s32.totalorder %s21, 0
    %p361 = por %p359, %p360
    %p362 = scmp.ne.s32.totalorder %s351, %s354
    %p363 = scmp.eq.s32.totalorder %s26, 1
    %p364 = por %p362, %p363
    %p365 = scmp.ne.s32.totalorder %s354, %s355
    %p366 = scmp.eq.s32.totalorder %s26, 0
    %p367 = por %p365, %p366
    %p368 = scmp.ne.s32.totalorder %s354, %s355
    %p369 = scmp.eq.s32.totalorder %s27, 1
    %p370 = por %p368, %p369
    %p372 = scmp.ne.s32.totalorder %s355, %s371
    %p373 = scmp.eq.s32.totalorder %s27, 0
    %p374 = por %p372, %p373
    %p375 = scmp.le.s32.totalorder 1, %s21
    %p376 = scmp.lt.s32.totalorder %s21, 3
    %p377 = pnand %p375, %p376
    %p378 = pneg %p377
    // Predicated region
    $region9: #{_lambda_.5} parent=5 // pred_check
      _
    $region10: #{_lambda_.5} parent=5 // pred_check_branch
      %380 = sbr.rel (%p377) target = $region12
    $region11: #{_lambda_.5} parent=5 // pred_region
      %s381 = ssub.s32 %s21, 1
      // Predicated region
      $region13: #{_lambda_.5} parent=11 // pred_check
        %p382 = pneg %p68
      $region14: #{_lambda_.5} parent=11 // pred_check_branch
        %384 = sbr.rel (%p382) target = $region16
      $region15: #{_lambda_.5} parent=11 // pred_region
        _
      $region16: #{_lambda_.5} parent=11 // pred_fallthru
        _
      // Predicated region
      $region17: #{_lambda_.5} parent=11 // pred_check
        %p385 = pneg %p89
      $region18: #{_lambda_.5} parent=11 // pred_check_branch
        %387 = sbr.rel (%p385) target = $region20
      $region19: #{_lambda_.5} parent=11 // pred_region
        _
      $region20: #{_lambda_.5} parent=11 // pred_fallthru
        _
      // Predicated region
      $region21: #{_lambda_.5} parent=11 // pred_check
        %p388 = pneg %p110
      $region22: #{_lambda_.5} parent=11 // pred_check_branch
        %390 = sbr.rel (%p388) target = $region24
      $region23: #{_lambda_.5} parent=11 // pred_region
        _
      $region24: #{_lambda_.5} parent=11 // pred_fallthru
        _
      // Predicated region
      $region25: #{_lambda_.5} parent=11 // pred_check
        %p391 = pneg %p131
      $region26: #{_lambda_.5} parent=11 // pred_check_branch
        %393 = sbr.rel (%p391) target = $region28
      $region27: #{_lambda_.5} parent=11 // pred_region
        _
      $region28: #{_lambda_.5} parent=11 // pred_fallthru
        _
      // Predicated region
      $region29: #{_lambda_.5} parent=11 // pred_check
        %p394 = pneg %p152
      $region30: #{_lambda_.5} parent=11 // pred_check_branch
        %396 = sbr.rel (%p394) target = $region32
      $region31: #{_lambda_.5} parent=11 // pred_region
        _
      $region32: #{_lambda_.5} parent=11 // pred_fallthru
        _
      // Predicated region
      $region33: #{_lambda_.5} parent=11 // pred_check
        %p397 = pneg %p173
      $region34: #{_lambda_.5} parent=11 // pred_check_branch
        %399 = sbr.rel (%p397) target = $region36
      $region35: #{_lambda_.5} parent=11 // pred_region
        _
      $region36: #{_lambda_.5} parent=11 // pred_fallthru
        _
      // Predicated region
      $region37: #{_lambda_.5} parent=11 // pred_check
        %p400 = pneg %p194
      $region38: #{_lambda_.5} parent=11 // pred_check_branch
        %402 = sbr.rel (%p400) target = $region40
      $region39: #{_lambda_.5} parent=11 // pred_region
        _
      $region40: #{_lambda_.5} parent=11 // pred_fallthru
        _
      // Predicated region
      $region41: #{_lambda_.5} parent=11 // pred_check
        %p403 = pneg %p215
      $region42: #{_lambda_.5} parent=11 // pred_check_branch
        %405 = sbr.rel (%p403) target = $region44
      $region43: #{_lambda_.5} parent=11 // pred_region
        _
      $region44: #{_lambda_.5} parent=11 // pred_fallthru
        _
      // Predicated region
      $region45: #{_lambda_.5} parent=11 // pred_check
        %p406 = pneg %p236
      $region46: #{_lambda_.5} parent=11 // pred_check_branch
        %408 = sbr.rel (%p406) target = $region48
      $region47: #{_lambda_.5} parent=11 // pred_region
        _
      $region48: #{_lambda_.5} parent=11 // pred_fallthru
        _
      // Predicated region
      $region49: #{_lambda_.5} parent=11 // pred_check
        %p409 = pneg %p257
      $region50: #{_lambda_.5} parent=11 // pred_check_branch
        %411 = sbr.rel (%p409) target = $region52
      $region51: #{_lambda_.5} parent=11 // pred_region
        _
      $region52: #{_lambda_.5} parent=11 // pred_fallthru
        _
      // Predicated region
      $region53: #{_lambda_.5} parent=11 // pred_check
        %p412 = pneg %p278
      $region54: #{_lambda_.5} parent=11 // pred_check_branch
        %414 = sbr.rel (%p412) target = $region56
      $region55: #{_lambda_.5} parent=11 // pred_region
        _
      $region56: #{_lambda_.5} parent=11 // pred_fallthru
        _
      // Predicated region
      $region57: #{_lambda_.5} parent=11 // pred_check
        %p415 = pneg %p299
      $region58: #{_lambda_.5} parent=11 // pred_check_branch
        %417 = sbr.rel (%p415) target = $region60
      $region59: #{_lambda_.5} parent=11 // pred_region
        _
      $region60: #{_lambda_.5} parent=11 // pred_fallthru
        _
      // Predicated region
      $region61: #{_lambda_.5} parent=11 // pred_check
        %p418 = pneg %p320
      $region62: #{_lambda_.5} parent=11 // pred_check_branch
        %420 = sbr.rel (%p418) target = $region64
      $region63: #{_lambda_.5} parent=11 // pred_region
        _
      $region64: #{_lambda_.5} parent=11 // pred_fallthru
        _
      // Predicated region
      $region65: #{_lambda_.5} parent=11 // pred_check
        %p421 = pneg %p341
      $region66: #{_lambda_.5} parent=11 // pred_check_branch
        %423 = sbr.rel (%p421) target = $region68
      $region67: #{_lambda_.5} parent=11 // pred_region
        _
      $region68: #{_lambda_.5} parent=11 // pred_fallthru
        _
    $region12: #{_lambda_.5} parent=5 // pred_fallthru
      _
    %p424 = scmp.lt.s32.totalorder %s21, 2
    // Predicated region
    $region69: #{_lambda_.5} parent=5 // pred_check
      %p425 = pneg %p424
    $region70: #{_lambda_.5} parent=5 // pred_check_branch
      %427 = sbr.rel (%p425) target = $region72
    $region71: #{_lambda_.5} parent=5 // pred_region
      // Predicated region
      $region73: #{_lambda_.5} parent=71 // pred_check
        %p428 = pneg %p41
      $region74: #{_lambda_.5} parent=71 // pred_check_branch
        %430 = sbr.rel (%p428) target = $region76
      $region75: #{_lambda_.5} parent=71 // pred_region
        %s431 = smul.u32 4, %s21
        %p432 = scmp.lt.s32.totalorder %s431, 7
        %s433 = scalar_select %p432, %s431, 7
        %s434 = smul.addr %s433, 2
        %s435 = smul.addr %s434, 8
        %s436 = scalar_lea.vmem %s0, %s435
        %s437 = smul.u32 4, %s21
      $region76: #{_lambda_.5} parent=71 // pred_fallthru
        _
    $region72: #{_lambda_.5} parent=5 // pred_fallthru
      _
    %p438 = scmp.le.s32.totalorder 1, %s21
    %p439 = scmp.lt.s32.totalorder %s21, 3
    %p440 = pnand %p438, %p439
    %p441 = pneg %p440
    // Predicated region
    $region77: #{_lambda_.5} parent=5 // pred_check
      _
    $region78: #{_lambda_.5} parent=5 // pred_check_branch
      %443 = sbr.rel (%p440) target = $region80
    $region79: #{_lambda_.5} parent=5 // pred_region
      %s444 = ssub.s32 %s21, 1
      %s445 = smul.u32 4, %s26
      %p446 = scmp.lt.s32.totalorder %s445, 7
      %s447 = scalar_select %p446, %s445, 7
      %s448 = smul.addr %s447, 2
      %s449 = smul.addr %s448, 8
      %s450 = scalar_lea.vmem %s0, %s449
      %p451 = pneg %p47
      %p452 = pneg %p44
      %p453 = pneg %p68
      %p454 = pneg %p65
      %p455 = pneg %p89
      %p456 = pneg %p86
      %p457 = pneg %p110
      %p458 = pneg %p107
      %p459 = pneg %p131
      %p460 = pneg %p128
      %p461 = pneg %p152
      %p462 = pneg %p149
      %p463 = pneg %p173
      %p464 = pneg %p170
      %p465 = pneg %p194
      %p466 = pneg %p191
      %p467 = pneg %p215
      %p468 = pneg %p212
      %p469 = pneg %p236
      %p470 = pneg %p233
      %p471 = pneg %p257
      %p472 = pneg %p254
      %p473 = pneg %p278
      %p474 = pneg %p275
      %p475 = pneg %p299
      %p476 = pneg %p296
      %p477 = pneg %p320
      %p478 = pneg %p317
      %p479 = pneg %p341
      %p480 = pneg %p338
      %p481 = pneg %p367
      %p482 = pneg %p364
      %s483 = smul.u32 4, %s26
      %p484 = scmp.lt.s32.totalorder %s483, 7
      %s485 = scalar_select %p484, %s483, 7
      %s486 = smul.addr %s485, 2
      %s487 = smul.addr %s486, 8
      %s488 = scalar_lea.vmem %s15, %s487
      %s489 = smul.u32 4, %s26
      %p490 = scmp.lt.s32.totalorder %s489, 7
      %s491 = scalar_select %p490, %s489, 7
      %s492 = smul.addr %s491, 2
      %s493 = smul.addr %s492, 8
      %s494 = scalar_lea.vmem %s0, %s493
      %s495 = smul.u32 4, %s26
      %s496 = smul.u32 4, %s26
      %p497 = scmp.lt.s32.totalorder %s496, 7
      %s498 = scalar_select %p497, %s496, 7
      %s499 = smul.addr %s498, 2
      %s500 = smul.addr %s499, 8
      %s501 = scalar_lea.vmem %s15, %s500
      %s502 = smul.u32 4, %s26
      %v504 = vld [vmem:[%s494] sm:$0xff]
      %v505 = vld [vmem:[%s494 + $0x8] sm:$0xff]
      %v506 = vld [vmem:[%s494 + $0x10] sm:$0xff]
      %v507 = vld [vmem:[%s494 + $0x18] sm:$0xff]
      %v508 = vld [vmem:[%s494 + $0x20] sm:$0xff]
      %v509 = vld [vmem:[%s494 + $0x28] sm:$0xff]
      %v510 = vld [vmem:[%s494 + $0x30] sm:$0xff]
      %v511 = vld [vmem:[%s494 + $0x38] sm:$0xff]
      %v512 = vld [vmem:[%s2] sm:$0x1]
      %v513 = vld [vmem:[%s3] sm:$0x1]
      %vm514 = vcmask 261120
      %v515 = vsel %vm514, %v504, 0.0
      %516 = vadd.xlane.f32.xlu0 %v515
      %v517 = vpop.xlane.xlu0 %516
      %v518 = vsel %vm514, %v505, 0.0
      %519 = vadd.xlane.f32.xlu0 %v518
      %v520 = vpop.xlane.xlu0 %519
      %v521 = vsel %vm514, %v506, 0.0
      %522 = vadd.xlane.f32.xlu0 %v521
      %v523 = vpop.xlane.xlu0 %522
      %v524 = vsel %vm514, %v507, 0.0
      %525 = vadd.xlane.f32.xlu0 %v524
      %v526 = vpop.xlane.xlu0 %525
      %v527 = vsel %vm514, %v508, 0.0
      %528 = vadd.xlane.f32.xlu0 %v527
      %v529 = vpop.xlane.xlu0 %528
      %v530 = vsel %vm514, %v509, 0.0
      %531 = vadd.xlane.f32.xlu0 %v530
      %v532 = vpop.xlane.xlu0 %531
      %v533 = vsel %vm514, %v510, 0.0
      %534 = vadd.xlane.f32.xlu0 %v533
      %v535 = vpop.xlane.xlu0 %534
      %v536 = vsel %vm514, %v511, 0.0
      %537 = vadd.xlane.f32.xlu0 %v536
      %v538 = vpop.xlane.xlu0 %537
      %v539 = vrcp.pop 32.0
      %v540 = vmul.f32 %v517, %v539
      %v541 = vmul.f32 %v520, %v539
      %v542 = vmul.f32 %v523, %v539
      %v543 = vmul.f32 %v526, %v539
      %v544 = vmul.f32 %v529, %v539
      %v545 = vmul.f32 %v532, %v539
      %v546 = vmul.f32 %v535, %v539
      %v547 = vmul.f32 %v538, %v539
      %v548 = vsub.f32 %v504, %v540
      %v549 = vsub.f32 %v505, %v541
      %v550 = vsub.f32 %v506, %v542
      %v551 = vsub.f32 %v507, %v543
      %v552 = vsub.f32 %v508, %v544
      %v553 = vsub.f32 %v509, %v545
      %v554 = vsub.f32 %v510, %v546
      %v555 = vsub.f32 %v511, %v547
      %v556 = vmul.f32 %v548, %v548
      %v557 = vmul.f32 %v549, %v549
      %v558 = vmul.f32 %v550, %v550
      %v559 = vmul.f32 %v551, %v551
      %v560 = vmul.f32 %v552, %v552
      %v561 = vmul.f32 %v553, %v553
      %v562 = vmul.f32 %v554, %v554
      %v563 = vmul.f32 %v555, %v555
      %v564 = vsel %vm514, %v556, 0.0
      %565 = vadd.xlane.f32.xlu0 %v564
      %v566 = vpop.xlane.xlu0 %565
      %v567 = vsel %vm514, %v557, 0.0
      %568 = vadd.xlane.f32.xlu0 %v567
      %v569 = vpop.xlane.xlu0 %568
      %v570 = vsel %vm514, %v558, 0.0
      %571 = vadd.xlane.f32.xlu0 %v570
      %v572 = vpop.xlane.xlu0 %571
      %v573 = vsel %vm514, %v559, 0.0
      %574 = vadd.xlane.f32.xlu0 %v573
      %v575 = vpop.xlane.xlu0 %574
      %v576 = vsel %vm514, %v560, 0.0
      %577 = vadd.xlane.f32.xlu0 %v576
      %v578 = vpop.xlane.xlu0 %577
      %v579 = vsel %vm514, %v561, 0.0
      %580 = vadd.xlane.f32.xlu0 %v579
      %v581 = vpop.xlane.xlu0 %580
      %v582 = vsel %vm514, %v562, 0.0
      %583 = vadd.xlane.f32.xlu0 %v582
      %v584 = vpop.xlane.xlu0 %583
      %v585 = vsel %vm514, %v563, 0.0
      %586 = vadd.xlane.f32.xlu0 %v585
      %v587 = vpop.xlane.xlu0 %586
      %v588 = vmul.f32 %v566, %v539
      %v589 = vmul.f32 %v569, %v539
      %v590 = vmul.f32 %v572, %v539
      %v591 = vmul.f32 %v575, %v539
      %v592 = vmul.f32 %v578, %v539
      %v593 = vmul.f32 %v581, %v539
      %v594 = vmul.f32 %v584, %v539
      %v595 = vmul.f32 %v587, %v539
      %v596 = vadd.f32 %v588, 1e-05
      %v597 = vadd.f32 %v589, 1e-05
      %v598 = vadd.f32 %v590, 1e-05
      %v599 = vadd.f32 %v591, 1e-05
      %v600 = vadd.f32 %v592, 1e-05
      %v601 = vadd.f32 %v593, 1e-05
      %v602 = vadd.f32 %v594, 1e-05
      %v603 = vadd.f32 %v595, 1e-05
      %v604 = vrsqrt.pop %v596
      %v605 = vrsqrt.pop %v597
      %v606 = vrsqrt.pop %v598
      %v607 = vrsqrt.pop %v599
      %v608 = vrsqrt.pop %v600
      %v609 = vrsqrt.pop %v601
      %v610 = vrsqrt.pop %v602
      %v611 = vrsqrt.pop %v603
      %v612 = vmul.f32 %v548, %v604
      %v613 = vmul.f32 %v549, %v605
      %v614 = vmul.f32 %v550, %v606
      %v615 = vmul.f32 %v551, %v607
      %v616 = vmul.f32 %v552, %v608
      %v617 = vmul.f32 %v553, %v609
      %v618 = vmul.f32 %v554, %v610
      %v619 = vmul.f32 %v555, %v611
      %v621 = vlaneseq
      %v622 = vshrl.u32 %v621, 7
      %v623 = vsub.s32 0, %v622
      %v624 = vrot.slane %v512, %v623
      %v626 = vmul.f32 %v612, %v624
      %v627 = vmul.f32 %v613, %v624
      %v628 = vmul.f32 %v614, %v624
      %v629 = vmul.f32 %v615, %v624
      %v630 = vmul.f32 %v616, %v624
      %v631 = vmul.f32 %v617, %v624
      %v632 = vmul.f32 %v618, %v624
      %v633 = vmul.f32 %v619, %v624
      %v635 = vlaneseq
      %v636 = vshrl.u32 %v635, 7
      %v637 = vsub.s32 0, %v636
      %v638 = vrot.slane %v513, %v637
      %v640 = vadd.f32 %v626, %v638
      %v641 = vadd.f32 %v627, %v638
      %v642 = vadd.f32 %v628, %v638
      %v643 = vadd.f32 %v629, %v638
      %v644 = vadd.f32 %v630, %v638
      %v645 = vadd.f32 %v631, %v638
      %v646 = vadd.f32 %v632, %v638
      %v647 = vadd.f32 %v633, %v638
      %v648 = vpack.c.bf16 %v641, %v640
      %v649 = vpack.c.bf16 %v643, %v642
      %v650 = vpack.c.bf16 %v645, %v644
      %v651 = vpack.c.bf16 %v647, %v646
      %v652 = vld [vmem:[%s4] sm:$0xf]
      %v653 = vld [vmem:[%s4 + $0x4] sm:$0xf]
      %v654 = vld [vmem:[%s4 + $0x8] sm:$0xf]
      %v655 = vld [vmem:[%s4 + $0xc] sm:$0xf]
      %v656 = vld [vmem:[%s5] sm:$0x1]
      %v658 = vlaneseq
      %v659 = vshrl.u32 %v658, 7
      %v660 = vsub.s32 0, %v659
      %v661 = vrot.slane %v656, %v660
      %v667 = vunpack.c.l.b16 %v652
      %v668 = vunpack.c.l.b16 %v653
      %v669 = vunpack.c.l.b16 %v654
      %v670 = vunpack.c.l.b16 %v655
      %v671 = vpack.c.b16 %v668, %v667
      %v672 = vpack.c.b16 %v670, %v669
      %v676 = vsel %vm514, %v648, 0
      %v679 = vsel %vm514, %v649, 0
      %v682 = vsel %vm514, %v650, 0
      %v685 = vsel %vm514, %v651, 0
      %687 = vmatprep.subr.bf16.mxu0 0
      %688 = vmatpush1.bf16.msra.mxu0 %v671
      %689 = vmatprep.subr.bf16.mxu0 0
      %690 = vmatpush1.bf16.msra.mxu0 %v672
      %691 = vmatprep.subr.bf16.mxu0 0
      %692 = vmatpush1.bf16.msra.mxu0 0
      %693 = vmatprep.subr.bf16.mxu0 0
      %694 = vmatpush1.bf16.msra.mxu0 0
      %695 = vmatprep.subr.bf16.mxu0 0
      %696 = vmatpush1.bf16.msra.mxu0 0
      %697 = vmatprep.subr.bf16.mxu0 0
      %698 = vmatpush1.bf16.msra.mxu0 0
      %699 = vmatprep.subr.bf16.mxu0 0
      %700 = vmatpush1.bf16.msra.mxu0 0
      %701 = vmatprep.subr.bf16.mxu0 0
      %702 = vmatpush1.bf16.msra.mxu0 0
      %703 = vmatprep.subr.bf16.mxu0 0
      %704 = vmatpush1.bf16.msra.mxu0 0
      %705 = vmatprep.subr.bf16.mxu0 0
      %706 = vmatpush1.bf16.msra.mxu0 0
      %707 = vmatprep.subr.bf16.mxu0 0
      %708 = vmatpush1.bf16.msra.mxu0 0
      %709 = vmatprep.subr.bf16.mxu0 0
      %710 = vmatpush1.bf16.msra.mxu0 0
      %711 = vmatprep.subr.bf16.mxu0 0
      %712 = vmatpush1.bf16.msra.mxu0 0
      %713 = vmatprep.subr.bf16.mxu0 0
      %714 = vmatpush1.bf16.msra.mxu0 0
      %715 = vmatprep.subr.bf16.mxu0 0
      %716 = vmatpush1.bf16.msra.mxu0 0
      %717 = vmatprep.subr.bf16.mxu0 0
      %718 = vmatpush1.bf16.msra.mxu0 0
      %719 = vmatprep.mubr.bf16.mxu0 0
      %720 = vmatmul.mubr.bf16.gmra.mrb[0].mxu0 %v676
      %v721 = vpop.f32.mrb[0].mxu0
      %v722 = vadd.f32 %v661, %v721
      %v723 = vpop.f32.mrb[0].mxu0
      %v724 = vpop.f32.mrb[0].mxu0
      %v725 = vadd.f32 %v661, %v724
      %v726 = vpop.f32.mrb[0].mxu0
      %727 = vmatprep.mubr.bf16.mxu0 0
      %728 = vmatmul.mubr.bf16.gmra.mrb[0].mxu0 %v679
      %v729 = vpop.f32.mrb[0].mxu0
      %v730 = vadd.f32 %v661, %v729
      %v731 = vpop.f32.mrb[0].mxu0
      %v732 = vpop.f32.mrb[0].mxu0
      %v733 = vadd.f32 %v661, %v732
      %v734 = vpop.f32.mrb[0].mxu0
      %735 = vmatprep.mubr.bf16.mxu0 0
      %736 = vmatmul.mubr.bf16.gmra.mrb[0].mxu0 %v682
      %v737 = vpop.f32.mrb[0].mxu0
      %v738 = vadd.f32 %v661, %v737
      %v739 = vpop.f32.mrb[0].mxu0
      %v740 = vpop.f32.mrb[0].mxu0
      %v741 = vadd.f32 %v661, %v740
      %v742 = vpop.f32.mrb[0].mxu0
      %743 = vmatprep.mubr.bf16.mxu0 0
      %744 = vmatmul.mubr.bf16.gmra.mrb[0].mxu0 %v685
      %v745 = vpop.f32.mrb[0].mxu0
      %v746 = vadd.f32 %v661, %v745
      %v747 = vpop.f32.mrb[0].mxu0
      %v748 = vpop.f32.mrb[0].mxu0
      %v749 = vadd.f32 %v661, %v748
      %v750 = vpop.f32.mrb[0].mxu0
      %751 = vdwg.mxu0
      %v752 = vld [vmem:[%s8] sm:$0xff]
      %v753 = vld [vmem:[%s8 + $0x8] sm:$0xff]
      %v754 = vld [vmem:[%s8 + $0x10] sm:$0xff]
      %v755 = vld [vmem:[%s8 + $0x18] sm:$0xff]
      %v756 = vld [vmem:[%s8 + $0x20] sm:$0xff]
      %v757 = vld [vmem:[%s8 + $0x28] sm:$0xff]
      %v758 = vld [vmem:[%s8 + $0x30] sm:$0xff]
      %v759 = vld [vmem:[%s8 + $0x38] sm:$0xff]
      %v760 = vld [vmem:[%s1] sm:$0xff]
      %v761 = vld [vmem:[%s1 + $0x8] sm:$0xff]
      %v762 = vld [vmem:[%s1 + $0x10] sm:$0xff]
      %v763 = vld [vmem:[%s1 + $0x18] sm:$0xff]
      %v764 = vld [vmem:[%s1 + $0x20] sm:$0xff]
      %v765 = vld [vmem:[%s1 + $0x28] sm:$0xff]
      %v766 = vld [vmem:[%s1 + $0x30] sm:$0xff]
      %v767 = vld [vmem:[%s1 + $0x38] sm:$0xff]
      %v768 = vld [vmem:[%s7] sm:$0x1]
      %v770 = vlaneseq
      %v771 = vshrl.u32 %v770, 7
      %v772 = vsub.s32 0, %v771
      %v773 = vrot.slane %v768, %v772
      %v775 = vpack.c.bf16 %v725, %v722
      %v776 = vpack.c.bf16 %v733, %v730
      %v777 = vpack.c.bf16 %v741, %v738
      %v778 = vpack.c.bf16 %v749, %v746
      %780 = vrot.lane.b32.xlu0 %v775, 96
      %v781 = vpop.permute.xlu0 %780
      %vm782 = vcmask 64512
      %v784 = vsel %vm782, %v775, 0
      %v787 = vsel %vm782, %v781, 0
      %789 = vmatprep.subr.bf16.mxu0 0
      %790 = vmatpush1.bf16.xpose.msra.mxu0 %v787
      %791 = vmatprep.subr.bf16.mxu0 0
      %792 = vmatpush1.bf16.xpose.msra.mxu0 0
      %793 = vmatprep.subr.bf16.mxu0 0
      %794 = vmatpush1.bf16.xpose.msra.mxu0 0
      %795 = vmatprep.subr.bf16.mxu0 0
      %796 = vmatpush1.bf16.xpose.msra.mxu0 0
      %797 = vmatprep.subr.bf16.mxu0 0
      %798 = vmatpush1.bf16.xpose.msra.mxu0 0
      %799 = vmatprep.subr.bf16.mxu0 0
      %800 = vmatpush1.bf16.xpose.msra.mxu0 0
      %801 = vmatprep.subr.bf16.mxu0 0
      %802 = vmatpush1.bf16.xpose.msra.mxu0 0
      %803 = vmatprep.subr.bf16.mxu0 0
      %804 = vmatpush1.bf16.xpose.msra.mxu0 0
      %805 = vmatprep.subr.bf16.mxu0 0
      %806 = vmatpush1.bf16.xpose.msra.mxu0 0
      %807 = vmatprep.subr.bf16.mxu0 0
      %808 = vmatpush1.bf16.xpose.msra.mxu0 0
      %809 = vmatprep.subr.bf16.mxu0 0
      %810 = vmatpush1.bf16.xpose.msra.mxu0 0
      %811 = vmatprep.subr.bf16.mxu0 0
      %812 = vmatpush1.bf16.xpose.msra.mxu0 0
      %813 = vmatprep.subr.bf16.mxu0 0
      %814 = vmatpush1.bf16.xpose.msra.mxu0 0
      %815 = vmatprep.subr.bf16.mxu0 0
      %816 = vmatpush1.bf16.xpose.msra.mxu0 0
      %817 = vmatprep.subr.bf16.mxu0 0
      %818 = vmatpush1.bf16.xpose.msra.mxu0 0
      %819 = vmatprep.subr.bf16.mxu0 0
      %820 = vmatpush1.bf16.xpose.msra.mxu0 0
      %821 = vmatprep.mubr.bf16.mxu0 0
      %822 = vmatmul.mubr.bf16.gmra.mrb[0].mxu0 %v784
      %v823 = vpop.f32.mrb[0].mxu0
      %v824 = vadd.f32 0.0, %v823
      %v825 = vpop.f32.mrb[0].mxu0
      %v826 = vpop.f32.mrb[0].mxu0
      %v827 = vadd.f32 0.0, %v826
      %v828 = vpop.f32.mrb[0].mxu0
      %829 = vdwg.mxu0
      %831 = vrot.lane.b32.xlu0 %v776, 96
      %v832 = vpop.permute.xlu0 %831
      %v834 = vsel %vm782, %v776, 0
      %v837 = vsel %vm782, %v832, 0
      %839 = vmatprep.subr.bf16.mxu0 0
      %840 = vmatpush1.bf16.xpose.msra.mxu0 %v837
      %841 = vmatprep.subr.bf16.mxu0 0
      %842 = vmatpush1.bf16.xpose.msra.mxu0 0
      %843 = vmatprep.subr.bf16.mxu0 0
      %844 = vmatpush1.bf16.xpose.msra.mxu0 0
      %845 = vmatprep.subr.bf16.mxu0 0
      %846 = vmatpush1.bf16.xpose.msra.mxu0 0
      %847 = vmatprep.subr.bf16.mxu0 0
      %848 = vmatpush1.bf16.xpose.msra.mxu0 0
      %849 = vmatprep.subr.bf16.mxu0 0
      %850 = vmatpush1.bf16.xpose.msra.mxu0 0
      %851 = vmatprep.subr.bf16.mxu0 0
      %852 = vmatpush1.bf16.xpose.msra.mxu0 0
      %853 = vmatprep.subr.bf16.mxu0 0
      %854 = vmatpush1.bf16.xpose.msra.mxu0 0
      %855 = vmatprep.subr.bf16.mxu0 0
      %856 = vmatpush1.bf16.xpose.msra.mxu0 0
      %857 = vmatprep.subr.bf16.mxu0 0
      %858 = vmatpush1.bf16.xpose.msra.mxu0 0
      %859 = vmatprep.subr.bf16.mxu0 0
      %860 = vmatpush1.bf16.xpose.msra.mxu0 0
      %861 = vmatprep.subr.bf16.mxu0 0
      %862 = vmatpush1.bf16.xpose.msra.mxu0 0
      %863 = vmatprep.subr.bf16.mxu0 0
      %864 = vmatpush1.bf16.xpose.msra.mxu0 0
      %865 = vmatprep.subr.bf16.mxu0 0
      %866 = vmatpush1.bf16.xpose.msra.mxu0 0
      %867 = vmatprep.subr.bf16.mxu0 0
      %868 = vmatpush1.bf16.xpose.msra.mxu0 0
      %869 = vmatprep.subr.bf16.mxu0 0
      %870 = vmatpush1.bf16.xpose.msra.mxu0 0
      %871 = vmatprep.mubr.bf16.mxu0 0
      %872 = vmatmul.mubr.bf16.gmra.mrb[0].mxu0 %v834
      %v873 = vpop.f32.mrb[0].mxu0
      %v874 = vadd.f32 0.0, %v873
      %v875 = vpop.f32.mrb[0].mxu0
      %v876 = vpop.f32.mrb[0].mxu0
      %v877 = vadd.f32 0.0, %v876
      %v878 = vpop.f32.mrb[0].mxu0
      %879 = vdwg.mxu0
      %881 = vrot.lane.b32.xlu0 %v777, 96
      %v882 = vpop.permute.xlu0 %881
      %v884 = vsel %vm782, %v777, 0
      %v887 = vsel %vm782, %v882, 0
      %889 = vmatprep.subr.bf16.mxu0 0
      %890 = vmatpush1.bf16.xpose.msra.mxu0 %v887
      %891 = vmatprep.subr.bf16.mxu0 0
      %892 = vmatpush1.bf16.xpose.msra.mxu0 0
      %893 = vmatprep.subr.bf16.mxu0 0
      %894 = vmatpush1.bf16.xpose.msra.mxu0 0
      %895 = vmatprep.subr.bf16.mxu0 0
      %896 = vmatpush1.bf16.xpose.msra.mxu0 0
      %897 = vmatprep.subr.bf16.mxu0 0
      %898 = vmatpush1.bf16.xpose.msra.mxu0 0
      %899 = vmatprep.subr.bf16.mxu0 0
      %900 = vmatpush1.bf16.xpose.msra.mxu0 0
      %901 = vmatprep.subr.bf16.mxu0 0
      %902 = vmatpush1.bf16.xpose.msra.mxu0 0
      %903 = vmatprep.subr.bf16.mxu0 0
      %904 = vmatpush1.bf16.xpose.msra.mxu0 0
      %905 = vmatprep.subr.bf16.mxu0 0
      %906 = vmatpush1.bf16.xpose.msra.mxu0 0
      %907 = vmatprep.subr.bf16.mxu0 0
      %908 = vmatpush1.bf16.xpose.msra.mxu0 0
      %909 = vmatprep.subr.bf16.mxu0 0
      %910 = vmatpush1.bf16.xpose.msra.mxu0 0
      %911 = vmatprep.subr.bf16.mxu0 0
      %912 = vmatpush1.bf16.xpose.msra.mxu0 0
      %913 = vmatprep.subr.bf16.mxu0 0
      %914 = vmatpush1.bf16.xpose.msra.mxu0 0
      %915 = vmatprep.subr.bf16.mxu0 0
      %916 = vmatpush1.bf16.xpose.msra.mxu0 0
      %917 = vmatprep.subr.bf16.mxu0 0
      %918 = vmatpush1.bf16.xpose.msra.mxu0 0
      %919 = vmatprep.subr.bf16.mxu0 0
      %920 = vmatpush1.bf16.xpose.msra.mxu0 0
      %921 = vmatprep.mubr.bf16.mxu0 0
      %922 = vmatmul.mubr.bf16.gmra.mrb[0].mxu0 %v884
      %v923 = vpop.f32.mrb[0].mxu0
      %v924 = vadd.f32 0.0, %v923
      %v925 = vpop.f32.mrb[0].mxu0
      %v926 = vpop.f32.mrb[0].mxu0
      %v927 = vadd.f32 0.0, %v926
      %v928 = vpop.f32.mrb[0].mxu0
      %929 = vdwg.mxu0
      %931 = vrot.lane.b32.xlu0 %v778, 96
      %v932 = vpop.permute.xlu0 %931
      %v934 = vsel %vm782, %v778, 0
      %v937 = vsel %vm782, %v932, 0
      %939 = vmatprep.subr.bf16.mxu0 0
      %940 = vmatpush1.bf16.xpose.msra.mxu0 %v937
      %941 = vmatprep.subr.bf16.mxu0 0
      %942 = vmatpush1.bf16.xpose.msra.mxu0 0
      %943 = vmatprep.subr.bf16.mxu0 0
      %944 = vmatpush1.bf16.xpose.msra.mxu0 0
      %945 = vmatprep.subr.bf16.mxu0 0
      %946 = vmatpush1.bf16.xpose.msra.mxu0 0
      %947 = vmatprep.subr.bf16.mxu0 0
      %948 = vmatpush1.bf16.xpose.msra.mxu0 0
      %949 = vmatprep.subr.bf16.mxu0 0
      %950 = vmatpush1.bf16.xpose.msra.mxu0 0
      %951 = vmatprep.subr.bf16.mxu0 0
      %952 = vmatpush1.bf16.xpose.msra.mxu0 0
      %953 = vmatprep.subr.bf16.mxu0 0
      %954 = vmatpush1.bf16.xpose.msra.mxu0 0
      %955 = vmatprep.subr.bf16.mxu0 0
      %956 = vmatpush1.bf16.xpose.msra.mxu0 0
      %957 = vmatprep.subr.bf16.mxu0 0
      %958 = vmatpush1.bf16.xpose.msra.mxu0 0
      %959 = vmatprep.subr.bf16.mxu0 0
      %960 = vmatpush1.bf16.xpose.msra.mxu0 0
      %961 = vmatprep.subr.bf16.mxu0 0
      %962 = vmatpush1.bf16.xpose.msra.mxu0 0
      %963 = vmatprep.subr.bf16.mxu0 0
      %964 = vmatpush1.bf16.xpose.msra.mxu0 0
      %965 = vmatprep.subr.bf16.mxu0 0
      %966 = vmatpush1.bf16.xpose.msra.mxu0 0
      %967 = vmatprep.subr.bf16.mxu0 0
      %968 = vmatpush1.bf16.xpose.msra.mxu0 0
      %969 = vmatprep.subr.bf16.mxu0 0
      %970 = vmatpush1.bf16.xpose.msra.mxu0 0
      %971 = vmatprep.mubr.bf16.mxu0 0
      %972 = vmatmul.mubr.bf16.gmra.mrb[0].mxu0 %v934
      %v973 = vpop.f32.mrb[0].mxu0
      %v974 = vadd.f32 0.0, %v973
      %v975 = vpop.f32.mrb[0].mxu0
      %v976 = vpop.f32.mrb[0].mxu0
      %v977 = vadd.f32 0.0, %v976
      %v978 = vpop.f32.mrb[0].mxu0
      %979 = vdwg.mxu0
      %v980 = vmul.f32 %v824, 0.35355338
      %v981 = vmul.f32 %v827, 0.35355338
      %v982 = vmul.f32 %v874, 0.35355338
      %v983 = vmul.f32 %v877, 0.35355338
      %v984 = vmul.f32 %v924, 0.35355338
      %v985 = vmul.f32 %v927, 0.35355338
      %v986 = vmul.f32 %v974, 0.35355338
      %v987 = vmul.f32 %v977, 0.35355338
      %v988 = vadd.f32 %v980, %v752
      %v989 = vadd.f32 %v981, %v753
      %v990 = vadd.f32 %v982, %v752
      %v991 = vadd.f32 %v983, %v753
      %v992 = vadd.f32 %v984, %v752
      %v993 = vadd.f32 %v985, %v753
      %v994 = vadd.f32 %v986, %v752
      %v995 = vadd.f32 %v987, %v753
      %v996 = vadd.f32 %v988, %v760
      %v997 = vadd.f32 %v989, %v761
      %v998 = vadd.f32 %v990, %v762
      %v999 = vadd.f32 %v991, %v763
      %v1000 = vadd.f32 %v992, %v764
      %v1001 = vadd.f32 %v993, %v765
      %v1002 = vadd.f32 %v994, %v766
      %v1003 = vadd.f32 %v995, %v767
      %vm1004 = vcmask 130048
      %v1005 = vsel %vm1004, %v996, -inf
      %1006 = vmax.xlane.f32.xlu0 %v1005
      %v1007 = vpop.xlane.xlu0 %1006
      %v1008 = vsel %vm1004, %v997, -inf
      %1009 = vmax.xlane.f32.xlu0 %v1008
      %v1010 = vpop.xlane.xlu0 %1009
      %v1011 = vsel %vm1004, %v998, -inf
      %1012 = vmax.xlane.f32.xlu0 %v1011
      %v1013 = vpop.xlane.xlu0 %1012
      %v1014 = vsel %vm1004, %v999, -inf
      %1015 = vmax.xlane.f32.xlu0 %v1014
      %v1016 = vpop.xlane.xlu0 %1015
      %v1017 = vsel %vm1004, %v1000, -inf
      %1018 = vmax.xlane.f32.xlu0 %v1017
      %v1019 = vpop.xlane.xlu0 %1018
      %v1020 = vsel %vm1004, %v1001, -inf
      %1021 = vmax.xlane.f32.xlu0 %v1020
      %v1022 = vpop.xlane.xlu0 %1021
      %v1023 = vsel %vm1004, %v1002, -inf
      %1024 = vmax.xlane.f32.xlu0 %v1023
      %v1025 = vpop.xlane.xlu0 %1024
      %v1026 = vsel %vm1004, %v1003, -inf
      %1027 = vmax.xlane.f32.xlu0 %v1026
      %v1028 = vpop.xlane.xlu0 %1027
      %v1029 = vsub.f32 %v996, %v1007
      %v1030 = vsub.f32 %v997, %v1010
      %v1031 = vsub.f32 %v998, %v1013
      %v1032 = vsub.f32 %v999, %v1016
      %v1033 = vsub.f32 %v1000, %v1019
      %v1034 = vsub.f32 %v1001, %v1022
      %v1035 = vsub.f32 %v1002, %v1025
      %v1036 = vsub.f32 %v1003, %v1028
      %v1037 = vmul.f32 %v1029, 1.442695
      %v1038 = vpow.pop %v1037
      %v1039 = vmul.f32 %v1030, 1.442695
      %v1040 = vpow.pop %v1039
      %v1041 = vmul.f32 %v1031, 1.442695
      %v1042 = vpow.pop %v1041
      %v1043 = vmul.f32 %v1032, 1.442695
      %v1044 = vpow.pop %v1043
      %v1045 = vmul.f32 %v1033, 1.442695
      %v1046 = vpow.pop %v1045
      %v1047 = vmul.f32 %v1034, 1.442695
      %v1048 = vpow.pop %v1047
      %v1049 = vmul.f32 %v1035, 1.442695
      %v1050 = vpow.pop %v1049
      %v1051 = vmul.f32 %v1036, 1.442695
      %v1052 = vpow.pop %v1051
      %v1053 = vsel %vm1004, %v1038, 0.0
      %1054 = vadd.xlane.f32.xlu0 %v1053
      %v1055 = vpop.xlane.xlu0 %1054
      %v1056 = vsel %vm1004, %v1040, 0.0
      %1057 = vadd.xlane.f32.xlu0 %v1056
      %v1058 = vpop.xlane.xlu0 %1057
      %v1059 = vsel %vm1004, %v1042, 0.0
      %1060 = vadd.xlane.f32.xlu0 %v1059
      %v1061 = vpop.xlane.xlu0 %1060
      %v1062 = vsel %vm1004, %v1044, 0.0
      %1063 = vadd.xlane.f32.xlu0 %v1062
      %v1064 = vpop.xlane.xlu0 %1063
      %v1065 = vsel %vm1004, %v1046, 0.0
      %1066 = vadd.xlane.f32.xlu0 %v1065
      %v1067 = vpop.xlane.xlu0 %1066
      %v1068 = vsel %vm1004, %v1048, 0.0
      %1069 = vadd.xlane.f32.xlu0 %v1068
      %v1070 = vpop.xlane.xlu0 %1069
      %v1071 = vsel %vm1004, %v1050, 0.0
      %1072 = vadd.xlane.f32.xlu0 %v1071
      %v1073 = vpop.xlane.xlu0 %1072
      %v1074 = vsel %vm1004, %v1052, 0.0
      %1075 = vadd.xlane.f32.xlu0 %v1074
      %v1076 = vpop.xlane.xlu0 %1075
      %v1077 = vrcp.pop %v1055
      %v1078 = vrcp.pop %v1058
      %v1079 = vrcp.pop %v1061
      %v1080 = vrcp.pop %v1064
      %v1081 = vrcp.pop %v1067
      %v1082 = vrcp.pop %v1070
      %v1083 = vrcp.pop %v1073
      %v1084 = vrcp.pop %v1076
      %v1085 = vmul.f32 %v1038, %v1077
      %v1086 = vmul.f32 %v1040, %v1078
      %v1087 = vmul.f32 %v1042, %v1079
      %v1088 = vmul.f32 %v1044, %v1080
      %v1089 = vmul.f32 %v1046, %v1081
      %v1090 = vmul.f32 %v1048, %v1082
      %v1091 = vmul.f32 %v1050, %v1083
      %v1092 = vmul.f32 %v1052, %v1084
      %v1093 = vpack.c.bf16 %v1086, %v1085
      %v1094 = vpack.c.bf16 %v1088, %v1087
      %v1095 = vpack.c.bf16 %v1090, %v1089
      %v1096 = vpack.c.bf16 %v1092, %v1091
      %1097 = vrot.lane.b32.xlu0 %v775, 64
      %v1098 = vpop.permute.xlu0 %1097
      %v1101 = vsel %vm1004, %v1093, 0
      %1103 = vmatprep.subr.bf16.mxu0 0
      %1104 = vmatpush1.bf16.msra.mxu0 %v1098
      %1105 = vmatprep.subr.bf16.mxu0 0
      %1106 = vmatpush1.bf16.msra.mxu0 0
      %1107 = vmatprep.subr.bf16.mxu0 0
      %1108 = vmatpush1.bf16.msra.mxu0 0
      %1109 = vmatprep.subr.bf16.mxu0 0
      %1110 = vmatpush1.bf16.msra.mxu0 0
      %1111 = vmatprep.subr.bf16.mxu0 0
      %1112 = vmatpush1.bf16.msra.mxu0 0
      %1113 = vmatprep.subr.bf16.mxu0 0
      %1114 = vmatpush1.bf16.msra.mxu0 0
      %1115 = vmatprep.subr.bf16.mxu0 0
      %1116 = vmatpush1.bf16.msra.mxu0 0
      %1117 = vmatprep.subr.bf16.mxu0 0
      %1118 = vmatpush1.bf16.msra.mxu0 0
      %1119 = vmatprep.subr.bf16.mxu0 0
      %1120 = vmatpush1.bf16.msra.mxu0 0
      %1121 = vmatprep.subr.bf16.mxu0 0
      %1122 = vmatpush1.bf16.msra.mxu0 0
      %1123 = vmatprep.subr.bf16.mxu0 0
      %1124 = vmatpush1.bf16.msra.mxu0 0
      %1125 = vmatprep.subr.bf16.mxu0 0
      %1126 = vmatpush1.bf16.msra.mxu0 0
      %1127 = vmatprep.subr.bf16.mxu0 0
      %1128 = vmatpush1.bf16.msra.mxu0 0
      %1129 = vmatprep.subr.bf16.mxu0 0
      %1130 = vmatpush1.bf16.msra.mxu0 0
      %1131 = vmatprep.subr.bf16.mxu0 0
      %1132 = vmatpush1.bf16.msra.mxu0 0
      %1133 = vmatprep.subr.bf16.mxu0 0
      %1134 = vmatpush1.bf16.msra.mxu0 0
      %1135 = vmatprep.mubr.bf16.mxu0 0
      %1136 = vmatmul.mubr.bf16.gmra.mrb[0].mxu0 %v1101
      %v1137 = vpop.f32.mrb[0].mxu0
      %v1138 = vadd.f32 0.0, %v1137
      %v1139 = vpop.f32.mrb[0].mxu0
      %v1140 = vpop.f32.mrb[0].mxu0
      %v1141 = vadd.f32 0.0, %v1140
      %v1142 = vpop.f32.mrb[0].mxu0
      %1143 = vdwg.mxu0
      %1144 = vrot.lane.b32.xlu0 %v776, 64
      %v1145 = vpop.permute.xlu0 %1144
      %v1148 = vsel %vm1004, %v1094, 0
      %1150 = vmatprep.subr.bf16.mxu0 0
      %1151 = vmatpush1.bf16.msra.mxu0 %v1145
      %1152 = vmatprep.subr.bf16.mxu0 0
      %1153 = vmatpush1.bf16.msra.mxu0 0
      %1154 = vmatprep.subr.bf16.mxu0 0
      %1155 = vmatpush1.bf16.msra.mxu0 0
      %1156 = vmatprep.subr.bf16.mxu0 0
      %1157 = vmatpush1.bf16.msra.mxu0 0
      %1158 = vmatprep.subr.bf16.mxu0 0
      %1159 = vmatpush1.bf16.msra.mxu0 0
      %1160 = vmatprep.subr.bf16.mxu0 0
      %1161 = vmatpush1.bf16.msra.mxu0 0
      %1162 = vmatprep.subr.bf16.mxu0 0
      %1163 = vmatpush1.bf16.msra.mxu0 0
      %1164 = vmatprep.subr.bf16.mxu0 0
      %1165 = vmatpush1.bf16.msra.mxu0 0
      %1166 = vmatprep.subr.bf16.mxu0 0
      %1167 = vmatpush1.bf16.msra.mxu0 0
      %1168 = vmatprep.subr.bf16.mxu0 0
      %1169 = vmatpush1.bf16.msra.mxu0 0
      %1170 = vmatprep.subr.bf16.mxu0 0
      %1171 = vmatpush1.bf16.msra.mxu0 0
      %1172 = vmatprep.subr.bf16.mxu0 0
      %1173 = vmatpush1.bf16.msra.mxu0 0
      %1174 = vmatprep.subr.bf16.mxu0 0
      %1175 = vmatpush1.bf16.msra.mxu0 0
      %1176 = vmatprep.subr.bf16.mxu0 0
      %1177 = vmatpush1.bf16.msra.mxu0 0
      %1178 = vmatprep.subr.bf16.mxu0 0
      %1179 = vmatpush1.bf16.msra.mxu0 0
      %1180 = vmatprep.subr.bf16.mxu0 0
      %1181 = vmatpush1.bf16.msra.mxu0 0
      %1182 = vmatprep.mubr.bf16.mxu0 0
      %1183 = vmatmul.mubr.bf16.gmra.mrb[0].mxu0 %v1148
      %v1184 = vpop.f32.mrb[0].mxu0
      %v1185 = vadd.f32 0.0, %v1184
      %v1186 = vpop.f32.mrb[0].mxu0
      %v1187 = vpop.f32.mrb[0].mxu0
      %v1188 = vadd.f32 0.0, %v1187
      %v1189 = vpop.f32.mrb[0].mxu0
      %1190 = vdwg.mxu0
      %1191 = vrot.lane.b32.xlu0 %v777, 64
      %v1192 = vpop.permute.xlu0 %1191
      %v1195 = vsel %vm1004, %v1095, 0
      %1197 = vmatprep.subr.bf16.mxu0 0
      %1198 = vmatpush1.bf16.msra.mxu0 %v1192
      %1199 = vmatprep.subr.bf16.mxu0 0
      %1200 = vmatpush1.bf16.msra.mxu0 0
      %1201 = vmatprep.subr.bf16.mxu0 0
      %1202 = vmatpush1.bf16.msra.mxu0 0
      %1203 = vmatprep.subr.bf16.mxu0 0
      %1204 = vmatpush1.bf16.msra.mxu0 0
      %1205 = vmatprep.subr.bf16.mxu0 0
      %1206 = vmatpush1.bf16.msra.mxu0 0
      %1207 = vmatprep.subr.bf16.mxu0 0
      %1208 = vmatpush1.bf16.msra.mxu0 0
      %1209 = vmatprep.subr.bf16.mxu0 0
      %1210 = vmatpush1.bf16.msra.mxu0 0
      %1211 = vmatprep.subr.bf16.mxu0 0
      %1212 = vmatpush1.bf16.msra.mxu0 0
      %1213 = vmatprep.subr.bf16.mxu0 0
      %1214 = vmatpush1.bf16.msra.mxu0 0
      %1215 = vmatprep.subr.bf16.mxu0 0
      %1216 = vmatpush1.bf16.msra.mxu0 0
      %1217 = vmatprep.subr.bf16.mxu0 0
      %1218 = vmatpush1.bf16.msra.mxu0 0
      %1219 = vmatprep.subr.bf16.mxu0 0
      %1220 = vmatpush1.bf16.msra.mxu0 0
      %1221 = vmatprep.subr.bf16.mxu0 0
      %1222 = vmatpush1.bf16.msra.mxu0 0
      %1223 = vmatprep.subr.bf16.mxu0 0
      %1224 = vmatpush1.bf16.msra.mxu0 0
      %1225 = vmatprep.subr.bf16.mxu0 0
      %1226 = vmatpush1.bf16.msra.mxu0 0
      %1227 = vmatprep.subr.bf16.mxu0 0
      %1228 = vmatpush1.bf16.msra.mxu0 0
      %1229 = vmatprep.mubr.bf16.mxu0 0
      %1230 = vmatmul.mubr.bf16.gmra.mrb[0].mxu0 %v1195
      %v1231 = vpop.f32.mrb[0].mxu0
      %v1232 = vadd.f32 0.0, %v1231
      %v1233 = vpop.f32.mrb[0].mxu0
      %v1234 = vpop.f32.mrb[0].mxu0
      %v1235 = vadd.f32 0.0, %v1234
      %v1236 = vpop.f32.mrb[0].mxu0
      %1237 = vdwg.mxu0
      %1238 = vrot.lane.b32.xlu0 %v778, 64
      %v1239 = vpop.permute.xlu0 %1238
      %v1242 = vsel %vm1004, %v1096, 0
      %1244 = vmatprep.subr.bf16.mxu0 0
      %1245 = vmatpush1.bf16.msra.mxu0 %v1239
      %1246 = vmatprep.subr.bf16.mxu0 0
      %1247 = vmatpush1.bf16.msra.mxu0 0
      %1248 = vmatprep.subr.bf16.mxu0 0
      %1249 = vmatpush1.bf16.msra.mxu0 0
      %1250 = vmatprep.subr.bf16.mxu0 0
      %1251 = vmatpush1.bf16.msra.mxu0 0
      %1252 = vmatprep.subr.bf16.mxu0 0
      %1253 = vmatpush1.bf16.msra.mxu0 0
      %1254 = vmatprep.subr.bf16.mxu0 0
      %1255 = vmatpush1.bf16.msra.mxu0 0
      %1256 = vmatprep.subr.bf16.mxu0 0
      %1257 = vmatpush1.bf16.msra.mxu0 0
      %1258 = vmatprep.subr.bf16.mxu0 0
      %1259 = vmatpush1.bf16.msra.mxu0 0
      %1260 = vmatprep.subr.bf16.mxu0 0
      %1261 = vmatpush1.bf16.msra.mxu0 0
      %1262 = vmatprep.subr.bf16.mxu0 0
      %1263 = vmatpush1.bf16.msra.mxu0 0
      %1264 = vmatprep.subr.bf16.mxu0 0
      %1265 = vmatpush1.bf16.msra.mxu0 0
      %1266 = vmatprep.subr.bf16.mxu0 0
      %1267 = vmatpush1.bf16.msra.mxu0 0
      %1268 = vmatprep.subr.bf16.mxu0 0
      %1269 = vmatpush1.bf16.msra.mxu0 0
      %1270 = vmatprep.subr.bf16.mxu0 0
      %1271 = vmatpush1.bf16.msra.mxu0 0
      %1272 = vmatprep.subr.bf16.mxu0 0
      %1273 = vmatpush1.bf16.msra.mxu0 0
      %1274 = vmatprep.subr.bf16.mxu0 0
      %1275 = vmatpush1.bf16.msra.mxu0 0
      %1276 = vmatprep.mubr.bf16.mxu0 0
      %1277 = vmatmul.mubr.bf16.gmra.mrb[0].mxu0 %v1242
      %v1278 = vpop.f32.mrb[0].mxu0
      %v1279 = vadd.f32 0.0, %v1278
      %v1280 = vpop.f32.mrb[0].mxu0
      %v1281 = vpop.f32.mrb[0].mxu0
      %v1282 = vadd.f32 0.0, %v1281
      %v1283 = vpop.f32.mrb[0].mxu0
      %1284 = vdwg.mxu0
      %v1285 = vpack.c.bf16 %v1141, %v1138
      %v1286 = vpack.c.bf16 %v1188, %v1185
      %v1287 = vpack.c.bf16 %v1235, %v1232
      %v1288 = vpack.c.bf16 %v1282, %v1279
      %v1289 = vld [vmem:[%s6] sm:$0xf]
      %v1291 = vsel %vm782, %v1285, 0
      %v1294 = vsel %vm782, %v1286, 0
      %v1297 = vsel %vm782, %v1287, 0
      %v1300 = vsel %vm782, %v1288, 0
      %vm1302 = vcmask 1043456
      %v1304 = vsel %vm1302, %v1289, 0
      %1306 = vmatprep.subr.bf16.mxu0 0
      %1307 = vmatpush1.bf16.msra.mxu0 %v1304
      %1308 = vmatprep.subr.bf16.mxu0 0
      %1309 = vmatpush1.bf16.msra.mxu0 0
      %1310 = vmatprep.subr.bf16.mxu0 0
      %1311 = vmatpush1.bf16.msra.mxu0 0
      %1312 = vmatprep.subr.bf16.mxu0 0
      %1313 = vmatpush1.bf16.msra.mxu0 0
      %1314 = vmatprep.subr.bf16.mxu0 0
      %1315 = vmatpush1.bf16.msra.mxu0 0
      %1316 = vmatprep.subr.bf16.mxu0 0
      %1317 = vmatpush1.bf16.msra.mxu0 0
      %1318 = vmatprep.subr.bf16.mxu0 0
      %1319 = vmatpush1.bf16.msra.mxu0 0
      %1320 = vmatprep.subr.bf16.mxu0 0
      %1321 = vmatpush1.bf16.msra.mxu0 0
      %1322 = vmatprep.subr.bf16.mxu0 0
      %1323 = vmatpush1.bf16.msra.mxu0 0
      %1324 = vmatprep.subr.bf16.mxu0 0
      %1325 = vmatpush1.bf16.msra.mxu0 0
      %1326 = vmatprep.subr.bf16.mxu0 0
      %1327 = vmatpush1.bf16.msra.mxu0 0
      %1328 = vmatprep.subr.bf16.mxu0 0
      %1329 = vmatpush1.bf16.msra.mxu0 0
      %1330 = vmatprep.subr.bf16.mxu0 0
      %1331 = vmatpush1.bf16.msra.mxu0 0
      %1332 = vmatprep.subr.bf16.mxu0 0
      %1333 = vmatpush1.bf16.msra.mxu0 0
      %1334 = vmatprep.subr.bf16.mxu0 0
      %1335 = vmatpush1.bf16.msra.mxu0 0
      %1336 = vmatprep.subr.bf16.mxu0 0
      %1337 = vmatpush1.bf16.msra.mxu0 0
      %1338 = vmatprep.mubr.bf16.mxu0 0
      %1339 = vmatmul.mubr.bf16.gmra.mrb[0].mxu0 %v1291
      %v1340 = vpop.f32.mrb[0].mxu0
      %v1341 = vadd.f32 0.0, %v1340
      %v1342 = vpop.f32.mrb[0].mxu0
      %v1343 = vpop.f32.mrb[0].mxu0
      %v1344 = vadd.f32 0.0, %v1343
      %v1345 = vpop.f32.mrb[0].mxu0
      %1346 = vmatprep.mubr.bf16.mxu0 0
      %1347 = vmatmul.mubr.bf16.gmra.mrb[0].mxu0 %v1294
      %v1348 = vpop.f32.mrb[0].mxu0
      %v1349 = vadd.f32 0.0, %v1348
      %v1350 = vpop.f32.mrb[0].mxu0
      %v1351 = vpop.f32.mrb[0].mxu0
      %v1352 = vadd.f32 0.0, %v1351
      %v1353 = vpop.f32.mrb[0].mxu0
      %1354 = vmatprep.mubr.bf16.mxu0 0
      %1355 = vmatmul.mubr.bf16.gmra.mrb[0].mxu0 %v1297
      %v1356 = vpop.f32.mrb[0].mxu0
      %v1357 = vadd.f32 0.0, %v1356
      %v1358 = vpop.f32.mrb[0].mxu0
      %v1359 = vpop.f32.mrb[0].mxu0
      %v1360 = vadd.f32 0.0, %v1359
      %v1361 = vpop.f32.mrb[0].mxu0
      %1362 = vmatprep.mubr.bf16.mxu0 0
      %1363 = vmatmul.mubr.bf16.gmra.mrb[0].mxu0 %v1300
      %v1364 = vpop.f32.mrb[0].mxu0
      %v1365 = vadd.f32 0.0, %v1364
      %v1366 = vpop.f32.mrb[0].mxu0
      %v1367 = vpop.f32.mrb[0].mxu0
      %v1368 = vadd.f32 0.0, %v1367
      %v1369 = vpop.f32.mrb[0].mxu0
      %1370 = vdwg.mxu0
      %v1371 = vadd.f32 %v773, %v1341
      %v1372 = vadd.f32 %v773, %v1344
      %v1373 = vadd.f32 %v773, %v1349
      %v1374 = vadd.f32 %v773, %v1352
      %v1375 = vadd.f32 %v773, %v1357
      %v1376 = vadd.f32 %v773, %v1360
      %v1377 = vadd.f32 %v773, %v1365
      %v1378 = vadd.f32 %v773, %v1368
      %1379 = vrot.lane.b32.xlu0 %v775, 120
      %v1380 = vpop.permute.xlu0 %1379
      %1381 = vrot.lane.b32.xlu0 %v775, 88
      %v1382 = vpop.permute.xlu0 %1381
      %v1384 = vsel %vm782, %v1380, 0
      %v1387 = vsel %vm782, %v1382, 0
      %1389 = vmatprep.subr.bf16.mxu0 0
      %1390 = vmatpush1.bf16.xpose.msra.mxu0 %v1387
      %1391 = vmatprep.subr.bf16.mxu0 0
      %1392 = vmatpush1.bf16.xpose.msra.mxu0 0
      %1393 = vmatprep.subr.bf16.mxu0 0
      %1394 = vmatpush1.bf16.xpose.msra.mxu0 0
      %1395 = vmatprep.subr.bf16.mxu0 0
      %1396 = vmatpush1.bf16.xpose.msra.mxu0 0
      %1397 = vmatprep.subr.bf16.mxu0 0
      %1398 = vmatpush1.bf16.xpose.msra.mxu0 0
      %1399 = vmatprep.subr.bf16.mxu0 0
      %1400 = vmatpush1.bf16.xpose.msra.mxu0 0
      %1401 = vmatprep.subr.bf16.mxu0 0
      %1402 = vmatpush1.bf16.xpose.msra.mxu0 0
      %1403 = vmatprep.subr.bf16.mxu0 0
      %1404 = vmatpush1.bf16.xpose.msra.mxu0 0
      %1405 = vmatprep.subr.bf16.mxu0 0
      %1406 = vmatpush1.bf16.xpose.msra.mxu0 0
      %1407 = vmatprep.subr.bf16.mxu0 0
      %1408 = vmatpush1.bf16.xpose.msra.mxu0 0
      %1409 = vmatprep.subr.bf16.mxu0 0
      %1410 = vmatpush1.bf16.xpose.msra.mxu0 0
      %1411 = vmatprep.subr.bf16.mxu0 0
      %1412 = vmatpush1.bf16.xpose.msra.mxu0 0
      %1413 = vmatprep.subr.bf16.mxu0 0
      %1414 = vmatpush1.bf16.xpose.msra.mxu0 0
      %1415 = vmatprep.subr.bf16.mxu0 0
      %1416 = vmatpush1.bf16.xpose.msra.mxu0 0
      %1417 = vmatprep.subr.bf16.mxu0 0
      %1418 = vmatpush1.bf16.xpose.msra.mxu0 0
      %1419 = vmatprep.subr.bf16.mxu0 0
      %1420 = vmatpush1.bf16.xpose.msra.mxu0 0
      %1421 = vmatprep.mubr.bf16.mxu0 0
      %1422 = vmatmul.mubr.bf16.gmra.mrb[0].mxu0 %v1384
      %v1423 = vpop.f32.mrb[0].mxu0
      %v1424 = vadd.f32 0.0, %v1423
      %v1425 = vpop.f32.mrb[0].mxu0
      %v1426 = vpop.f32.mrb[0].mxu0
      %v1427 = vadd.f32 0.0, %v1426
      %v1428 = vpop.f32.mrb[0].mxu0
      %1429 = vdwg.mxu0
      %1430 = vrot.lane.b32.xlu0 %v776, 120
      %v1431 = vpop.permute.xlu0 %1430
      %1432 = vrot.lane.b32.xlu0 %v776, 88
      %v1433 = vpop.permute.xlu0 %1432
      %v1435 = vsel %vm782, %v1431, 0
      %v1438 = vsel %vm782, %v1433, 0
      %1440 = vmatprep.subr.bf16.mxu0 0
      %1441 = vmatpush1.bf16.xpose.msra.mxu0 %v1438
      %1442 = vmatprep.subr.bf16.mxu0 0
      %1443 = vmatpush1.bf16.xpose.msra.mxu0 0
      %1444 = vmatprep.subr.bf16.mxu0 0
      %1445 = vmatpush1.bf16.xpose.msra.mxu0 0
      %1446 = vmatprep.subr.bf16.mxu0 0
      %1447 = vmatpush1.bf16.xpose.msra.mxu0 0
      %1448 = vmatprep.subr.bf16.mxu0 0
      %1449 = vmatpush1.bf16.xpose.msra.mxu0 0
      %1450 = vmatprep.subr.bf16.mxu0 0
      %1451 = vmatpush1.bf16.xpose.msra.mxu0 0
      %1452 = vmatprep.subr.bf16.mxu0 0
      %1453 = vmatpush1.bf16.xpose.msra.mxu0 0
      %1454 = vmatprep.subr.bf16.mxu0 0
      %1455 = vmatpush1.bf16.xpose.msra.mxu0 0
      %1456 = vmatprep.subr.bf16.mxu0 0
      %1457 = vmatpush1.bf16.xpose.msra.mxu0 0
      %1458 = vmatprep.subr.bf16.mxu0 0
      %1459 = vmatpush1.bf16.xpose.msra.mxu0 0
      %1460 = vmatprep.subr.bf16.mxu0 0
      %1461 = vmatpush1.bf16.xpose.msra.mxu0 0
      %1462 = vmatprep.subr.bf16.mxu0 0
      %1463 = vmatpush1.bf16.xpose.msra.mxu0 0
      %1464 = vmatprep.subr.bf16.mxu0 0
      %1465 = vmatpush1.bf16.xpose.msra.mxu0 0
      %1466 = vmatprep.subr.bf16.mxu0 0
      %1467 = vmatpush1.bf16.xpose.msra.mxu0 0
      %1468 = vmatprep.subr.bf16.mxu0 0
      %1469 = vmatpush1.bf16.xpose.msra.mxu0 0
      %1470 = vmatprep.subr.bf16.mxu0 0
      %1471 = vmatpush1.bf16.xpose.msra.mxu0 0
      %1472 = vmatprep.mubr.bf16.mxu0 0
      %1473 = vmatmul.mubr.bf16.gmra.mrb[0].mxu0 %v1435
      %v1474 = vpop.f32.mrb[0].mxu0
      %v1475 = vadd.f32 0.0, %v1474
      %v1476 = vpop.f32.mrb[0].mxu0
      %v1477 = vpop.f32.mrb[0].mxu0
      %v1478 = vadd.f32 0.0, %v1477
      %v1479 = vpop.f32.mrb[0].mxu0
      %1480 = vdwg.mxu0
      %1481 = vrot.lane.b32.xlu0 %v777, 120
      %v1482 = vpop.permute.xlu0 %1481
      %1483 = vrot.lane.b32.xlu0 %v777, 88
      %v1484 = vpop.permute.xlu0 %1483
      %v1486 = vsel %vm782, %v1482, 0
      %v1489 = vsel %vm782, %v1484, 0
      %1491 = vmatprep.subr.bf16.mxu0 0
      %1492 = vmatpush1.bf16.xpose.msra.mxu0 %v1489
      %1493 = vmatprep.subr.bf16.mxu0 0
      %1494 = vmatpush1.bf16.xpose.msra.mxu0 0
      %1495 = vmatprep.subr.bf16.mxu0 0
      %1496 = vmatpush1.bf16.xpose.msra.mxu0 0
      %1497 = vmatprep.subr.bf16.mxu0 0
      %1498 = vmatpush1.bf16.xpose.msra.mxu0 0
      %1499 = vmatprep.subr.bf16.mxu0 0
      %1500 = vmatpush1.bf16.xpose.msra.mxu0 0
      %1501 = vmatprep.subr.bf16.mxu0 0
      %1502 = vmatpush1.bf16.xpose.msra.mxu0 0
      %1503 = vmatprep.subr.bf16.mxu0 0
      %1504 = vmatpush1.bf16.xpose.msra.mxu0 0
      %1505 = vmatprep.subr.bf16.mxu0 0
      %1506 = vmatpush1.bf16.xpose.msra.mxu0 0
      %1507 = vmatprep.subr.bf16.mxu0 0
      %1508 = vmatpush1.bf16.xpose.msra.mxu0 0
      %1509 = vmatprep.subr.bf16.mxu0 0
      %1510 = vmatpush1.bf16.xpose.msra.mxu0 0
      %1511 = vmatprep.subr.bf16.mxu0 0
      %1512 = vmatpush1.bf16.xpose.msra.mxu0 0
      %1513 = vmatprep.subr.bf16.mxu0 0
      %1514 = vmatpush1.bf16.xpose.msra.mxu0 0
      %1515 = vmatprep.subr.bf16.mxu0 0
      %1516 = vmatpush1.bf16.xpose.msra.mxu0 0
      %1517 = vmatprep.subr.bf16.mxu0 0
      %1518 = vmatpush1.bf16.xpose.msra.mxu0 0
      %1519 = vmatprep.subr.bf16.mxu0 0
      %1520 = vmatpush1.bf16.xpose.msra.mxu0 0
      %1521 = vmatprep.subr.bf16.mxu0 0
      %1522 = vmatpush1.bf16.xpose.msra.mxu0 0
      %1523 = vmatprep.mubr.bf16.mxu0 0
      %1524 = vmatmul.mubr.bf16.gmra.mrb[0].mxu0 %v1486
      %v1525 = vpop.f32.mrb[0].mxu0
      %v1526 = vadd.f32 0.0, %v1525
      %v1527 = vpop.f32.mrb[0].mxu0
      %v1528 = vpop.f32.mrb[0].mxu0
      %v1529 = vadd.f32 0.0, %v1528
      %v1530 = vpop.f32.mrb[0].mxu0
      %1531 = vdwg.mxu0
      %1532 = vrot.lane.b32.xlu0 %v778, 120
      %v1533 = vpop.permute.xlu0 %1532
      %1534 = vrot.lane.b32.xlu0 %v778, 88
      %v1535 = vpop.permute.xlu0 %1534
      %v1537 = vsel %vm782, %v1533, 0
      %v1540 = vsel %vm782, %v1535, 0
      %1542 = vmatprep.subr.bf16.mxu0 0
      %1543 = vmatpush1.bf16.xpose.msra.mxu0 %v1540
      %1544 = vmatprep.subr.bf16.mxu0 0
      %1545 = vmatpush1.bf16.xpose.msra.mxu0 0
      %1546 = vmatprep.subr.bf16.mxu0 0
      %1547 = vmatpush1.bf16.xpose.msra.mxu0 0
      %1548 = vmatprep.subr.bf16.mxu0 0
      %1549 = vmatpush1.bf16.xpose.msra.mxu0 0
      %1550 = vmatprep.subr.bf16.mxu0 0
      %1551 = vmatpush1.bf16.xpose.msra.mxu0 0
      %1552 = vmatprep.subr.bf16.mxu0 0
      %1553 = vmatpush1.bf16.xpose.msra.mxu0 0
      %1554 = vmatprep.subr.bf16.mxu0 0
      %1555 = vmatpush1.bf16.xpose.msra.mxu0 0
      %1556 = vmatprep.subr.bf16.mxu0 0
      %1557 = vmatpush1.bf16.xpose.msra.mxu0 0
      %1558 = vmatprep.subr.bf16.mxu0 0
      %1559 = vmatpush1.bf16.xpose.msra.mxu0 0
      %1560 = vmatprep.subr.bf16.mxu0 0
      %1561 = vmatpush1.bf16.xpose.msra.mxu0 0
      %1562 = vmatprep.subr.bf16.mxu0 0
      %1563 = vmatpush1.bf16.xpose.msra.mxu0 0
      %1564 = vmatprep.subr.bf16.mxu0 0
      %1565 = vmatpush1.bf16.xpose.msra.mxu0 0
      %1566 = vmatprep.subr.bf16.mxu0 0
      %1567 = vmatpush1.bf16.xpose.msra.mxu0 0
      %1568 = vmatprep.subr.bf16.mxu0 0
      %1569 = vmatpush1.bf16.xpose.msra.mxu0 0
      %1570 = vmatprep.subr.bf16.mxu0 0
      %1571 = vmatpush1.bf16.xpose.msra.mxu0 0
      %1572 = vmatprep.subr.bf16.mxu0 0
      %1573 = vmatpush1.bf16.xpose.msra.mxu0 0
      %1574 = vmatprep.mubr.bf16.mxu0 0
      %1575 = vmatmul.mubr.bf16.gmra.mrb[0].mxu0 %v1537
      %v1576 = vpop.f32.mrb[0].mxu0
      %v1577 = vadd.f32 0.0, %v1576
      %v1578 = vpop.f32.mrb[0].mxu0
      %v1579 = vpop.f32.mrb[0].mxu0
      %v1580 = vadd.f32 0.0, %v1579
      %v1581 = vpop.f32.mrb[0].mxu0
      %1582 = vdwg.mxu0
      %v1583 = vmul.f32 %v1424, 0.35355338
      %v1584 = vmul.f32 %v1427, 0.35355338
      %v1585 = vmul.f32 %v1475, 0.35355338
      %v1586 = vmul.f32 %v1478, 0.35355338
      %v1587 = vmul.f32 %v1526, 0.35355338
      %v1588 = vmul.f32 %v1529, 0.35355338
      %v1589 = vmul.f32 %v1577, 0.35355338
      %v1590 = vmul.f32 %v1580, 0.35355338
      %v1591 = vadd.f32 %v1583, %v754
      %v1592 = vadd.f32 %v1584, %v755
      %v1593 = vadd.f32 %v1585, %v754
      %v1594 = vadd.f32 %v1586, %v755
      %v1595 = vadd.f32 %v1587, %v754
      %v1596 = vadd.f32 %v1588, %v755
      %v1597 = vadd.f32 %v1589, %v754
      %v1598 = vadd.f32 %v1590, %v755
      %v1599 = vadd.f32 %v1591, %v760
      %v1600 = vadd.f32 %v1592, %v761
      %v1601 = vadd.f32 %v1593, %v762
      %v1602 = vadd.f32 %v1594, %v763
      %v1603 = vadd.f32 %v1595, %v764
      %v1604 = vadd.f32 %v1596, %v765
      %v1605 = vadd.f32 %v1597, %v766
      %v1606 = vadd.f32 %v1598, %v767
      %v1607 = vsel %vm1004, %v1599, -inf
      %1608 = vmax.xlane.f32.xlu0 %v1607
      %v1609 = vpop.xlane.xlu0 %1608
      %v1610 = vsel %vm1004, %v1600, -inf
      %1611 = vmax.xlane.f32.xlu0 %v1610
      %v1612 = vpop.xlane.xlu0 %1611
      %v1613 = vsel %vm1004, %v1601, -inf
      %1614 = vmax.xlane.f32.xlu0 %v1613
      %v1615 = vpop.xlane.xlu0 %1614
      %v1616 = vsel %vm1004, %v1602, -inf
      %1617 = vmax.xlane.f32.xlu0 %v1616
      %v1618 = vpop.xlane.xlu0 %1617
      %v1619 = vsel %vm1004, %v1603, -inf
      %1620 = vmax.xlane.f32.xlu0 %v1619
      %v1621 = vpop.xlane.xlu0 %1620
      %v1622 = vsel %vm1004, %v1604, -inf
      %1623 = vmax.xlane.f32.xlu0 %v1622
      %v1624 = vpop.xlane.xlu0 %1623
      %v1625 = vsel %vm1004, %v1605, -inf
      %1626 = vmax.xlane.f32.xlu0 %v1625
      %v1627 = vpop.xlane.xlu0 %1626
      %v1628 = vsel %vm1004, %v1606, -inf
      %1629 = vmax.xlane.f32.xlu0 %v1628
      %v1630 = vpop.xlane.xlu0 %1629
      %v1631 = vsub.f32 %v1599, %v1609
      %v1632 = vsub.f32 %v1600, %v1612
      %v1633 = vsub.f32 %v1601, %v1615
      %v1634 = vsub.f32 %v1602, %v1618
      %v1635 = vsub.f32 %v1603, %v1621
      %v1636 = vsub.f32 %v1604, %v1624
      %v1637 = vsub.f32 %v1605, %v1627
      %v1638 = vsub.f32 %v1606, %v1630
      %v1639 = vmul.f32 %v1631, 1.442695
      %v1640 = vpow.pop %v1639
      %v1641 = vmul.f32 %v1632, 1.442695
      %v1642 = vpow.pop %v1641
      %v1643 = vmul.f32 %v1633, 1.442695
      %v1644 = vpow.pop %v1643
      %v1645 = vmul.f32 %v1634, 1.442695
      %v1646 = vpow.pop %v1645
      %v1647 = vmul.f32 %v1635, 1.442695
      %v1648 = vpow.pop %v1647
      %v1649 = vmul.f32 %v1636, 1.442695
      %v1650 = vpow.pop %v1649
      %v1651 = vmul.f32 %v1637, 1.442695
      %v1652 = vpow.pop %v1651
      %v1653 = vmul.f32 %v1638, 1.442695
      %v1654 = vpow.pop %v1653
      %v1655 = vsel %vm1004, %v1640, 0.0
      %1656 = vadd.xlane.f32.xlu0 %v1655
      %v1657 = vpop.xlane.xlu0 %1656
      %v1658 = vsel %vm1004, %v1642, 0.0
      %1659 = vadd.xlane.f32.xlu0 %v1658
      %v1660 = vpop.xlane.xlu0 %1659
      %v1661 = vsel %vm1004, %v1644, 0.0
      %1662 = vadd.xlane.f32.xlu0 %v1661
      %v1663 = vpop.xlane.xlu0 %1662
      %v1664 = vsel %vm1004, %v1646, 0.0
      %1665 = vadd.xlane.f32.xlu0 %v1664
      %v1666 = vpop.xlane.xlu0 %1665
      %v1667 = vsel %vm1004, %v1648, 0.0
      %1668 = vadd.xlane.f32.xlu0 %v1667
      %v1669 = vpop.xlane.xlu0 %1668
      %v1670 = vsel %vm1004, %v1650, 0.0
      %1671 = vadd.xlane.f32.xlu0 %v1670
      %v1672 = vpop.xlane.xlu0 %1671
      %v1673 = vsel %vm1004, %v1652, 0.0
      %1674 = vadd.xlane.f32.xlu0 %v1673
      %v1675 = vpop.xlane.xlu0 %1674
      %v1676 = vsel %vm1004, %v1654, 0.0
      %1677 = vadd.xlane.f32.xlu0 %v1676
      %v1678 = vpop.xlane.xlu0 %1677
      %v1679 = vrcp.pop %v1657
      %v1680 = vrcp.pop %v1660
      %v1681 = vrcp.pop %v1663
      %v1682 = vrcp.pop %v1666
      %v1683 = vrcp.pop %v1669
      %v1684 = vrcp.pop %v1672
      %v1685 = vrcp.pop %v1675
      %v1686 = vrcp.pop %v1678
      %v1687 = vmul.f32 %v1640, %v1679
      %v1688 = vmul.f32 %v1642, %v1680
      %v1689 = vmul.f32 %v1644, %v1681
      %v1690 = vmul.f32 %v1646, %v1682
      %v1691 = vmul.f32 %v1648, %v1683
      %v1692 = vmul.f32 %v1650, %v1684
      %v1693 = vmul.f32 %v1652, %v1685
      %v1694 = vmul.f32 %v1654, %v1686
      %v1695 = vpack.c.bf16 %v1688, %v1687
      %v1696 = vpack.c.bf16 %v1690, %v1689
      %v1697 = vpack.c.bf16 %v1692, %v1691
      %v1698 = vpack.c.bf16 %v1694, %v1693
      %1699 = vrot.lane.b32.xlu0 %v775, 56
      %v1700 = vpop.permute.xlu0 %1699
      %v1703 = vsel %vm1004, %v1695, 0
      %1705 = vmatprep.subr.bf16.mxu0 0
      %1706 = vmatpush1.bf16.msra.mxu0 %v1700
      %1707 = vmatprep.subr.bf16.mxu0 0
      %1708 = vmatpush1.bf16.msra.mxu0 0
      %1709 = vmatprep.subr.bf16.mxu0 0
      %1710 = vmatpush1.bf16.msra.mxu0 0
      %1711 = vmatprep.subr.bf16.mxu0 0
      %1712 = vmatpush1.bf16.msra.mxu0 0
      %1713 = vmatprep.subr.bf16.mxu0 0
      %1714 = vmatpush1.bf16.msra.mxu0 0
      %1715 = vmatprep.subr.bf16.mxu0 0
      %1716 = vmatpush1.bf16.msra.mxu0 0
      %1717 = vmatprep.subr.bf16.mxu0 0
      %1718 = vmatpush1.bf16.msra.mxu0 0
      %1719 = vmatprep.subr.bf16.mxu0 0
      %1720 = vmatpush1.bf16.msra.mxu0 0
      %1721 = vmatprep.subr.bf16.mxu0 0
      %1722 = vmatpush1.bf16.msra.mxu0 0
      %1723 = vmatprep.subr.bf16.mxu0 0
      %1724 = vmatpush1.bf16.msra.mxu0 0
      %1725 = vmatprep.subr.bf16.mxu0 0
      %1726 = vmatpush1.bf16.msra.mxu0 0
      %1727 = vmatprep.subr.bf16.mxu0 0
      %1728 = vmatpush1.bf16.msra.mxu0 0
      %1729 = vmatprep.subr.bf16.mxu0 0
      %1730 = vmatpush1.bf16.msra.mxu0 0
      %1731 = vmatprep.subr.bf16.mxu0 0
      %1732 = vmatpush1.bf16.msra.mxu0 0
      %1733 = vmatprep.subr.bf16.mxu0 0
      %1734 = vmatpush1.bf16.msra.mxu0 0
      %1735 = vmatprep.subr.bf16.mxu0 0
      %1736 = vmatpush1.bf16.msra.mxu0 0
      %1737 = vmatprep.mubr.bf16.mxu0 0
      %1738 = vmatmul.mubr.bf16.gmra.mrb[0].mxu0 %v1703
      %v1739 = vpop.f32.mrb[0].mxu0
      %v1740 = vadd.f32 0.0, %v1739
      %v1741 = vpop.f32.mrb[0].mxu0
      %v1742 = vpop.f32.mrb[0].mxu0
      %v1743 = vadd.f32 0.0, %v1742
      %v1744 = vpop.f32.mrb[0].mxu0
      %1745 = vdwg.mxu0
      %1746 = vrot.lane.b32.xlu0 %v776, 56
      %v1747 = vpop.permute.xlu0 %1746
      %v1750 = vsel %vm1004, %v1696, 0
      %1752 = vmatprep.subr.bf16.mxu0 0
      %1753 = vmatpush1.bf16.msra.mxu0 %v1747
      %1754 = vmatprep.subr.bf16.mxu0 0
      %1755 = vmatpush1.bf16.msra.mxu0 0
      %1756 = vmatprep.subr.bf16.mxu0 0
      %1757 = vmatpush1.bf16.msra.mxu0 0
      %1758 = vmatprep.subr.bf16.mxu0 0
      %1759 = vmatpush1.bf16.msra.mxu0 0
      %1760 = vmatprep.subr.bf16.mxu0 0
      %1761 = vmatpush1.bf16.msra.mxu0 0
      %1762 = vmatprep.subr.bf16.mxu0 0
      %1763 = vmatpush1.bf16.msra.mxu0 0
      %1764 = vmatprep.subr.bf16.mxu0 0
      %1765 = vmatpush1.bf16.msra.mxu0 0
      %1766 = vmatprep.subr.bf16.mxu0 0
      %1767 = vmatpush1.bf16.msra.mxu0 0
      %1768 = vmatprep.subr.bf16.mxu0 0
      %1769 = vmatpush1.bf16.msra.mxu0 0
      %1770 = vmatprep.subr.bf16.mxu0 0
      %1771 = vmatpush1.bf16.msra.mxu0 0
      %1772 = vmatprep.subr.bf16.mxu0 0
      %1773 = vmatpush1.bf16.msra.mxu0 0
      %1774 = vmatprep.subr.bf16.mxu0 0
      %1775 = vmatpush1.bf16.msra.mxu0 0
      %1776 = vmatprep.subr.bf16.mxu0 0
      %1777 = vmatpush1.bf16.msra.mxu0 0
      %1778 = vmatprep.subr.bf16.mxu0 0
      %1779 = vmatpush1.bf16.msra.mxu0 0
      %1780 = vmatprep.subr.bf16.mxu0 0
      %1781 = vmatpush1.bf16.msra.mxu0 0
      %1782 = vmatprep.subr.bf16.mxu0 0
      %1783 = vmatpush1.bf16.msra.mxu0 0
      %1784 = vmatprep.mubr.bf16.mxu0 0
      %1785 = vmatmul.mubr.bf16.gmra.mrb[0].mxu0 %v1750
      %v1786 = vpop.f32.mrb[0].mxu0
      %v1787 = vadd.f32 0.0, %v1786
      %v1788 = vpop.f32.mrb[0].mxu0
      %v1789 = vpop.f32.mrb[0].mxu0
      %v1790 = vadd.f32 0.0, %v1789
      %v1791 = vpop.f32.mrb[0].mxu0
      %1792 = vdwg.mxu0
      %1793 = vrot.lane.b32.xlu0 %v777, 56
      %v1794 = vpop.permute.xlu0 %1793
      %v1797 = vsel %vm1004, %v1697, 0
      %1799 = vmatprep.subr.bf16.mxu0 0
      %1800 = vmatpush1.bf16.msra.mxu0 %v1794
      %1801 = vmatprep.subr.bf16.mxu0 0
      %1802 = vmatpush1.bf16.msra.mxu0 0
      %1803 = vmatprep.subr.bf16.mxu0 0
      %1804 = vmatpush1.bf16.msra.mxu0 0
      %1805 = vmatprep.subr.bf16.mxu0 0
      %1806 = vmatpush1.bf16.msra.mxu0 0
      %1807 = vmatprep.subr.bf16.mxu0 0
      %1808 = vmatpush1.bf16.msra.mxu0 0
      %1809 = vmatprep.subr.bf16.mxu0 0
      %1810 = vmatpush1.bf16.msra.mxu0 0
      %1811 = vmatprep.subr.bf16.mxu0 0
      %1812 = vmatpush1.bf16.msra.mxu0 0
      %1813 = vmatprep.subr.bf16.mxu0 0
      %1814 = vmatpush1.bf16.msra.mxu0 0
      %1815 = vmatprep.subr.bf16.mxu0 0
      %1816 = vmatpush1.bf16.msra.mxu0 0
      %1817 = vmatprep.subr.bf16.mxu0 0
      %1818 = vmatpush1.bf16.msra.mxu0 0
      %1819 = vmatprep.subr.bf16.mxu0 0
      %1820 = vmatpush1.bf16.msra.mxu0 0
      %1821 = vmatprep.subr.bf16.mxu0 0
      %1822 = vmatpush1.bf16.msra.mxu0 0
      %1823 = vmatprep.subr.bf16.mxu0 0
      %1824 = vmatpush1.bf16.msra.mxu0 0
      %1825 = vmatprep.subr.bf16.mxu0 0
      %1826 = vmatpush1.bf16.msra.mxu0 0
      %1827 = vmatprep.subr.bf16.mxu0 0
      %1828 = vmatpush1.bf16.msra.mxu0 0
      %1829 = vmatprep.subr.bf16.mxu0 0
      %1830 = vmatpush1.bf16.msra.mxu0 0
      %1831 = vmatprep.mubr.bf16.mxu0 0
      %1832 = vmatmul.mubr.bf16.gmra.mrb[0].mxu0 %v1797
      %v1833 = vpop.f32.mrb[0].mxu0
      %v1834 = vadd.f32 0.0, %v1833
      %v1835 = vpop.f32.mrb[0].mxu0
      %v1836 = vpop.f32.mrb[0].mxu0
      %v1837 = vadd.f32 0.0, %v1836
      %v1838 = vpop.f32.mrb[0].mxu0
      %1839 = vdwg.mxu0
      %1840 = vrot.lane.b32.xlu0 %v778, 56
      %v1841 = vpop.permute.xlu0 %1840
      %v1844 = vsel %vm1004, %v1698, 0
      %1846 = vmatprep.subr.bf16.mxu0 0
      %1847 = vmatpush1.bf16.msra.mxu0 %v1841
      %1848 = vmatprep.subr.bf16.mxu0 0
      %1849 = vmatpush1.bf16.msra.mxu0 0
      %1850 = vmatprep.subr.bf16.mxu0 0
      %1851 = vmatpush1.bf16.msra.mxu0 0
      %1852 = vmatprep.subr.bf16.mxu0 0
      %1853 = vmatpush1.bf16.msra.mxu0 0
      %1854 = vmatprep.subr.bf16.mxu0 0
      %1855 = vmatpush1.bf16.msra.mxu0 0
      %1856 = vmatprep.subr.bf16.mxu0 0
      %1857 = vmatpush1.bf16.msra.mxu0 0
      %1858 = vmatprep.subr.bf16.mxu0 0
      %1859 = vmatpush1.bf16.msra.mxu0 0
      %1860 = vmatprep.subr.bf16.mxu0 0
      %1861 = vmatpush1.bf16.msra.mxu0 0
      %1862 = vmatprep.subr.bf16.mxu0 0
      %1863 = vmatpush1.bf16.msra.mxu0 0
      %1864 = vmatprep.subr.bf16.mxu0 0
      %1865 = vmatpush1.bf16.msra.mxu0 0
      %1866 = vmatprep.subr.bf16.mxu0 0
      %1867 = vmatpush1.bf16.msra.mxu0 0
      %1868 = vmatprep.subr.bf16.mxu0 0
      %1869 = vmatpush1.bf16.msra.mxu0 0
      %1870 = vmatprep.subr.bf16.mxu0 0
      %1871 = vmatpush1.bf16.msra.mxu0 0
      %1872 = vmatprep.subr.bf16.mxu0 0
      %1873 = vmatpush1.bf16.msra.mxu0 0
      %1874 = vmatprep.subr.bf16.mxu0 0
      %1875 = vmatpush1.bf16.msra.mxu0 0
      %1876 = vmatprep.subr.bf16.mxu0 0
      %1877 = vmatpush1.bf16.msra.mxu0 0
      %1878 = vmatprep.mubr.bf16.mxu0 0
      %1879 = vmatmul.mubr.bf16.gmra.mrb[0].mxu0 %v1844
      %v1880 = vpop.f32.mrb[0].mxu0
      %v1881 = vadd.f32 0.0, %v1880
      %v1882 = vpop.f32.mrb[0].mxu0
      %v1883 = vpop.f32.mrb[0].mxu0
      %v1884 = vadd.f32 0.0, %v1883
      %v1885 = vpop.f32.mrb[0].mxu0
      %1886 = vdwg.mxu0
      %v1887 = vpack.c.bf16 %v1743, %v1740
      %v1888 = vpack.c.bf16 %v1790, %v1787
      %v1889 = vpack.c.bf16 %v1837, %v1834
      %v1890 = vpack.c.bf16 %v1884, %v1881
      %v1891 = vld [vmem:[%s6 + $0x4] sm:$0xf]
      %v1893 = vsel %vm782, %v1887, 0
      %v1896 = vsel %vm782, %v1888, 0
      %v1899 = vsel %vm782, %v1889, 0
      %v1902 = vsel %vm782, %v1890, 0
      %v1905 = vsel %vm1302, %v1891, 0
      %1907 = vmatprep.subr.bf16.mxu0 0
      %1908 = vmatpush1.bf16.msra.mxu0 %v1905
      %1909 = vmatprep.subr.bf16.mxu0 0
      %1910 = vmatpush1.bf16.msra.mxu0 0
      %1911 = vmatprep.subr.bf16.mxu0 0
      %1912 = vmatpush1.bf16.msra.mxu0 0
      %1913 = vmatprep.subr.bf16.mxu0 0
      %1914 = vmatpush1.bf16.msra.mxu0 0
      %1915 = vmatprep.subr.bf16.mxu0 0
      %1916 = vmatpush1.bf16.msra.mxu0 0
      %1917 = vmatprep.subr.bf16.mxu0 0
      %1918 = vmatpush1.bf16.msra.mxu0 0
      %1919 = vmatprep.subr.bf16.mxu0 0
      %1920 = vmatpush1.bf16.msra.mxu0 0
      %1921 = vmatprep.subr.bf16.mxu0 0
      %1922 = vmatpush1.bf16.msra.mxu0 0
      %1923 = vmatprep.subr.bf16.mxu0 0
      %1924 = vmatpush1.bf16.msra.mxu0 0
      %1925 = vmatprep.subr.bf16.mxu0 0
      %1926 = vmatpush1.bf16.msra.mxu0 0
      %1927 = vmatprep.subr.bf16.mxu0 0
      %1928 = vmatpush1.bf16.msra.mxu0 0
      %1929 = vmatprep.subr.bf16.mxu0 0
      %1930 = vmatpush1.bf16.msra.mxu0 0
      %1931 = vmatprep.subr.bf16.mxu0 0
      %1932 = vmatpush1.bf16.msra.mxu0 0
      %1933 = vmatprep.subr.bf16.mxu0 0
      %1934 = vmatpush1.bf16.msra.mxu0 0
      %1935 = vmatprep.subr.bf16.mxu0 0
      %1936 = vmatpush1.bf16.msra.mxu0 0
      %1937 = vmatprep.subr.bf16.mxu0 0
      %1938 = vmatpush1.bf16.msra.mxu0 0
      %1939 = vmatprep.mubr.bf16.mxu0 0
      %1940 = vmatmul.mubr.bf16.gmra.mrb[0].mxu0 %v1893
      %v1941 = vpop.f32.mrb[0].mxu0
      %v1942 = vadd.f32 0.0, %v1941
      %v1943 = vpop.f32.mrb[0].mxu0
      %v1944 = vpop.f32.mrb[0].mxu0
      %v1945 = vadd.f32 0.0, %v1944
      %v1946 = vpop.f32.mrb[0].mxu0
      %1947 = vmatprep.mubr.bf16.mxu0 0
      %1948 = vmatmul.mubr.bf16.gmra.mrb[0].mxu0 %v1896
      %v1949 = vpop.f32.mrb[0].mxu0
      %v1950 = vadd.f32 0.0, %v1949
      %v1951 = vpop.f32.mrb[0].mxu0
      %v1952 = vpop.f32.mrb[0].mxu0
      %v1953 = vadd.f32 0.0, %v1952
      %v1954 = vpop.f32.mrb[0].mxu0
      %1955 = vmatprep.mubr.bf16.mxu0 0
      %1956 = vmatmul.mubr.bf16.gmra.mrb[0].mxu0 %v1899
      %v1957 = vpop.f32.mrb[0].mxu0
      %v1958 = vadd.f32 0.0, %v1957
      %v1959 = vpop.f32.mrb[0].mxu0
      %v1960 = vpop.f32.mrb[0].mxu0
      %v1961 = vadd.f32 0.0, %v1960
      %v1962 = vpop.f32.mrb[0].mxu0
      %1963 = vmatprep.mubr.bf16.mxu0 0
      %1964 = vmatmul.mubr.bf16.gmra.mrb[0].mxu0 %v1902
      %v1965 = vpop.f32.mrb[0].mxu0
      %v1966 = vadd.f32 0.0, %v1965
      %v1967 = vpop.f32.mrb[0].mxu0
      %v1968 = vpop.f32.mrb[0].mxu0
      %v1969 = vadd.f32 0.0, %v1968
      %v1970 = vpop.f32.mrb[0].mxu0
      %1971 = vdwg.mxu0
      %v1972 = vadd.f32 %v1371, %v1942
      %v1973 = vadd.f32 %v1372, %v1945
      %v1974 = vadd.f32 %v1373, %v1950
      %v1975 = vadd.f32 %v1374, %v1953
      %v1976 = vadd.f32 %v1375, %v1958
      %v1977 = vadd.f32 %v1376, %v1961
      %v1978 = vadd.f32 %v1377, %v1966
      %v1979 = vadd.f32 %v1378, %v1969
      %1980 = vrot.lane.b32.xlu0 %v775, 112
      %v1981 = vpop.permute.xlu0 %1980
      %1982 = vrot.lane.b32.xlu0 %v775, 80
      %v1983 = vpop.permute.xlu0 %1982
      %v1985 = vsel %vm782, %v1981, 0
      %v1988 = vsel %vm782, %v1983, 0
      %1990 = vmatprep.subr.bf16.mxu0 0
      %1991 = vmatpush1.bf16.xpose.msra.mxu0 %v1988
      %1992 = vmatprep.subr.bf16.mxu0 0
      %1993 = vmatpush1.bf16.xpose.msra.mxu0 0
      %1994 = vmatprep.subr.bf16.mxu0 0
      %1995 = vmatpush1.bf16.xpose.msra.mxu0 0
      %1996 = vmatprep.subr.bf16.mxu0 0
      %1997 = vmatpush1.bf16.xpose.msra.mxu0 0
      %1998 = vmatprep.subr.bf16.mxu0 0
      %1999 = vmatpush1.bf16.xpose.msra.mxu0 0
      %2000 = vmatprep.subr.bf16.mxu0 0
      %2001 = vmatpush1.bf16.xpose.msra.mxu0 0
      %2002 = vmatprep.subr.bf16.mxu0 0
      %2003 = vmatpush1.bf16.xpose.msra.mxu0 0
      %2004 = vmatprep.subr.bf16.mxu0 0
      %2005 = vmatpush1.bf16.xpose.msra.mxu0 0
      %2006 = vmatprep.subr.bf16.mxu0 0
      %2007 = vmatpush1.bf16.xpose.msra.mxu0 0
      %2008 = vmatprep.subr.bf16.mxu0 0
      %2009 = vmatpush1.bf16.xpose.msra.mxu0 0
      %2010 = vmatprep.subr.bf16.mxu0 0
      %2011 = vmatpush1.bf16.xpose.msra.mxu0 0
      %2012 = vmatprep.subr.bf16.mxu0 0
      %2013 = vmatpush1.bf16.xpose.msra.mxu0 0
      %2014 = vmatprep.subr.bf16.mxu0 0
      %2015 = vmatpush1.bf16.xpose.msra.mxu0 0
      %2016 = vmatprep.subr.bf16.mxu0 0
      %2017 = vmatpush1.bf16.xpose.msra.mxu0 0
      %2018 = vmatprep.subr.bf16.mxu0 0
      %2019 = vmatpush1.bf16.xpose.msra.mxu0 0
      %2020 = vmatprep.subr.bf16.mxu0 0
      %2021 = vmatpush1.bf16.xpose.msra.mxu0 0
      %2022 = vmatprep.mubr.bf16.mxu0 0
      %2023 = vmatmul.mubr.bf16.gmra.mrb[0].mxu0 %v1985
      %v2024 = vpop.f32.mrb[0].mxu0
      %v2025 = vadd.f32 0.0, %v2024
      %v2026 = vpop.f32.mrb[0].mxu0
      %v2027 = vpop.f32.mrb[0].mxu0
      %v2028 = vadd.f32 0.0, %v2027
      %v2029 = vpop.f32.mrb[0].mxu0
      %2030 = vdwg.mxu0
      %2031 = vrot.lane.b32.xlu0 %v776, 112
      %v2032 = vpop.permute.xlu0 %2031
      %2033 = vrot.lane.b32.xlu0 %v776, 80
      %v2034 = vpop.permute.xlu0 %2033
      %v2036 = vsel %vm782, %v2032, 0
      %v2039 = vsel %vm782, %v2034, 0
      %2041 = vmatprep.subr.bf16.mxu0 0
      %2042 = vmatpush1.bf16.xpose.msra.mxu0 %v2039
      %2043 = vmatprep.subr.bf16.mxu0 0
      %2044 = vmatpush1.bf16.xpose.msra.mxu0 0
      %2045 = vmatprep.subr.bf16.mxu0 0
      %2046 = vmatpush1.bf16.xpose.msra.mxu0 0
      %2047 = vmatprep.subr.bf16.mxu0 0
      %2048 = vmatpush1.bf16.xpose.msra.mxu0 0
      %2049 = vmatprep.subr.bf16.mxu0 0
      %2050 = vmatpush1.bf16.xpose.msra.mxu0 0
      %2051 = vmatprep.subr.bf16.mxu0 0
      %2052 = vmatpush1.bf16.xpose.msra.mxu0 0
      %2053 = vmatprep.subr.bf16.mxu0 0
      %2054 = vmatpush1.bf16.xpose.msra.mxu0 0
      %2055 = vmatprep.subr.bf16.mxu0 0
      %2056 = vmatpush1.bf16.xpose.msra.mxu0 0
      %2057 = vmatprep.subr.bf16.mxu0 0
      %2058 = vmatpush1.bf16.xpose.msra.mxu0 0
      %2059 = vmatprep.subr.bf16.mxu0 0
      %2060 = vmatpush1.bf16.xpose.msra.mxu0 0
      %2061 = vmatprep.subr.bf16.mxu0 0
      %2062 = vmatpush1.bf16.xpose.msra.mxu0 0
      %2063 = vmatprep.subr.bf16.mxu0 0
      %2064 = vmatpush1.bf16.xpose.msra.mxu0 0
      %2065 = vmatprep.subr.bf16.mxu0 0
      %2066 = vmatpush1.bf16.xpose.msra.mxu0 0
      %2067 = vmatprep.subr.bf16.mxu0 0
      %2068 = vmatpush1.bf16.xpose.msra.mxu0 0
      %2069 = vmatprep.subr.bf16.mxu0 0
      %2070 = vmatpush1.bf16.xpose.msra.mxu0 0
      %2071 = vmatprep.subr.bf16.mxu0 0
      %2072 = vmatpush1.bf16.xpose.msra.mxu0 0
      %2073 = vmatprep.mubr.bf16.mxu0 0
      %2074 = vmatmul.mubr.bf16.gmra.mrb[0].mxu0 %v2036
      %v2075 = vpop.f32.mrb[0].mxu0
      %v2076 = vadd.f32 0.0, %v2075
      %v2077 = vpop.f32.mrb[0].mxu0
      %v2078 = vpop.f32.mrb[0].mxu0
      %v2079 = vadd.f32 0.0, %v2078
      %v2080 = vpop.f32.mrb[0].mxu0
      %2081 = vdwg.mxu0
      %2082 = vrot.lane.b32.xlu0 %v777, 112
      %v2083 = vpop.permute.xlu0 %2082
      %2084 = vrot.lane.b32.xlu0 %v777, 80
      %v2085 = vpop.permute.xlu0 %2084
      %v2087 = vsel %vm782, %v2083, 0
      %v2090 = vsel %vm782, %v2085, 0
      %2092 = vmatprep.subr.bf16.mxu0 0
      %2093 = vmatpush1.bf16.xpose.msra.mxu0 %v2090
      %2094 = vmatprep.subr.bf16.mxu0 0
      %2095 = vmatpush1.bf16.xpose.msra.mxu0 0
      %2096 = vmatprep.subr.bf16.mxu0 0
      %2097 = vmatpush1.bf16.xpose.msra.mxu0 0
      %2098 = vmatprep.subr.bf16.mxu0 0
      %2099 = vmatpush1.bf16.xpose.msra.mxu0 0
      %2100 = vmatprep.subr.bf16.mxu0 0
      %2101 = vmatpush1.bf16.xpose.msra.mxu0 0
      %2102 = vmatprep.subr.bf16.mxu0 0
      %2103 = vmatpush1.bf16.xpose.msra.mxu0 0
      %2104 = vmatprep.subr.bf16.mxu0 0
      %2105 = vmatpush1.bf16.xpose.msra.mxu0 0
      %2106 = vmatprep.subr.bf16.mxu0 0
      %2107 = vmatpush1.bf16.xpose.msra.mxu0 0
      %2108 = vmatprep.subr.bf16.mxu0 0
      %2109 = vmatpush1.bf16.xpose.msra.mxu0 0
      %2110 = vmatprep.subr.bf16.mxu0 0
      %2111 = vmatpush1.bf16.xpose.msra.mxu0 0
      %2112 = vmatprep.subr.bf16.mxu0 0
      %2113 = vmatpush1.bf16.xpose.msra.mxu0 0
      %2114 = vmatprep.subr.bf16.mxu0 0
      %2115 = vmatpush1.bf16.xpose.msra.mxu0 0
      %2116 = vmatprep.subr.bf16.mxu0 0
      %2117 = vmatpush1.bf16.xpose.msra.mxu0 0
      %2118 = vmatprep.subr.bf16.mxu0 0
      %2119 = vmatpush1.bf16.xpose.msra.mxu0 0
      %2120 = vmatprep.subr.bf16.mxu0 0
      %2121 = vmatpush1.bf16.xpose.msra.mxu0 0
      %2122 = vmatprep.subr.bf16.mxu0 0
      %2123 = vmatpush1.bf16.xpose.msra.mxu0 0
      %2124 = vmatprep.mubr.bf16.mxu0 0
      %2125 = vmatmul.mubr.bf16.gmra.mrb[0].mxu0 %v2087
      %v2126 = vpop.f32.mrb[0].mxu0
      %v2127 = vadd.f32 0.0, %v2126
      %v2128 = vpop.f32.mrb[0].mxu0
      %v2129 = vpop.f32.mrb[0].mxu0
      %v2130 = vadd.f32 0.0, %v2129
      %v2131 = vpop.f32.mrb[0].mxu0
      %2132 = vdwg.mxu0
      %2133 = vrot.lane.b32.xlu0 %v778, 112
      %v2134 = vpop.permute.xlu0 %2133
      %2135 = vrot.lane.b32.xlu0 %v778, 80
      %v2136 = vpop.permute.xlu0 %2135
      %v2138 = vsel %vm782, %v2134, 0
      %v2141 = vsel %vm782, %v2136, 0
      %2143 = vmatprep.subr.bf16.mxu0 0
      %2144 = vmatpush1.bf16.xpose.msra.mxu0 %v2141
      %2145 = vmatprep.subr.bf16.mxu0 0
      %2146 = vmatpush1.bf16.xpose.msra.mxu0 0
      %2147 = vmatprep.subr.bf16.mxu0 0
      %2148 = vmatpush1.bf16.xpose.msra.mxu0 0
      %2149 = vmatprep.subr.bf16.mxu0 0
      %2150 = vmatpush1.bf16.xpose.msra.mxu0 0
      %2151 = vmatprep.subr.bf16.mxu0 0
      %2152 = vmatpush1.bf16.xpose.msra.mxu0 0
      %2153 = vmatprep.subr.bf16.mxu0 0
      %2154 = vmatpush1.bf16.xpose.msra.mxu0 0
      %2155 = vmatprep.subr.bf16.mxu0 0
      %2156 = vmatpush1.bf16.xpose.msra.mxu0 0
      %2157 = vmatprep.subr.bf16.mxu0 0
      %2158 = vmatpush1.bf16.xpose.msra.mxu0 0
      %2159 = vmatprep.subr.bf16.mxu0 0
      %2160 = vmatpush1.bf16.xpose.msra.mxu0 0
      %2161 = vmatprep.subr.bf16.mxu0 0
      %2162 = vmatpush1.bf16.xpose.msra.mxu0 0
      %2163 = vmatprep.subr.bf16.mxu0 0
      %2164 = vmatpush1.bf16.xpose.msra.mxu0 0
      %2165 = vmatprep.subr.bf16.mxu0 0
      %2166 = vmatpush1.bf16.xpose.msra.mxu0 0
      %2167 = vmatprep.subr.bf16.mxu0 0
      %2168 = vmatpush1.bf16.xpose.msra.mxu0 0
      %2169 = vmatprep.subr.bf16.mxu0 0
      %2170 = vmatpush1.bf16.xpose.msra.mxu0 0
      %2171 = vmatprep.subr.bf16.mxu0 0
      %2172 = vmatpush1.bf16.xpose.msra.mxu0 0
      %2173 = vmatprep.subr.bf16.mxu0 0
      %2174 = vmatpush1.bf16.xpose.msra.mxu0 0
      %2175 = vmatprep.mubr.bf16.mxu0 0
      %2176 = vmatmul.mubr.bf16.gmra.mrb[0].mxu0 %v2138
      %v2177 = vpop.f32.mrb[0].mxu0
      %v2178 = vadd.f32 0.0, %v2177
      %v2179 = vpop.f32.mrb[0].mxu0
      %v2180 = vpop.f32.mrb[0].mxu0
      %v2181 = vadd.f32 0.0, %v2180
      %v2182 = vpop.f32.mrb[0].mxu0
      %2183 = vdwg.mxu0
      %v2184 = vmul.f32 %v2025, 0.35355338
      %v2185 = vmul.f32 %v2028, 0.35355338
      %v2186 = vmul.f32 %v2076, 0.35355338
      %v2187 = vmul.f32 %v2079, 0.35355338
      %v2188 = vmul.f32 %v2127, 0.35355338
      %v2189 = vmul.f32 %v2130, 0.35355338
      %v2190 = vmul.f32 %v2178, 0.35355338
      %v2191 = vmul.f32 %v2181, 0.35355338
      %v2192 = vadd.f32 %v2184, %v756
      %v2193 = vadd.f32 %v2185, %v757
      %v2194 = vadd.f32 %v2186, %v756
      %v2195 = vadd.f32 %v2187, %v757
      %v2196 = vadd.f32 %v2188, %v756
      %v2197 = vadd.f32 %v2189, %v757
      %v2198 = vadd.f32 %v2190, %v756
      %v2199 = vadd.f32 %v2191, %v757
      %v2200 = vadd.f32 %v2192, %v760
      %v2201 = vadd.f32 %v2193, %v761
      %v2202 = vadd.f32 %v2194, %v762
      %v2203 = vadd.f32 %v2195, %v763
      %v2204 = vadd.f32 %v2196, %v764
      %v2205 = vadd.f32 %v2197, %v765
      %v2206 = vadd.f32 %v2198, %v766
      %v2207 = vadd.f32 %v2199, %v767
      %v2208 = vsel %vm1004, %v2200, -inf
      %2209 = vmax.xlane.f32.xlu0 %v2208
      %v2210 = vpop.xlane.xlu0 %2209
      %v2211 = vsel %vm1004, %v2201, -inf
      %2212 = vmax.xlane.f32.xlu0 %v2211
      %v2213 = vpop.xlane.xlu0 %2212
      %v2214 = vsel %vm1004, %v2202, -inf
      %2215 = vmax.xlane.f32.xlu0 %v2214
      %v2216 = vpop.xlane.xlu0 %2215
      %v2217 = vsel %vm1004, %v2203, -inf
      %2218 = vmax.xlane.f32.xlu0 %v2217
      %v2219 = vpop.xlane.xlu0 %2218
      %v2220 = vsel %vm1004, %v2204, -inf
      %2221 = vmax.xlane.f32.xlu0 %v2220
      %v2222 = vpop.xlane.xlu0 %2221
      %v2223 = vsel %vm1004, %v2205, -inf
      %2224 = vmax.xlane.f32.xlu0 %v2223
      %v2225 = vpop.xlane.xlu0 %2224
      %v2226 = vsel %vm1004, %v2206, -inf
      %2227 = vmax.xlane.f32.xlu0 %v2226
      %v2228 = vpop.xlane.xlu0 %2227
      %v2229 = vsel %vm1004, %v2207, -inf
      %2230 = vmax.xlane.f32.xlu0 %v2229
      %v2231 = vpop.xlane.xlu0 %2230
      %v2232 = vsub.f32 %v2200, %v2210
      %v2233 = vsub.f32 %v2201, %v2213
      %v2234 = vsub.f32 %v2202, %v2216
      %v2235 = vsub.f32 %v2203, %v2219
      %v2236 = vsub.f32 %v2204, %v2222
      %v2237 = vsub.f32 %v2205, %v2225
      %v2238 = vsub.f32 %v2206, %v2228
      %v2239 = vsub.f32 %v2207, %v2231
      %v2240 = vmul.f32 %v2232, 1.442695
      %v2241 = vpow.pop %v2240
      %v2242 = vmul.f32 %v2233, 1.442695
      %v2243 = vpow.pop %v2242
      %v2244 = vmul.f32 %v2234, 1.442695
      %v2245 = vpow.pop %v2244
      %v2246 = vmul.f32 %v2235, 1.442695
      %v2247 = vpow.pop %v2246
      %v2248 = vmul.f32 %v2236, 1.442695
      %v2249 = vpow.pop %v2248
      %v2250 = vmul.f32 %v2237, 1.442695
      %v2251 = vpow.pop %v2250
      %v2252 = vmul.f32 %v2238, 1.442695
      %v2253 = vpow.pop %v2252
      %v2254 = vmul.f32 %v2239, 1.442695
      %v2255 = vpow.pop %v2254
      %v2256 = vsel %vm1004, %v2241, 0.0
      %2257 = vadd.xlane.f32.xlu0 %v2256
      %v2258 = vpop.xlane.xlu0 %2257
      %v2259 = vsel %vm1004, %v2243, 0.0
      %2260 = vadd.xlane.f32.xlu0 %v2259
      %v2261 = vpop.xlane.xlu0 %2260
      %v2262 = vsel %vm1004, %v2245, 0.0
      %2263 = vadd.xlane.f32.xlu0 %v2262
      %v2264 = vpop.xlane.xlu0 %2263
      %v2265 = vsel %vm1004, %v2247, 0.0
      %2266 = vadd.xlane.f32.xlu0 %v2265
      %v2267 = vpop.xlane.xlu0 %2266
      %v2268 = vsel %vm1004, %v2249, 0.0
      %2269 = vadd.xlane.f32.xlu0 %v2268
      %v2270 = vpop.xlane.xlu0 %2269
      %v2271 = vsel %vm1004, %v2251, 0.0
      %2272 = vadd.xlane.f32.xlu0 %v2271
      %v2273 = vpop.xlane.xlu0 %2272
      %v2274 = vsel %vm1004, %v2253, 0.0
      %2275 = vadd.xlane.f32.xlu0 %v2274
      %v2276 = vpop.xlane.xlu0 %2275
      %v2277 = vsel %vm1004, %v2255, 0.0
      %2278 = vadd.xlane.f32.xlu0 %v2277
      %v2279 = vpop.xlane.xlu0 %2278
      %v2280 = vrcp.pop %v2258
      %v2281 = vrcp.pop %v2261
      %v2282 = vrcp.pop %v2264
      %v2283 = vrcp.pop %v2267
      %v2284 = vrcp.pop %v2270
      %v2285 = vrcp.pop %v2273
      %v2286 = vrcp.pop %v2276
      %v2287 = vrcp.pop %v2279
      %v2288 = vmul.f32 %v2241, %v2280
      %v2289 = vmul.f32 %v2243, %v2281
      %v2290 = vmul.f32 %v2245, %v2282
      %v2291 = vmul.f32 %v2247, %v2283
      %v2292 = vmul.f32 %v2249, %v2284
      %v2293 = vmul.f32 %v2251, %v2285
      %v2294 = vmul.f32 %v2253, %v2286
      %v2295 = vmul.f32 %v2255, %v2287
      %v2296 = vpack.c.bf16 %v2289, %v2288
      %v2297 = vpack.c.bf16 %v2291, %v2290
      %v2298 = vpack.c.bf16 %v2293, %v2292
      %v2299 = vpack.c.bf16 %v2295, %v2294
      %2300 = vrot.lane.b32.xlu0 %v775, 48
      %v2301 = vpop.permute.xlu0 %2300
      %v2304 = vsel %vm1004, %v2296, 0
      %2306 = vmatprep.subr.bf16.mxu0 0
      %2307 = vmatpush1.bf16.msra.mxu0 %v2301
      %2308 = vmatprep.subr.bf16.mxu0 0
      %2309 = vmatpush1.bf16.msra.mxu0 0
      %2310 = vmatprep.subr.bf16.mxu0 0
      %2311 = vmatpush1.bf16.msra.mxu0 0
      %2312 = vmatprep.subr.bf16.mxu0 0
      %2313 = vmatpush1.bf16.msra.mxu0 0
      %2314 = vmatprep.subr.bf16.mxu0 0
      %2315 = vmatpush1.bf16.msra.mxu0 0
      %2316 = vmatprep.subr.bf16.mxu0 0
      %2317 = vmatpush1.bf16.msra.mxu0 0
      %2318 = vmatprep.subr.bf16.mxu0 0
      %2319 = vmatpush1.bf16.msra.mxu0 0
      %2320 = vmatprep.subr.bf16.mxu0 0
      %2321 = vmatpush1.bf16.msra.mxu0 0
      %2322 = vmatprep.subr.bf16.mxu0 0
      %2323 = vmatpush1.bf16.msra.mxu0 0
      %2324 = vmatprep.subr.bf16.mxu0 0
      %2325 = vmatpush1.bf16.msra.mxu0 0
      %2326 = vmatprep.subr.bf16.mxu0 0
      %2327 = vmatpush1.bf16.msra.mxu0 0
      %2328 = vmatprep.subr.bf16.mxu0 0
      %2329 = vmatpush1.bf16.msra.mxu0 0
      %2330 = vmatprep.subr.bf16.mxu0 0
      %2331 = vmatpush1.bf16.msra.mxu0 0
      %2332 = vmatprep.subr.bf16.mxu0 0
      %2333 = vmatpush1.bf16.msra.mxu0 0
      %2334 = vmatprep.subr.bf16.mxu0 0
      %2335 = vmatpush1.bf16.msra.mxu0 0
      %2336 = vmatprep.subr.bf16.mxu0 0
      %2337 = vmatpush1.bf16.msra.mxu0 0
      %2338 = vmatprep.mubr.bf16.mxu0 0
      %2339 = vmatmul.mubr.bf16.gmra.mrb[0].mxu0 %v2304
      %v2340 = vpop.f32.mrb[0].mxu0
      %v2341 = vadd.f32 0.0, %v2340
      %v2342 = vpop.f32.mrb[0].mxu0
      %v2343 = vpop.f32.mrb[0].mxu0
      %v2344 = vadd.f32 0.0, %v2343
      %v2345 = vpop.f32.mrb[0].mxu0
      %2346 = vdwg.mxu0
      %2347 = vrot.lane.b32.xlu0 %v776, 48
      %v2348 = vpop.permute.xlu0 %2347
      %v2351 = vsel %vm1004, %v2297, 0
      %2353 = vmatprep.subr.bf16.mxu0 0
      %2354 = vmatpush1.bf16.msra.mxu0 %v2348
      %2355 = vmatprep.subr.bf16.mxu0 0
      %2356 = vmatpush1.bf16.msra.mxu0 0
      %2357 = vmatprep.subr.bf16.mxu0 0
      %2358 = vmatpush1.bf16.msra.mxu0 0
      %2359 = vmatprep.subr.bf16.mxu0 0
      %2360 = vmatpush1.bf16.msra.mxu0 0
      %2361 = vmatprep.subr.bf16.mxu0 0
      %2362 = vmatpush1.bf16.msra.mxu0 0
      %2363 = vmatprep.subr.bf16.mxu0 0
      %2364 = vmatpush1.bf16.msra.mxu0 0
      %2365 = vmatprep.subr.bf16.mxu0 0
      %2366 = vmatpush1.bf16.msra.mxu0 0
      %2367 = vmatprep.subr.bf16.mxu0 0
      %2368 = vmatpush1.bf16.msra.mxu0 0
      %2369 = vmatprep.subr.bf16.mxu0 0
      %2370 = vmatpush1.bf16.msra.mxu0 0
      %2371 = vmatprep.subr.bf16.mxu0 0
      %2372 = vmatpush1.bf16.msra.mxu0 0
      %2373 = vmatprep.subr.bf16.mxu0 0
      %2374 = vmatpush1.bf16.msra.mxu0 0
      %2375 = vmatprep.subr.bf16.mxu0 0
      %2376 = vmatpush1.bf16.msra.mxu0 0
      %2377 = vmatprep.subr.bf16.mxu0 0
      %2378 = vmatpush1.bf16.msra.mxu0 0
      %2379 = vmatprep.subr.bf16.mxu0 0
      %2380 = vmatpush1.bf16.msra.mxu0 0
      %2381 = vmatprep.subr.bf16.mxu0 0
      %2382 = vmatpush1.bf16.msra.mxu0 0
      %2383 = vmatprep.subr.bf16.mxu0 0
      %2384 = vmatpush1.bf16.msra.mxu0 0
      %2385 = vmatprep.mubr.bf16.mxu0 0
      %2386 = vmatmul.mubr.bf16.gmra.mrb[0].mxu0 %v2351
      %v2387 = vpop.f32.mrb[0].mxu0
      %v2388 = vadd.f32 0.0, %v2387
      %v2389 = vpop.f32.mrb[0].mxu0
      %v2390 = vpop.f32.mrb[0].mxu0
      %v2391 = vadd.f32 0.0, %v2390
      %v2392 = vpop.f32.mrb[0].mxu0
      %2393 = vdwg.mxu0
      %2394 = vrot.lane.b32.xlu0 %v777, 48
      %v2395 = vpop.permute.xlu0 %2394
      %v2398 = vsel %vm1004, %v2298, 0
      %2400 = vmatprep.subr.bf16.mxu0 0
      %2401 = vmatpush1.bf16.msra.mxu0 %v2395
      %2402 = vmatprep.subr.bf16.mxu0 0
      %2403 = vmatpush1.bf16.msra.mxu0 0
      %2404 = vmatprep.subr.bf16.mxu0 0
      %2405 = vmatpush1.bf16.msra.mxu0 0
      %2406 = vmatprep.subr.bf16.mxu0 0
      %2407 = vmatpush1.bf16.msra.mxu0 0
      %2408 = vmatprep.subr.bf16.mxu0 0
      %2409 = vmatpush1.bf16.msra.mxu0 0
      %2410 = vmatprep.subr.bf16.mxu0 0
      %2411 = vmatpush1.bf16.msra.mxu0 0
      %2412 = vmatprep.subr.bf16.mxu0 0
      %2413 = vmatpush1.bf16.msra.mxu0 0
      %2414 = vmatprep.subr.bf16.mxu0 0
      %2415 = vmatpush1.bf16.msra.mxu0 0
      %2416 = vmatprep.subr.bf16.mxu0 0
      %2417 = vmatpush1.bf16.msra.mxu0 0
      %2418 = vmatprep.subr.bf16.mxu0 0
      %2419 = vmatpush1.bf16.msra.mxu0 0
      %2420 = vmatprep.subr.bf16.mxu0 0
      %2421 = vmatpush1.bf16.msra.mxu0 0
      %2422 = vmatprep.subr.bf16.mxu0 0
      %2423 = vmatpush1.bf16.msra.mxu0 0
      %2424 = vmatprep.subr.bf16.mxu0 0
      %2425 = vmatpush1.bf16.msra.mxu0 0
      %2426 = vmatprep.subr.bf16.mxu0 0
      %2427 = vmatpush1.bf16.msra.mxu0 0
      %2428 = vmatprep.subr.bf16.mxu0 0
      %2429 = vmatpush1.bf16.msra.mxu0 0
      %2430 = vmatprep.subr.bf16.mxu0 0
      %2431 = vmatpush1.bf16.msra.mxu0 0
      %2432 = vmatprep.mubr.bf16.mxu0 0
      %2433 = vmatmul.mubr.bf16.gmra.mrb[0].mxu0 %v2398
      %v2434 = vpop.f32.mrb[0].mxu0
      %v2435 = vadd.f32 0.0, %v2434
      %v2436 = vpop.f32.mrb[0].mxu0
      %v2437 = vpop.f32.mrb[0].mxu0
      %v2438 = vadd.f32 0.0, %v2437
      %v2439 = vpop.f32.mrb[0].mxu0
      %2440 = vdwg.mxu0
      %2441 = vrot.lane.b32.xlu0 %v778, 48
      %v2442 = vpop.permute.xlu0 %2441
      %v2445 = vsel %vm1004, %v2299, 0
      %2447 = vmatprep.subr.bf16.mxu0 0
      %2448 = vmatpush1.bf16.msra.mxu0 %v2442
      %2449 = vmatprep.subr.bf16.mxu0 0
      %2450 = vmatpush1.bf16.msra.mxu0 0
      %2451 = vmatprep.subr.bf16.mxu0 0
      %2452 = vmatpush1.bf16.msra.mxu0 0
      %2453 = vmatprep.subr.bf16.mxu0 0
      %2454 = vmatpush1.bf16.msra.mxu0 0
      %2455 = vmatprep.subr.bf16.mxu0 0
      %2456 = vmatpush1.bf16.msra.mxu0 0
      %2457 = vmatprep.subr.bf16.mxu0 0
      %2458 = vmatpush1.bf16.msra.mxu0 0
      %2459 = vmatprep.subr.bf16.mxu0 0
      %2460 = vmatpush1.bf16.msra.mxu0 0
      %2461 = vmatprep.subr.bf16.mxu0 0
      %2462 = vmatpush1.bf16.msra.mxu0 0
      %2463 = vmatprep.subr.bf16.mxu0 0
      %2464 = vmatpush1.bf16.msra.mxu0 0
      %2465 = vmatprep.subr.bf16.mxu0 0
      %2466 = vmatpush1.bf16.msra.mxu0 0
      %2467 = vmatprep.subr.bf16.mxu0 0
      %2468 = vmatpush1.bf16.msra.mxu0 0
      %2469 = vmatprep.subr.bf16.mxu0 0
      %2470 = vmatpush1.bf16.msra.mxu0 0
      %2471 = vmatprep.subr.bf16.mxu0 0
      %2472 = vmatpush1.bf16.msra.mxu0 0
      %2473 = vmatprep.subr.bf16.mxu0 0
      %2474 = vmatpush1.bf16.msra.mxu0 0
      %2475 = vmatprep.subr.bf16.mxu0 0
      %2476 = vmatpush1.bf16.msra.mxu0 0
      %2477 = vmatprep.subr.bf16.mxu0 0
      %2478 = vmatpush1.bf16.msra.mxu0 0
      %2479 = vmatprep.mubr.bf16.mxu0 0
      %2480 = vmatmul.mubr.bf16.gmra.mrb[0].mxu0 %v2445
      %v2481 = vpop.f32.mrb[0].mxu0
      %v2482 = vadd.f32 0.0, %v2481
      %v2483 = vpop.f32.mrb[0].mxu0
      %v2484 = vpop.f32.mrb[0].mxu0
      %v2485 = vadd.f32 0.0, %v2484
      %v2486 = vpop.f32.mrb[0].mxu0
      %2487 = vdwg.mxu0
      %v2488 = vpack.c.bf16 %v2344, %v2341
      %v2489 = vpack.c.bf16 %v2391, %v2388
      %v2490 = vpack.c.bf16 %v2438, %v2435
      %v2491 = vpack.c.bf16 %v2485, %v2482
      %v2492 = vld [vmem:[%s6 + $0x8] sm:$0xf]
      %v2494 = vsel %vm782, %v2488, 0
      %v2497 = vsel %vm782, %v2489, 0
      %v2500 = vsel %vm782, %v2490, 0
      %v2503 = vsel %vm782, %v2491, 0
      %v2506 = vsel %vm1302, %v2492, 0
      %2508 = vmatprep.subr.bf16.mxu0 0
      %2509 = vmatpush1.bf16.msra.mxu0 %v2506
      %2510 = vmatprep.subr.bf16.mxu0 0
      %2511 = vmatpush1.bf16.msra.mxu0 0
      %2512 = vmatprep.subr.bf16.mxu0 0
      %2513 = vmatpush1.bf16.msra.mxu0 0
      %2514 = vmatprep.subr.bf16.mxu0 0
      %2515 = vmatpush1.bf16.msra.mxu0 0
      %2516 = vmatprep.subr.bf16.mxu0 0
      %2517 = vmatpush1.bf16.msra.mxu0 0
      %2518 = vmatprep.subr.bf16.mxu0 0
      %2519 = vmatpush1.bf16.msra.mxu0 0
      %2520 = vmatprep.subr.bf16.mxu0 0
      %2521 = vmatpush1.bf16.msra.mxu0 0
      %2522 = vmatprep.subr.bf16.mxu0 0
      %2523 = vmatpush1.bf16.msra.mxu0 0
      %2524 = vmatprep.subr.bf16.mxu0 0
      %2525 = vmatpush1.bf16.msra.mxu0 0
      %2526 = vmatprep.subr.bf16.mxu0 0
      %2527 = vmatpush1.bf16.msra.mxu0 0
      %2528 = vmatprep.subr.bf16.mxu0 0
      %2529 = vmatpush1.bf16.msra.mxu0 0
      %2530 = vmatprep.subr.bf16.mxu0 0
      %2531 = vmatpush1.bf16.msra.mxu0 0
      %2532 = vmatprep.subr.bf16.mxu0 0
      %2533 = vmatpush1.bf16.msra.mxu0 0
      %2534 = vmatprep.subr.bf16.mxu0 0
      %2535 = vmatpush1.bf16.msra.mxu0 0
      %2536 = vmatprep.subr.bf16.mxu0 0
      %2537 = vmatpush1.bf16.msra.mxu0 0
      %2538 = vmatprep.subr.bf16.mxu0 0
      %2539 = vmatpush1.bf16.msra.mxu0 0
      %2540 = vmatprep.mubr.bf16.mxu0 0
      %2541 = vmatmul.mubr.bf16.gmra.mrb[0].mxu0 %v2494
      %v2542 = vpop.f32.mrb[0].mxu0
      %v2543 = vadd.f32 0.0, %v2542
      %v2544 = vpop.f32.mrb[0].mxu0
      %v2545 = vpop.f32.mrb[0].mxu0
      %v2546 = vadd.f32 0.0, %v2545
      %v2547 = vpop.f32.mrb[0].mxu0
      %2548 = vmatprep.mubr.bf16.mxu0 0
      %2549 = vmatmul.mubr.bf16.gmra.mrb[0].mxu0 %v2497
      %v2550 = vpop.f32.mrb[0].mxu0
      %v2551 = vadd.f32 0.0, %v2550
      %v2552 = vpop.f32.mrb[0].mxu0
      %v2553 = vpop.f32.mrb[0].mxu0
      %v2554 = vadd.f32 0.0, %v2553
      %v2555 = vpop.f32.mrb[0].mxu0
      %2556 = vmatprep.mubr.bf16.mxu0 0
      %2557 = vmatmul.mubr.bf16.gmra.mrb[0].mxu0 %v2500
      %v2558 = vpop.f32.mrb[0].mxu0
      %v2559 = vadd.f32 0.0, %v2558
      %v2560 = vpop.f32.mrb[0].mxu0
      %v2561 = vpop.f32.mrb[0].mxu0
      %v2562 = vadd.f32 0.0, %v2561
      %v2563 = vpop.f32.mrb[0].mxu0
      %2564 = vmatprep.mubr.bf16.mxu0 0
      %2565 = vmatmul.mubr.bf16.gmra.mrb[0].mxu0 %v2503
      %v2566 = vpop.f32.mrb[0].mxu0
      %v2567 = vadd.f32 0.0, %v2566
      %v2568 = vpop.f32.mrb[0].mxu0
      %v2569 = vpop.f32.mrb[0].mxu0
      %v2570 = vadd.f32 0.0, %v2569
      %v2571 = vpop.f32.mrb[0].mxu0
      %2572 = vdwg.mxu0
      %v2573 = vadd.f32 %v1972, %v2543
      %v2574 = vadd.f32 %v1973, %v2546
      %v2575 = vadd.f32 %v1974, %v2551
      %v2576 = vadd.f32 %v1975, %v2554
      %v2577 = vadd.f32 %v1976, %v2559
      %v2578 = vadd.f32 %v1977, %v2562
      %v2579 = vadd.f32 %v1978, %v2567
      %v2580 = vadd.f32 %v1979, %v2570
      %2581 = vrot.lane.b32.xlu0 %v775, 104
      %v2582 = vpop.permute.xlu0 %2581
      %2583 = vrot.lane.b32.xlu0 %v775, 72
      %v2584 = vpop.permute.xlu0 %2583
      %v2586 = vsel %vm782, %v2582, 0
      %v2589 = vsel %vm782, %v2584, 0
      %2591 = vmatprep.subr.bf16.mxu0 0
      %2592 = vmatpush1.bf16.xpose.msra.mxu0 %v2589
      %2593 = vmatprep.subr.bf16.mxu0 0
      %2594 = vmatpush1.bf16.xpose.msra.mxu0 0
      %2595 = vmatprep.subr.bf16.mxu0 0
      %2596 = vmatpush1.bf16.xpose.msra.mxu0 0
      %2597 = vmatprep.subr.bf16.mxu0 0
      %2598 = vmatpush1.bf16.xpose.msra.mxu0 0
      %2599 = vmatprep.subr.bf16.mxu0 0
      %2600 = vmatpush1.bf16.xpose.msra.mxu0 0
      %2601 = vmatprep.subr.bf16.mxu0 0
      %2602 = vmatpush1.bf16.xpose.msra.mxu0 0
      %2603 = vmatprep.subr.bf16.mxu0 0
      %2604 = vmatpush1.bf16.xpose.msra.mxu0 0
      %2605 = vmatprep.subr.bf16.mxu0 0
      %2606 = vmatpush1.bf16.xpose.msra.mxu0 0
      %2607 = vmatprep.subr.bf16.mxu0 0
      %2608 = vmatpush1.bf16.xpose.msra.mxu0 0
      %2609 = vmatprep.subr.bf16.mxu0 0
      %2610 = vmatpush1.bf16.xpose.msra.mxu0 0
      %2611 = vmatprep.subr.bf16.mxu0 0
      %2612 = vmatpush1.bf16.xpose.msra.mxu0 0
      %2613 = vmatprep.subr.bf16.mxu0 0
      %2614 = vmatpush1.bf16.xpose.msra.mxu0 0
      %2615 = vmatprep.subr.bf16.mxu0 0
      %2616 = vmatpush1.bf16.xpose.msra.mxu0 0
      %2617 = vmatprep.subr.bf16.mxu0 0
      %2618 = vmatpush1.bf16.xpose.msra.mxu0 0
      %2619 = vmatprep.subr.bf16.mxu0 0
      %2620 = vmatpush1.bf16.xpose.msra.mxu0 0
      %2621 = vmatprep.subr.bf16.mxu0 0
      %2622 = vmatpush1.bf16.xpose.msra.mxu0 0
      %2623 = vmatprep.mubr.bf16.mxu0 0
      %2624 = vmatmul.mubr.bf16.gmra.mrb[0].mxu0 %v2586
      %v2625 = vpop.f32.mrb[0].mxu0
      %v2626 = vadd.f32 0.0, %v2625
      %v2627 = vpop.f32.mrb[0].mxu0
      %v2628 = vpop.f32.mrb[0].mxu0
      %v2629 = vadd.f32 0.0, %v2628
      %v2630 = vpop.f32.mrb[0].mxu0
      %2631 = vdwg.mxu0
      %2632 = vrot.lane.b32.xlu0 %v776, 104
      %v2633 = vpop.permute.xlu0 %2632
      %2634 = vrot.lane.b32.xlu0 %v776, 72
      %v2635 = vpop.permute.xlu0 %2634
      %v2637 = vsel %vm782, %v2633, 0
      %v2640 = vsel %vm782, %v2635, 0
      %2642 = vmatprep.subr.bf16.mxu0 0
      %2643 = vmatpush1.bf16.xpose.msra.mxu0 %v2640
      %2644 = vmatprep.subr.bf16.mxu0 0
      %2645 = vmatpush1.bf16.xpose.msra.mxu0 0
      %2646 = vmatprep.subr.bf16.mxu0 0
      %2647 = vmatpush1.bf16.xpose.msra.mxu0 0
      %2648 = vmatprep.subr.bf16.mxu0 0
      %2649 = vmatpush1.bf16.xpose.msra.mxu0 0
      %2650 = vmatprep.subr.bf16.mxu0 0
      %2651 = vmatpush1.bf16.xpose.msra.mxu0 0
      %2652 = vmatprep.subr.bf16.mxu0 0
      %2653 = vmatpush1.bf16.xpose.msra.mxu0 0
      %2654 = vmatprep.subr.bf16.mxu0 0
      %2655 = vmatpush1.bf16.xpose.msra.mxu0 0
      %2656 = vmatprep.subr.bf16.mxu0 0
      %2657 = vmatpush1.bf16.xpose.msra.mxu0 0
      %2658 = vmatprep.subr.bf16.mxu0 0
      %2659 = vmatpush1.bf16.xpose.msra.mxu0 0
      %2660 = vmatprep.subr.bf16.mxu0 0
      %2661 = vmatpush1.bf16.xpose.msra.mxu0 0
      %2662 = vmatprep.subr.bf16.mxu0 0
      %2663 = vmatpush1.bf16.xpose.msra.mxu0 0
      %2664 = vmatprep.subr.bf16.mxu0 0
      %2665 = vmatpush1.bf16.xpose.msra.mxu0 0
      %2666 = vmatprep.subr.bf16.mxu0 0
      %2667 = vmatpush1.bf16.xpose.msra.mxu0 0
      %2668 = vmatprep.subr.bf16.mxu0 0
      %2669 = vmatpush1.bf16.xpose.msra.mxu0 0
      %2670 = vmatprep.subr.bf16.mxu0 0
      %2671 = vmatpush1.bf16.xpose.msra.mxu0 0
      %2672 = vmatprep.subr.bf16.mxu0 0
      %2673 = vmatpush1.bf16.xpose.msra.mxu0 0
      %2674 = vmatprep.mubr.bf16.mxu0 0
      %2675 = vmatmul.mubr.bf16.gmra.mrb[0].mxu0 %v2637
      %v2676 = vpop.f32.mrb[0].mxu0
      %v2677 = vadd.f32 0.0, %v2676
      %v2678 = vpop.f32.mrb[0].mxu0
      %v2679 = vpop.f32.mrb[0].mxu0
      %v2680 = vadd.f32 0.0, %v2679
      %v2681 = vpop.f32.mrb[0].mxu0
      %2682 = vdwg.mxu0
      %2683 = vrot.lane.b32.xlu0 %v777, 104
      %v2684 = vpop.permute.xlu0 %2683
      %2685 = vrot.lane.b32.xlu0 %v777, 72
      %v2686 = vpop.permute.xlu0 %2685
      %v2688 = vsel %vm782, %v2684, 0
      %v2691 = vsel %vm782, %v2686, 0
      %2693 = vmatprep.subr.bf16.mxu0 0
      %2694 = vmatpush1.bf16.xpose.msra.mxu0 %v2691
      %2695 = vmatprep.subr.bf16.mxu0 0
      %2696 = vmatpush1.bf16.xpose.msra.mxu0 0
      %2697 = vmatprep.subr.bf16.mxu0 0
      %2698 = vmatpush1.bf16.xpose.msra.mxu0 0
      %2699 = vmatprep.subr.bf16.mxu0 0
      %2700 = vmatpush1.bf16.xpose.msra.mxu0 0
      %2701 = vmatprep.subr.bf16.mxu0 0
      %2702 = vmatpush1.bf16.xpose.msra.mxu0 0
      %2703 = vmatprep.subr.bf16.mxu0 0
      %2704 = vmatpush1.bf16.xpose.msra.mxu0 0
      %2705 = vmatprep.subr.bf16.mxu0 0
      %2706 = vmatpush1.bf16.xpose.msra.mxu0 0
      %2707 = vmatprep.subr.bf16.mxu0 0
      %2708 = vmatpush1.bf16.xpose.msra.mxu0 0
      %2709 = vmatprep.subr.bf16.mxu0 0
      %2710 = vmatpush1.bf16.xpose.msra.mxu0 0
      %2711 = vmatprep.subr.bf16.mxu0 0
      %2712 = vmatpush1.bf16.xpose.msra.mxu0 0
      %2713 = vmatprep.subr.bf16.mxu0 0
      %2714 = vmatpush1.bf16.xpose.msra.mxu0 0
      %2715 = vmatprep.subr.bf16.mxu0 0
      %2716 = vmatpush1.bf16.xpose.msra.mxu0 0
      %2717 = vmatprep.subr.bf16.mxu0 0
      %2718 = vmatpush1.bf16.xpose.msra.mxu0 0
      %2719 = vmatprep.subr.bf16.mxu0 0
      %2720 = vmatpush1.bf16.xpose.msra.mxu0 0
      %2721 = vmatprep.subr.bf16.mxu0 0
      %2722 = vmatpush1.bf16.xpose.msra.mxu0 0
      %2723 = vmatprep.subr.bf16.mxu0 0
      %2724 = vmatpush1.bf16.xpose.msra.mxu0 0
      %2725 = vmatprep.mubr.bf16.mxu0 0
      %2726 = vmatmul.mubr.bf16.gmra.mrb[0].mxu0 %v2688
      %v2727 = vpop.f32.mrb[0].mxu0
      %v2728 = vadd.f32 0.0, %v2727
      %v2729 = vpop.f32.mrb[0].mxu0
      %v2730 = vpop.f32.mrb[0].mxu0
      %v2731 = vadd.f32 0.0, %v2730
      %v2732 = vpop.f32.mrb[0].mxu0
      %2733 = vdwg.mxu0
      %2734 = vrot.lane.b32.xlu0 %v778, 104
      %v2735 = vpop.permute.xlu0 %2734
      %2736 = vrot.lane.b32.xlu0 %v778, 72
      %v2737 = vpop.permute.xlu0 %2736
      %v2739 = vsel %vm782, %v2735, 0
      %v2742 = vsel %vm782, %v2737, 0
      %2744 = vmatprep.subr.bf16.mxu0 0
      %2745 = vmatpush1.bf16.xpose.msra.mxu0 %v2742
      %2746 = vmatprep.subr.bf16.mxu0 0
      %2747 = vmatpush1.bf16.xpose.msra.mxu0 0
      %2748 = vmatprep.subr.bf16.mxu0 0
      %2749 = vmatpush1.bf16.xpose.msra.mxu0 0
      %2750 = vmatprep.subr.bf16.mxu0 0
      %2751 = vmatpush1.bf16.xpose.msra.mxu0 0
      %2752 = vmatprep.subr.bf16.mxu0 0
      %2753 = vmatpush1.bf16.xpose.msra.mxu0 0
      %2754 = vmatprep.subr.bf16.mxu0 0
      %2755 = vmatpush1.bf16.xpose.msra.mxu0 0
      %2756 = vmatprep.subr.bf16.mxu0 0
      %2757 = vmatpush1.bf16.xpose.msra.mxu0 0
      %2758 = vmatprep.subr.bf16.mxu0 0
      %2759 = vmatpush1.bf16.xpose.msra.mxu0 0
      %2760 = vmatprep.subr.bf16.mxu0 0
      %2761 = vmatpush1.bf16.xpose.msra.mxu0 0
      %2762 = vmatprep.subr.bf16.mxu0 0
      %2763 = vmatpush1.bf16.xpose.msra.mxu0 0
      %2764 = vmatprep.subr.bf16.mxu0 0
      %2765 = vmatpush1.bf16.xpose.msra.mxu0 0
      %2766 = vmatprep.subr.bf16.mxu0 0
      %2767 = vmatpush1.bf16.xpose.msra.mxu0 0
      %2768 = vmatprep.subr.bf16.mxu0 0
      %2769 = vmatpush1.bf16.xpose.msra.mxu0 0
      %2770 = vmatprep.subr.bf16.mxu0 0
      %2771 = vmatpush1.bf16.xpose.msra.mxu0 0
      %2772 = vmatprep.subr.bf16.mxu0 0
      %2773 = vmatpush1.bf16.xpose.msra.mxu0 0
      %2774 = vmatprep.subr.bf16.mxu0 0
      %2775 = vmatpush1.bf16.xpose.msra.mxu0 0
      %2776 = vmatprep.mubr.bf16.mxu0 0
      %2777 = vmatmul.mubr.bf16.gmra.mrb[0].mxu0 %v2739
      %v2778 = vpop.f32.mrb[0].mxu0
      %v2779 = vadd.f32 0.0, %v2778
      %v2780 = vpop.f32.mrb[0].mxu0
      %v2781 = vpop.f32.mrb[0].mxu0
      %v2782 = vadd.f32 0.0, %v2781
      %v2783 = vpop.f32.mrb[0].mxu0
      %2784 = vdwg.mxu0
      %v2785 = vmul.f32 %v2626, 0.35355338
      %v2786 = vmul.f32 %v2629, 0.35355338
      %v2787 = vmul.f32 %v2677, 0.35355338
      %v2788 = vmul.f32 %v2680, 0.35355338
      %v2789 = vmul.f32 %v2728, 0.35355338
      %v2790 = vmul.f32 %v2731, 0.35355338
      %v2791 = vmul.f32 %v2779, 0.35355338
      %v2792 = vmul.f32 %v2782, 0.35355338
      %v2793 = vadd.f32 %v2785, %v758
      %v2794 = vadd.f32 %v2786, %v759
      %v2795 = vadd.f32 %v2787, %v758
      %v2796 = vadd.f32 %v2788, %v759
      %v2797 = vadd.f32 %v2789, %v758
      %v2798 = vadd.f32 %v2790, %v759
      %v2799 = vadd.f32 %v2791, %v758
      %v2800 = vadd.f32 %v2792, %v759
      %v2801 = vadd.f32 %v2793, %v760
      %v2802 = vadd.f32 %v2794, %v761
      %v2803 = vadd.f32 %v2795, %v762
      %v2804 = vadd.f32 %v2796, %v763
      %v2805 = vadd.f32 %v2797, %v764
      %v2806 = vadd.f32 %v2798, %v765
      %v2807 = vadd.f32 %v2799, %v766
      %v2808 = vadd.f32 %v2800, %v767
      %v2809 = vsel %vm1004, %v2801, -inf
      %2810 = vmax.xlane.f32.xlu0 %v2809
      %v2811 = vpop.xlane.xlu0 %2810
      %v2812 = vsel %vm1004, %v2802, -inf
      %2813 = vmax.xlane.f32.xlu0 %v2812
      %v2814 = vpop.xlane.xlu0 %2813
      %v2815 = vsel %vm1004, %v2803, -inf
      %2816 = vmax.xlane.f32.xlu0 %v2815
      %v2817 = vpop.xlane.xlu0 %2816
      %v2818 = vsel %vm1004, %v2804, -inf
      %2819 = vmax.xlane.f32.xlu0 %v2818
      %v2820 = vpop.xlane.xlu0 %2819
      %v2821 = vsel %vm1004, %v2805, -inf
      %2822 = vmax.xlane.f32.xlu0 %v2821
      %v2823 = vpop.xlane.xlu0 %2822
      %v2824 = vsel %vm1004, %v2806, -inf
      %2825 = vmax.xlane.f32.xlu0 %v2824
      %v2826 = vpop.xlane.xlu0 %2825
      %v2827 = vsel %vm1004, %v2807, -inf
      %2828 = vmax.xlane.f32.xlu0 %v2827
      %v2829 = vpop.xlane.xlu0 %2828
      %v2830 = vsel %vm1004, %v2808, -inf
      %2831 = vmax.xlane.f32.xlu0 %v2830
      %v2832 = vpop.xlane.xlu0 %2831
      %v2833 = vsub.f32 %v2801, %v2811
      %v2834 = vsub.f32 %v2802, %v2814
      %v2835 = vsub.f32 %v2803, %v2817
      %v2836 = vsub.f32 %v2804, %v2820
      %v2837 = vsub.f32 %v2805, %v2823
      %v2838 = vsub.f32 %v2806, %v2826
      %v2839 = vsub.f32 %v2807, %v2829
      %v2840 = vsub.f32 %v2808, %v2832
      %v2841 = vmul.f32 %v2833, 1.442695
      %v2842 = vpow.pop %v2841
      %v2843 = vmul.f32 %v2834, 1.442695
      %v2844 = vpow.pop %v2843
      %v2845 = vmul.f32 %v2835, 1.442695
      %v2846 = vpow.pop %v2845
      %v2847 = vmul.f32 %v2836, 1.442695
      %v2848 = vpow.pop %v2847
      %v2849 = vmul.f32 %v2837, 1.442695
      %v2850 = vpow.pop %v2849
      %v2851 = vmul.f32 %v2838, 1.442695
      %v2852 = vpow.pop %v2851
      %v2853 = vmul.f32 %v2839, 1.442695
      %v2854 = vpow.pop %v2853
      %v2855 = vmul.f32 %v2840, 1.442695
      %v2856 = vpow.pop %v2855
      %v2857 = vsel %vm1004, %v2842, 0.0
      %2858 = vadd.xlane.f32.xlu0 %v2857
      %v2859 = vpop.xlane.xlu0 %2858
      %v2860 = vsel %vm1004, %v2844, 0.0
      %2861 = vadd.xlane.f32.xlu0 %v2860
      %v2862 = vpop.xlane.xlu0 %2861
      %v2863 = vsel %vm1004, %v2846, 0.0
      %2864 = vadd.xlane.f32.xlu0 %v2863
      %v2865 = vpop.xlane.xlu0 %2864
      %v2866 = vsel %vm1004, %v2848, 0.0
      %2867 = vadd.xlane.f32.xlu0 %v2866
      %v2868 = vpop.xlane.xlu0 %2867
      %v2869 = vsel %vm1004, %v2850, 0.0
      %2870 = vadd.xlane.f32.xlu0 %v2869
      %v2871 = vpop.xlane.xlu0 %2870
      %v2872 = vsel %vm1004, %v2852, 0.0
      %2873 = vadd.xlane.f32.xlu0 %v2872
      %v2874 = vpop.xlane.xlu0 %2873
      %v2875 = vsel %vm1004, %v2854, 0.0
      %2876 = vadd.xlane.f32.xlu0 %v2875
      %v2877 = vpop.xlane.xlu0 %2876
      %v2878 = vsel %vm1004, %v2856, 0.0
      %2879 = vadd.xlane.f32.xlu0 %v2878
      %v2880 = vpop.xlane.xlu0 %2879
      %v2881 = vrcp.pop %v2859
      %v2882 = vrcp.pop %v2862
      %v2883 = vrcp.pop %v2865
      %v2884 = vrcp.pop %v2868
      %v2885 = vrcp.pop %v2871
      %v2886 = vrcp.pop %v2874
      %v2887 = vrcp.pop %v2877
      %v2888 = vrcp.pop %v2880
      %v2889 = vmul.f32 %v2842, %v2881
      %v2890 = vmul.f32 %v2844, %v2882
      %v2891 = vmul.f32 %v2846, %v2883
      %v2892 = vmul.f32 %v2848, %v2884
      %v2893 = vmul.f32 %v2850, %v2885
      %v2894 = vmul.f32 %v2852, %v2886
      %v2895 = vmul.f32 %v2854, %v2887
      %v2896 = vmul.f32 %v2856, %v2888
      %v2897 = vpack.c.bf16 %v2890, %v2889
      %v2898 = vpack.c.bf16 %v2892, %v2891
      %v2899 = vpack.c.bf16 %v2894, %v2893
      %v2900 = vpack.c.bf16 %v2896, %v2895
      %2901 = vrot.lane.b32.xlu0 %v775, 40
      %v2902 = vpop.permute.xlu0 %2901
      %v2905 = vsel %vm1004, %v2897, 0
      %2907 = vmatprep.subr.bf16.mxu0 0
      %2908 = vmatpush1.bf16.msra.mxu0 %v2902
      %2909 = vmatprep.subr.bf16.mxu0 0
      %2910 = vmatpush1.bf16.msra.mxu0 0
      %2911 = vmatprep.subr.bf16.mxu0 0
      %2912 = vmatpush1.bf16.msra.mxu0 0
      %2913 = vmatprep.subr.bf16.mxu0 0
      %2914 = vmatpush1.bf16.msra.mxu0 0
      %2915 = vmatprep.subr.bf16.mxu0 0
      %2916 = vmatpush1.bf16.msra.mxu0 0
      %2917 = vmatprep.subr.bf16.mxu0 0
      %2918 = vmatpush1.bf16.msra.mxu0 0
      %2919 = vmatprep.subr.bf16.mxu0 0
      %2920 = vmatpush1.bf16.msra.mxu0 0
      %2921 = vmatprep.subr.bf16.mxu0 0
      %2922 = vmatpush1.bf16.msra.mxu0 0
      %2923 = vmatprep.subr.bf16.mxu0 0
      %2924 = vmatpush1.bf16.msra.mxu0 0
      %2925 = vmatprep.subr.bf16.mxu0 0
      %2926 = vmatpush1.bf16.msra.mxu0 0
      %2927 = vmatprep.subr.bf16.mxu0 0
      %2928 = vmatpush1.bf16.msra.mxu0 0
      %2929 = vmatprep.subr.bf16.mxu0 0
      %2930 = vmatpush1.bf16.msra.mxu0 0
      %2931 = vmatprep.subr.bf16.mxu0 0
      %2932 = vmatpush1.bf16.msra.mxu0 0
      %2933 = vmatprep.subr.bf16.mxu0 0
      %2934 = vmatpush1.bf16.msra.mxu0 0
      %2935 = vmatprep.subr.bf16.mxu0 0
      %2936 = vmatpush1.bf16.msra.mxu0 0
      %2937 = vmatprep.subr.bf16.mxu0 0
      %2938 = vmatpush1.bf16.msra.mxu0 0
      %2939 = vmatprep.mubr.bf16.mxu0 0
      %2940 = vmatmul.mubr.bf16.gmra.mrb[0].mxu0 %v2905
      %v2941 = vpop.f32.mrb[0].mxu0
      %v2942 = vadd.f32 0.0, %v2941
      %v2943 = vpop.f32.mrb[0].mxu0
      %v2944 = vpop.f32.mrb[0].mxu0
      %v2945 = vadd.f32 0.0, %v2944
      %v2946 = vpop.f32.mrb[0].mxu0
      %2947 = vdwg.mxu0
      %2948 = vrot.lane.b32.xlu0 %v776, 40
      %v2949 = vpop.permute.xlu0 %2948
      %v2952 = vsel %vm1004, %v2898, 0
      %2954 = vmatprep.subr.bf16.mxu0 0
      %2955 = vmatpush1.bf16.msra.mxu0 %v2949
      %2956 = vmatprep.subr.bf16.mxu0 0
      %2957 = vmatpush1.bf16.msra.mxu0 0
      %2958 = vmatprep.subr.bf16.mxu0 0
      %2959 = vmatpush1.bf16.msra.mxu0 0
      %2960 = vmatprep.subr.bf16.mxu0 0
      %2961 = vmatpush1.bf16.msra.mxu0 0
      %2962 = vmatprep.subr.bf16.mxu0 0
      %2963 = vmatpush1.bf16.msra.mxu0 0
      %2964 = vmatprep.subr.bf16.mxu0 0
      %2965 = vmatpush1.bf16.msra.mxu0 0
      %2966 = vmatprep.subr.bf16.mxu0 0
      %2967 = vmatpush1.bf16.msra.mxu0 0
      %2968 = vmatprep.subr.bf16.mxu0 0
      %2969 = vmatpush1.bf16.msra.mxu0 0
      %2970 = vmatprep.subr.bf16.mxu0 0
      %2971 = vmatpush1.bf16.msra.mxu0 0
      %2972 = vmatprep.subr.bf16.mxu0 0
      %2973 = vmatpush1.bf16.msra.mxu0 0
      %2974 = vmatprep.subr.bf16.mxu0 0
      %2975 = vmatpush1.bf16.msra.mxu0 0
      %2976 = vmatprep.subr.bf16.mxu0 0
      %2977 = vmatpush1.bf16.msra.mxu0 0
      %2978 = vmatprep.subr.bf16.mxu0 0
      %2979 = vmatpush1.bf16.msra.mxu0 0
      %2980 = vmatprep.subr.bf16.mxu0 0
      %2981 = vmatpush1.bf16.msra.mxu0 0
      %2982 = vmatprep.subr.bf16.mxu0 0
      %2983 = vmatpush1.bf16.msra.mxu0 0
      %2984 = vmatprep.subr.bf16.mxu0 0
      %2985 = vmatpush1.bf16.msra.mxu0 0
      %2986 = vmatprep.mubr.bf16.mxu0 0
      %2987 = vmatmul.mubr.bf16.gmra.mrb[0].mxu0 %v2952
      %v2988 = vpop.f32.mrb[0].mxu0
      %v2989 = vadd.f32 0.0, %v2988
      %v2990 = vpop.f32.mrb[0].mxu0
      %v2991 = vpop.f32.mrb[0].mxu0
      %v2992 = vadd.f32 0.0, %v2991
      %v2993 = vpop.f32.mrb[0].mxu0
      %2994 = vdwg.mxu0
      %2995 = vrot.lane.b32.xlu0 %v777, 40
      %v2996 = vpop.permute.xlu0 %2995
      %v2999 = vsel %vm1004, %v2899, 0
      %3001 = vmatprep.subr.bf16.mxu0 0
      %3002 = vmatpush1.bf16.msra.mxu0 %v2996
      %3003 = vmatprep.subr.bf16.mxu0 0
      %3004 = vmatpush1.bf16.msra.mxu0 0
      %3005 = vmatprep.subr.bf16.mxu0 0
      %3006 = vmatpush1.bf16.msra.mxu0 0
      %3007 = vmatprep.subr.bf16.mxu0 0
      %3008 = vmatpush1.bf16.msra.mxu0 0
      %3009 = vmatprep.subr.bf16.mxu0 0
      %3010 = vmatpush1.bf16.msra.mxu0 0
      %3011 = vmatprep.subr.bf16.mxu0 0
      %3012 = vmatpush1.bf16.msra.mxu0 0
      %3013 = vmatprep.subr.bf16.mxu0 0
      %3014 = vmatpush1.bf16.msra.mxu0 0
      %3015 = vmatprep.subr.bf16.mxu0 0
      %3016 = vmatpush1.bf16.msra.mxu0 0
      %3017 = vmatprep.subr.bf16.mxu0 0
      %3018 = vmatpush1.bf16.msra.mxu0 0
      %3019 = vmatprep.subr.bf16.mxu0 0
      %3020 = vmatpush1.bf16.msra.mxu0 0
      %3021 = vmatprep.subr.bf16.mxu0 0
      %3022 = vmatpush1.bf16.msra.mxu0 0
      %3023 = vmatprep.subr.bf16.mxu0 0
      %3024 = vmatpush1.bf16.msra.mxu0 0
      %3025 = vmatprep.subr.bf16.mxu0 0
      %3026 = vmatpush1.bf16.msra.mxu0 0
      %3027 = vmatprep.subr.bf16.mxu0 0
      %3028 = vmatpush1.bf16.msra.mxu0 0
      %3029 = vmatprep.subr.bf16.mxu0 0
      %3030 = vmatpush1.bf16.msra.mxu0 0
      %3031 = vmatprep.subr.bf16.mxu0 0
      %3032 = vmatpush1.bf16.msra.mxu0 0
      %3033 = vmatprep.mubr.bf16.mxu0 0
      %3034 = vmatmul.mubr.bf16.gmra.mrb[0].mxu0 %v2999
      %v3035 = vpop.f32.mrb[0].mxu0
      %v3036 = vadd.f32 0.0, %v3035
      %v3037 = vpop.f32.mrb[0].mxu0
      %v3038 = vpop.f32.mrb[0].mxu0
      %v3039 = vadd.f32 0.0, %v3038
      %v3040 = vpop.f32.mrb[0].mxu0
      %3041 = vdwg.mxu0
      %3042 = vrot.lane.b32.xlu0 %v778, 40
      %v3043 = vpop.permute.xlu0 %3042
      %v3046 = vsel %vm1004, %v2900, 0
      %3048 = vmatprep.subr.bf16.mxu0 0
      %3049 = vmatpush1.bf16.msra.mxu0 %v3043
      %3050 = vmatprep.subr.bf16.mxu0 0
      %3051 = vmatpush1.bf16.msra.mxu0 0
      %3052 = vmatprep.subr.bf16.mxu0 0
      %3053 = vmatpush1.bf16.msra.mxu0 0
      %3054 = vmatprep.subr.bf16.mxu0 0
      %3055 = vmatpush1.bf16.msra.mxu0 0
      %3056 = vmatprep.subr.bf16.mxu0 0
      %3057 = vmatpush1.bf16.msra.mxu0 0
      %3058 = vmatprep.subr.bf16.mxu0 0
      %3059 = vmatpush1.bf16.msra.mxu0 0
      %3060 = vmatprep.subr.bf16.mxu0 0
      %3061 = vmatpush1.bf16.msra.mxu0 0
      %3062 = vmatprep.subr.bf16.mxu0 0
      %3063 = vmatpush1.bf16.msra.mxu0 0
      %3064 = vmatprep.subr.bf16.mxu0 0
      %3065 = vmatpush1.bf16.msra.mxu0 0
      %3066 = vmatprep.subr.bf16.mxu0 0
      %3067 = vmatpush1.bf16.msra.mxu0 0
      %3068 = vmatprep.subr.bf16.mxu0 0
      %3069 = vmatpush1.bf16.msra.mxu0 0
      %3070 = vmatprep.subr.bf16.mxu0 0
      %3071 = vmatpush1.bf16.msra.mxu0 0
      %3072 = vmatprep.subr.bf16.mxu0 0
      %3073 = vmatpush1.bf16.msra.mxu0 0
      %3074 = vmatprep.subr.bf16.mxu0 0
      %3075 = vmatpush1.bf16.msra.mxu0 0
      %3076 = vmatprep.subr.bf16.mxu0 0
      %3077 = vmatpush1.bf16.msra.mxu0 0
      %3078 = vmatprep.subr.bf16.mxu0 0
      %3079 = vmatpush1.bf16.msra.mxu0 0
      %3080 = vmatprep.mubr.bf16.mxu0 0
      %3081 = vmatmul.mubr.bf16.gmra.mrb[0].mxu0 %v3046
      %v3082 = vpop.f32.mrb[0].mxu0
      %v3083 = vadd.f32 0.0, %v3082
      %v3084 = vpop.f32.mrb[0].mxu0
      %v3085 = vpop.f32.mrb[0].mxu0
      %v3086 = vadd.f32 0.0, %v3085
      %v3087 = vpop.f32.mrb[0].mxu0
      %3088 = vdwg.mxu0
      %v3089 = vpack.c.bf16 %v2945, %v2942
      %v3090 = vpack.c.bf16 %v2992, %v2989
      %v3091 = vpack.c.bf16 %v3039, %v3036
      %v3092 = vpack.c.bf16 %v3086, %v3083
      %v3093 = vld [vmem:[%s6 + $0xc] sm:$0xf]
      %v3095 = vsel %vm782, %v3089, 0
      %v3098 = vsel %vm782, %v3090, 0
      %v3101 = vsel %vm782, %v3091, 0
      %v3104 = vsel %vm782, %v3092, 0
      %v3107 = vsel %vm1302, %v3093, 0
      %3109 = vmatprep.subr.bf16.mxu0 0
      %3110 = vmatpush1.bf16.msra.mxu0 %v3107
      %3111 = vmatprep.subr.bf16.mxu0 0
      %3112 = vmatpush1.bf16.msra.mxu0 0
      %3113 = vmatprep.subr.bf16.mxu0 0
      %3114 = vmatpush1.bf16.msra.mxu0 0
      %3115 = vmatprep.subr.bf16.mxu0 0
      %3116 = vmatpush1.bf16.msra.mxu0 0
      %3117 = vmatprep.subr.bf16.mxu0 0
      %3118 = vmatpush1.bf16.msra.mxu0 0
      %3119 = vmatprep.subr.bf16.mxu0 0
      %3120 = vmatpush1.bf16.msra.mxu0 0
      %3121 = vmatprep.subr.bf16.mxu0 0
      %3122 = vmatpush1.bf16.msra.mxu0 0
      %3123 = vmatprep.subr.bf16.mxu0 0
      %3124 = vmatpush1.bf16.msra.mxu0 0
      %3125 = vmatprep.subr.bf16.mxu0 0
      %3126 = vmatpush1.bf16.msra.mxu0 0
      %3127 = vmatprep.subr.bf16.mxu0 0
      %3128 = vmatpush1.bf16.msra.mxu0 0
      %3129 = vmatprep.subr.bf16.mxu0 0
      %3130 = vmatpush1.bf16.msra.mxu0 0
      %3131 = vmatprep.subr.bf16.mxu0 0
      %3132 = vmatpush1.bf16.msra.mxu0 0
      %3133 = vmatprep.subr.bf16.mxu0 0
      %3134 = vmatpush1.bf16.msra.mxu0 0
      %3135 = vmatprep.subr.bf16.mxu0 0
      %3136 = vmatpush1.bf16.msra.mxu0 0
      %3137 = vmatprep.subr.bf16.mxu0 0
      %3138 = vmatpush1.bf16.msra.mxu0 0
      %3139 = vmatprep.subr.bf16.mxu0 0
      %3140 = vmatpush1.bf16.msra.mxu0 0
      %3141 = vmatprep.mubr.bf16.mxu0 0
      %3142 = vmatmul.mubr.bf16.gmra.mrb[0].mxu0 %v3095
      %v3143 = vpop.f32.mrb[0].mxu0
      %v3144 = vadd.f32 0.0, %v3143
      %v3145 = vpop.f32.mrb[0].mxu0
      %v3146 = vpop.f32.mrb[0].mxu0
      %v3147 = vadd.f32 0.0, %v3146
      %v3148 = vpop.f32.mrb[0].mxu0
      %3149 = vmatprep.mubr.bf16.mxu0 0
      %3150 = vmatmul.mubr.bf16.gmra.mrb[0].mxu0 %v3098
      %v3151 = vpop.f32.mrb[0].mxu0
      %v3152 = vadd.f32 0.0, %v3151
      %v3153 = vpop.f32.mrb[0].mxu0
      %v3154 = vpop.f32.mrb[0].mxu0
      %v3155 = vadd.f32 0.0, %v3154
      %v3156 = vpop.f32.mrb[0].mxu0
      %3157 = vmatprep.mubr.bf16.mxu0 0
      %3158 = vmatmul.mubr.bf16.gmra.mrb[0].mxu0 %v3101
      %v3159 = vpop.f32.mrb[0].mxu0
      %v3160 = vadd.f32 0.0, %v3159
      %v3161 = vpop.f32.mrb[0].mxu0
      %v3162 = vpop.f32.mrb[0].mxu0
      %v3163 = vadd.f32 0.0, %v3162
      %v3164 = vpop.f32.mrb[0].mxu0
      %3165 = vmatprep.mubr.bf16.mxu0 0
      %3166 = vmatmul.mubr.bf16.gmra.mrb[0].mxu0 %v3104
      %v3167 = vpop.f32.mrb[0].mxu0
      %v3168 = vadd.f32 0.0, %v3167
      %v3169 = vpop.f32.mrb[0].mxu0
      %v3170 = vpop.f32.mrb[0].mxu0
      %v3171 = vadd.f32 0.0, %v3170
      %v3172 = vpop.f32.mrb[0].mxu0
      %3173 = vdwg.mxu0
      %v3174 = vadd.f32 %v2573, %v3144
      %v3175 = vadd.f32 %v2574, %v3147
      %v3176 = vadd.f32 %v2575, %v3152
      %v3177 = vadd.f32 %v2576, %v3155
      %v3178 = vadd.f32 %v2577, %v3160
      %v3179 = vadd.f32 %v2578, %v3163
      %v3180 = vadd.f32 %v2579, %v3168
      %v3181 = vadd.f32 %v2580, %v3171
      %v3182 = vadd.f32 %v504, %v3174
      %v3183 = vadd.f32 %v505, %v3175
      %v3184 = vadd.f32 %v506, %v3176
      %v3185 = vadd.f32 %v507, %v3177
      %v3186 = vadd.f32 %v508, %v3178
      %v3187 = vadd.f32 %v509, %v3179
      %v3188 = vadd.f32 %v510, %v3180
      %v3189 = vadd.f32 %v511, %v3181
      %v3190 = vld [vmem:[%s9] sm:$0x1]
      %v3191 = vld [vmem:[%s10] sm:$0x1]
      %v3192 = vsel %vm514, %v3182, 0.0
      %3193 = vadd.xlane.f32.xlu0 %v3192
      %v3194 = vpop.xlane.xlu0 %3193
      %v3195 = vsel %vm514, %v3183, 0.0
      %3196 = vadd.xlane.f32.xlu0 %v3195
      %v3197 = vpop.xlane.xlu0 %3196
      %v3198 = vsel %vm514, %v3184, 0.0
      %3199 = vadd.xlane.f32.xlu0 %v3198
      %v3200 = vpop.xlane.xlu0 %3199
      %v3201 = vsel %vm514, %v3185, 0.0
      %3202 = vadd.xlane.f32.xlu0 %v3201
      %v3203 = vpop.xlane.xlu0 %3202
      %v3204 = vsel %vm514, %v3186, 0.0
      %3205 = vadd.xlane.f32.xlu0 %v3204
      %v3206 = vpop.xlane.xlu0 %3205
      %v3207 = vsel %vm514, %v3187, 0.0
      %3208 = vadd.xlane.f32.xlu0 %v3207
      %v3209 = vpop.xlane.xlu0 %3208
      %v3210 = vsel %vm514, %v3188, 0.0
      %3211 = vadd.xlane.f32.xlu0 %v3210
      %v3212 = vpop.xlane.xlu0 %3211
      %v3213 = vsel %vm514, %v3189, 0.0
      %3214 = vadd.xlane.f32.xlu0 %v3213
      %v3215 = vpop.xlane.xlu0 %3214
      %v3216 = vmul.f32 %v3194, %v539
      %v3217 = vmul.f32 %v3197, %v539
      %v3218 = vmul.f32 %v3200, %v539
      %v3219 = vmul.f32 %v3203, %v539
      %v3220 = vmul.f32 %v3206, %v539
      %v3221 = vmul.f32 %v3209, %v539
      %v3222 = vmul.f32 %v3212, %v539
      %v3223 = vmul.f32 %v3215, %v539
      %v3224 = vsub.f32 %v3182, %v3216
      %v3225 = vsub.f32 %v3183, %v3217
      %v3226 = vsub.f32 %v3184, %v3218
      %v3227 = vsub.f32 %v3185, %v3219
      %v3228 = vsub.f32 %v3186, %v3220
      %v3229 = vsub.f32 %v3187, %v3221
      %v3230 = vsub.f32 %v3188, %v3222
      %v3231 = vsub.f32 %v3189, %v3223
      %v3232 = vmul.f32 %v3224, %v3224
      %v3233 = vmul.f32 %v3225, %v3225
      %v3234 = vmul.f32 %v3226, %v3226
      %v3235 = vmul.f32 %v3227, %v3227
      %v3236 = vmul.f32 %v3228, %v3228
      %v3237 = vmul.f32 %v3229, %v3229
      %v3238 = vmul.f32 %v3230, %v3230
      %v3239 = vmul.f32 %v3231, %v3231
      %v3240 = vsel %vm514, %v3232, 0.0
      %3241 = vadd.xlane.f32.xlu0 %v3240
      %v3242 = vpop.xlane.xlu0 %3241
      %v3243 = vsel %vm514, %v3233, 0.0
      %3244 = vadd.xlane.f32.xlu0 %v3243
      %v3245 = vpop.xlane.xlu0 %3244
      %v3246 = vsel %vm514, %v3234, 0.0
      %3247 = vadd.xlane.f32.xlu0 %v3246
      %v3248 = vpop.xlane.xlu0 %3247
      %v3249 = vsel %vm514, %v3235, 0.0
      %3250 = vadd.xlane.f32.xlu0 %v3249
      %v3251 = vpop.xlane.xlu0 %3250
      %v3252 = vsel %vm514, %v3236, 0.0
      %3253 = vadd.xlane.f32.xlu0 %v3252
      %v3254 = vpop.xlane.xlu0 %3253
      %v3255 = vsel %vm514, %v3237, 0.0
      %3256 = vadd.xlane.f32.xlu0 %v3255
      %v3257 = vpop.xlane.xlu0 %3256
      %v3258 = vsel %vm514, %v3238, 0.0
      %3259 = vadd.xlane.f32.xlu0 %v3258
      %v3260 = vpop.xlane.xlu0 %3259
      %v3261 = vsel %vm514, %v3239, 0.0
      %3262 = vadd.xlane.f32.xlu0 %v3261
      %v3263 = vpop.xlane.xlu0 %3262
      %v3264 = vmul.f32 %v3242, %v539
      %v3265 = vmul.f32 %v3245, %v539
      %v3266 = vmul.f32 %v3248, %v539
      %v3267 = vmul.f32 %v3251, %v539
      %v3268 = vmul.f32 %v3254, %v539
      %v3269 = vmul.f32 %v3257, %v539
      %v3270 = vmul.f32 %v3260, %v539
      %v3271 = vmul.f32 %v3263, %v539
      %v3272 = vadd.f32 %v3264, 1e-05
      %v3273 = vadd.f32 %v3265, 1e-05
      %v3274 = vadd.f32 %v3266, 1e-05
      %v3275 = vadd.f32 %v3267, 1e-05
      %v3276 = vadd.f32 %v3268, 1e-05
      %v3277 = vadd.f32 %v3269, 1e-05
      %v3278 = vadd.f32 %v3270, 1e-05
      %v3279 = vadd.f32 %v3271, 1e-05
      %v3280 = vrsqrt.pop %v3272
      %v3281 = vrsqrt.pop %v3273
      %v3282 = vrsqrt.pop %v3274
      %v3283 = vrsqrt.pop %v3275
      %v3284 = vrsqrt.pop %v3276
      %v3285 = vrsqrt.pop %v3277
      %v3286 = vrsqrt.pop %v3278
      %v3287 = vrsqrt.pop %v3279
      %v3288 = vmul.f32 %v3224, %v3280
      %v3289 = vmul.f32 %v3225, %v3281
      %v3290 = vmul.f32 %v3226, %v3282
      %v3291 = vmul.f32 %v3227, %v3283
      %v3292 = vmul.f32 %v3228, %v3284
      %v3293 = vmul.f32 %v3229, %v3285
      %v3294 = vmul.f32 %v3230, %v3286
      %v3295 = vmul.f32 %v3231, %v3287
      %v3297 = vlaneseq
      %v3298 = vshrl.u32 %v3297, 7
      %v3299 = vsub.s32 0, %v3298
      %v3300 = vrot.slane %v3190, %v3299
      %v3302 = vmul.f32 %v3288, %v3300
      %v3303 = vmul.f32 %v3289, %v3300
      %v3304 = vmul.f32 %v3290, %v3300
      %v3305 = vmul.f32 %v3291, %v3300
      %v3306 = vmul.f32 %v3292, %v3300
      %v3307 = vmul.f32 %v3293, %v3300
      %v3308 = vmul.f32 %v3294, %v3300
      %v3309 = vmul.f32 %v3295, %v3300
      %v3311 = vlaneseq
      %v3312 = vshrl.u32 %v3311, 7
      %v3313 = vsub.s32 0, %v3312
      %v3314 = vrot.slane %v3191, %v3313
      %v3316 = vadd.f32 %v3302, %v3314
      %v3317 = vadd.f32 %v3303, %v3314
      %v3318 = vadd.f32 %v3304, %v3314
      %v3319 = vadd.f32 %v3305, %v3314
      %v3320 = vadd.f32 %v3306, %v3314
      %v3321 = vadd.f32 %v3307, %v3314
      %v3322 = vadd.f32 %v3308, %v3314
      %v3323 = vadd.f32 %v3309, %v3314
      %v3324 = vpack.c.bf16 %v3317, %v3316
      %v3325 = vpack.c.bf16 %v3319, %v3318
      %v3326 = vpack.c.bf16 %v3321, %v3320
      %v3327 = vpack.c.bf16 %v3323, %v3322
      %v3328 = vld [vmem:[%s11] sm:$0xf]
      %v3329 = vld [vmem:[%s11 + $0x4] sm:$0xf]
      %v3330 = vld [vmem:[%s11 + $0x8] sm:$0xf]
      %v3331 = vld [vmem:[%s11 + $0xc] sm:$0xf]
      %v3332 = vld [vmem:[%s12] sm:$0x1]
      %v3334 = vlaneseq
      %v3335 = vshrl.u32 %v3334, 7
      %v3336 = vsub.s32 0, %v3335
      %v3337 = vrot.slane %v3332, %v3336
      %v3343 = vunpack.c.l.b16 %v3328
      %v3344 = vunpack.c.l.b16 %v3329
      %v3345 = vunpack.c.l.b16 %v3330
      %v3346 = vunpack.c.l.b16 %v3331
      %v3347 = vpack.c.b16 %v3344, %v3343
      %v3348 = vpack.c.b16 %v3346, %v3345
      %v3352 = vsel %vm514, %v3324, 0
      %v3355 = vsel %vm514, %v3325, 0
      %v3358 = vsel %vm514, %v3326, 0
      %v3361 = vsel %vm514, %v3327, 0
      %3363 = vmatprep.subr.bf16.mxu0 0
      %3364 = vmatpush1.bf16.msra.mxu0 %v3347
      %3365 = vmatprep.subr.bf16.mxu0 0
      %3366 = vmatpush1.bf16.msra.mxu0 %v3348
      %3367 = vmatprep.subr.bf16.mxu0 0
      %3368 = vmatpush1.bf16.msra.mxu0 0
      %3369 = vmatprep.subr.bf16.mxu0 0
      %3370 = vmatpush1.bf16.msra.mxu0 0
      %3371 = vmatprep.subr.bf16.mxu0 0
      %3372 = vmatpush1.bf16.msra.mxu0 0
      %3373 = vmatprep.subr.bf16.mxu0 0
      %3374 = vmatpush1.bf16.msra.mxu0 0
      %3375 = vmatprep.subr.bf16.mxu0 0
      %3376 = vmatpush1.bf16.msra.mxu0 0
      %3377 = vmatprep.subr.bf16.mxu0 0
      %3378 = vmatpush1.bf16.msra.mxu0 0
      %3379 = vmatprep.subr.bf16.mxu0 0
      %3380 = vmatpush1.bf16.msra.mxu0 0
      %3381 = vmatprep.subr.bf16.mxu0 0
      %3382 = vmatpush1.bf16.msra.mxu0 0
      %3383 = vmatprep.subr.bf16.mxu0 0
      %3384 = vmatpush1.bf16.msra.mxu0 0
      %3385 = vmatprep.subr.bf16.mxu0 0
      %3386 = vmatpush1.bf16.msra.mxu0 0
      %3387 = vmatprep.subr.bf16.mxu0 0
      %3388 = vmatpush1.bf16.msra.mxu0 0
      %3389 = vmatprep.subr.bf16.mxu0 0
      %3390 = vmatpush1.bf16.msra.mxu0 0
      %3391 = vmatprep.subr.bf16.mxu0 0
      %3392 = vmatpush1.bf16.msra.mxu0 0
      %3393 = vmatprep.subr.bf16.mxu0 0
      %3394 = vmatpush1.bf16.msra.mxu0 0
      %3395 = vmatprep.mubr.bf16.mxu0 0
      %3396 = vmatmul.mubr.bf16.gmra.mrb[0].mxu0 %v3352
      %v3397 = vpop.f32.mrb[0].mxu0
      %v3398 = vadd.f32 %v3337, %v3397
      %v3399 = vpop.f32.mrb[0].mxu0
      %v3400 = vpop.f32.mrb[0].mxu0
      %v3401 = vadd.f32 %v3337, %v3400
      %v3402 = vpop.f32.mrb[0].mxu0
      %3403 = vmatprep.mubr.bf16.mxu0 0
      %3404 = vmatmul.mubr.bf16.gmra.mrb[0].mxu0 %v3355
      %v3405 = vpop.f32.mrb[0].mxu0
      %v3406 = vadd.f32 %v3337, %v3405
      %v3407 = vpop.f32.mrb[0].mxu0
      %v3408 = vpop.f32.mrb[0].mxu0
      %v3409 = vadd.f32 %v3337, %v3408
      %v3410 = vpop.f32.mrb[0].mxu0
      %3411 = vmatprep.mubr.bf16.mxu0 0
      %3412 = vmatmul.mubr.bf16.gmra.mrb[0].mxu0 %v3358
      %v3413 = vpop.f32.mrb[0].mxu0
      %v3414 = vadd.f32 %v3337, %v3413
      %v3415 = vpop.f32.mrb[0].mxu0
      %v3416 = vpop.f32.mrb[0].mxu0
      %v3417 = vadd.f32 %v3337, %v3416
      %v3418 = vpop.f32.mrb[0].mxu0
      %3419 = vmatprep.mubr.bf16.mxu0 0
      %3420 = vmatmul.mubr.bf16.gmra.mrb[0].mxu0 %v3361
      %v3421 = vpop.f32.mrb[0].mxu0
      %v3422 = vadd.f32 %v3337, %v3421
      %v3423 = vpop.f32.mrb[0].mxu0
      %v3424 = vpop.f32.mrb[0].mxu0
      %v3425 = vadd.f32 %v3337, %v3424
      %v3426 = vpop.f32.mrb[0].mxu0
      %3427 = vdwg.mxu0
      %v3428 = vmul.f32 %v3398, 0.5
      %v3429 = vmul.f32 %v3401, 0.5
      %v3430 = vmul.f32 %v3406, 0.5
      %v3431 = vmul.f32 %v3409, 0.5
      %v3432 = vmul.f32 %v3414, 0.5
      %v3433 = vmul.f32 %v3417, 0.5
      %v3434 = vmul.f32 %v3422, 0.5
      %v3435 = vmul.f32 %v3425, 0.5
      %v3436 = vmul.f32 %v3398, 0.70710677
      %v3437 = vmul.f32 %v3401, 0.70710677
      %v3438 = vmul.f32 %v3406, 0.70710677
      %v3439 = vmul.f32 %v3409, 0.70710677
      %v3440 = vmul.f32 %v3414, 0.70710677
      %v3441 = vmul.f32 %v3417, 0.70710677
      %v3442 = vmul.f32 %v3422, 0.70710677
      %v3443 = vmul.f32 %v3425, 0.70710677
      %v3444 = verf.f32.pop %v3436
      %v3445 = verf.f32.pop %v3437
      %v3446 = verf.f32.pop %v3438
      %v3447 = verf.f32.pop %v3439
      %v3448 = verf.f32.pop %v3440
      %v3449 = verf.f32.pop %v3441
      %v3450 = verf.f32.pop %v3442
      %v3451 = verf.f32.pop %v3443
      %v3452 = vadd.f32 %v3444, 1.0
      %v3453 = vadd.f32 %v3445, 1.0
      %v3454 = vadd.f32 %v3446, 1.0
      %v3455 = vadd.f32 %v3447, 1.0
      %v3456 = vadd.f32 %v3448, 1.0
      %v3457 = vadd.f32 %v3449, 1.0
      %v3458 = vadd.f32 %v3450, 1.0
      %v3459 = vadd.f32 %v3451, 1.0
      %v3460 = vmul.f32 %v3428, %v3452
      %v3461 = vmul.f32 %v3429, %v3453
      %v3462 = vmul.f32 %v3430, %v3454
      %v3463 = vmul.f32 %v3431, %v3455
      %v3464 = vmul.f32 %v3432, %v3456
      %v3465 = vmul.f32 %v3433, %v3457
      %v3466 = vmul.f32 %v3434, %v3458
      %v3467 = vmul.f32 %v3435, %v3459
      %v3468 = vpack.c.bf16 %v3461, %v3460
      %v3469 = vpack.c.bf16 %v3463, %v3462
      %v3470 = vpack.c.bf16 %v3465, %v3464
      %v3471 = vpack.c.bf16 %v3467, %v3466
      %v3472 = vld [vmem:[%s13] sm:$0xf]
      %v3473 = vld [vmem:[%s13 + $0x4] sm:$0xf]
      %v3474 = vld [vmem:[%s13 + $0x8] sm:$0xf]
      %v3475 = vld [vmem:[%s13 + $0xc] sm:$0xf]
      %v3476 = vld [vmem:[%s13 + $0x10] sm:$0xf]
      %v3477 = vld [vmem:[%s13 + $0x14] sm:$0xf]
      %v3478 = vld [vmem:[%s13 + $0x18] sm:$0xf]
      %v3479 = vld [vmem:[%s13 + $0x1c] sm:$0xf]
      %v3480 = vld [vmem:[%s13 + $0x20] sm:$0xf]
      %v3481 = vld [vmem:[%s13 + $0x24] sm:$0xf]
      %v3482 = vld [vmem:[%s13 + $0x28] sm:$0xf]
      %v3483 = vld [vmem:[%s13 + $0x2c] sm:$0xf]
      %v3484 = vld [vmem:[%s13 + $0x30] sm:$0xf]
      %v3485 = vld [vmem:[%s13 + $0x34] sm:$0xf]
      %v3486 = vld [vmem:[%s13 + $0x38] sm:$0xf]
      %v3487 = vld [vmem:[%s13 + $0x3c] sm:$0xf]
      %v3488 = vld [vmem:[%s14] sm:$0x1]
      %v3490 = vlaneseq
      %v3491 = vshrl.u32 %v3490, 7
      %v3492 = vsub.s32 0, %v3491
      %v3493 = vrot.slane %v3488, %v3492
      %v3511 = vunpack.c.l.b16 %v3472
      %v3512 = vunpack.c.l.b16 %v3473
      %v3513 = vunpack.c.l.b16 %v3474
      %v3514 = vunpack.c.l.b16 %v3475
      %v3515 = vunpack.c.l.b16 %v3476
      %v3516 = vunpack.c.l.b16 %v3477
      %v3517 = vunpack.c.l.b16 %v3478
      %v3518 = vunpack.c.l.b16 %v3479
      %v3519 = vunpack.c.l.b16 %v3480
      %v3520 = vunpack.c.l.b16 %v3481
      %v3521 = vunpack.c.l.b16 %v3482
      %v3522 = vunpack.c.l.b16 %v3483
      %v3523 = vunpack.c.l.b16 %v3484
      %v3524 = vunpack.c.l.b16 %v3485
      %v3525 = vunpack.c.l.b16 %v3486
      %v3526 = vunpack.c.l.b16 %v3487
      %v3527 = vpack.c.b16 %v3512, %v3511
      %v3528 = vpack.c.b16 %v3514, %v3513
      %v3529 = vpack.c.b16 %v3516, %v3515
      %v3530 = vpack.c.b16 %v3518, %v3517
      %v3531 = vpack.c.b16 %v3520, %v3519
      %v3532 = vpack.c.b16 %v3522, %v3521
      %v3533 = vpack.c.b16 %v3524, %v3523
      %v3534 = vpack.c.b16 %v3526, %v3525
      %3543 = vmatprep.subr.bf16.mxu0 0
      %3544 = vmatpush1.bf16.msra.mxu0 %v3527
      %3545 = vmatprep.subr.bf16.mxu0 0
      %3546 = vmatpush1.bf16.msra.mxu0 %v3528
      %3547 = vmatprep.subr.bf16.mxu0 0
      %3548 = vmatpush1.bf16.msra.mxu0 %v3529
      %3549 = vmatprep.subr.bf16.mxu0 0
      %3550 = vmatpush1.bf16.msra.mxu0 %v3530
      %3551 = vmatprep.subr.bf16.mxu0 0
      %3552 = vmatpush1.bf16.msra.mxu0 %v3531
      %3553 = vmatprep.subr.bf16.mxu0 0
      %3554 = vmatpush1.bf16.msra.mxu0 %v3532
      %3555 = vmatprep.subr.bf16.mxu0 0
      %3556 = vmatpush1.bf16.msra.mxu0 %v3533
      %3557 = vmatprep.subr.bf16.mxu0 0
      %3558 = vmatpush1.bf16.msra.mxu0 %v3534
      %3559 = vmatprep.subr.bf16.mxu0 0
      %3560 = vmatpush1.bf16.msra.mxu0 0
      %3561 = vmatprep.subr.bf16.mxu0 0
      %3562 = vmatpush1.bf16.msra.mxu0 0
      %3563 = vmatprep.subr.bf16.mxu0 0
      %3564 = vmatpush1.bf16.msra.mxu0 0
      %3565 = vmatprep.subr.bf16.mxu0 0
      %3566 = vmatpush1.bf16.msra.mxu0 0
      %3567 = vmatprep.subr.bf16.mxu0 0
      %3568 = vmatpush1.bf16.msra.mxu0 0
      %3569 = vmatprep.subr.bf16.mxu0 0
      %3570 = vmatpush1.bf16.msra.mxu0 0
      %3571 = vmatprep.subr.bf16.mxu0 0
      %3572 = vmatpush1.bf16.msra.mxu0 0
      %3573 = vmatprep.subr.bf16.mxu0 0
      %3574 = vmatpush1.bf16.msra.mxu0 0
      %3575 = vmatprep.mubr.bf16.mxu0 0
      %3576 = vmatmul.mubr.bf16.gmra.mrb[0].mxu0 %v3468
      %v3577 = vpop.f32.mrb[0].mxu0
      %v3578 = vadd.f32 %v3493, %v3577
      %v3579 = vpop.f32.mrb[0].mxu0
      %v3580 = vpop.f32.mrb[0].mxu0
      %v3581 = vadd.f32 %v3493, %v3580
      %v3582 = vpop.f32.mrb[0].mxu0
      %3583 = vmatprep.mubr.bf16.mxu0 0
      %3584 = vmatmul.mubr.bf16.gmra.mrb[0].mxu0 %v3469
      %v3585 = vpop.f32.mrb[0].mxu0
      %v3586 = vadd.f32 %v3493, %v3585
      %v3587 = vpop.f32.mrb[0].mxu0
      %v3588 = vpop.f32.mrb[0].mxu0
      %v3589 = vadd.f32 %v3493, %v3588
      %v3590 = vpop.f32.mrb[0].mxu0
      %3591 = vmatprep.mubr.bf16.mxu0 0
      %3592 = vmatmul.mubr.bf16.gmra.mrb[0].mxu0 %v3470
      %v3593 = vpop.f32.mrb[0].mxu0
      %v3594 = vadd.f32 %v3493, %v3593
      %v3595 = vpop.f32.mrb[0].mxu0
      %v3596 = vpop.f32.mrb[0].mxu0
      %v3597 = vadd.f32 %v3493, %v3596
      %v3598 = vpop.f32.mrb[0].mxu0
      %3599 = vmatprep.mubr.bf16.mxu0 0
      %3600 = vmatmul.mubr.bf16.gmra.mrb[0].mxu0 %v3471
      %v3601 = vpop.f32.mrb[0].mxu0
      %v3602 = vadd.f32 %v3493, %v3601
      %v3603 = vpop.f32.mrb[0].mxu0
      %v3604 = vpop.f32.mrb[0].mxu0
      %v3605 = vadd.f32 %v3493, %v3604
      %v3606 = vpop.f32.mrb[0].mxu0
      %3607 = vdwg.mxu0
      %v3608 = vadd.f32 %v3182, %v3578
      %v3609 = vadd.f32 %v3183, %v3581
      %v3610 = vadd.f32 %v3184, %v3586
      %v3611 = vadd.f32 %v3185, %v3589
      %v3612 = vadd.f32 %v3186, %v3594
      %v3613 = vadd.f32 %v3187, %v3597
      %v3614 = vadd.f32 %v3188, %v3602
      %v3615 = vadd.f32 %v3189, %v3605
      %3616 = vst.msk [vmem:[%s501] sm:$0xff] %vm514, %v3608
      %3617 = vst.msk [vmem:[%s501 + $0x8] sm:$0xff] %vm514, %v3609
      %3618 = vst.msk [vmem:[%s501 + $0x10] sm:$0xff] %vm514, %v3610
      %3619 = vst.msk [vmem:[%s501 + $0x18] sm:$0xff] %vm514, %v3611
      %3620 = vst.msk [vmem:[%s501 + $0x20] sm:$0xff] %vm514, %v3612
      %3621 = vst.msk [vmem:[%s501 + $0x28] sm:$0xff] %vm514, %v3613
      %3622 = vst.msk [vmem:[%s501 + $0x30] sm:$0xff] %vm514, %v3614
      %3623 = vst.msk [vmem:[%s501 + $0x38] sm:$0xff] %vm514, %v3615
      %s3624 = smul.u32 4, %s26
      %p3625 = scmp.lt.s32.totalorder %s3624, 7
      %s3626 = scalar_select %p3625, %s3624, 7
      %s3627 = smul.addr %s3626, 2
      %s3628 = smul.addr %s3627, 8
      %s3629 = scalar_lea.vmem %s15, %s3628
      // Predicated region
      $region81: #{_lambda_.5} parent=79 // pred_check
        %p3630 = pneg %p364
      $region82: #{_lambda_.5} parent=79 // pred_check_branch
        %3632 = sbr.rel (%p3630) target = $region84
      $region83: #{_lambda_.5} parent=79 // pred_region
        %s3633 = smul.u32 4, %s26
      $region84: #{_lambda_.5} parent=79 // pred_fallthru
        _
    $region80: #{_lambda_.5} parent=5 // pred_fallthru
      _
    %p3634 = scmp.le.s32.totalorder 2, %s21
    // Predicated region
    $region85: #{_lambda_.5} parent=5 // pred_check
      %p3635 = pneg %p3634
    $region86: #{_lambda_.5} parent=5 // pred_check_branch
      %3637 = sbr.rel (%p3635) target = $region88
    $region87: #{_lambda_.5} parent=5 // pred_region
      %s3638 = ssub.s32 %s21, 2
      // Predicated region
      $region89: #{_lambda_.5} parent=87 // pred_check
        %p3639 = pneg %p370
      $region90: #{_lambda_.5} parent=87 // pred_check_branch
        %3641 = sbr.rel (%p3639) target = $region92
      $region91: #{_lambda_.5} parent=87 // pred_region
        %s3642 = smul.u32 4, %s27
        %p3643 = scmp.lt.s32.totalorder %s3642, 7
        %s3644 = scalar_select %p3643, %s3642, 7
        %s3645 = smul.addr %s3644, 2
        %s3646 = smul.addr %s3645, 8
        %s3647 = scalar_lea.vmem %s15, %s3646
      $region92: #{_lambda_.5} parent=87 // pred_fallthru
        _
    $region88: #{_lambda_.5} parent=5 // pred_fallthru
      _
  $region6: #{_lambda_.5} parent=0 // loop_footer
    %s25 = sadd.s32 1, %s21
  $region7: #{_lambda_.5} parent=0 // loop_footer_branch
    %20 = sbr.rel target = $region3
  $region8: #{_lambda_.5} parent=0 // loop_exit
    _

// kernel: _lambda_.4
$region0: #{_lambda_.4}
  #allocation0 [shape = 'u32[]', space=smem, size = 0x4, offset = 0x4, fixed_abs, tag = 'smem constant byte address 0x4 - core index']
  #allocation1 [shape = 'u32[144,128]{1,0:T(1,128)}', space=vmem, size = 0x12000, scoped, tag = 'internal scratch']
  %s0 = inlined_call_operand.vmem [shape: f32[8,16,32], index: 0, kind: input, shape index: {}]
  %s1 = inlined_call_operand.vmem [shape: f32[1,32], index: 1, kind: input, shape index: {}, may-alias: {1,8}]
  %s2 = inlined_call_operand.vmem [shape: f32[1,32], index: 2, kind: input, shape index: {}, may-alias: {2,9}]
  %s3 = inlined_call_operand.vmem [shape: bf16[32,96], index: 3, kind: input, shape index: {}]
  %s4 = inlined_call_operand.vmem [shape: f32[1,96], index: 4, kind: input, shape index: {}]
  %s5 = inlined_call_operand.vmem [shape: bf16[32,32], index: 5, kind: input, shape index: {}]
  %s6 = inlined_call_operand.vmem [shape: f32[1,32], index: 6, kind: input, shape index: {}]
  %s7 = inlined_call_operand.vmem [shape: f32[4,16,16], index: 7, kind: input, shape index: {}]
  %s8 = inlined_call_operand.vmem [shape: f32[1,32], index: 8, kind: input, shape index: {}, may-alias: {1,8}]
  %s9 = inlined_call_operand.vmem [shape: f32[1,32], index: 9, kind: input, shape index: {}, may-alias: {2,9}]
  %s10 = inlined_call_operand.vmem [shape: bf16[32,128], index: 10, kind: input, shape index: {}]
  %s11 = inlined_call_operand.vmem [shape: f32[1,128], index: 11, kind: input, shape index: {}]
  %s12 = inlined_call_operand.vmem [shape: bf16[128,32], index: 12, kind: input, shape index: {}]
  %s13 = inlined_call_operand.vmem [shape: f32[1,32], index: 13, kind: input, shape index: {}]
  %s14 = inlined_call_operand.vmem [shape: f32[8,16,32], index: 14, kind: output, shape index: {}]
  %s15 = sld [smem:[#allocation0]]
  $region66: #{_lambda_.4} parent=0
    _
  %s17 = ssub.s32 1, %s15
  %s18 = scalar_select 0, %s17, %s15
  // Predicated region
  $region2: #{_lambda_.4} parent=0 // pred_check
    _
  $region3: #{_lambda_.4} parent=0 // pred_check_branch
    %20 = sbr.rel (0) target = $region5
  $region4: #{_lambda_.4} parent=0 // pred_region
    _
  $region5: #{_lambda_.4} parent=0 // pred_fallthru
    _
  // Predicated region
  $region6: #{_lambda_.4} parent=0 // pred_check
    _
  $region7: #{_lambda_.4} parent=0 // pred_check_branch
    %22 = sbr.rel (0) target = $region9
  $region8: #{_lambda_.4} parent=0 // pred_region
    _
  $region9: #{_lambda_.4} parent=0 // pred_fallthru
    _
  // Predicated region
  $region10: #{_lambda_.4} parent=0 // pred_check
    _
  $region11: #{_lambda_.4} parent=0 // pred_check_branch
    %24 = sbr.rel (0) target = $region13
  $region12: #{_lambda_.4} parent=0 // pred_region
    _
  $region13: #{_lambda_.4} parent=0 // pred_fallthru
    _
  // Predicated region
  $region14: #{_lambda_.4} parent=0 // pred_check
    _
  $region15: #{_lambda_.4} parent=0 // pred_check_branch
    %26 = sbr.rel (0) target = $region17
  $region16: #{_lambda_.4} parent=0 // pred_region
    _
  $region17: #{_lambda_.4} parent=0 // pred_fallthru
    _
  // Predicated region
  $region18: #{_lambda_.4} parent=0 // pred_check
    _
  $region19: #{_lambda_.4} parent=0 // pred_check_branch
    %28 = sbr.rel (0) target = $region21
  $region20: #{_lambda_.4} parent=0 // pred_region
    _
  $region21: #{_lambda_.4} parent=0 // pred_fallthru
    _
  // Predicated region
  $region22: #{_lambda_.4} parent=0 // pred_check
    _
  $region23: #{_lambda_.4} parent=0 // pred_check_branch
    %30 = sbr.rel (0) target = $region25
  $region24: #{_lambda_.4} parent=0 // pred_region
    _
  $region25: #{_lambda_.4} parent=0 // pred_fallthru
    _
  // Predicated region
  $region26: #{_lambda_.4} parent=0 // pred_check
    _
  $region27: #{_lambda_.4} parent=0 // pred_check_branch
    %32 = sbr.rel (0) target = $region29
  $region28: #{_lambda_.4} parent=0 // pred_region
    _
  $region29: #{_lambda_.4} parent=0 // pred_fallthru
    _
  // Predicated region
  $region30: #{_lambda_.4} parent=0 // pred_check
    _
  $region31: #{_lambda_.4} parent=0 // pred_check_branch
    %34 = sbr.rel (0) target = $region33
  $region32: #{_lambda_.4} parent=0 // pred_region
    _
  $region33: #{_lambda_.4} parent=0 // pred_fallthru
    _
  // Predicated region
  $region34: #{_lambda_.4} parent=0 // pred_check
    _
  $region35: #{_lambda_.4} parent=0 // pred_check_branch
    %36 = sbr.rel (0) target = $region37
  $region36: #{_lambda_.4} parent=0 // pred_region
    _
  $region37: #{_lambda_.4} parent=0 // pred_fallthru
    _
  // Predicated region
  $region38: #{_lambda_.4} parent=0 // pred_check
    _
  $region39: #{_lambda_.4} parent=0 // pred_check_branch
    %38 = sbr.rel (0) target = $region41
  $region40: #{_lambda_.4} parent=0 // pred_region
    _
  $region41: #{_lambda_.4} parent=0 // pred_fallthru
    _
  // Predicated region
  $region42: #{_lambda_.4} parent=0 // pred_check
    _
  $region43: #{_lambda_.4} parent=0 // pred_check_branch
    %40 = sbr.rel (0) target = $region45
  $region44: #{_lambda_.4} parent=0 // pred_region
    _
  $region45: #{_lambda_.4} parent=0 // pred_fallthru
    _
  // Predicated region
  $region46: #{_lambda_.4} parent=0 // pred_check
    _
  $region47: #{_lambda_.4} parent=0 // pred_check_branch
    %42 = sbr.rel (0) target = $region49
  $region48: #{_lambda_.4} parent=0 // pred_region
    _
  $region49: #{_lambda_.4} parent=0 // pred_fallthru
    _
  // Predicated region
  $region50: #{_lambda_.4} parent=0 // pred_check
    _
  $region51: #{_lambda_.4} parent=0 // pred_check_branch
    %44 = sbr.rel (0) target = $region53
  $region52: #{_lambda_.4} parent=0 // pred_region
    _
  $region53: #{_lambda_.4} parent=0 // pred_fallthru
    _
  // Predicated region
  $region54: #{_lambda_.4} parent=0 // pred_check
    _
  $region55: #{_lambda_.4} parent=0 // pred_check_branch
    %46 = sbr.rel (0) target = $region57
  $region56: #{_lambda_.4} parent=0 // pred_region
    _
  $region57: #{_lambda_.4} parent=0 // pred_fallthru
    _
  %v48 = vld [vmem:[%s0] sm:$0xff]
  %v49 = vld [vmem:[%s0 + $0x8] sm:$0xff]
  %v50 = vld [vmem:[%s0 + $0x10] sm:$0xff]
  %v51 = vld [vmem:[%s0 + $0x18] sm:$0xff]
  %v52 = vld [vmem:[%s0 + $0x20] sm:$0xff]
  %v53 = vld [vmem:[%s0 + $0x28] sm:$0xff]
  %v54 = vld [vmem:[%s0 + $0x30] sm:$0xff]
  %v55 = vld [vmem:[%s0 + $0x38] sm:$0xff]
  %v56 = vld [vmem:[%s0 + $0x40] sm:$0xff]
  %v57 = vld [vmem:[%s0 + $0x48] sm:$0xff]
  %v58 = vld [vmem:[%s0 + $0x50] sm:$0xff]
  %v59 = vld [vmem:[%s0 + $0x58] sm:$0xff]
  %v60 = vld [vmem:[%s0 + $0x60] sm:$0xff]
  %v61 = vld [vmem:[%s0 + $0x68] sm:$0xff]
  %v62 = vld [vmem:[%s0 + $0x70] sm:$0xff]
  %v63 = vld [vmem:[%s0 + $0x78] sm:$0xff]
  %v64 = vld [vmem:[%s1] sm:$0x1]
  %v65 = vld [vmem:[%s2] sm:$0x1]
  %vm66 = vcmask 261120
  %v67 = vsel %vm66, %v48, 0.0
  %68 = vadd.xlane.f32.xlu0 %v67
  %v69 = vpop.xlane.xlu0 %68
  %v70 = vsel %vm66, %v49, 0.0
  %71 = vadd.xlane.f32.xlu0 %v70
  %v72 = vpop.xlane.xlu0 %71
  %v73 = vsel %vm66, %v50, 0.0
  %74 = vadd.xlane.f32.xlu0 %v73
  %v75 = vpop.xlane.xlu0 %74
  %v76 = vsel %vm66, %v51, 0.0
  %77 = vadd.xlane.f32.xlu0 %v76
  %v78 = vpop.xlane.xlu0 %77
  %v79 = vsel %vm66, %v52, 0.0
  %80 = vadd.xlane.f32.xlu0 %v79
  %v81 = vpop.xlane.xlu0 %80
  %v82 = vsel %vm66, %v53, 0.0
  %83 = vadd.xlane.f32.xlu0 %v82
  %v84 = vpop.xlane.xlu0 %83
  %v85 = vsel %vm66, %v54, 0.0
  %86 = vadd.xlane.f32.xlu0 %v85
  %v87 = vpop.xlane.xlu0 %86
  %v88 = vsel %vm66, %v55, 0.0
  %89 = vadd.xlane.f32.xlu0 %v88
  %v90 = vpop.xlane.xlu0 %89
  %v91 = vsel %vm66, %v56, 0.0
  %92 = vadd.xlane.f32.xlu0 %v91
  %v93 = vpop.xlane.xlu0 %92
  %v94 = vsel %vm66, %v57, 0.0
  %95 = vadd.xlane.f32.xlu0 %v94
  %v96 = vpop.xlane.xlu0 %95
  %v97 = vsel %vm66, %v58, 0.0
  %98 = vadd.xlane.f32.xlu0 %v97
  %v99 = vpop.xlane.xlu0 %98
  %v100 = vsel %vm66, %v59, 0.0
  %101 = vadd.xlane.f32.xlu0 %v100
  %v102 = vpop.xlane.xlu0 %101
  %v103 = vsel %vm66, %v60, 0.0
  %104 = vadd.xlane.f32.xlu0 %v103
  %v105 = vpop.xlane.xlu0 %104
  %v106 = vsel %vm66, %v61, 0.0
  %107 = vadd.xlane.f32.xlu0 %v106
  %v108 = vpop.xlane.xlu0 %107
  %v109 = vsel %vm66, %v62, 0.0
  %110 = vadd.xlane.f32.xlu0 %v109
  %v111 = vpop.xlane.xlu0 %110
  %v112 = vsel %vm66, %v63, 0.0
  %113 = vadd.xlane.f32.xlu0 %v112
  %v114 = vpop.xlane.xlu0 %113
  %v115 = vrcp.pop 32.0
  %v116 = vmul.f32 %v69, %v115
  %v117 = vmul.f32 %v72, %v115
  %v118 = vmul.f32 %v75, %v115
  %v119 = vmul.f32 %v78, %v115
  %v120 = vmul.f32 %v81, %v115
  %v121 = vmul.f32 %v84, %v115
  %v122 = vmul.f32 %v87, %v115
  %v123 = vmul.f32 %v90, %v115
  %v124 = vmul.f32 %v93, %v115
  %v125 = vmul.f32 %v96, %v115
  %v126 = vmul.f32 %v99, %v115
  %v127 = vmul.f32 %v102, %v115
  %v128 = vmul.f32 %v105, %v115
  %v129 = vmul.f32 %v108, %v115
  %v130 = vmul.f32 %v111, %v115
  %v131 = vmul.f32 %v114, %v115
  %v132 = vsub.f32 %v48, %v116
  %v133 = vsub.f32 %v49, %v117
  %v134 = vsub.f32 %v50, %v118
  %v135 = vsub.f32 %v51, %v119
  %v136 = vsub.f32 %v52, %v120
  %v137 = vsub.f32 %v53, %v121
  %v138 = vsub.f32 %v54, %v122
  %v139 = vsub.f32 %v55, %v123
  %v140 = vsub.f32 %v56, %v124
  %v141 = vsub.f32 %v57, %v125
  %v142 = vsub.f32 %v58, %v126
  %v143 = vsub.f32 %v59, %v127
  %v144 = vsub.f32 %v60, %v128
  %v145 = vsub.f32 %v61, %v129
  %v146 = vsub.f32 %v62, %v130
  %v147 = vsub.f32 %v63, %v131
  %v148 = vmul.f32 %v132, %v132
  %v149 = vmul.f32 %v133, %v133
  %v150 = vmul.f32 %v134, %v134
  %v151 = vmul.f32 %v135, %v135
  %v152 = vmul.f32 %v136, %v136
  %v153 = vmul.f32 %v137, %v137
  %v154 = vmul.f32 %v138, %v138
  %v155 = vmul.f32 %v139, %v139
  %v156 = vmul.f32 %v140, %v140
  %v157 = vmul.f32 %v141, %v141
  %v158 = vmul.f32 %v142, %v142
  %v159 = vmul.f32 %v143, %v143
  %v160 = vmul.f32 %v144, %v144
  %v161 = vmul.f32 %v145, %v145
  %v162 = vmul.f32 %v146, %v146
  %v163 = vmul.f32 %v147, %v147
  %v164 = vsel %vm66, %v148, 0.0
  %165 = vadd.xlane.f32.xlu0 %v164
  %v166 = vpop.xlane.xlu0 %165
  %v167 = vsel %vm66, %v149, 0.0
  %168 = vadd.xlane.f32.xlu0 %v167
  %v169 = vpop.xlane.xlu0 %168
  %v170 = vsel %vm66, %v150, 0.0
  %171 = vadd.xlane.f32.xlu0 %v170
  %v172 = vpop.xlane.xlu0 %171
  %v173 = vsel %vm66, %v151, 0.0
  %174 = vadd.xlane.f32.xlu0 %v173
  %v175 = vpop.xlane.xlu0 %174
  %v176 = vsel %vm66, %v152, 0.0
  %177 = vadd.xlane.f32.xlu0 %v176
  %v178 = vpop.xlane.xlu0 %177
  %v179 = vsel %vm66, %v153, 0.0
  %180 = vadd.xlane.f32.xlu0 %v179
  %v181 = vpop.xlane.xlu0 %180
  %v182 = vsel %vm66, %v154, 0.0
  %183 = vadd.xlane.f32.xlu0 %v182
  %v184 = vpop.xlane.xlu0 %183
  %v185 = vsel %vm66, %v155, 0.0
  %186 = vadd.xlane.f32.xlu0 %v185
  %v187 = vpop.xlane.xlu0 %186
  %v188 = vsel %vm66, %v156, 0.0
  %189 = vadd.xlane.f32.xlu0 %v188
  %v190 = vpop.xlane.xlu0 %189
  %v191 = vsel %vm66, %v157, 0.0
  %192 = vadd.xlane.f32.xlu0 %v191
  %v193 = vpop.xlane.xlu0 %192
  %v194 = vsel %vm66, %v158, 0.0
  %195 = vadd.xlane.f32.xlu0 %v194
  %v196 = vpop.xlane.xlu0 %195
  %v197 = vsel %vm66, %v159, 0.0
  %198 = vadd.xlane.f32.xlu0 %v197
  %v199 = vpop.xlane.xlu0 %198
  %v200 = vsel %vm66, %v160, 0.0
  %201 = vadd.xlane.f32.xlu0 %v200
  %v202 = vpop.xlane.xlu0 %201
  %v203 = vsel %vm66, %v161, 0.0
  %204 = vadd.xlane.f32.xlu0 %v203
  %v205 = vpop.xlane.xlu0 %204
  %v206 = vsel %vm66, %v162, 0.0
  %207 = vadd.xlane.f32.xlu0 %v206
  %v208 = vpop.xlane.xlu0 %207
  %v209 = vsel %vm66, %v163, 0.0
  %210 = vadd.xlane.f32.xlu0 %v209
  %v211 = vpop.xlane.xlu0 %210
  %v212 = vmul.f32 %v166, %v115
  %v213 = vmul.f32 %v169, %v115
  %v214 = vmul.f32 %v172, %v115
  %v215 = vmul.f32 %v175, %v115
  %v216 = vmul.f32 %v178, %v115
  %v217 = vmul.f32 %v181, %v115
  %v218 = vmul.f32 %v184, %v115
  %v219 = vmul.f32 %v187, %v115
  %v220 = vmul.f32 %v190, %v115
  %v221 = vmul.f32 %v193, %v115
  %v222 = vmul.f32 %v196, %v115
  %v223 = vmul.f32 %v199, %v115
  %v224 = vmul.f32 %v202, %v115
  %v225 = vmul.f32 %v205, %v115
  %v226 = vmul.f32 %v208, %v115
  %v227 = vmul.f32 %v211, %v115
  %v228 = vadd.f32 %v212, 1e-05
  %v229 = vadd.f32 %v213, 1e-05
  %v230 = vadd.f32 %v214, 1e-05
  %v231 = vadd.f32 %v215, 1e-05
  %v232 = vadd.f32 %v216, 1e-05
  %v233 = vadd.f32 %v217, 1e-05
  %v234 = vadd.f32 %v218, 1e-05
  %v235 = vadd.f32 %v219, 1e-05
  %v236 = vadd.f32 %v220, 1e-05
  %v237 = vadd.f32 %v221, 1e-05
  %v238 = vadd.f32 %v222, 1e-05
  %v239 = vadd.f32 %v223, 1e-05
  %v240 = vadd.f32 %v224, 1e-05
  %v241 = vadd.f32 %v225, 1e-05
  %v242 = vadd.f32 %v226, 1e-05
  %v243 = vadd.f32 %v227, 1e-05
  %v244 = vrsqrt.pop %v228
  %v245 = vrsqrt.pop %v229
  %v246 = vrsqrt.pop %v230
  %v247 = vrsqrt.pop %v231
  %v248 = vrsqrt.pop %v232
  %v249 = vrsqrt.pop %v233
  %v250 = vrsqrt.pop %v234
  %v251 = vrsqrt.pop %v235
  %v252 = vrsqrt.pop %v236
  %v253 = vrsqrt.pop %v237
  %v254 = vrsqrt.pop %v238
  %v255 = vrsqrt.pop %v239
  %v256 = vrsqrt.pop %v240
  %v257 = vrsqrt.pop %v241
  %v258 = vrsqrt.pop %v242
  %v259 = vrsqrt.pop %v243
  %v260 = vmul.f32 %v132, %v244
  %v261 = vmul.f32 %v133, %v245
  %v262 = vmul.f32 %v134, %v246
  %v263 = vmul.f32 %v135, %v247
  %v264 = vmul.f32 %v136, %v248
  %v265 = vmul.f32 %v137, %v249
  %v266 = vmul.f32 %v138, %v250
  %v267 = vmul.f32 %v139, %v251
  %v268 = vmul.f32 %v140, %v252
  %v269 = vmul.f32 %v141, %v253
  %v270 = vmul.f32 %v142, %v254
  %v271 = vmul.f32 %v143, %v255
  %v272 = vmul.f32 %v144, %v256
  %v273 = vmul.f32 %v145, %v257
  %v274 = vmul.f32 %v146, %v258
  %v275 = vmul.f32 %v147, %v259
  %v277 = vlaneseq
  %v278 = vshrl.u32 %v277, 7
  %v279 = vsub.s32 0, %v278
  %v280 = vrot.slane %v64, %v279
  %v282 = vmul.f32 %v260, %v280
  %v283 = vmul.f32 %v261, %v280
  %v284 = vmul.f32 %v262, %v280
  %v285 = vmul.f32 %v263, %v280
  %v286 = vmul.f32 %v264, %v280
  %v287 = vmul.f32 %v265, %v280
  %v288 = vmul.f32 %v266, %v280
  %v289 = vmul.f32 %v267, %v280
  %v290 = vmul.f32 %v268, %v280
  %v291 = vmul.f32 %v269, %v280
  %v292 = vmul.f32 %v270, %v280
  %v293 = vmul.f32 %v271, %v280
  %v294 = vmul.f32 %v272, %v280
  %v295 = vmul.f32 %v273, %v280
  %v296 = vmul.f32 %v274, %v280
  %v297 = vmul.f32 %v275, %v280
  %v299 = vlaneseq
  %v300 = vshrl.u32 %v299, 7
  %v301 = vsub.s32 0, %v300
  %v302 = vrot.slane %v65, %v301
  %v304 = vadd.f32 %v282, %v302
  %v305 = vadd.f32 %v283, %v302
  %v306 = vadd.f32 %v284, %v302
  %v307 = vadd.f32 %v285, %v302
  %v308 = vadd.f32 %v286, %v302
  %v309 = vadd.f32 %v287, %v302
  %v310 = vadd.f32 %v288, %v302
  %v311 = vadd.f32 %v289, %v302
  %v312 = vadd.f32 %v290, %v302
  %v313 = vadd.f32 %v291, %v302
  %v314 = vadd.f32 %v292, %v302
  %v315 = vadd.f32 %v293, %v302
  %v316 = vadd.f32 %v294, %v302
  %v317 = vadd.f32 %v295, %v302
  %v318 = vadd.f32 %v296, %v302
  %v319 = vadd.f32 %v297, %v302
  %v320 = vpack.c.bf16 %v305, %v304
  %v321 = vpack.c.bf16 %v307, %v306
  %v322 = vpack.c.bf16 %v309, %v308
  %v323 = vpack.c.bf16 %v311, %v310
  %v324 = vpack.c.bf16 %v313, %v312
  %v325 = vpack.c.bf16 %v315, %v314
  %v326 = vpack.c.bf16 %v317, %v316
  %v327 = vpack.c.bf16 %v319, %v318
  %v328 = vld [vmem:[%s3] sm:$0xf]
  %v329 = vld [vmem:[%s3 + $0x4] sm:$0xf]
  %v330 = vld [vmem:[%s3 + $0x8] sm:$0xf]
  %v331 = vld [vmem:[%s3 + $0xc] sm:$0xf]
  %v332 = vld [vmem:[%s4] sm:$0x1]
  %v334 = vlaneseq
  %v335 = vshrl.u32 %v334, 7
  %v336 = vsub.s32 0, %v335
  %v337 = vrot.slane %v332, %v336
  %v343 = vunpack.c.l.b16 %v328
  %v344 = vunpack.c.l.b16 %v329
  %v345 = vunpack.c.l.b16 %v330
  %v346 = vunpack.c.l.b16 %v331
  %v347 = vpack.c.b16 %v344, %v343
  %v348 = vpack.c.b16 %v346, %v345
  %v352 = vsel %vm66, %v320, 0
  %v355 = vsel %vm66, %v321, 0
  %v358 = vsel %vm66, %v322, 0
  %v361 = vsel %vm66, %v323, 0
  %v364 = vsel %vm66, %v324, 0
  %v367 = vsel %vm66, %v325, 0
  %v370 = vsel %vm66, %v326, 0
  %v373 = vsel %vm66, %v327, 0
  %375 = vmatprep.subr.bf16.mxu0 0
  %376 = vmatpush1.bf16.msra.mxu0 %v347
  %377 = vmatprep.subr.bf16.mxu0 0
  %378 = vmatpush1.bf16.msra.mxu0 %v348
  %379 = vmatprep.subr.bf16.mxu0 0
  %380 = vmatpush1.bf16.msra.mxu0 0
  %381 = vmatprep.subr.bf16.mxu0 0
  %382 = vmatpush1.bf16.msra.mxu0 0
  %383 = vmatprep.subr.bf16.mxu0 0
  %384 = vmatpush1.bf16.msra.mxu0 0
  %385 = vmatprep.subr.bf16.mxu0 0
  %386 = vmatpush1.bf16.msra.mxu0 0
  %387 = vmatprep.subr.bf16.mxu0 0
  %388 = vmatpush1.bf16.msra.mxu0 0
  %389 = vmatprep.subr.bf16.mxu0 0
  %390 = vmatpush1.bf16.msra.mxu0 0
  %391 = vmatprep.subr.bf16.mxu0 0
  %392 = vmatpush1.bf16.msra.mxu0 0
  %393 = vmatprep.subr.bf16.mxu0 0
  %394 = vmatpush1.bf16.msra.mxu0 0
  %395 = vmatprep.subr.bf16.mxu0 0
  %396 = vmatpush1.bf16.msra.mxu0 0
  %397 = vmatprep.subr.bf16.mxu0 0
  %398 = vmatpush1.bf16.msra.mxu0 0
  %399 = vmatprep.subr.bf16.mxu0 0
  %400 = vmatpush1.bf16.msra.mxu0 0
  %401 = vmatprep.subr.bf16.mxu0 0
  %402 = vmatpush1.bf16.msra.mxu0 0
  %403 = vmatprep.subr.bf16.mxu0 0
  %404 = vmatpush1.bf16.msra.mxu0 0
  %405 = vmatprep.subr.bf16.mxu0 0
  %406 = vmatpush1.bf16.msra.mxu0 0
  %407 = vmatprep.mubr.bf16.mxu0 0
  %408 = vmatmul.mubr.bf16.gmra.mrb[0].mxu0 %v352
  %v409 = vpop.f32.mrb[0].mxu0
  %v410 = vadd.f32 %v337, %v409
  %v411 = vpop.f32.mrb[0].mxu0
  %v412 = vpop.f32.mrb[0].mxu0
  %v413 = vadd.f32 %v337, %v412
  %v414 = vpop.f32.mrb[0].mxu0
  %415 = vmatprep.mubr.bf16.mxu0 0
  %416 = vmatmul.mubr.bf16.gmra.mrb[0].mxu0 %v355
  %v417 = vpop.f32.mrb[0].mxu0
  %v418 = vadd.f32 %v337, %v417
  %v419 = vpop.f32.mrb[0].mxu0
  %v420 = vpop.f32.mrb[0].mxu0
  %v421 = vadd.f32 %v337, %v420
  %v422 = vpop.f32.mrb[0].mxu0
  %423 = vmatprep.mubr.bf16.mxu0 0
  %424 = vmatmul.mubr.bf16.gmra.mrb[0].mxu0 %v358
  %v425 = vpop.f32.mrb[0].mxu0
  %v426 = vadd.f32 %v337, %v425
  %v427 = vpop.f32.mrb[0].mxu0
  %v428 = vpop.f32.mrb[0].mxu0
  %v429 = vadd.f32 %v337, %v428
  %v430 = vpop.f32.mrb[0].mxu0
  %431 = vmatprep.mubr.bf16.mxu0 0
  %432 = vmatmul.mubr.bf16.gmra.mrb[0].mxu0 %v361
  %v433 = vpop.f32.mrb[0].mxu0
  %v434 = vadd.f32 %v337, %v433
  %v435 = vpop.f32.mrb[0].mxu0
  %v436 = vpop.f32.mrb[0].mxu0
  %v437 = vadd.f32 %v337, %v436
  %v438 = vpop.f32.mrb[0].mxu0
  %439 = vmatprep.mubr.bf16.mxu0 0
  %440 = vmatmul.mubr.bf16.gmra.mrb[0].mxu0 %v364
  %v441 = vpop.f32.mrb[0].mxu0
  %v442 = vadd.f32 %v337, %v441
  %v443 = vpop.f32.mrb[0].mxu0
  %v444 = vpop.f32.mrb[0].mxu0
  %v445 = vadd.f32 %v337, %v444
  %v446 = vpop.f32.mrb[0].mxu0
  %447 = vmatprep.mubr.bf16.mxu0 0
  %448 = vmatmul.mubr.bf16.gmra.mrb[0].mxu0 %v367
  %v449 = vpop.f32.mrb[0].mxu0
  %v450 = vadd.f32 %v337, %v449
  %v451 = vpop.f32.mrb[0].mxu0
  %v452 = vpop.f32.mrb[0].mxu0
  %v453 = vadd.f32 %v337, %v452
  %v454 = vpop.f32.mrb[0].mxu0
  %455 = vmatprep.mubr.bf16.mxu0 0
  %456 = vmatmul.mubr.bf16.gmra.mrb[0].mxu0 %v370
  %v457 = vpop.f32.mrb[0].mxu0
  %v458 = vadd.f32 %v337, %v457
  %v459 = vpop.f32.mrb[0].mxu0
  %v460 = vpop.f32.mrb[0].mxu0
  %v461 = vadd.f32 %v337, %v460
  %v462 = vpop.f32.mrb[0].mxu0
  %463 = vmatprep.mubr.bf16.mxu0 0
  %464 = vmatmul.mubr.bf16.gmra.mrb[0].mxu0 %v373
  %v465 = vpop.f32.mrb[0].mxu0
  %v466 = vadd.f32 %v337, %v465
  %v467 = vpop.f32.mrb[0].mxu0
  %v468 = vpop.f32.mrb[0].mxu0
  %v469 = vadd.f32 %v337, %v468
  %v470 = vpop.f32.mrb[0].mxu0
  %471 = vdwg.mxu0
  %v472 = vld [vmem:[%s7] sm:$0xff]
  %v473 = vld [vmem:[%s7 + $0x8] sm:$0xff]
  %v474 = vld [vmem:[%s7 + $0x10] sm:$0xff]
  %v475 = vld [vmem:[%s7 + $0x18] sm:$0xff]
  %v476 = vld [vmem:[%s7 + $0x20] sm:$0xff]
  %v477 = vld [vmem:[%s7 + $0x28] sm:$0xff]
  %v478 = vld [vmem:[%s7 + $0x30] sm:$0xff]
  %v479 = vld [vmem:[%s7 + $0x38] sm:$0xff]
  %v480 = vld [vmem:[%s6] sm:$0x1]
  %v482 = vlaneseq
  %v483 = vshrl.u32 %v482, 7
  %v484 = vsub.s32 0, %v483
  %v485 = vrot.slane %v480, %v484
  %v487 = vpack.c.bf16 %v413, %v410
  %v488 = vpack.c.bf16 %v421, %v418
  %v489 = vpack.c.bf16 %v429, %v426
  %v490 = vpack.c.bf16 %v437, %v434
  %v491 = vpack.c.bf16 %v445, %v442
  %v492 = vpack.c.bf16 %v453, %v450
  %v493 = vpack.c.bf16 %v461, %v458
  %v494 = vpack.c.bf16 %v469, %v466
  %496 = vrot.lane.b32.xlu0 %v487, 96
  %v497 = vpop.permute.xlu0 %496
  %vm498 = vcmask 64512
  %v500 = vsel %vm498, %v487, 0
  %v503 = vsel %vm498, %v497, 0
  %505 = vmatprep.subr.bf16.mxu0 0
  %506 = vmatpush1.bf16.xpose.msra.mxu0 %v503
  %507 = vmatprep.subr.bf16.mxu0 0
  %508 = vmatpush1.bf16.xpose.msra.mxu0 0
  %509 = vmatprep.subr.bf16.mxu0 0
  %510 = vmatpush1.bf16.xpose.msra.mxu0 0
  %511 = vmatprep.subr.bf16.mxu0 0
  %512 = vmatpush1.bf16.xpose.msra.mxu0 0
  %513 = vmatprep.subr.bf16.mxu0 0
  %514 = vmatpush1.bf16.xpose.msra.mxu0 0
  %515 = vmatprep.subr.bf16.mxu0 0
  %516 = vmatpush1.bf16.xpose.msra.mxu0 0
  %517 = vmatprep.subr.bf16.mxu0 0
  %518 = vmatpush1.bf16.xpose.msra.mxu0 0
  %519 = vmatprep.subr.bf16.mxu0 0
  %520 = vmatpush1.bf16.xpose.msra.mxu0 0
  %521 = vmatprep.subr.bf16.mxu0 0
  %522 = vmatpush1.bf16.xpose.msra.mxu0 0
  %523 = vmatprep.subr.bf16.mxu0 0
  %524 = vmatpush1.bf16.xpose.msra.mxu0 0
  %525 = vmatprep.subr.bf16.mxu0 0
  %526 = vmatpush1.bf16.xpose.msra.mxu0 0
  %527 = vmatprep.subr.bf16.mxu0 0
  %528 = vmatpush1.bf16.xpose.msra.mxu0 0
  %529 = vmatprep.subr.bf16.mxu0 0
  %530 = vmatpush1.bf16.xpose.msra.mxu0 0
  %531 = vmatprep.subr.bf16.mxu0 0
  %532 = vmatpush1.bf16.xpose.msra.mxu0 0
  %533 = vmatprep.subr.bf16.mxu0 0
  %534 = vmatpush1.bf16.xpose.msra.mxu0 0
  %535 = vmatprep.subr.bf16.mxu0 0
  %536 = vmatpush1.bf16.xpose.msra.mxu0 0
  %537 = vmatprep.mubr.bf16.mxu0 0
  %538 = vmatmul.mubr.bf16.gmra.mrb[0].mxu0 %v500
  %v539 = vpop.f32.mrb[0].mxu0
  %v540 = vadd.f32 0.0, %v539
  %v541 = vpop.f32.mrb[0].mxu0
  %v542 = vpop.f32.mrb[0].mxu0
  %v543 = vadd.f32 0.0, %v542
  %v544 = vpop.f32.mrb[0].mxu0
  %545 = vdwg.mxu0
  %547 = vrot.lane.b32.xlu0 %v488, 96
  %v548 = vpop.permute.xlu0 %547
  %v550 = vsel %vm498, %v488, 0
  %v553 = vsel %vm498, %v548, 0
  %555 = vmatprep.subr.bf16.mxu0 0
  %556 = vmatpush1.bf16.xpose.msra.mxu0 %v553
  %557 = vmatprep.subr.bf16.mxu0 0
  %558 = vmatpush1.bf16.xpose.msra.mxu0 0
  %559 = vmatprep.subr.bf16.mxu0 0
  %560 = vmatpush1.bf16.xpose.msra.mxu0 0
  %561 = vmatprep.subr.bf16.mxu0 0
  %562 = vmatpush1.bf16.xpose.msra.mxu0 0
  %563 = vmatprep.subr.bf16.mxu0 0
  %564 = vmatpush1.bf16.xpose.msra.mxu0 0
  %565 = vmatprep.subr.bf16.mxu0 0
  %566 = vmatpush1.bf16.xpose.msra.mxu0 0
  %567 = vmatprep.subr.bf16.mxu0 0
  %568 = vmatpush1.bf16.xpose.msra.mxu0 0
  %569 = vmatprep.subr.bf16.mxu0 0
  %570 = vmatpush1.bf16.xpose.msra.mxu0 0
  %571 = vmatprep.subr.bf16.mxu0 0
  %572 = vmatpush1.bf16.xpose.msra.mxu0 0
  %573 = vmatprep.subr.bf16.mxu0 0
  %574 = vmatpush1.bf16.xpose.msra.mxu0 0
  %575 = vmatprep.subr.bf16.mxu0 0
  %576 = vmatpush1.bf16.xpose.msra.mxu0 0
  %577 = vmatprep.subr.bf16.mxu0 0
  %578 = vmatpush1.bf16.xpose.msra.mxu0 0
  %579 = vmatprep.subr.bf16.mxu0 0
  %580 = vmatpush1.bf16.xpose.msra.mxu0 0
  %581 = vmatprep.subr.bf16.mxu0 0
  %582 = vmatpush1.bf16.xpose.msra.mxu0 0
  %583 = vmatprep.subr.bf16.mxu0 0
  %584 = vmatpush1.bf16.xpose.msra.mxu0 0
  %585 = vmatprep.subr.bf16.mxu0 0
  %586 = vmatpush1.bf16.xpose.msra.mxu0 0
  %587 = vmatprep.mubr.bf16.mxu0 0
  %588 = vmatmul.mubr.bf16.gmra.mrb[0].mxu0 %v550
  %v589 = vpop.f32.mrb[0].mxu0
  %v590 = vadd.f32 0.0, %v589
  %v591 = vpop.f32.mrb[0].mxu0
  %v592 = vpop.f32.mrb[0].mxu0
  %v593 = vadd.f32 0.0, %v592
  %v594 = vpop.f32.mrb[0].mxu0
  %595 = vdwg.mxu0
  %597 = vrot.lane.b32.xlu0 %v489, 96
  %v598 = vpop.permute.xlu0 %597
  %v600 = vsel %vm498, %v489, 0
  %v603 = vsel %vm498, %v598, 0
  %605 = vmatprep.subr.bf16.mxu0 0
  %606 = vmatpush1.bf16.xpose.msra.mxu0 %v603
  %607 = vmatprep.subr.bf16.mxu0 0
  %608 = vmatpush1.bf16.xpose.msra.mxu0 0
  %609 = vmatprep.subr.bf16.mxu0 0
  %610 = vmatpush1.bf16.xpose.msra.mxu0 0
  %611 = vmatprep.subr.bf16.mxu0 0
  %612 = vmatpush1.bf16.xpose.msra.mxu0 0
  %613 = vmatprep.subr.bf16.mxu0 0
  %614 = vmatpush1.bf16.xpose.msra.mxu0 0
  %615 = vmatprep.subr.bf16.mxu0 0
  %616 = vmatpush1.bf16.xpose.msra.mxu0 0
  %617 = vmatprep.subr.bf16.mxu0 0
  %618 = vmatpush1.bf16.xpose.msra.mxu0 0
  %619 = vmatprep.subr.bf16.mxu0 0
  %620 = vmatpush1.bf16.xpose.msra.mxu0 0
  %621 = vmatprep.subr.bf16.mxu0 0
  %622 = vmatpush1.bf16.xpose.msra.mxu0 0
  %623 = vmatprep.subr.bf16.mxu0 0
  %624 = vmatpush1.bf16.xpose.msra.mxu0 0
  %625 = vmatprep.subr.bf16.mxu0 0
  %626 = vmatpush1.bf16.xpose.msra.mxu0 0
  %627 = vmatprep.subr.bf16.mxu0 0
  %628 = vmatpush1.bf16.xpose.msra.mxu0 0
  %629 = vmatprep.subr.bf16.mxu0 0
  %630 = vmatpush1.bf16.xpose.msra.mxu0 0
  %631 = vmatprep.subr.bf16.mxu0 0
  %632 = vmatpush1.bf16.xpose.msra.mxu0 0
  %633 = vmatprep.subr.bf16.mxu0 0
  %634 = vmatpush1.bf16.xpose.msra.mxu0 0
  %635 = vmatprep.subr.bf16.mxu0 0
  %636 = vmatpush1.bf16.xpose.msra.mxu0 0
  %637 = vmatprep.mubr.bf16.mxu0 0
  %638 = vmatmul.mubr.bf16.gmra.mrb[0].mxu0 %v600
  %v639 = vpop.f32.mrb[0].mxu0
  %v640 = vadd.f32 0.0, %v639
  %v641 = vpop.f32.mrb[0].mxu0
  %v642 = vpop.f32.mrb[0].mxu0
  %v643 = vadd.f32 0.0, %v642
  %v644 = vpop.f32.mrb[0].mxu0
  %645 = vdwg.mxu0
  %647 = vrot.lane.b32.xlu0 %v490, 96
  %v648 = vpop.permute.xlu0 %647
  %v650 = vsel %vm498, %v490, 0
  %v653 = vsel %vm498, %v648, 0
  %655 = vmatprep.subr.bf16.mxu0 0
  %656 = vmatpush1.bf16.xpose.msra.mxu0 %v653
  %657 = vmatprep.subr.bf16.mxu0 0
  %658 = vmatpush1.bf16.xpose.msra.mxu0 0
  %659 = vmatprep.subr.bf16.mxu0 0
  %660 = vmatpush1.bf16.xpose.msra.mxu0 0
  %661 = vmatprep.subr.bf16.mxu0 0
  %662 = vmatpush1.bf16.xpose.msra.mxu0 0
  %663 = vmatprep.subr.bf16.mxu0 0
  %664 = vmatpush1.bf16.xpose.msra.mxu0 0
  %665 = vmatprep.subr.bf16.mxu0 0
  %666 = vmatpush1.bf16.xpose.msra.mxu0 0
  %667 = vmatprep.subr.bf16.mxu0 0
  %668 = vmatpush1.bf16.xpose.msra.mxu0 0
  %669 = vmatprep.subr.bf16.mxu0 0
  %670 = vmatpush1.bf16.xpose.msra.mxu0 0
  %671 = vmatprep.subr.bf16.mxu0 0
  %672 = vmatpush1.bf16.xpose.msra.mxu0 0
  %673 = vmatprep.subr.bf16.mxu0 0
  %674 = vmatpush1.bf16.xpose.msra.mxu0 0
  %675 = vmatprep.subr.bf16.mxu0 0
  %676 = vmatpush1.bf16.xpose.msra.mxu0 0
  %677 = vmatprep.subr.bf16.mxu0 0
  %678 = vmatpush1.bf16.xpose.msra.mxu0 0
  %679 = vmatprep.subr.bf16.mxu0 0
  %680 = vmatpush1.bf16.xpose.msra.mxu0 0
  %681 = vmatprep.subr.bf16.mxu0 0
  %682 = vmatpush1.bf16.xpose.msra.mxu0 0
  %683 = vmatprep.subr.bf16.mxu0 0
  %684 = vmatpush1.bf16.xpose.msra.mxu0 0
  %685 = vmatprep.subr.bf16.mxu0 0
  %686 = vmatpush1.bf16.xpose.msra.mxu0 0
  %687 = vmatprep.mubr.bf16.mxu0 0
  %688 = vmatmul.mubr.bf16.gmra.mrb[0].mxu0 %v650
  %v689 = vpop.f32.mrb[0].mxu0
  %v690 = vadd.f32 0.0, %v689
  %v691 = vpop.f32.mrb[0].mxu0
  %v692 = vpop.f32.mrb[0].mxu0
  %v693 = vadd.f32 0.0, %v692
  %v694 = vpop.f32.mrb[0].mxu0
  %695 = vdwg.mxu0
  %697 = vrot.lane.b32.xlu0 %v491, 96
  %v698 = vpop.permute.xlu0 %697
  %v700 = vsel %vm498, %v491, 0
  %v703 = vsel %vm498, %v698, 0
  %705 = vmatprep.subr.bf16.mxu0 0
  %706 = vmatpush1.bf16.xpose.msra.mxu0 %v703
  %707 = vmatprep.subr.bf16.mxu0 0
  %708 = vmatpush1.bf16.xpose.msra.mxu0 0
  %709 = vmatprep.subr.bf16.mxu0 0
  %710 = vmatpush1.bf16.xpose.msra.mxu0 0
  %711 = vmatprep.subr.bf16.mxu0 0
  %712 = vmatpush1.bf16.xpose.msra.mxu0 0
  %713 = vmatprep.subr.bf16.mxu0 0
  %714 = vmatpush1.bf16.xpose.msra.mxu0 0
  %715 = vmatprep.subr.bf16.mxu0 0
  %716 = vmatpush1.bf16.xpose.msra.mxu0 0
  %717 = vmatprep.subr.bf16.mxu0 0
  %718 = vmatpush1.bf16.xpose.msra.mxu0 0
  %719 = vmatprep.subr.bf16.mxu0 0
  %720 = vmatpush1.bf16.xpose.msra.mxu0 0
  %721 = vmatprep.subr.bf16.mxu0 0
  %722 = vmatpush1.bf16.xpose.msra.mxu0 0
  %723 = vmatprep.subr.bf16.mxu0 0
  %724 = vmatpush1.bf16.xpose.msra.mxu0 0
  %725 = vmatprep.subr.bf16.mxu0 0
  %726 = vmatpush1.bf16.xpose.msra.mxu0 0
  %727 = vmatprep.subr.bf16.mxu0 0
  %728 = vmatpush1.bf16.xpose.msra.mxu0 0
  %729 = vmatprep.subr.bf16.mxu0 0
  %730 = vmatpush1.bf16.xpose.msra.mxu0 0
  %731 = vmatprep.subr.bf16.mxu0 0
  %732 = vmatpush1.bf16.xpose.msra.mxu0 0
  %733 = vmatprep.subr.bf16.mxu0 0
  %734 = vmatpush1.bf16.xpose.msra.mxu0 0
  %735 = vmatprep.subr.bf16.mxu0 0
  %736 = vmatpush1.bf16.xpose.msra.mxu0 0
  %737 = vmatprep.mubr.bf16.mxu0 0
  %738 = vmatmul.mubr.bf16.gmra.mrb[0].mxu0 %v700
  %v739 = vpop.f32.mrb[0].mxu0
  %v740 = vadd.f32 0.0, %v739
  %v741 = vpop.f32.mrb[0].mxu0
  %v742 = vpop.f32.mrb[0].mxu0
  %v743 = vadd.f32 0.0, %v742
  %v744 = vpop.f32.mrb[0].mxu0
  %745 = vdwg.mxu0
  %747 = vrot.lane.b32.xlu0 %v492, 96
  %v748 = vpop.permute.xlu0 %747
  %v750 = vsel %vm498, %v492, 0
  %v753 = vsel %vm498, %v748, 0
  %755 = vmatprep.subr.bf16.mxu0 0
  %756 = vmatpush1.bf16.xpose.msra.mxu0 %v753
  %757 = vmatprep.subr.bf16.mxu0 0
  %758 = vmatpush1.bf16.xpose.msra.mxu0 0
  %759 = vmatprep.subr.bf16.mxu0 0
  %760 = vmatpush1.bf16.xpose.msra.mxu0 0
  %761 = vmatprep.subr.bf16.mxu0 0
  %762 = vmatpush1.bf16.xpose.msra.mxu0 0
  %763 = vmatprep.subr.bf16.mxu0 0
  %764 = vmatpush1.bf16.xpose.msra.mxu0 0
  %765 = vmatprep.subr.bf16.mxu0 0
  %766 = vmatpush1.bf16.xpose.msra.mxu0 0
  %767 = vmatprep.subr.bf16.mxu0 0
  %768 = vmatpush1.bf16.xpose.msra.mxu0 0
  %769 = vmatprep.subr.bf16.mxu0 0
  %770 = vmatpush1.bf16.xpose.msra.mxu0 0
  %771 = vmatprep.subr.bf16.mxu0 0
  %772 = vmatpush1.bf16.xpose.msra.mxu0 0
  %773 = vmatprep.subr.bf16.mxu0 0
  %774 = vmatpush1.bf16.xpose.msra.mxu0 0
  %775 = vmatprep.subr.bf16.mxu0 0
  %776 = vmatpush1.bf16.xpose.msra.mxu0 0
  %777 = vmatprep.subr.bf16.mxu0 0
  %778 = vmatpush1.bf16.xpose.msra.mxu0 0
  %779 = vmatprep.subr.bf16.mxu0 0
  %780 = vmatpush1.bf16.xpose.msra.mxu0 0
  %781 = vmatprep.subr.bf16.mxu0 0
  %782 = vmatpush1.bf16.xpose.msra.mxu0 0
  %783 = vmatprep.subr.bf16.mxu0 0
  %784 = vmatpush1.bf16.xpose.msra.mxu0 0
  %785 = vmatprep.subr.bf16.mxu0 0
  %786 = vmatpush1.bf16.xpose.msra.mxu0 0
  %787 = vmatprep.mubr.bf16.mxu0 0
  %788 = vmatmul.mubr.bf16.gmra.mrb[0].mxu0 %v750
  %v789 = vpop.f32.mrb[0].mxu0
  %v790 = vadd.f32 0.0, %v789
  %v791 = vpop.f32.mrb[0].mxu0
  %v792 = vpop.f32.mrb[0].mxu0
  %v793 = vadd.f32 0.0, %v792
  %v794 = vpop.f32.mrb[0].mxu0
  %795 = vdwg.mxu0
  %797 = vrot.lane.b32.xlu0 %v493, 96
  %v798 = vpop.permute.xlu0 %797
  %v800 = vsel %vm498, %v493, 0
  %v803 = vsel %vm498, %v798, 0
  %805 = vmatprep.subr.bf16.mxu0 0
  %806 = vmatpush1.bf16.xpose.msra.mxu0 %v803
  %807 = vmatprep.subr.bf16.mxu0 0
  %808 = vmatpush1.bf16.xpose.msra.mxu0 0
  %809 = vmatprep.subr.bf16.mxu0 0
  %810 = vmatpush1.bf16.xpose.msra.mxu0 0
  %811 = vmatprep.subr.bf16.mxu0 0
  %812 = vmatpush1.bf16.xpose.msra.mxu0 0
  %813 = vmatprep.subr.bf16.mxu0 0
  %814 = vmatpush1.bf16.xpose.msra.mxu0 0
  %815 = vmatprep.subr.bf16.mxu0 0
  %816 = vmatpush1.bf16.xpose.msra.mxu0 0
  %817 = vmatprep.subr.bf16.mxu0 0
  %818 = vmatpush1.bf16.xpose.msra.mxu0 0
  %819 = vmatprep.subr.bf16.mxu0 0
  %820 = vmatpush1.bf16.xpose.msra.mxu0 0
  %821 = vmatprep.subr.bf16.mxu0 0
  %822 = vmatpush1.bf16.xpose.msra.mxu0 0
  %823 = vmatprep.subr.bf16.mxu0 0
  %824 = vmatpush1.bf16.xpose.msra.mxu0 0
  %825 = vmatprep.subr.bf16.mxu0 0
  %826 = vmatpush1.bf16.xpose.msra.mxu0 0
  %827 = vmatprep.subr.bf16.mxu0 0
  %828 = vmatpush1.bf16.xpose.msra.mxu0 0
  %829 = vmatprep.subr.bf16.mxu0 0
  %830 = vmatpush1.bf16.xpose.msra.mxu0 0
  %831 = vmatprep.subr.bf16.mxu0 0
  %832 = vmatpush1.bf16.xpose.msra.mxu0 0
  %833 = vmatprep.subr.bf16.mxu0 0
  %834 = vmatpush1.bf16.xpose.msra.mxu0 0
  %835 = vmatprep.subr.bf16.mxu0 0
  %836 = vmatpush1.bf16.xpose.msra.mxu0 0
  %837 = vmatprep.mubr.bf16.mxu0 0
  %838 = vmatmul.mubr.bf16.gmra.mrb[0].mxu0 %v800
  %v839 = vpop.f32.mrb[0].mxu0
  %v840 = vadd.f32 0.0, %v839
  %v841 = vpop.f32.mrb[0].mxu0
  %v842 = vpop.f32.mrb[0].mxu0
  %v843 = vadd.f32 0.0, %v842
  %v844 = vpop.f32.mrb[0].mxu0
  %845 = vdwg.mxu0
  %847 = vrot.lane.b32.xlu0 %v494, 96
  %v848 = vpop.permute.xlu0 %847
  %v850 = vsel %vm498, %v494, 0
  %v853 = vsel %vm498, %v848, 0
  %855 = vmatprep.subr.bf16.mxu0 0
  %856 = vmatpush1.bf16.xpose.msra.mxu0 %v853
  %857 = vmatprep.subr.bf16.mxu0 0
  %858 = vmatpush1.bf16.xpose.msra.mxu0 0
  %859 = vmatprep.subr.bf16.mxu0 0
  %860 = vmatpush1.bf16.xpose.msra.mxu0 0
  %861 = vmatprep.subr.bf16.mxu0 0
  %862 = vmatpush1.bf16.xpose.msra.mxu0 0
  %863 = vmatprep.subr.bf16.mxu0 0
  %864 = vmatpush1.bf16.xpose.msra.mxu0 0
  %865 = vmatprep.subr.bf16.mxu0 0
  %866 = vmatpush1.bf16.xpose.msra.mxu0 0
  %867 = vmatprep.subr.bf16.mxu0 0
  %868 = vmatpush1.bf16.xpose.msra.mxu0 0
  %869 = vmatprep.subr.bf16.mxu0 0
  %870 = vmatpush1.bf16.xpose.msra.mxu0 0
  %871 = vmatprep.subr.bf16.mxu0 0
  %872 = vmatpush1.bf16.xpose.msra.mxu0 0
  %873 = vmatprep.subr.bf16.mxu0 0
  %874 = vmatpush1.bf16.xpose.msra.mxu0 0
  %875 = vmatprep.subr.bf16.mxu0 0
  %876 = vmatpush1.bf16.xpose.msra.mxu0 0
  %877 = vmatprep.subr.bf16.mxu0 0
  %878 = vmatpush1.bf16.xpose.msra.mxu0 0
  %879 = vmatprep.subr.bf16.mxu0 0
  %880 = vmatpush1.bf16.xpose.msra.mxu0 0
  %881 = vmatprep.subr.bf16.mxu0 0
  %882 = vmatpush1.bf16.xpose.msra.mxu0 0
  %883 = vmatprep.subr.bf16.mxu0 0
  %884 = vmatpush1.bf16.xpose.msra.mxu0 0
  %885 = vmatprep.subr.bf16.mxu0 0
  %886 = vmatpush1.bf16.xpose.msra.mxu0 0
  %887 = vmatprep.mubr.bf16.mxu0 0
  %888 = vmatmul.mubr.bf16.gmra.mrb[0].mxu0 %v850
  %v889 = vpop.f32.mrb[0].mxu0
  %v890 = vadd.f32 0.0, %v889
  %v891 = vpop.f32.mrb[0].mxu0
  %v892 = vpop.f32.mrb[0].mxu0
  %v893 = vadd.f32 0.0, %v892
  %v894 = vpop.f32.mrb[0].mxu0
  %895 = vdwg.mxu0
  %v896 = vmul.f32 %v540, 0.35355338
  %v897 = vmul.f32 %v543, 0.35355338
  %v898 = vmul.f32 %v590, 0.35355338
  %v899 = vmul.f32 %v593, 0.35355338
  %v900 = vmul.f32 %v640, 0.35355338
  %v901 = vmul.f32 %v643, 0.35355338
  %v902 = vmul.f32 %v690, 0.35355338
  %v903 = vmul.f32 %v693, 0.35355338
  %v904 = vmul.f32 %v740, 0.35355338
  %v905 = vmul.f32 %v743, 0.35355338
  %v906 = vmul.f32 %v790, 0.35355338
  %v907 = vmul.f32 %v793, 0.35355338
  %v908 = vmul.f32 %v840, 0.35355338
  %v909 = vmul.f32 %v843, 0.35355338
  %v910 = vmul.f32 %v890, 0.35355338
  %v911 = vmul.f32 %v893, 0.35355338
  %v912 = vadd.f32 %v896, %v472
  %v913 = vadd.f32 %v897, %v473
  %v914 = vadd.f32 %v898, %v472
  %v915 = vadd.f32 %v899, %v473
  %v916 = vadd.f32 %v900, %v472
  %v917 = vadd.f32 %v901, %v473
  %v918 = vadd.f32 %v902, %v472
  %v919 = vadd.f32 %v903, %v473
  %v920 = vadd.f32 %v904, %v472
  %v921 = vadd.f32 %v905, %v473
  %v922 = vadd.f32 %v906, %v472
  %v923 = vadd.f32 %v907, %v473
  %v924 = vadd.f32 %v908, %v472
  %v925 = vadd.f32 %v909, %v473
  %v926 = vadd.f32 %v910, %v472
  %v927 = vadd.f32 %v911, %v473
  %vm928 = vcmask 130048
  %v929 = vsel %vm928, %v912, -inf
  %930 = vmax.xlane.f32.xlu0 %v929
  %v931 = vpop.xlane.xlu0 %930
  %v932 = vsel %vm928, %v913, -inf
  %933 = vmax.xlane.f32.xlu0 %v932
  %v934 = vpop.xlane.xlu0 %933
  %v935 = vsel %vm928, %v914, -inf
  %936 = vmax.xlane.f32.xlu0 %v935
  %v937 = vpop.xlane.xlu0 %936
  %v938 = vsel %vm928, %v915, -inf
  %939 = vmax.xlane.f32.xlu0 %v938
  %v940 = vpop.xlane.xlu0 %939
  %v941 = vsel %vm928, %v916, -inf
  %942 = vmax.xlane.f32.xlu0 %v941
  %v943 = vpop.xlane.xlu0 %942
  %v944 = vsel %vm928, %v917, -inf
  %945 = vmax.xlane.f32.xlu0 %v944
  %v946 = vpop.xlane.xlu0 %945
  %v947 = vsel %vm928, %v918, -inf
  %948 = vmax.xlane.f32.xlu0 %v947
  %v949 = vpop.xlane.xlu0 %948
  %v950 = vsel %vm928, %v919, -inf
  %951 = vmax.xlane.f32.xlu0 %v950
  %v952 = vpop.xlane.xlu0 %951
  %v953 = vsel %vm928, %v920, -inf
  %954 = vmax.xlane.f32.xlu0 %v953
  %v955 = vpop.xlane.xlu0 %954
  %v956 = vsel %vm928, %v921, -inf
  %957 = vmax.xlane.f32.xlu0 %v956
  %v958 = vpop.xlane.xlu0 %957
  %v959 = vsel %vm928, %v922, -inf
  %960 = vmax.xlane.f32.xlu0 %v959
  %v961 = vpop.xlane.xlu0 %960
  %v962 = vsel %vm928, %v923, -inf
  %963 = vmax.xlane.f32.xlu0 %v962
  %v964 = vpop.xlane.xlu0 %963
  %v965 = vsel %vm928, %v924, -inf
  %966 = vmax.xlane.f32.xlu0 %v965
  %v967 = vpop.xlane.xlu0 %966
  %v968 = vsel %vm928, %v925, -inf
  %969 = vmax.xlane.f32.xlu0 %v968
  %v970 = vpop.xlane.xlu0 %969
  %v971 = vsel %vm928, %v926, -inf
  %972 = vmax.xlane.f32.xlu0 %v971
  %v973 = vpop.xlane.xlu0 %972
  %v974 = vsel %vm928, %v927, -inf
  %975 = vmax.xlane.f32.xlu0 %v974
  %v976 = vpop.xlane.xlu0 %975
  %v977 = vsub.f32 %v912, %v931
  %v978 = vsub.f32 %v913, %v934
  %v979 = vsub.f32 %v914, %v937
  %v980 = vsub.f32 %v915, %v940
  %v981 = vsub.f32 %v916, %v943
  %v982 = vsub.f32 %v917, %v946
  %v983 = vsub.f32 %v918, %v949
  %v984 = vsub.f32 %v919, %v952
  %v985 = vsub.f32 %v920, %v955
  %v986 = vsub.f32 %v921, %v958
  %v987 = vsub.f32 %v922, %v961
  %v988 = vsub.f32 %v923, %v964
  %v989 = vsub.f32 %v924, %v967
  %v990 = vsub.f32 %v925, %v970
  %v991 = vsub.f32 %v926, %v973
  %v992 = vsub.f32 %v927, %v976
  %v993 = vmul.f32 %v977, 1.442695
  %v994 = vpow.pop %v993
  %v995 = vmul.f32 %v978, 1.442695
  %v996 = vpow.pop %v995
  %v997 = vmul.f32 %v979, 1.442695
  %v998 = vpow.pop %v997
  %v999 = vmul.f32 %v980, 1.442695
  %v1000 = vpow.pop %v999
  %v1001 = vmul.f32 %v981, 1.442695
  %v1002 = vpow.pop %v1001
  %v1003 = vmul.f32 %v982, 1.442695
  %v1004 = vpow.pop %v1003
  %v1005 = vmul.f32 %v983, 1.442695
  %v1006 = vpow.pop %v1005
  %v1007 = vmul.f32 %v984, 1.442695
  %v1008 = vpow.pop %v1007
  %v1009 = vmul.f32 %v985, 1.442695
  %v1010 = vpow.pop %v1009
  %v1011 = vmul.f32 %v986, 1.442695
  %v1012 = vpow.pop %v1011
  %v1013 = vmul.f32 %v987, 1.442695
  %v1014 = vpow.pop %v1013
  %v1015 = vmul.f32 %v988, 1.442695
  %v1016 = vpow.pop %v1015
  %v1017 = vmul.f32 %v989, 1.442695
  %v1018 = vpow.pop %v1017
  %v1019 = vmul.f32 %v990, 1.442695
  %v1020 = vpow.pop %v1019
  %v1021 = vmul.f32 %v991, 1.442695
  %v1022 = vpow.pop %v1021
  %v1023 = vmul.f32 %v992, 1.442695
  %v1024 = vpow.pop %v1023
  %v1025 = vsel %vm928, %v994, 0.0
  %1026 = vadd.xlane.f32.xlu0 %v1025
  %v1027 = vpop.xlane.xlu0 %1026
  %v1028 = vsel %vm928, %v996, 0.0
  %1029 = vadd.xlane.f32.xlu0 %v1028
  %v1030 = vpop.xlane.xlu0 %1029
  %v1031 = vsel %vm928, %v998, 0.0
  %1032 = vadd.xlane.f32.xlu0 %v1031
  %v1033 = vpop.xlane.xlu0 %1032
  %v1034 = vsel %vm928, %v1000, 0.0
  %1035 = vadd.xlane.f32.xlu0 %v1034
  %v1036 = vpop.xlane.xlu0 %1035
  %v1037 = vsel %vm928, %v1002, 0.0
  %1038 = vadd.xlane.f32.xlu0 %v1037
  %v1039 = vpop.xlane.xlu0 %1038
  %v1040 = vsel %vm928, %v1004, 0.0
  %1041 = vadd.xlane.f32.xlu0 %v1040
  %v1042 = vpop.xlane.xlu0 %1041
  %v1043 = vsel %vm928, %v1006, 0.0
  %1044 = vadd.xlane.f32.xlu0 %v1043
  %v1045 = vpop.xlane.xlu0 %1044
  %v1046 = vsel %vm928, %v1008, 0.0
  %1047 = vadd.xlane.f32.xlu0 %v1046
  %v1048 = vpop.xlane.xlu0 %1047
  %v1049 = vsel %vm928, %v1010, 0.0
  %1050 = vadd.xlane.f32.xlu0 %v1049
  %v1051 = vpop.xlane.xlu0 %1050
  %v1052 = vsel %vm928, %v1012, 0.0
  %1053 = vadd.xlane.f32.xlu0 %v1052
  %v1054 = vpop.xlane.xlu0 %1053
  %v1055 = vsel %vm928, %v1014, 0.0
  %1056 = vadd.xlane.f32.xlu0 %v1055
  %v1057 = vpop.xlane.xlu0 %1056
  %v1058 = vsel %vm928, %v1016, 0.0
  %1059 = vadd.xlane.f32.xlu0 %v1058
  %v1060 = vpop.xlane.xlu0 %1059
  %v1061 = vsel %vm928, %v1018, 0.0
  %1062 = vadd.xlane.f32.xlu0 %v1061
  %v1063 = vpop.xlane.xlu0 %1062
  %v1064 = vsel %vm928, %v1020, 0.0
  %1065 = vadd.xlane.f32.xlu0 %v1064
  %v1066 = vpop.xlane.xlu0 %1065
  %v1067 = vsel %vm928, %v1022, 0.0
  %1068 = vadd.xlane.f32.xlu0 %v1067
  %v1069 = vpop.xlane.xlu0 %1068
  %v1070 = vsel %vm928, %v1024, 0.0
  %1071 = vadd.xlane.f32.xlu0 %v1070
  %v1072 = vpop.xlane.xlu0 %1071
  %v1073 = vrcp.pop %v1027
  %v1074 = vrcp.pop %v1030
  %v1075 = vrcp.pop %v1033
  %v1076 = vrcp.pop %v1036
  %v1077 = vrcp.pop %v1039
  %v1078 = vrcp.pop %v1042
  %v1079 = vrcp.pop %v1045
  %v1080 = vrcp.pop %v1048
  %v1081 = vrcp.pop %v1051
  %v1082 = vrcp.pop %v1054
  %v1083 = vrcp.pop %v1057
  %v1084 = vrcp.pop %v1060
  %v1085 = vrcp.pop %v1063
  %v1086 = vrcp.pop %v1066
  %v1087 = vrcp.pop %v1069
  %v1088 = vrcp.pop %v1072
  %v1089 = vmul.f32 %v994, %v1073
  %v1090 = vmul.f32 %v996, %v1074
  %v1091 = vmul.f32 %v998, %v1075
  %v1092 = vmul.f32 %v1000, %v1076
  %v1093 = vmul.f32 %v1002, %v1077
  %v1094 = vmul.f32 %v1004, %v1078
  %v1095 = vmul.f32 %v1006, %v1079
  %v1096 = vmul.f32 %v1008, %v1080
  %v1097 = vmul.f32 %v1010, %v1081
  %v1098 = vmul.f32 %v1012, %v1082
  %v1099 = vmul.f32 %v1014, %v1083
  %v1100 = vmul.f32 %v1016, %v1084
  %v1101 = vmul.f32 %v1018, %v1085
  %v1102 = vmul.f32 %v1020, %v1086
  %v1103 = vmul.f32 %v1022, %v1087
  %v1104 = vmul.f32 %v1024, %v1088
  %v1105 = vpack.c.bf16 %v1090, %v1089
  %v1106 = vpack.c.bf16 %v1092, %v1091
  %v1107 = vpack.c.bf16 %v1094, %v1093
  %v1108 = vpack.c.bf16 %v1096, %v1095
  %v1109 = vpack.c.bf16 %v1098, %v1097
  %v1110 = vpack.c.bf16 %v1100, %v1099
  %v1111 = vpack.c.bf16 %v1102, %v1101
  %v1112 = vpack.c.bf16 %v1104, %v1103
  %1113 = vrot.lane.b32.xlu0 %v487, 64
  %v1114 = vpop.permute.xlu0 %1113
  %v1117 = vsel %vm928, %v1105, 0
  %1119 = vmatprep.subr.bf16.mxu0 0
  %1120 = vmatpush1.bf16.msra.mxu0 %v1114
  %1121 = vmatprep.subr.bf16.mxu0 0
  %1122 = vmatpush1.bf16.msra.mxu0 0
  %1123 = vmatprep.subr.bf16.mxu0 0
  %1124 = vmatpush1.bf16.msra.mxu0 0
  %1125 = vmatprep.subr.bf16.mxu0 0
  %1126 = vmatpush1.bf16.msra.mxu0 0
  %1127 = vmatprep.subr.bf16.mxu0 0
  %1128 = vmatpush1.bf16.msra.mxu0 0
  %1129 = vmatprep.subr.bf16.mxu0 0
  %1130 = vmatpush1.bf16.msra.mxu0 0
  %1131 = vmatprep.subr.bf16.mxu0 0
  %1132 = vmatpush1.bf16.msra.mxu0 0
  %1133 = vmatprep.subr.bf16.mxu0 0
  %1134 = vmatpush1.bf16.msra.mxu0 0
  %1135 = vmatprep.subr.bf16.mxu0 0
  %1136 = vmatpush1.bf16.msra.mxu0 0
  %1137 = vmatprep.subr.bf16.mxu0 0
  %1138 = vmatpush1.bf16.msra.mxu0 0
  %1139 = vmatprep.subr.bf16.mxu0 0
  %1140 = vmatpush1.bf16.msra.mxu0 0
  %1141 = vmatprep.subr.bf16.mxu0 0
  %1142 = vmatpush1.bf16.msra.mxu0 0
  %1143 = vmatprep.subr.bf16.mxu0 0
  %1144 = vmatpush1.bf16.msra.mxu0 0
  %1145 = vmatprep.subr.bf16.mxu0 0
  %1146 = vmatpush1.bf16.msra.mxu0 0
  %1147 = vmatprep.subr.bf16.mxu0 0
  %1148 = vmatpush1.bf16.msra.mxu0 0
  %1149 = vmatprep.subr.bf16.mxu0 0
  %1150 = vmatpush1.bf16.msra.mxu0 0
  %1151 = vmatprep.mubr.bf16.mxu0 0
  %1152 = vmatmul.mubr.bf16.gmra.mrb[0].mxu0 %v1117
  %v1153 = vpop.f32.mrb[0].mxu0
  %v1154 = vadd.f32 0.0, %v1153
  %v1155 = vpop.f32.mrb[0].mxu0
  %v1156 = vpop.f32.mrb[0].mxu0
  %v1157 = vadd.f32 0.0, %v1156
  %v1158 = vpop.f32.mrb[0].mxu0
  %1159 = vdwg.mxu0
  %1160 = vrot.lane.b32.xlu0 %v488, 64
  %v1161 = vpop.permute.xlu0 %1160
  %v1164 = vsel %vm928, %v1106, 0
  %1166 = vmatprep.subr.bf16.mxu0 0
  %1167 = vmatpush1.bf16.msra.mxu0 %v1161
  %1168 = vmatprep.subr.bf16.mxu0 0
  %1169 = vmatpush1.bf16.msra.mxu0 0
  %1170 = vmatprep.subr.bf16.mxu0 0
  %1171 = vmatpush1.bf16.msra.mxu0 0
  %1172 = vmatprep.subr.bf16.mxu0 0
  %1173 = vmatpush1.bf16.msra.mxu0 0
  %1174 = vmatprep.subr.bf16.mxu0 0
  %1175 = vmatpush1.bf16.msra.mxu0 0
  %1176 = vmatprep.subr.bf16.mxu0 0
  %1177 = vmatpush1.bf16.msra.mxu0 0
  %1178 = vmatprep.subr.bf16.mxu0 0
  %1179 = vmatpush1.bf16.msra.mxu0 0
  %1180 = vmatprep.subr.bf16.mxu0 0
  %1181 = vmatpush1.bf16.msra.mxu0 0
  %1182 = vmatprep.subr.bf16.mxu0 0
  %1183 = vmatpush1.bf16.msra.mxu0 0
  %1184 = vmatprep.subr.bf16.mxu0 0
  %1185 = vmatpush1.bf16.msra.mxu0 0
  %1186 = vmatprep.subr.bf16.mxu0 0
  %1187 = vmatpush1.bf16.msra.mxu0 0
  %1188 = vmatprep.subr.bf16.mxu0 0
  %1189 = vmatpush1.bf16.msra.mxu0 0
  %1190 = vmatprep.subr.bf16.mxu0 0
  %1191 = vmatpush1.bf16.msra.mxu0 0
  %1192 = vmatprep.subr.bf16.mxu0 0
  %1193 = vmatpush1.bf16.msra.mxu0 0
  %1194 = vmatprep.subr.bf16.mxu0 0
  %1195 = vmatpush1.bf16.msra.mxu0 0
  %1196 = vmatprep.subr.bf16.mxu0 0
  %1197 = vmatpush1.bf16.msra.mxu0 0
  %1198 = vmatprep.mubr.bf16.mxu0 0
  %1199 = vmatmul.mubr.bf16.gmra.mrb[0].mxu0 %v1164
  %v1200 = vpop.f32.mrb[0].mxu0
  %v1201 = vadd.f32 0.0, %v1200
  %v1202 = vpop.f32.mrb[0].mxu0
  %v1203 = vpop.f32.mrb[0].mxu0
  %v1204 = vadd.f32 0.0, %v1203
  %v1205 = vpop.f32.mrb[0].mxu0
  %1206 = vdwg.mxu0
  %1207 = vrot.lane.b32.xlu0 %v489, 64
  %v1208 = vpop.permute.xlu0 %1207
  %v1211 = vsel %vm928, %v1107, 0
  %1213 = vmatprep.subr.bf16.mxu0 0
  %1214 = vmatpush1.bf16.msra.mxu0 %v1208
  %1215 = vmatprep.subr.bf16.mxu0 0
  %1216 = vmatpush1.bf16.msra.mxu0 0
  %1217 = vmatprep.subr.bf16.mxu0 0
  %1218 = vmatpush1.bf16.msra.mxu0 0
  %1219 = vmatprep.subr.bf16.mxu0 0
  %1220 = vmatpush1.bf16.msra.mxu0 0
  %1221 = vmatprep.subr.bf16.mxu0 0
  %1222 = vmatpush1.bf16.msra.mxu0 0
  %1223 = vmatprep.subr.bf16.mxu0 0
  %1224 = vmatpush1.bf16.msra.mxu0 0
  %1225 = vmatprep.subr.bf16.mxu0 0
  %1226 = vmatpush1.bf16.msra.mxu0 0
  %1227 = vmatprep.subr.bf16.mxu0 0
  %1228 = vmatpush1.bf16.msra.mxu0 0
  %1229 = vmatprep.subr.bf16.mxu0 0
  %1230 = vmatpush1.bf16.msra.mxu0 0
  %1231 = vmatprep.subr.bf16.mxu0 0
  %1232 = vmatpush1.bf16.msra.mxu0 0
  %1233 = vmatprep.subr.bf16.mxu0 0
  %1234 = vmatpush1.bf16.msra.mxu0 0
  %1235 = vmatprep.subr.bf16.mxu0 0
  %1236 = vmatpush1.bf16.msra.mxu0 0
  %1237 = vmatprep.subr.bf16.mxu0 0
  %1238 = vmatpush1.bf16.msra.mxu0 0
  %1239 = vmatprep.subr.bf16.mxu0 0
  %1240 = vmatpush1.bf16.msra.mxu0 0
  %1241 = vmatprep.subr.bf16.mxu0 0
  %1242 = vmatpush1.bf16.msra.mxu0 0
  %1243 = vmatprep.subr.bf16.mxu0 0
  %1244 = vmatpush1.bf16.msra.mxu0 0
  %1245 = vmatprep.mubr.bf16.mxu0 0
  %1246 = vmatmul.mubr.bf16.gmra.mrb[0].mxu0 %v1211
  %v1247 = vpop.f32.mrb[0].mxu0
  %v1248 = vadd.f32 0.0, %v1247
  %v1249 = vpop.f32.mrb[0].mxu0
  %v1250 = vpop.f32.mrb[0].mxu0
  %v1251 = vadd.f32 0.0, %v1250
  %v1252 = vpop.f32.mrb[0].mxu0
  %1253 = vdwg.mxu0
  %1254 = vrot.lane.b32.xlu0 %v490, 64
  %v1255 = vpop.permute.xlu0 %1254
  %v1258 = vsel %vm928, %v1108, 0
  %1260 = vmatprep.subr.bf16.mxu0 0
  %1261 = vmatpush1.bf16.msra.mxu0 %v1255
  %1262 = vmatprep.subr.bf16.mxu0 0
  %1263 = vmatpush1.bf16.msra.mxu0 0
  %1264 = vmatprep.subr.bf16.mxu0 0
  %1265 = vmatpush1.bf16.msra.mxu0 0
  %1266 = vmatprep.subr.bf16.mxu0 0
  %1267 = vmatpush1.bf16.msra.mxu0 0
  %1268 = vmatprep.subr.bf16.mxu0 0
  %1269 = vmatpush1.bf16.msra.mxu0 0
  %1270 = vmatprep.subr.bf16.mxu0 0
  %1271 = vmatpush1.bf16.msra.mxu0 0
  %1272 = vmatprep.subr.bf16.mxu0 0
  %1273 = vmatpush1.bf16.msra.mxu0 0
  %1274 = vmatprep.subr.bf16.mxu0 0
  %1275 = vmatpush1.bf16.msra.mxu0 0
  %1276 = vmatprep.subr.bf16.mxu0 0
  %1277 = vmatpush1.bf16.msra.mxu0 0
  %1278 = vmatprep.subr.bf16.mxu0 0
  %1279 = vmatpush1.bf16.msra.mxu0 0
  %1280 = vmatprep.subr.bf16.mxu0 0
  %1281 = vmatpush1.bf16.msra.mxu0 0
  %1282 = vmatprep.subr.bf16.mxu0 0
  %1283 = vmatpush1.bf16.msra.mxu0 0
  %1284 = vmatprep.subr.bf16.mxu0 0
  %1285 = vmatpush1.bf16.msra.mxu0 0
  %1286 = vmatprep.subr.bf16.mxu0 0
  %1287 = vmatpush1.bf16.msra.mxu0 0
  %1288 = vmatprep.subr.bf16.mxu0 0
  %1289 = vmatpush1.bf16.msra.mxu0 0
  %1290 = vmatprep.subr.bf16.mxu0 0
  %1291 = vmatpush1.bf16.msra.mxu0 0
  %1292 = vmatprep.mubr.bf16.mxu0 0
  %1293 = vmatmul.mubr.bf16.gmra.mrb[0].mxu0 %v1258
  %v1294 = vpop.f32.mrb[0].mxu0
  %v1295 = vadd.f32 0.0, %v1294
  %v1296 = vpop.f32.mrb[0].mxu0
  %v1297 = vpop.f32.mrb[0].mxu0
  %v1298 = vadd.f32 0.0, %v1297
  %v1299 = vpop.f32.mrb[0].mxu0
  %1300 = vdwg.mxu0
  %1301 = vrot.lane.b32.xlu0 %v491, 64
  %v1302 = vpop.permute.xlu0 %1301
  %v1305 = vsel %vm928, %v1109, 0
  %1307 = vmatprep.subr.bf16.mxu0 0
  %1308 = vmatpush1.bf16.msra.mxu0 %v1302
  %1309 = vmatprep.subr.bf16.mxu0 0
  %1310 = vmatpush1.bf16.msra.mxu0 0
  %1311 = vmatprep.subr.bf16.mxu0 0
  %1312 = vmatpush1.bf16.msra.mxu0 0
  %1313 = vmatprep.subr.bf16.mxu0 0
  %1314 = vmatpush1.bf16.msra.mxu0 0
  %1315 = vmatprep.subr.bf16.mxu0 0
  %1316 = vmatpush1.bf16.msra.mxu0 0
  %1317 = vmatprep.subr.bf16.mxu0 0
  %1318 = vmatpush1.bf16.msra.mxu0 0
  %1319 = vmatprep.subr.bf16.mxu0 0
  %1320 = vmatpush1.bf16.msra.mxu0 0
  %1321 = vmatprep.subr.bf16.mxu0 0
  %1322 = vmatpush1.bf16.msra.mxu0 0
  %1323 = vmatprep.subr.bf16.mxu0 0
  %1324 = vmatpush1.bf16.msra.mxu0 0
  %1325 = vmatprep.subr.bf16.mxu0 0
  %1326 = vmatpush1.bf16.msra.mxu0 0
  %1327 = vmatprep.subr.bf16.mxu0 0
  %1328 = vmatpush1.bf16.msra.mxu0 0
  %1329 = vmatprep.subr.bf16.mxu0 0
  %1330 = vmatpush1.bf16.msra.mxu0 0
  %1331 = vmatprep.subr.bf16.mxu0 0
  %1332 = vmatpush1.bf16.msra.mxu0 0
  %1333 = vmatprep.subr.bf16.mxu0 0
  %1334 = vmatpush1.bf16.msra.mxu0 0
  %1335 = vmatprep.subr.bf16.mxu0 0
  %1336 = vmatpush1.bf16.msra.mxu0 0
  %1337 = vmatprep.subr.bf16.mxu0 0
  %1338 = vmatpush1.bf16.msra.mxu0 0
  %1339 = vmatprep.mubr.bf16.mxu0 0
  %1340 = vmatmul.mubr.bf16.gmra.mrb[0].mxu0 %v1305
  %v1341 = vpop.f32.mrb[0].mxu0
  %v1342 = vadd.f32 0.0, %v1341
  %v1343 = vpop.f32.mrb[0].mxu0
  %v1344 = vpop.f32.mrb[0].mxu0
  %v1345 = vadd.f32 0.0, %v1344
  %v1346 = vpop.f32.mrb[0].mxu0
  %1347 = vdwg.mxu0
  %1348 = vrot.lane.b32.xlu0 %v492, 64
  %v1349 = vpop.permute.xlu0 %1348
  %v1352 = vsel %vm928, %v1110, 0
  %1354 = vmatprep.subr.bf16.mxu0 0
  %1355 = vmatpush1.bf16.msra.mxu0 %v1349
  %1356 = vmatprep.subr.bf16.mxu0 0
  %1357 = vmatpush1.bf16.msra.mxu0 0
  %1358 = vmatprep.subr.bf16.mxu0 0
  %1359 = vmatpush1.bf16.msra.mxu0 0
  %1360 = vmatprep.subr.bf16.mxu0 0
  %1361 = vmatpush1.bf16.msra.mxu0 0
  %1362 = vmatprep.subr.bf16.mxu0 0
  %1363 = vmatpush1.bf16.msra.mxu0 0
  %1364 = vmatprep.subr.bf16.mxu0 0
  %1365 = vmatpush1.bf16.msra.mxu0 0
  %1366 = vmatprep.subr.bf16.mxu0 0
  %1367 = vmatpush1.bf16.msra.mxu0 0
  %1368 = vmatprep.subr.bf16.mxu0 0
  %1369 = vmatpush1.bf16.msra.mxu0 0
  %1370 = vmatprep.subr.bf16.mxu0 0
  %1371 = vmatpush1.bf16.msra.mxu0 0
  %1372 = vmatprep.subr.bf16.mxu0 0
  %1373 = vmatpush1.bf16.msra.mxu0 0
  %1374 = vmatprep.subr.bf16.mxu0 0
  %1375 = vmatpush1.bf16.msra.mxu0 0
  %1376 = vmatprep.subr.bf16.mxu0 0
  %1377 = vmatpush1.bf16.msra.mxu0 0
  %1378 = vmatprep.subr.bf16.mxu0 0
  %1379 = vmatpush1.bf16.msra.mxu0 0
  %1380 = vmatprep.subr.bf16.mxu0 0
  %1381 = vmatpush1.bf16.msra.mxu0 0
  %1382 = vmatprep.subr.bf16.mxu0 0
  %1383 = vmatpush1.bf16.msra.mxu0 0
  %1384 = vmatprep.subr.bf16.mxu0 0
  %1385 = vmatpush1.bf16.msra.mxu0 0
  %1386 = vmatprep.mubr.bf16.mxu0 0
  %1387 = vmatmul.mubr.bf16.gmra.mrb[0].mxu0 %v1352
  %v1388 = vpop.f32.mrb[0].mxu0
  %v1389 = vadd.f32 0.0, %v1388
  %v1390 = vpop.f32.mrb[0].mxu0
  %v1391 = vpop.f32.mrb[0].mxu0
  %v1392 = vadd.f32 0.0, %v1391
  %v1393 = vpop.f32.mrb[0].mxu0
  %1394 = vdwg.mxu0
  %1395 = vrot.lane.b32.xlu0 %v493, 64
  %v1396 = vpop.permute.xlu0 %1395
  %v1399 = vsel %vm928, %v1111, 0
  %1401 = vmatprep.subr.bf16.mxu0 0
  %1402 = vmatpush1.bf16.msra.mxu0 %v1396
  %1403 = vmatprep.subr.bf16.mxu0 0
  %1404 = vmatpush1.bf16.msra.mxu0 0
  %1405 = vmatprep.subr.bf16.mxu0 0
  %1406 = vmatpush1.bf16.msra.mxu0 0
  %1407 = vmatprep.subr.bf16.mxu0 0
  %1408 = vmatpush1.bf16.msra.mxu0 0
  %1409 = vmatprep.subr.bf16.mxu0 0
  %1410 = vmatpush1.bf16.msra.mxu0 0
  %1411 = vmatprep.subr.bf16.mxu0 0
  %1412 = vmatpush1.bf16.msra.mxu0 0
  %1413 = vmatprep.subr.bf16.mxu0 0
  %1414 = vmatpush1.bf16.msra.mxu0 0
  %1415 = vmatprep.subr.bf16.mxu0 0
  %1416 = vmatpush1.bf16.msra.mxu0 0
  %1417 = vmatprep.subr.bf16.mxu0 0
  %1418 = vmatpush1.bf16.msra.mxu0 0
  %1419 = vmatprep.subr.bf16.mxu0 0
  %1420 = vmatpush1.bf16.msra.mxu0 0
  %1421 = vmatprep.subr.bf16.mxu0 0
  %1422 = vmatpush1.bf16.msra.mxu0 0
  %1423 = vmatprep.subr.bf16.mxu0 0
  %1424 = vmatpush1.bf16.msra.mxu0 0
  %1425 = vmatprep.subr.bf16.mxu0 0
  %1426 = vmatpush1.bf16.msra.mxu0 0
  %1427 = vmatprep.subr.bf16.mxu0 0
  %1428 = vmatpush1.bf16.msra.mxu0 0
  %1429 = vmatprep.subr.bf16.mxu0 0
  %1430 = vmatpush1.bf16.msra.mxu0 0
  %1431 = vmatprep.subr.bf16.mxu0 0
  %1432 = vmatpush1.bf16.msra.mxu0 0
  %1433 = vmatprep.mubr.bf16.mxu0 0
  %1434 = vmatmul.mubr.bf16.gmra.mrb[0].mxu0 %v1399
  %v1435 = vpop.f32.mrb[0].mxu0
  %v1436 = vadd.f32 0.0, %v1435
  %v1437 = vpop.f32.mrb[0].mxu0
  %v1438 = vpop.f32.mrb[0].mxu0
  %v1439 = vadd.f32 0.0, %v1438
  %v1440 = vpop.f32.mrb[0].mxu0
  %1441 = vdwg.mxu0
  %1442 = vrot.lane.b32.xlu0 %v494, 64
  %v1443 = vpop.permute.xlu0 %1442
  %v1446 = vsel %vm928, %v1112, 0
  %1448 = vmatprep.subr.bf16.mxu0 0
  %1449 = vmatpush1.bf16.msra.mxu0 %v1443
  %1450 = vmatprep.subr.bf16.mxu0 0
  %1451 = vmatpush1.bf16.msra.mxu0 0
  %1452 = vmatprep.subr.bf16.mxu0 0
  %1453 = vmatpush1.bf16.msra.mxu0 0
  %1454 = vmatprep.subr.bf16.mxu0 0
  %1455 = vmatpush1.bf16.msra.mxu0 0
  %1456 = vmatprep.subr.bf16.mxu0 0
  %1457 = vmatpush1.bf16.msra.mxu0 0
  %1458 = vmatprep.subr.bf16.mxu0 0
  %1459 = vmatpush1.bf16.msra.mxu0 0
  %1460 = vmatprep.subr.bf16.mxu0 0
  %1461 = vmatpush1.bf16.msra.mxu0 0
  %1462 = vmatprep.subr.bf16.mxu0 0
  %1463 = vmatpush1.bf16.msra.mxu0 0
  %1464 = vmatprep.subr.bf16.mxu0 0
  %1465 = vmatpush1.bf16.msra.mxu0 0
  %1466 = vmatprep.subr.bf16.mxu0 0
  %1467 = vmatpush1.bf16.msra.mxu0 0
  %1468 = vmatprep.subr.bf16.mxu0 0
  %1469 = vmatpush1.bf16.msra.mxu0 0
  %1470 = vmatprep.subr.bf16.mxu0 0
  %1471 = vmatpush1.bf16.msra.mxu0 0
  %1472 = vmatprep.subr.bf16.mxu0 0
  %1473 = vmatpush1.bf16.msra.mxu0 0
  %1474 = vmatprep.subr.bf16.mxu0 0
  %1475 = vmatpush1.bf16.msra.mxu0 0
  %1476 = vmatprep.subr.bf16.mxu0 0
  %1477 = vmatpush1.bf16.msra.mxu0 0
  %1478 = vmatprep.subr.bf16.mxu0 0
  %1479 = vmatpush1.bf16.msra.mxu0 0
  %1480 = vmatprep.mubr.bf16.mxu0 0
  %1481 = vmatmul.mubr.bf16.gmra.mrb[0].mxu0 %v1446
  %v1482 = vpop.f32.mrb[0].mxu0
  %v1483 = vadd.f32 0.0, %v1482
  %v1484 = vpop.f32.mrb[0].mxu0
  %v1485 = vpop.f32.mrb[0].mxu0
  %v1486 = vadd.f32 0.0, %v1485
  %v1487 = vpop.f32.mrb[0].mxu0
  %1488 = vdwg.mxu0
  %v1489 = vpack.c.bf16 %v1157, %v1154
  %v1490 = vpack.c.bf16 %v1204, %v1201
  %v1491 = vpack.c.bf16 %v1251, %v1248
  %v1492 = vpack.c.bf16 %v1298, %v1295
  %v1493 = vpack.c.bf16 %v1345, %v1342
  %v1494 = vpack.c.bf16 %v1392, %v1389
  %v1495 = vpack.c.bf16 %v1439, %v1436
  %v1496 = vpack.c.bf16 %v1486, %v1483
  %v1497 = vld [vmem:[%s5] sm:$0xf]
  %v1499 = vsel %vm498, %v1489, 0
  %v1502 = vsel %vm498, %v1490, 0
  %v1505 = vsel %vm498, %v1491, 0
  %v1508 = vsel %vm498, %v1492, 0
  %v1511 = vsel %vm498, %v1493, 0
  %v1514 = vsel %vm498, %v1494, 0
  %v1517 = vsel %vm498, %v1495, 0
  %v1520 = vsel %vm498, %v1496, 0
  %vm1522 = vcmask 1043456
  %v1524 = vsel %vm1522, %v1497, 0
  %1526 = vmatprep.subr.bf16.mxu0 0
  %1527 = vmatpush1.bf16.msra.mxu0 %v1524
  %1528 = vmatprep.subr.bf16.mxu0 0
  %1529 = vmatpush1.bf16.msra.mxu0 0
  %1530 = vmatprep.subr.bf16.mxu0 0
  %1531 = vmatpush1.bf16.msra.mxu0 0
  %1532 = vmatprep.subr.bf16.mxu0 0
  %1533 = vmatpush1.bf16.msra.mxu0 0
  %1534 = vmatprep.subr.bf16.mxu0 0
  %1535 = vmatpush1.bf16.msra.mxu0 0
  %1536 = vmatprep.subr.bf16.mxu0 0
  %1537 = vmatpush1.bf16.msra.mxu0 0
  %1538 = vmatprep.subr.bf16.mxu0 0
  %1539 = vmatpush1.bf16.msra.mxu0 0
  %1540 = vmatprep.subr.bf16.mxu0 0
  %1541 = vmatpush1.bf16.msra.mxu0 0
  %1542 = vmatprep.subr.bf16.mxu0 0
  %1543 = vmatpush1.bf16.msra.mxu0 0
  %1544 = vmatprep.subr.bf16.mxu0 0
  %1545 = vmatpush1.bf16.msra.mxu0 0
  %1546 = vmatprep.subr.bf16.mxu0 0
  %1547 = vmatpush1.bf16.msra.mxu0 0
  %1548 = vmatprep.subr.bf16.mxu0 0
  %1549 = vmatpush1.bf16.msra.mxu0 0
  %1550 = vmatprep.subr.bf16.mxu0 0
  %1551 = vmatpush1.bf16.msra.mxu0 0
  %1552 = vmatprep.subr.bf16.mxu0 0
  %1553 = vmatpush1.bf16.msra.mxu0 0
  %1554 = vmatprep.subr.bf16.mxu0 0
  %1555 = vmatpush1.bf16.msra.mxu0 0
  %1556 = vmatprep.subr.bf16.mxu0 0
  %1557 = vmatpush1.bf16.msra.mxu0 0
  %1558 = vmatprep.mubr.bf16.mxu0 0
  %1559 = vmatmul.mubr.bf16.gmra.mrb[0].mxu0 %v1499
  %v1560 = vpop.f32.mrb[0].mxu0
  %v1561 = vadd.f32 0.0, %v1560
  %v1562 = vpop.f32.mrb[0].mxu0
  %v1563 = vpop.f32.mrb[0].mxu0
  %v1564 = vadd.f32 0.0, %v1563
  %v1565 = vpop.f32.mrb[0].mxu0
  %1566 = vmatprep.mubr.bf16.mxu0 0
  %1567 = vmatmul.mubr.bf16.gmra.mrb[0].mxu0 %v1502
  %v1568 = vpop.f32.mrb[0].mxu0
  %v1569 = vadd.f32 0.0, %v1568
  %v1570 = vpop.f32.mrb[0].mxu0
  %v1571 = vpop.f32.mrb[0].mxu0
  %v1572 = vadd.f32 0.0, %v1571
  %v1573 = vpop.f32.mrb[0].mxu0
  %1574 = vmatprep.mubr.bf16.mxu0 0
  %1575 = vmatmul.mubr.bf16.gmra.mrb[0].mxu0 %v1505
  %v1576 = vpop.f32.mrb[0].mxu0
  %v1577 = vadd.f32 0.0, %v1576
  %v1578 = vpop.f32.mrb[0].mxu0
  %v1579 = vpop.f32.mrb[0].mxu0
  %v1580 = vadd.f32 0.0, %v1579
  %v1581 = vpop.f32.mrb[0].mxu0
  %1582 = vmatprep.mubr.bf16.mxu0 0
  %1583 = vmatmul.mubr.bf16.gmra.mrb[0].mxu0 %v1508
  %v1584 = vpop.f32.mrb[0].mxu0
  %v1585 = vadd.f32 0.0, %v1584
  %v1586 = vpop.f32.mrb[0].mxu0
  %v1587 = vpop.f32.mrb[0].mxu0
  %v1588 = vadd.f32 0.0, %v1587
  %v1589 = vpop.f32.mrb[0].mxu0
  %1590 = vmatprep.mubr.bf16.mxu0 0
  %1591 = vmatmul.mubr.bf16.gmra.mrb[0].mxu0 %v1511
  %v1592 = vpop.f32.mrb[0].mxu0
  %v1593 = vadd.f32 0.0, %v1592
  %v1594 = vpop.f32.mrb[0].mxu0
  %v1595 = vpop.f32.mrb[0].mxu0
  %v1596 = vadd.f32 0.0, %v1595
  %v1597 = vpop.f32.mrb[0].mxu0
  %1598 = vmatprep.mubr.bf16.mxu0 0
  %1599 = vmatmul.mubr.bf16.gmra.mrb[0].mxu0 %v1514
  %v1600 = vpop.f32.mrb[0].mxu0
  %v1601 = vadd.f32 0.0, %v1600
  %v1602 = vpop.f32.mrb[0].mxu0
  %v1603 = vpop.f32.mrb[0].mxu0
  %v1604 = vadd.f32 0.0, %v1603
  %v1605 = vpop.f32.mrb[0].mxu0
  %1606 = vmatprep.mubr.bf16.mxu0 0
  %1607 = vmatmul.mubr.bf16.gmra.mrb[0].mxu0 %v1517
  %v1608 = vpop.f32.mrb[0].mxu0
  %v1609 = vadd.f32 0.0, %v1608
  %v1610 = vpop.f32.mrb[0].mxu0
  %v1611 = vpop.f32.mrb[0].mxu0
  %v1612 = vadd.f32 0.0, %v1611
  %v1613 = vpop.f32.mrb[0].mxu0
  %1614 = vmatprep.mubr.bf16.mxu0 0
  %1615 = vmatmul.mubr.bf16.gmra.mrb[0].mxu0 %v1520
  %v1616 = vpop.f32.mrb[0].mxu0
  %v1617 = vadd.f32 0.0, %v1616
  %v1618 = vpop.f32.mrb[0].mxu0
  %v1619 = vpop.f32.mrb[0].mxu0
  %v1620 = vadd.f32 0.0, %v1619
  %v1621 = vpop.f32.mrb[0].mxu0
  %1622 = vdwg.mxu0
  %v1623 = vadd.f32 %v485, %v1561
  %v1624 = vadd.f32 %v485, %v1564
  %v1625 = vadd.f32 %v485, %v1569
  %v1626 = vadd.f32 %v485, %v1572
  %v1627 = vadd.f32 %v485, %v1577
  %v1628 = vadd.f32 %v485, %v1580
  %v1629 = vadd.f32 %v485, %v1585
  %v1630 = vadd.f32 %v485, %v1588
  %v1631 = vadd.f32 %v485, %v1593
  %v1632 = vadd.f32 %v485, %v1596
  %v1633 = vadd.f32 %v485, %v1601
  %v1634 = vadd.f32 %v485, %v1604
  %v1635 = vadd.f32 %v485, %v1609
  %v1636 = vadd.f32 %v485, %v1612
  %v1637 = vadd.f32 %v485, %v1617
  %v1638 = vadd.f32 %v485, %v1620
  %1639 = vrot.lane.b32.xlu0 %v487, 120
  %v1640 = vpop.permute.xlu0 %1639
  %1641 = vrot.lane.b32.xlu0 %v487, 88
  %v1642 = vpop.permute.xlu0 %1641
  %v1644 = vsel %vm498, %v1640, 0
  %v1647 = vsel %vm498, %v1642, 0
  %1649 = vmatprep.subr.bf16.mxu0 0
  %1650 = vmatpush1.bf16.xpose.msra.mxu0 %v1647
  %1651 = vmatprep.subr.bf16.mxu0 0
  %1652 = vmatpush1.bf16.xpose.msra.mxu0 0
  %1653 = vmatprep.subr.bf16.mxu0 0
  %1654 = vmatpush1.bf16.xpose.msra.mxu0 0
  %1655 = vmatprep.subr.bf16.mxu0 0
  %1656 = vmatpush1.bf16.xpose.msra.mxu0 0
  %1657 = vmatprep.subr.bf16.mxu0 0
  %1658 = vmatpush1.bf16.xpose.msra.mxu0 0
  %1659 = vmatprep.subr.bf16.mxu0 0
  %1660 = vmatpush1.bf16.xpose.msra.mxu0 0
  %1661 = vmatprep.subr.bf16.mxu0 0
  %1662 = vmatpush1.bf16.xpose.msra.mxu0 0
  %1663 = vmatprep.subr.bf16.mxu0 0
  %1664 = vmatpush1.bf16.xpose.msra.mxu0 0
  %1665 = vmatprep.subr.bf16.mxu0 0
  %1666 = vmatpush1.bf16.xpose.msra.mxu0 0
  %1667 = vmatprep.subr.bf16.mxu0 0
  %1668 = vmatpush1.bf16.xpose.msra.mxu0 0
  %1669 = vmatprep.subr.bf16.mxu0 0
  %1670 = vmatpush1.bf16.xpose.msra.mxu0 0
  %1671 = vmatprep.subr.bf16.mxu0 0
  %1672 = vmatpush1.bf16.xpose.msra.mxu0 0
  %1673 = vmatprep.subr.bf16.mxu0 0
  %1674 = vmatpush1.bf16.xpose.msra.mxu0 0
  %1675 = vmatprep.subr.bf16.mxu0 0
  %1676 = vmatpush1.bf16.xpose.msra.mxu0 0
  %1677 = vmatprep.subr.bf16.mxu0 0
  %1678 = vmatpush1.bf16.xpose.msra.mxu0 0
  %1679 = vmatprep.subr.bf16.mxu0 0
  %1680 = vmatpush1.bf16.xpose.msra.mxu0 0
  %1681 = vmatprep.mubr.bf16.mxu0 0
  %1682 = vmatmul.mubr.bf16.gmra.mrb[0].mxu0 %v1644
  %v1683 = vpop.f32.mrb[0].mxu0
  %v1684 = vadd.f32 0.0, %v1683
  %v1685 = vpop.f32.mrb[0].mxu0
  %v1686 = vpop.f32.mrb[0].mxu0
  %v1687 = vadd.f32 0.0, %v1686
  %v1688 = vpop.f32.mrb[0].mxu0
  %1689 = vdwg.mxu0
  %1690 = vrot.lane.b32.xlu0 %v488, 120
  %v1691 = vpop.permute.xlu0 %1690
  %1692 = vrot.lane.b32.xlu0 %v488, 88
  %v1693 = vpop.permute.xlu0 %1692
  %v1695 = vsel %vm498, %v1691, 0
  %v1698 = vsel %vm498, %v1693, 0
  %1700 = vmatprep.subr.bf16.mxu0 0
  %1701 = vmatpush1.bf16.xpose.msra.mxu0 %v1698
  %1702 = vmatprep.subr.bf16.mxu0 0
  %1703 = vmatpush1.bf16.xpose.msra.mxu0 0
  %1704 = vmatprep.subr.bf16.mxu0 0
  %1705 = vmatpush1.bf16.xpose.msra.mxu0 0
  %1706 = vmatprep.subr.bf16.mxu0 0
  %1707 = vmatpush1.bf16.xpose.msra.mxu0 0
  %1708 = vmatprep.subr.bf16.mxu0 0
  %1709 = vmatpush1.bf16.xpose.msra.mxu0 0
  %1710 = vmatprep.subr.bf16.mxu0 0
  %1711 = vmatpush1.bf16.xpose.msra.mxu0 0
  %1712 = vmatprep.subr.bf16.mxu0 0
  %1713 = vmatpush1.bf16.xpose.msra.mxu0 0
  %1714 = vmatprep.subr.bf16.mxu0 0
  %1715 = vmatpush1.bf16.xpose.msra.mxu0 0
  %1716 = vmatprep.subr.bf16.mxu0 0
  %1717 = vmatpush1.bf16.xpose.msra.mxu0 0
  %1718 = vmatprep.subr.bf16.mxu0 0
  %1719 = vmatpush1.bf16.xpose.msra.mxu0 0
  %1720 = vmatprep.subr.bf16.mxu0 0
  %1721 = vmatpush1.bf16.xpose.msra.mxu0 0
  %1722 = vmatprep.subr.bf16.mxu0 0
  %1723 = vmatpush1.bf16.xpose.msra.mxu0 0
  %1724 = vmatprep.subr.bf16.mxu0 0
  %1725 = vmatpush1.bf16.xpose.msra.mxu0 0
  %1726 = vmatprep.subr.bf16.mxu0 0
  %1727 = vmatpush1.bf16.xpose.msra.mxu0 0
  %1728 = vmatprep.subr.bf16.mxu0 0
  %1729 = vmatpush1.bf16.xpose.msra.mxu0 0
  %1730 = vmatprep.subr.bf16.mxu0 0
  %1731 = vmatpush1.bf16.xpose.msra.mxu0 0
  %1732 = vmatprep.mubr.bf16.mxu0 0
  %1733 = vmatmul.mubr.bf16.gmra.mrb[0].mxu0 %v1695
  %v1734 = vpop.f32.mrb[0].mxu0
  %v1735 = vadd.f32 0.0, %v1734
  %v1736 = vpop.f32.mrb[0].mxu0
  %v1737 = vpop.f32.mrb[0].mxu0
  %v1738 = vadd.f32 0.0, %v1737
  %v1739 = vpop.f32.mrb[0].mxu0
  %1740 = vdwg.mxu0
  %1741 = vrot.lane.b32.xlu0 %v489, 120
  %v1742 = vpop.permute.xlu0 %1741
  %1743 = vrot.lane.b32.xlu0 %v489, 88
  %v1744 = vpop.permute.xlu0 %1743
  %v1746 = vsel %vm498, %v1742, 0
  %v1749 = vsel %vm498, %v1744, 0
  %1751 = vmatprep.subr.bf16.mxu0 0
  %1752 = vmatpush1.bf16.xpose.msra.mxu0 %v1749
  %1753 = vmatprep.subr.bf16.mxu0 0
  %1754 = vmatpush1.bf16.xpose.msra.mxu0 0
  %1755 = vmatprep.subr.bf16.mxu0 0
  %1756 = vmatpush1.bf16.xpose.msra.mxu0 0
  %1757 = vmatprep.subr.bf16.mxu0 0
  %1758 = vmatpush1.bf16.xpose.msra.mxu0 0
  %1759 = vmatprep.subr.bf16.mxu0 0
  %1760 = vmatpush1.bf16.xpose.msra.mxu0 0
  %1761 = vmatprep.subr.bf16.mxu0 0
  %1762 = vmatpush1.bf16.xpose.msra.mxu0 0
  %1763 = vmatprep.subr.bf16.mxu0 0
  %1764 = vmatpush1.bf16.xpose.msra.mxu0 0
  %1765 = vmatprep.subr.bf16.mxu0 0
  %1766 = vmatpush1.bf16.xpose.msra.mxu0 0
  %1767 = vmatprep.subr.bf16.mxu0 0
  %1768 = vmatpush1.bf16.xpose.msra.mxu0 0
  %1769 = vmatprep.subr.bf16.mxu0 0
  %1770 = vmatpush1.bf16.xpose.msra.mxu0 0
  %1771 = vmatprep.subr.bf16.mxu0 0
  %1772 = vmatpush1.bf16.xpose.msra.mxu0 0
  %1773 = vmatprep.subr.bf16.mxu0 0
  %1774 = vmatpush1.bf16.xpose.msra.mxu0 0
  %1775 = vmatprep.subr.bf16.mxu0 0
  %1776 = vmatpush1.bf16.xpose.msra.mxu0 0
  %1777 = vmatprep.subr.bf16.mxu0 0
  %1778 = vmatpush1.bf16.xpose.msra.mxu0 0
  %1779 = vmatprep.subr.bf16.mxu0 0
  %1780 = vmatpush1.bf16.xpose.msra.mxu0 0
  %1781 = vmatprep.subr.bf16.mxu0 0
  %1782 = vmatpush1.bf16.xpose.msra.mxu0 0
  %1783 = vmatprep.mubr.bf16.mxu0 0
  %1784 = vmatmul.mubr.bf16.gmra.mrb[0].mxu0 %v1746
  %v1785 = vpop.f32.mrb[0].mxu0
  %v1786 = vadd.f32 0.0, %v1785
  %v1787 = vpop.f32.mrb[0].mxu0
  %v1788 = vpop.f32.mrb[0].mxu0
  %v1789 = vadd.f32 0.0, %v1788
  %v1790 = vpop.f32.mrb[0].mxu0
  %1791 = vdwg.mxu0
  %1792 = vrot.lane.b32.xlu0 %v490, 120
  %v1793 = vpop.permute.xlu0 %1792
  %1794 = vrot.lane.b32.xlu0 %v490, 88
  %v1795 = vpop.permute.xlu0 %1794
  %v1797 = vsel %vm498, %v1793, 0
  %v1800 = vsel %vm498, %v1795, 0
  %1802 = vmatprep.subr.bf16.mxu0 0
  %1803 = vmatpush1.bf16.xpose.msra.mxu0 %v1800
  %1804 = vmatprep.subr.bf16.mxu0 0
  %1805 = vmatpush1.bf16.xpose.msra.mxu0 0
  %1806 = vmatprep.subr.bf16.mxu0 0
  %1807 = vmatpush1.bf16.xpose.msra.mxu0 0
  %1808 = vmatprep.subr.bf16.mxu0 0
  %1809 = vmatpush1.bf16.xpose.msra.mxu0 0
  %1810 = vmatprep.subr.bf16.mxu0 0
  %1811 = vmatpush1.bf16.xpose.msra.mxu0 0
  %1812 = vmatprep.subr.bf16.mxu0 0
  %1813 = vmatpush1.bf16.xpose.msra.mxu0 0
  %1814 = vmatprep.subr.bf16.mxu0 0
  %1815 = vmatpush1.bf16.xpose.msra.mxu0 0
  %1816 = vmatprep.subr.bf16.mxu0 0
  %1817 = vmatpush1.bf16.xpose.msra.mxu0 0
  %1818 = vmatprep.subr.bf16.mxu0 0
  %1819 = vmatpush1.bf16.xpose.msra.mxu0 0
  %1820 = vmatprep.subr.bf16.mxu0 0
  %1821 = vmatpush1.bf16.xpose.msra.mxu0 0
  %1822 = vmatprep.subr.bf16.mxu0 0
  %1823 = vmatpush1.bf16.xpose.msra.mxu0 0
  %1824 = vmatprep.subr.bf16.mxu0 0
  %1825 = vmatpush1.bf16.xpose.msra.mxu0 0
  %1826 = vmatprep.subr.bf16.mxu0 0
  %1827 = vmatpush1.bf16.xpose.msra.mxu0 0
  %1828 = vmatprep.subr.bf16.mxu0 0
  %1829 = vmatpush1.bf16.xpose.msra.mxu0 0
  %1830 = vmatprep.subr.bf16.mxu0 0
  %1831 = vmatpush1.bf16.xpose.msra.mxu0 0
  %1832 = vmatprep.subr.bf16.mxu0 0
  %1833 = vmatpush1.bf16.xpose.msra.mxu0 0
  %1834 = vmatprep.mubr.bf16.mxu0 0
  %1835 = vmatmul.mubr.bf16.gmra.mrb[0].mxu0 %v1797
  %v1836 = vpop.f32.mrb[0].mxu0
  %v1837 = vadd.f32 0.0, %v1836
  %v1838 = vpop.f32.mrb[0].mxu0
  %v1839 = vpop.f32.mrb[0].mxu0
  %v1840 = vadd.f32 0.0, %v1839
  %v1841 = vpop.f32.mrb[0].mxu0
  %1842 = vdwg.mxu0
  %1843 = vrot.lane.b32.xlu0 %v491, 120
  %v1844 = vpop.permute.xlu0 %1843
  %1845 = vrot.lane.b32.xlu0 %v491, 88
  %v1846 = vpop.permute.xlu0 %1845
  %v1848 = vsel %vm498, %v1844, 0
  %v1851 = vsel %vm498, %v1846, 0
  %1853 = vmatprep.subr.bf16.mxu0 0
  %1854 = vmatpush1.bf16.xpose.msra.mxu0 %v1851
  %1855 = vmatprep.subr.bf16.mxu0 0
  %1856 = vmatpush1.bf16.xpose.msra.mxu0 0
  %1857 = vmatprep.subr.bf16.mxu0 0
  %1858 = vmatpush1.bf16.xpose.msra.mxu0 0
  %1859 = vmatprep.subr.bf16.mxu0 0
  %1860 = vmatpush1.bf16.xpose.msra.mxu0 0
  %1861 = vmatprep.subr.bf16.mxu0 0
  %1862 = vmatpush1.bf16.xpose.msra.mxu0 0
  %1863 = vmatprep.subr.bf16.mxu0 0
  %1864 = vmatpush1.bf16.xpose.msra.mxu0 0
  %1865 = vmatprep.subr.bf16.mxu0 0
  %1866 = vmatpush1.bf16.xpose.msra.mxu0 0
  %1867 = vmatprep.subr.bf16.mxu0 0
  %1868 = vmatpush1.bf16.xpose.msra.mxu0 0
  %1869 = vmatprep.subr.bf16.mxu0 0
  %1870 = vmatpush1.bf16.xpose.msra.mxu0 0
  %1871 = vmatprep.subr.bf16.mxu0 0
  %1872 = vmatpush1.bf16.xpose.msra.mxu0 0
  %1873 = vmatprep.subr.bf16.mxu0 0
  %1874 = vmatpush1.bf16.xpose.msra.mxu0 0
  %1875 = vmatprep.subr.bf16.mxu0 0
  %1876 = vmatpush1.bf16.xpose.msra.mxu0 0
  %1877 = vmatprep.subr.bf16.mxu0 0
  %1878 = vmatpush1.bf16.xpose.msra.mxu0 0
  %1879 = vmatprep.subr.bf16.mxu0 0
  %1880 = vmatpush1.bf16.xpose.msra.mxu0 0
  %1881 = vmatprep.subr.bf16.mxu0 0
  %1882 = vmatpush1.bf16.xpose.msra.mxu0 0
  %1883 = vmatprep.subr.bf16.mxu0 0
  %1884 = vmatpush1.bf16.xpose.msra.mxu0 0
  %1885 = vmatprep.mubr.bf16.mxu0 0
  %1886 = vmatmul.mubr.bf16.gmra.mrb[0].mxu0 %v1848
  %v1887 = vpop.f32.mrb[0].mxu0
  %v1888 = vadd.f32 0.0, %v1887
  %v1889 = vpop.f32.mrb[0].mxu0
  %v1890 = vpop.f32.mrb[0].mxu0
  %v1891 = vadd.f32 0.0, %v1890
  %v1892 = vpop.f32.mrb[0].mxu0
  %1893 = vdwg.mxu0
  %1894 = vrot.lane.b32.xlu0 %v492, 120
  %v1895 = vpop.permute.xlu0 %1894
  %1896 = vrot.lane.b32.xlu0 %v492, 88
  %v1897 = vpop.permute.xlu0 %1896
  %v1899 = vsel %vm498, %v1895, 0
  %v1902 = vsel %vm498, %v1897, 0
  %1904 = vmatprep.subr.bf16.mxu0 0
  %1905 = vmatpush1.bf16.xpose.msra.mxu0 %v1902
  %1906 = vmatprep.subr.bf16.mxu0 0
  %1907 = vmatpush1.bf16.xpose.msra.mxu0 0
  %1908 = vmatprep.subr.bf16.mxu0 0
  %1909 = vmatpush1.bf16.xpose.msra.mxu0 0
  %1910 = vmatprep.subr.bf16.mxu0 0
  %1911 = vmatpush1.bf16.xpose.msra.mxu0 0
  %1912 = vmatprep.subr.bf16.mxu0 0
  %1913 = vmatpush1.bf16.xpose.msra.mxu0 0
  %1914 = vmatprep.subr.bf16.mxu0 0
  %1915 = vmatpush1.bf16.xpose.msra.mxu0 0
  %1916 = vmatprep.subr.bf16.mxu0 0
  %1917 = vmatpush1.bf16.xpose.msra.mxu0 0
  %1918 = vmatprep.subr.bf16.mxu0 0
  %1919 = vmatpush1.bf16.xpose.msra.mxu0 0
  %1920 = vmatprep.subr.bf16.mxu0 0
  %1921 = vmatpush1.bf16.xpose.msra.mxu0 0
  %1922 = vmatprep.subr.bf16.mxu0 0
  %1923 = vmatpush1.bf16.xpose.msra.mxu0 0
  %1924 = vmatprep.subr.bf16.mxu0 0
  %1925 = vmatpush1.bf16.xpose.msra.mxu0 0
  %1926 = vmatprep.subr.bf16.mxu0 0
  %1927 = vmatpush1.bf16.xpose.msra.mxu0 0
  %1928 = vmatprep.subr.bf16.mxu0 0
  %1929 = vmatpush1.bf16.xpose.msra.mxu0 0
  %1930 = vmatprep.subr.bf16.mxu0 0
  %1931 = vmatpush1.bf16.xpose.msra.mxu0 0
  %1932 = vmatprep.subr.bf16.mxu0 0
  %1933 = vmatpush1.bf16.xpose.msra.mxu0 0
  %1934 = vmatprep.subr.bf16.mxu0 0
  %1935 = vmatpush1.bf16.xpose.msra.mxu0 0
  %1936 = vmatprep.mubr.bf16.mxu0 0
  %1937 = vmatmul.mubr.bf16.gmra.mrb[0].mxu0 %v1899
  %v1938 = vpop.f32.mrb[0].mxu0
  %v1939 = vadd.f32 0.0, %v1938
  %v1940 = vpop.f32.mrb[0].mxu0
  %v1941 = vpop.f32.mrb[0].mxu0
  %v1942 = vadd.f32 0.0, %v1941
  %v1943 = vpop.f32.mrb[0].mxu0
  %1944 = vdwg.mxu0
  %1945 = vrot.lane.b32.xlu0 %v493, 120
  %v1946 = vpop.permute.xlu0 %1945
  %1947 = vrot.lane.b32.xlu0 %v493, 88
  %v1948 = vpop.permute.xlu0 %1947
  %v1950 = vsel %vm498, %v1946, 0
  %v1953 = vsel %vm498, %v1948, 0
  %1955 = vmatprep.subr.bf16.mxu0 0
  %1956 = vmatpush1.bf16.xpose.msra.mxu0 %v1953
  %1957 = vmatprep.subr.bf16.mxu0 0
  %1958 = vmatpush1.bf16.xpose.msra.mxu0 0
  %1959 = vmatprep.subr.bf16.mxu0 0
  %1960 = vmatpush1.bf16.xpose.msra.mxu0 0
  %1961 = vmatprep.subr.bf16.mxu0 0
  %1962 = vmatpush1.bf16.xpose.msra.mxu0 0
  %1963 = vmatprep.subr.bf16.mxu0 0
  %1964 = vmatpush1.bf16.xpose.msra.mxu0 0
  %1965 = vmatprep.subr.bf16.mxu0 0
  %1966 = vmatpush1.bf16.xpose.msra.mxu0 0
  %1967 = vmatprep.subr.bf16.mxu0 0
  %1968 = vmatpush1.bf16.xpose.msra.mxu0 0
  %1969 = vmatprep.subr.bf16.mxu0 0
  %1970 = vmatpush1.bf16.xpose.msra.mxu0 0
  %1971 = vmatprep.subr.bf16.mxu0 0
  %1972 = vmatpush1.bf16.xpose.msra.mxu0 0
  %1973 = vmatprep.subr.bf16.mxu0 0
  %1974 = vmatpush1.bf16.xpose.msra.mxu0 0
  %1975 = vmatprep.subr.bf16.mxu0 0
  %1976 = vmatpush1.bf16.xpose.msra.mxu0 0
  %1977 = vmatprep.subr.bf16.mxu0 0
  %1978 = vmatpush1.bf16.xpose.msra.mxu0 0
  %1979 = vmatprep.subr.bf16.mxu0 0
  %1980 = vmatpush1.bf16.xpose.msra.mxu0 0
  %1981 = vmatprep.subr.bf16.mxu0 0
  %1982 = vmatpush1.bf16.xpose.msra.mxu0 0
  %1983 = vmatprep.subr.bf16.mxu0 0
  %1984 = vmatpush1.bf16.xpose.msra.mxu0 0
  %1985 = vmatprep.subr.bf16.mxu0 0
  %1986 = vmatpush1.bf16.xpose.msra.mxu0 0
  %1987 = vmatprep.mubr.bf16.mxu0 0
  %1988 = vmatmul.mubr.bf16.gmra.mrb[0].mxu0 %v1950
  %v1989 = vpop.f32.mrb[0].mxu0
  %v1990 = vadd.f32 0.0, %v1989
  %v1991 = vpop.f32.mrb[0].mxu0
  %v1992 = vpop.f32.mrb[0].mxu0
  %v1993 = vadd.f32 0.0, %v1992
  %v1994 = vpop.f32.mrb[0].mxu0
  %1995 = vdwg.mxu0
  %1996 = vrot.lane.b32.xlu0 %v494, 120
  %v1997 = vpop.permute.xlu0 %1996
  %1998 = vrot.lane.b32.xlu0 %v494, 88
  %v1999 = vpop.permute.xlu0 %1998
  %v2001 = vsel %vm498, %v1997, 0
  %v2004 = vsel %vm498, %v1999, 0
  %2006 = vmatprep.subr.bf16.mxu0 0
  %2007 = vmatpush1.bf16.xpose.msra.mxu0 %v2004
  %2008 = vmatprep.subr.bf16.mxu0 0
  %2009 = vmatpush1.bf16.xpose.msra.mxu0 0
  %2010 = vmatprep.subr.bf16.mxu0 0
  %2011 = vmatpush1.bf16.xpose.msra.mxu0 0
  %2012 = vmatprep.subr.bf16.mxu0 0
  %2013 = vmatpush1.bf16.xpose.msra.mxu0 0
  %2014 = vmatprep.subr.bf16.mxu0 0
  %2015 = vmatpush1.bf16.xpose.msra.mxu0 0
  %2016 = vmatprep.subr.bf16.mxu0 0
  %2017 = vmatpush1.bf16.xpose.msra.mxu0 0
  %2018 = vmatprep.subr.bf16.mxu0 0
  %2019 = vmatpush1.bf16.xpose.msra.mxu0 0
  %2020 = vmatprep.subr.bf16.mxu0 0
  %2021 = vmatpush1.bf16.xpose.msra.mxu0 0
  %2022 = vmatprep.subr.bf16.mxu0 0
  %2023 = vmatpush1.bf16.xpose.msra.mxu0 0
  %2024 = vmatprep.subr.bf16.mxu0 0
  %2025 = vmatpush1.bf16.xpose.msra.mxu0 0
  %2026 = vmatprep.subr.bf16.mxu0 0
  %2027 = vmatpush1.bf16.xpose.msra.mxu0 0
  %2028 = vmatprep.subr.bf16.mxu0 0
  %2029 = vmatpush1.bf16.xpose.msra.mxu0 0
  %2030 = vmatprep.subr.bf16.mxu0 0
  %2031 = vmatpush1.bf16.xpose.msra.mxu0 0
  %2032 = vmatprep.subr.bf16.mxu0 0
  %2033 = vmatpush1.bf16.xpose.msra.mxu0 0
  %2034 = vmatprep.subr.bf16.mxu0 0
  %2035 = vmatpush1.bf16.xpose.msra.mxu0 0
  %2036 = vmatprep.subr.bf16.mxu0 0
  %2037 = vmatpush1.bf16.xpose.msra.mxu0 0
  %2038 = vmatprep.mubr.bf16.mxu0 0
  %2039 = vmatmul.mubr.bf16.gmra.mrb[0].mxu0 %v2001
  %v2040 = vpop.f32.mrb[0].mxu0
  %v2041 = vadd.f32 0.0, %v2040
  %v2042 = vpop.f32.mrb[0].mxu0
  %v2043 = vpop.f32.mrb[0].mxu0
  %v2044 = vadd.f32 0.0, %v2043
  %v2045 = vpop.f32.mrb[0].mxu0
  %2046 = vdwg.mxu0
  %v2047 = vmul.f32 %v1684, 0.35355338
  %v2048 = vmul.f32 %v1687, 0.35355338
  %v2049 = vmul.f32 %v1735, 0.35355338
  %v2050 = vmul.f32 %v1738, 0.35355338
  %v2051 = vmul.f32 %v1786, 0.35355338
  %v2052 = vmul.f32 %v1789, 0.35355338
  %v2053 = vmul.f32 %v1837, 0.35355338
  %v2054 = vmul.f32 %v1840, 0.35355338
  %v2055 = vmul.f32 %v1888, 0.35355338
  %v2056 = vmul.f32 %v1891, 0.35355338
  %v2057 = vmul.f32 %v1939, 0.35355338
  %v2058 = vmul.f32 %v1942, 0.35355338
  %v2059 = vmul.f32 %v1990, 0.35355338
  %v2060 = vmul.f32 %v1993, 0.35355338
  %v2061 = vmul.f32 %v2041, 0.35355338
  %v2062 = vmul.f32 %v2044, 0.35355338
  %v2063 = vadd.f32 %v2047, %v474
  %v2064 = vadd.f32 %v2048, %v475
  %v2065 = vadd.f32 %v2049, %v474
  %v2066 = vadd.f32 %v2050, %v475
  %v2067 = vadd.f32 %v2051, %v474
  %v2068 = vadd.f32 %v2052, %v475
  %v2069 = vadd.f32 %v2053, %v474
  %v2070 = vadd.f32 %v2054, %v475
  %v2071 = vadd.f32 %v2055, %v474
  %v2072 = vadd.f32 %v2056, %v475
  %v2073 = vadd.f32 %v2057, %v474
  %v2074 = vadd.f32 %v2058, %v475
  %v2075 = vadd.f32 %v2059, %v474
  %v2076 = vadd.f32 %v2060, %v475
  %v2077 = vadd.f32 %v2061, %v474
  %v2078 = vadd.f32 %v2062, %v475
  %v2079 = vsel %vm928, %v2063, -inf
  %2080 = vmax.xlane.f32.xlu0 %v2079
  %v2081 = vpop.xlane.xlu0 %2080
  %v2082 = vsel %vm928, %v2064, -inf
  %2083 = vmax.xlane.f32.xlu0 %v2082
  %v2084 = vpop.xlane.xlu0 %2083
  %v2085 = vsel %vm928, %v2065, -inf
  %2086 = vmax.xlane.f32.xlu0 %v2085
  %v2087 = vpop.xlane.xlu0 %2086
  %v2088 = vsel %vm928, %v2066, -inf
  %2089 = vmax.xlane.f32.xlu0 %v2088
  %v2090 = vpop.xlane.xlu0 %2089
  %v2091 = vsel %vm928, %v2067, -inf
  %2092 = vmax.xlane.f32.xlu0 %v2091
  %v2093 = vpop.xlane.xlu0 %2092
  %v2094 = vsel %vm928, %v2068, -inf
  %2095 = vmax.xlane.f32.xlu0 %v2094
  %v2096 = vpop.xlane.xlu0 %2095
  %v2097 = vsel %vm928, %v2069, -inf
  %2098 = vmax.xlane.f32.xlu0 %v2097
  %v2099 = vpop.xlane.xlu0 %2098
  %v2100 = vsel %vm928, %v2070, -inf
  %2101 = vmax.xlane.f32.xlu0 %v2100
  %v2102 = vpop.xlane.xlu0 %2101
  %v2103 = vsel %vm928, %v2071, -inf
  %2104 = vmax.xlane.f32.xlu0 %v2103
  %v2105 = vpop.xlane.xlu0 %2104
  %v2106 = vsel %vm928, %v2072, -inf
  %2107 = vmax.xlane.f32.xlu0 %v2106
  %v2108 = vpop.xlane.xlu0 %2107
  %v2109 = vsel %vm928, %v2073, -inf
  %2110 = vmax.xlane.f32.xlu0 %v2109
  %v2111 = vpop.xlane.xlu0 %2110
  %v2112 = vsel %vm928, %v2074, -inf
  %2113 = vmax.xlane.f32.xlu0 %v2112
  %v2114 = vpop.xlane.xlu0 %2113
  %v2115 = vsel %vm928, %v2075, -inf
  %2116 = vmax.xlane.f32.xlu0 %v2115
  %v2117 = vpop.xlane.xlu0 %2116
  %v2118 = vsel %vm928, %v2076, -inf
  %2119 = vmax.xlane.f32.xlu0 %v2118
  %v2120 = vpop.xlane.xlu0 %2119
  %v2121 = vsel %vm928, %v2077, -inf
  %2122 = vmax.xlane.f32.xlu0 %v2121
  %v2123 = vpop.xlane.xlu0 %2122
  %v2124 = vsel %vm928, %v2078, -inf
  %2125 = vmax.xlane.f32.xlu0 %v2124
  %v2126 = vpop.xlane.xlu0 %2125
  %v2127 = vsub.f32 %v2063, %v2081
  %v2128 = vsub.f32 %v2064, %v2084
  %v2129 = vsub.f32 %v2065, %v2087
  %v2130 = vsub.f32 %v2066, %v2090
  %v2131 = vsub.f32 %v2067, %v2093
  %v2132 = vsub.f32 %v2068, %v2096
  %v2133 = vsub.f32 %v2069, %v2099
  %v2134 = vsub.f32 %v2070, %v2102
  %v2135 = vsub.f32 %v2071, %v2105
  %v2136 = vsub.f32 %v2072, %v2108
  %v2137 = vsub.f32 %v2073, %v2111
  %v2138 = vsub.f32 %v2074, %v2114
  %v2139 = vsub.f32 %v2075, %v2117
  %v2140 = vsub.f32 %v2076, %v2120
  %v2141 = vsub.f32 %v2077, %v2123
  %v2142 = vsub.f32 %v2078, %v2126
  %v2143 = vmul.f32 %v2127, 1.442695
  %v2144 = vpow.pop %v2143
  %v2145 = vmul.f32 %v2128, 1.442695
  %v2146 = vpow.pop %v2145
  %v2147 = vmul.f32 %v2129, 1.442695
  %v2148 = vpow.pop %v2147
  %v2149 = vmul.f32 %v2130, 1.442695
  %v2150 = vpow.pop %v2149
  %v2151 = vmul.f32 %v2131, 1.442695
  %v2152 = vpow.pop %v2151
  %v2153 = vmul.f32 %v2132, 1.442695
  %v2154 = vpow.pop %v2153
  %v2155 = vmul.f32 %v2133, 1.442695
  %v2156 = vpow.pop %v2155
  %v2157 = vmul.f32 %v2134, 1.442695
  %v2158 = vpow.pop %v2157
  %v2159 = vmul.f32 %v2135, 1.442695
  %v2160 = vpow.pop %v2159
  %v2161 = vmul.f32 %v2136, 1.442695
  %v2162 = vpow.pop %v2161
  %v2163 = vmul.f32 %v2137, 1.442695
  %v2164 = vpow.pop %v2163
  %v2165 = vmul.f32 %v2138, 1.442695
  %v2166 = vpow.pop %v2165
  %v2167 = vmul.f32 %v2139, 1.442695
  %v2168 = vpow.pop %v2167
  %v2169 = vmul.f32 %v2140, 1.442695
  %v2170 = vpow.pop %v2169
  %v2171 = vmul.f32 %v2141, 1.442695
  %v2172 = vpow.pop %v2171
  %v2173 = vmul.f32 %v2142, 1.442695
  %v2174 = vpow.pop %v2173
  %v2175 = vsel %vm928, %v2144, 0.0
  %2176 = vadd.xlane.f32.xlu0 %v2175
  %v2177 = vpop.xlane.xlu0 %2176
  %v2178 = vsel %vm928, %v2146, 0.0
  %2179 = vadd.xlane.f32.xlu0 %v2178
  %v2180 = vpop.xlane.xlu0 %2179
  %v2181 = vsel %vm928, %v2148, 0.0
  %2182 = vadd.xlane.f32.xlu0 %v2181
  %v2183 = vpop.xlane.xlu0 %2182
  %v2184 = vsel %vm928, %v2150, 0.0
  %2185 = vadd.xlane.f32.xlu0 %v2184
  %v2186 = vpop.xlane.xlu0 %2185
  %v2187 = vsel %vm928, %v2152, 0.0
  %2188 = vadd.xlane.f32.xlu0 %v2187
  %v2189 = vpop.xlane.xlu0 %2188
  %v2190 = vsel %vm928, %v2154, 0.0
  %2191 = vadd.xlane.f32.xlu0 %v2190
  %v2192 = vpop.xlane.xlu0 %2191
  %v2193 = vsel %vm928, %v2156, 0.0
  %2194 = vadd.xlane.f32.xlu0 %v2193
  %v2195 = vpop.xlane.xlu0 %2194
  %v2196 = vsel %vm928, %v2158, 0.0
  %2197 = vadd.xlane.f32.xlu0 %v2196
  %v2198 = vpop.xlane.xlu0 %2197
  %v2199 = vsel %vm928, %v2160, 0.0
  %2200 = vadd.xlane.f32.xlu0 %v2199
  %v2201 = vpop.xlane.xlu0 %2200
  %v2202 = vsel %vm928, %v2162, 0.0
  %2203 = vadd.xlane.f32.xlu0 %v2202
  %v2204 = vpop.xlane.xlu0 %2203
  %v2205 = vsel %vm928, %v2164, 0.0
  %2206 = vadd.xlane.f32.xlu0 %v2205
  %v2207 = vpop.xlane.xlu0 %2206
  %v2208 = vsel %vm928, %v2166, 0.0
  %2209 = vadd.xlane.f32.xlu0 %v2208
  %v2210 = vpop.xlane.xlu0 %2209
  %v2211 = vsel %vm928, %v2168, 0.0
  %2212 = vadd.xlane.f32.xlu0 %v2211
  %v2213 = vpop.xlane.xlu0 %2212
  %v2214 = vsel %vm928, %v2170, 0.0
  %2215 = vadd.xlane.f32.xlu0 %v2214
  %v2216 = vpop.xlane.xlu0 %2215
  %v2217 = vsel %vm928, %v2172, 0.0
  %2218 = vadd.xlane.f32.xlu0 %v2217
  %v2219 = vpop.xlane.xlu0 %2218
  %v2220 = vsel %vm928, %v2174, 0.0
  %2221 = vadd.xlane.f32.xlu0 %v2220
  %v2222 = vpop.xlane.xlu0 %2221
  %v2223 = vrcp.pop %v2177
  %v2224 = vrcp.pop %v2180
  %v2225 = vrcp.pop %v2183
  %v2226 = vrcp.pop %v2186
  %v2227 = vrcp.pop %v2189
  %v2228 = vrcp.pop %v2192
  %v2229 = vrcp.pop %v2195
  %v2230 = vrcp.pop %v2198
  %v2231 = vrcp.pop %v2201
  %v2232 = vrcp.pop %v2204
  %v2233 = vrcp.pop %v2207
  %v2234 = vrcp.pop %v2210
  %v2235 = vrcp.pop %v2213
  %v2236 = vrcp.pop %v2216
  %v2237 = vrcp.pop %v2219
  %v2238 = vrcp.pop %v2222
  %v2239 = vmul.f32 %v2144, %v2223
  %v2240 = vmul.f32 %v2146, %v2224
  %v2241 = vmul.f32 %v2148, %v2225
  %v2242 = vmul.f32 %v2150, %v2226
  %v2243 = vmul.f32 %v2152, %v2227
  %v2244 = vmul.f32 %v2154, %v2228
  %v2245 = vmul.f32 %v2156, %v2229
  %v2246 = vmul.f32 %v2158, %v2230
  %v2247 = vmul.f32 %v2160, %v2231
  %v2248 = vmul.f32 %v2162, %v2232
  %v2249 = vmul.f32 %v2164, %v2233
  %v2250 = vmul.f32 %v2166, %v2234
  %v2251 = vmul.f32 %v2168, %v2235
  %v2252 = vmul.f32 %v2170, %v2236
  %v2253 = vmul.f32 %v2172, %v2237
  %v2254 = vmul.f32 %v2174, %v2238
  %v2255 = vpack.c.bf16 %v2240, %v2239
  %v2256 = vpack.c.bf16 %v2242, %v2241
  %v2257 = vpack.c.bf16 %v2244, %v2243
  %v2258 = vpack.c.bf16 %v2246, %v2245
  %v2259 = vpack.c.bf16 %v2248, %v2247
  %v2260 = vpack.c.bf16 %v2250, %v2249
  %v2261 = vpack.c.bf16 %v2252, %v2251
  %v2262 = vpack.c.bf16 %v2254, %v2253
  %2263 = vrot.lane.b32.xlu0 %v487, 56
  %v2264 = vpop.permute.xlu0 %2263
  %v2267 = vsel %vm928, %v2255, 0
  %2269 = vmatprep.subr.bf16.mxu0 0
  %2270 = vmatpush1.bf16.msra.mxu0 %v2264
  %2271 = vmatprep.subr.bf16.mxu0 0
  %2272 = vmatpush1.bf16.msra.mxu0 0
  %2273 = vmatprep.subr.bf16.mxu0 0
  %2274 = vmatpush1.bf16.msra.mxu0 0
  %2275 = vmatprep.subr.bf16.mxu0 0
  %2276 = vmatpush1.bf16.msra.mxu0 0
  %2277 = vmatprep.subr.bf16.mxu0 0
  %2278 = vmatpush1.bf16.msra.mxu0 0
  %2279 = vmatprep.subr.bf16.mxu0 0
  %2280 = vmatpush1.bf16.msra.mxu0 0
  %2281 = vmatprep.subr.bf16.mxu0 0
  %2282 = vmatpush1.bf16.msra.mxu0 0
  %2283 = vmatprep.subr.bf16.mxu0 0
  %2284 = vmatpush1.bf16.msra.mxu0 0
  %2285 = vmatprep.subr.bf16.mxu0 0
  %2286 = vmatpush1.bf16.msra.mxu0 0
  %2287 = vmatprep.subr.bf16.mxu0 0
  %2288 = vmatpush1.bf16.msra.mxu0 0
  %2289 = vmatprep.subr.bf16.mxu0 0
  %2290 = vmatpush1.bf16.msra.mxu0 0
  %2291 = vmatprep.subr.bf16.mxu0 0
  %2292 = vmatpush1.bf16.msra.mxu0 0
  %2293 = vmatprep.subr.bf16.mxu0 0
  %2294 = vmatpush1.bf16.msra.mxu0 0
  %2295 = vmatprep.subr.bf16.mxu0 0
  %2296 = vmatpush1.bf16.msra.mxu0 0
  %2297 = vmatprep.subr.bf16.mxu0 0
  %2298 = vmatpush1.bf16.msra.mxu0 0
  %2299 = vmatprep.subr.bf16.mxu0 0
  %2300 = vmatpush1.bf16.msra.mxu0 0
  %2301 = vmatprep.mubr.bf16.mxu0 0
  %2302 = vmatmul.mubr.bf16.gmra.mrb[0].mxu0 %v2267
  %v2303 = vpop.f32.mrb[0].mxu0
  %v2304 = vadd.f32 0.0, %v2303
  %v2305 = vpop.f32.mrb[0].mxu0
  %v2306 = vpop.f32.mrb[0].mxu0
  %v2307 = vadd.f32 0.0, %v2306
  %v2308 = vpop.f32.mrb[0].mxu0
  %2309 = vdwg.mxu0
  %2310 = vrot.lane.b32.xlu0 %v488, 56
  %v2311 = vpop.permute.xlu0 %2310
  %v2314 = vsel %vm928, %v2256, 0
  %2316 = vmatprep.subr.bf16.mxu0 0
  %2317 = vmatpush1.bf16.msra.mxu0 %v2311
  %2318 = vmatprep.subr.bf16.mxu0 0
  %2319 = vmatpush1.bf16.msra.mxu0 0
  %2320 = vmatprep.subr.bf16.mxu0 0
  %2321 = vmatpush1.bf16.msra.mxu0 0
  %2322 = vmatprep.subr.bf16.mxu0 0
  %2323 = vmatpush1.bf16.msra.mxu0 0
  %2324 = vmatprep.subr.bf16.mxu0 0
  %2325 = vmatpush1.bf16.msra.mxu0 0
  %2326 = vmatprep.subr.bf16.mxu0 0
  %2327 = vmatpush1.bf16.msra.mxu0 0
  %2328 = vmatprep.subr.bf16.mxu0 0
  %2329 = vmatpush1.bf16.msra.mxu0 0
  %2330 = vmatprep.subr.bf16.mxu0 0
  %2331 = vmatpush1.bf16.msra.mxu0 0
  %2332 = vmatprep.subr.bf16.mxu0 0
  %2333 = vmatpush1.bf16.msra.mxu0 0
  %2334 = vmatprep.subr.bf16.mxu0 0
  %2335 = vmatpush1.bf16.msra.mxu0 0
  %2336 = vmatprep.subr.bf16.mxu0 0
  %2337 = vmatpush1.bf16.msra.mxu0 0
  %2338 = vmatprep.subr.bf16.mxu0 0
  %2339 = vmatpush1.bf16.msra.mxu0 0
  %2340 = vmatprep.subr.bf16.mxu0 0
  %2341 = vmatpush1.bf16.msra.mxu0 0
  %2342 = vmatprep.subr.bf16.mxu0 0
  %2343 = vmatpush1.bf16.msra.mxu0 0
  %2344 = vmatprep.subr.bf16.mxu0 0
  %2345 = vmatpush1.bf16.msra.mxu0 0
  %2346 = vmatprep.subr.bf16.mxu0 0
  %2347 = vmatpush1.bf16.msra.mxu0 0
  %2348 = vmatprep.mubr.bf16.mxu0 0
  %2349 = vmatmul.mubr.bf16.gmra.mrb[0].mxu0 %v2314
  %v2350 = vpop.f32.mrb[0].mxu0
  %v2351 = vadd.f32 0.0, %v2350
  %v2352 = vpop.f32.mrb[0].mxu0
  %v2353 = vpop.f32.mrb[0].mxu0
  %v2354 = vadd.f32 0.0, %v2353
  %v2355 = vpop.f32.mrb[0].mxu0
  %2356 = vdwg.mxu0
  %2357 = vrot.lane.b32.xlu0 %v489, 56
  %v2358 = vpop.permute.xlu0 %2357
  %v2361 = vsel %vm928, %v2257, 0
  %2363 = vmatprep.subr.bf16.mxu0 0
  %2364 = vmatpush1.bf16.msra.mxu0 %v2358
  %2365 = vmatprep.subr.bf16.mxu0 0
  %2366 = vmatpush1.bf16.msra.mxu0 0
  %2367 = vmatprep.subr.bf16.mxu0 0
  %2368 = vmatpush1.bf16.msra.mxu0 0
  %2369 = vmatprep.subr.bf16.mxu0 0
  %2370 = vmatpush1.bf16.msra.mxu0 0
  %2371 = vmatprep.subr.bf16.mxu0 0
  %2372 = vmatpush1.bf16.msra.mxu0 0
  %2373 = vmatprep.subr.bf16.mxu0 0
  %2374 = vmatpush1.bf16.msra.mxu0 0
  %2375 = vmatprep.subr.bf16.mxu0 0
  %2376 = vmatpush1.bf16.msra.mxu0 0
  %2377 = vmatprep.subr.bf16.mxu0 0
  %2378 = vmatpush1.bf16.msra.mxu0 0
  %2379 = vmatprep.subr.bf16.mxu0 0
  %2380 = vmatpush1.bf16.msra.mxu0 0
  %2381 = vmatprep.subr.bf16.mxu0 0
  %2382 = vmatpush1.bf16.msra.mxu0 0
  %2383 = vmatprep.subr.bf16.mxu0 0
  %2384 = vmatpush1.bf16.msra.mxu0 0
  %2385 = vmatprep.subr.bf16.mxu0 0
  %2386 = vmatpush1.bf16.msra.mxu0 0
  %2387 = vmatprep.subr.bf16.mxu0 0
  %2388 = vmatpush1.bf16.msra.mxu0 0
  %2389 = vmatprep.subr.bf16.mxu0 0
  %2390 = vmatpush1.bf16.msra.mxu0 0
  %2391 = vmatprep.subr.bf16.mxu0 0
  %2392 = vmatpush1.bf16.msra.mxu0 0
  %2393 = vmatprep.subr.bf16.mxu0 0
  %2394 = vmatpush1.bf16.msra.mxu0 0
  %2395 = vmatprep.mubr.bf16.mxu0 0
  %2396 = vmatmul.mubr.bf16.gmra.mrb[0].mxu0 %v2361
  %v2397 = vpop.f32.mrb[0].mxu0
  %v2398 = vadd.f32 0.0, %v2397
  %v2399 = vpop.f32.mrb[0].mxu0
  %v2400 = vpop.f32.mrb[0].mxu0
  %v2401 = vadd.f32 0.0, %v2400
  %v2402 = vpop.f32.mrb[0].mxu0
  %2403 = vdwg.mxu0
  %2404 = vrot.lane.b32.xlu0 %v490, 56
  %v2405 = vpop.permute.xlu0 %2404
  %v2408 = vsel %vm928, %v2258, 0
  %2410 = vmatprep.subr.bf16.mxu0 0
  %2411 = vmatpush1.bf16.msra.mxu0 %v2405
  %2412 = vmatprep.subr.bf16.mxu0 0
  %2413 = vmatpush1.bf16.msra.mxu0 0
  %2414 = vmatprep.subr.bf16.mxu0 0
  %2415 = vmatpush1.bf16.msra.mxu0 0
  %2416 = vmatprep.subr.bf16.mxu0 0
  %2417 = vmatpush1.bf16.msra.mxu0 0
  %2418 = vmatprep.subr.bf16.mxu0 0
  %2419 = vmatpush1.bf16.msra.mxu0 0
  %2420 = vmatprep.subr.bf16.mxu0 0
  %2421 = vmatpush1.bf16.msra.mxu0 0
  %2422 = vmatprep.subr.bf16.mxu0 0
  %2423 = vmatpush1.bf16.msra.mxu0 0
  %2424 = vmatprep.subr.bf16.mxu0 0
  %2425 = vmatpush1.bf16.msra.mxu0 0
  %2426 = vmatprep.subr.bf16.mxu0 0
  %2427 = vmatpush1.bf16.msra.mxu0 0
  %2428 = vmatprep.subr.bf16.mxu0 0
  %2429 = vmatpush1.bf16.msra.mxu0 0
  %2430 = vmatprep.subr.bf16.mxu0 0
  %2431 = vmatpush1.bf16.msra.mxu0 0
  %2432 = vmatprep.subr.bf16.mxu0 0
  %2433 = vmatpush1.bf16.msra.mxu0 0
  %2434 = vmatprep.subr.bf16.mxu0 0
  %2435 = vmatpush1.bf16.msra.mxu0 0
  %2436 = vmatprep.subr.bf16.mxu0 0
  %2437 = vmatpush1.bf16.msra.mxu0 0
  %2438 = vmatprep.subr.bf16.mxu0 0
  %2439 = vmatpush1.bf16.msra.mxu0 0
  %2440 = vmatprep.subr.bf16.mxu0 0
  %2441 = vmatpush1.bf16.msra.mxu0 0
  %2442 = vmatprep.mubr.bf16.mxu0 0
  %2443 = vmatmul.mubr.bf16.gmra.mrb[0].mxu0 %v2408
  %v2444 = vpop.f32.mrb[0].mxu0
  %v2445 = vadd.f32 0.0, %v2444
  %v2446 = vpop.f32.mrb[0].mxu0
  %v2447 = vpop.f32.mrb[0].mxu0
  %v2448 = vadd.f32 0.0, %v2447
  %v2449 = vpop.f32.mrb[0].mxu0
  %2450 = vdwg.mxu0
  %2451 = vrot.lane.b32.xlu0 %v491, 56
  %v2452 = vpop.permute.xlu0 %2451
  %v2455 = vsel %vm928, %v2259, 0
  %2457 = vmatprep.subr.bf16.mxu0 0
  %2458 = vmatpush1.bf16.msra.mxu0 %v2452
  %2459 = vmatprep.subr.bf16.mxu0 0
  %2460 = vmatpush1.bf16.msra.mxu0 0
  %2461 = vmatprep.subr.bf16.mxu0 0
  %2462 = vmatpush1.bf16.msra.mxu0 0
  %2463 = vmatprep.subr.bf16.mxu0 0
  %2464 = vmatpush1.bf16.msra.mxu0 0
  %2465 = vmatprep.subr.bf16.mxu0 0
  %2466 = vmatpush1.bf16.msra.mxu0 0
  %2467 = vmatprep.subr.bf16.mxu0 0
  %2468 = vmatpush1.bf16.msra.mxu0 0
  %2469 = vmatprep.subr.bf16.mxu0 0
  %2470 = vmatpush1.bf16.msra.mxu0 0
  %2471 = vmatprep.subr.bf16.mxu0 0
  %2472 = vmatpush1.bf16.msra.mxu0 0
  %2473 = vmatprep.subr.bf16.mxu0 0
  %2474 = vmatpush1.bf16.msra.mxu0 0
  %2475 = vmatprep.subr.bf16.mxu0 0
  %2476 = vmatpush1.bf16.msra.mxu0 0
  %2477 = vmatprep.subr.bf16.mxu0 0
  %2478 = vmatpush1.bf16.msra.mxu0 0
  %2479 = vmatprep.subr.bf16.mxu0 0
  %2480 = vmatpush1.bf16.msra.mxu0 0
  %2481 = vmatprep.subr.bf16.mxu0 0
  %2482 = vmatpush1.bf16.msra.mxu0 0
  %2483 = vmatprep.subr.bf16.mxu0 0
  %2484 = vmatpush1.bf16.msra.mxu0 0
  %2485 = vmatprep.subr.bf16.mxu0 0
  %2486 = vmatpush1.bf16.msra.mxu0 0
  %2487 = vmatprep.subr.bf16.mxu0 0
  %2488 = vmatpush1.bf16.msra.mxu0 0
  %2489 = vmatprep.mubr.bf16.mxu0 0
  %2490 = vmatmul.mubr.bf16.gmra.mrb[0].mxu0 %v2455
  %v2491 = vpop.f32.mrb[0].mxu0
  %v2492 = vadd.f32 0.0, %v2491
  %v2493 = vpop.f32.mrb[0].mxu0
  %v2494 = vpop.f32.mrb[0].mxu0
  %v2495 = vadd.f32 0.0, %v2494
  %v2496 = vpop.f32.mrb[0].mxu0
  %2497 = vdwg.mxu0
  %2498 = vrot.lane.b32.xlu0 %v492, 56
  %v2499 = vpop.permute.xlu0 %2498
  %v2502 = vsel %vm928, %v2260, 0
  %2504 = vmatprep.subr.bf16.mxu0 0
  %2505 = vmatpush1.bf16.msra.mxu0 %v2499
  %2506 = vmatprep.subr.bf16.mxu0 0
  %2507 = vmatpush1.bf16.msra.mxu0 0
  %2508 = vmatprep.subr.bf16.mxu0 0
  %2509 = vmatpush1.bf16.msra.mxu0 0
  %2510 = vmatprep.subr.bf16.mxu0 0
  %2511 = vmatpush1.bf16.msra.mxu0 0
  %2512 = vmatprep.subr.bf16.mxu0 0
  %2513 = vmatpush1.bf16.msra.mxu0 0
  %2514 = vmatprep.subr.bf16.mxu0 0
  %2515 = vmatpush1.bf16.msra.mxu0 0
  %2516 = vmatprep.subr.bf16.mxu0 0
  %2517 = vmatpush1.bf16.msra.mxu0 0
  %2518 = vmatprep.subr.bf16.mxu0 0
  %2519 = vmatpush1.bf16.msra.mxu0 0
  %2520 = vmatprep.subr.bf16.mxu0 0
  %2521 = vmatpush1.bf16.msra.mxu0 0
  %2522 = vmatprep.subr.bf16.mxu0 0
  %2523 = vmatpush1.bf16.msra.mxu0 0
  %2524 = vmatprep.subr.bf16.mxu0 0
  %2525 = vmatpush1.bf16.msra.mxu0 0
  %2526 = vmatprep.subr.bf16.mxu0 0
  %2527 = vmatpush1.bf16.msra.mxu0 0
  %2528 = vmatprep.subr.bf16.mxu0 0
  %2529 = vmatpush1.bf16.msra.mxu0 0
  %2530 = vmatprep.subr.bf16.mxu0 0
  %2531 = vmatpush1.bf16.msra.mxu0 0
  %2532 = vmatprep.subr.bf16.mxu0 0
  %2533 = vmatpush1.bf16.msra.mxu0 0
  %2534 = vmatprep.subr.bf16.mxu0 0
  %2535 = vmatpush1.bf16.msra.mxu0 0
  %2536 = vmatprep.mubr.bf16.mxu0 0
  %2537 = vmatmul.mubr.bf16.gmra.mrb[0].mxu0 %v2502
  %v2538 = vpop.f32.mrb[0].mxu0
  %v2539 = vadd.f32 0.0, %v2538
  %v2540 = vpop.f32.mrb[0].mxu0
  %v2541 = vpop.f32.mrb[0].mxu0
  %v2542 = vadd.f32 0.0, %v2541
  %v2543 = vpop.f32.mrb[0].mxu0
  %2544 = vdwg.mxu0
  %2545 = vrot.lane.b32.xlu0 %v493, 56
  %v2546 = vpop.permute.xlu0 %2545
  %v2549 = vsel %vm928, %v2261, 0
  %2551 = vmatprep.subr.bf16.mxu0 0
  %2552 = vmatpush1.bf16.msra.mxu0 %v2546
  %2553 = vmatprep.subr.bf16.mxu0 0
  %2554 = vmatpush1.bf16.msra.mxu0 0
  %2555 = vmatprep.subr.bf16.mxu0 0
  %2556 = vmatpush1.bf16.msra.mxu0 0
  %2557 = vmatprep.subr.bf16.mxu0 0
  %2558 = vmatpush1.bf16.msra.mxu0 0
  %2559 = vmatprep.subr.bf16.mxu0 0
  %2560 = vmatpush1.bf16.msra.mxu0 0
  %2561 = vmatprep.subr.bf16.mxu0 0
  %2562 = vmatpush1.bf16.msra.mxu0 0
  %2563 = vmatprep.subr.bf16.mxu0 0
  %2564 = vmatpush1.bf16.msra.mxu0 0
  %2565 = vmatprep.subr.bf16.mxu0 0
  %2566 = vmatpush1.bf16.msra.mxu0 0
  %2567 = vmatprep.subr.bf16.mxu0 0
  %2568 = vmatpush1.bf16.msra.mxu0 0
  %2569 = vmatprep.subr.bf16.mxu0 0
  %2570 = vmatpush1.bf16.msra.mxu0 0
  %2571 = vmatprep.subr.bf16.mxu0 0
  %2572 = vmatpush1.bf16.msra.mxu0 0
  %2573 = vmatprep.subr.bf16.mxu0 0
  %2574 = vmatpush1.bf16.msra.mxu0 0
  %2575 = vmatprep.subr.bf16.mxu0 0
  %2576 = vmatpush1.bf16.msra.mxu0 0
  %2577 = vmatprep.subr.bf16.mxu0 0
  %2578 = vmatpush1.bf16.msra.mxu0 0
  %2579 = vmatprep.subr.bf16.mxu0 0
  %2580 = vmatpush1.bf16.msra.mxu0 0
  %2581 = vmatprep.subr.bf16.mxu0 0
  %2582 = vmatpush1.bf16.msra.mxu0 0
  %2583 = vmatprep.mubr.bf16.mxu0 0
  %2584 = vmatmul.mubr.bf16.gmra.mrb[0].mxu0 %v2549
  %v2585 = vpop.f32.mrb[0].mxu0
  %v2586 = vadd.f32 0.0, %v2585
  %v2587 = vpop.f32.mrb[0].mxu0
  %v2588 = vpop.f32.mrb[0].mxu0
  %v2589 = vadd.f32 0.0, %v2588
  %v2590 = vpop.f32.mrb[0].mxu0
  %2591 = vdwg.mxu0
  %2592 = vrot.lane.b32.xlu0 %v494, 56
  %v2593 = vpop.permute.xlu0 %2592
  %v2596 = vsel %vm928, %v2262, 0
  %2598 = vmatprep.subr.bf16.mxu0 0
  %2599 = vmatpush1.bf16.msra.mxu0 %v2593
  %2600 = vmatprep.subr.bf16.mxu0 0
  %2601 = vmatpush1.bf16.msra.mxu0 0
  %2602 = vmatprep.subr.bf16.mxu0 0
  %2603 = vmatpush1.bf16.msra.mxu0 0
  %2604 = vmatprep.subr.bf16.mxu0 0
  %2605 = vmatpush1.bf16.msra.mxu0 0
  %2606 = vmatprep.subr.bf16.mxu0 0
  %2607 = vmatpush1.bf16.msra.mxu0 0
  %2608 = vmatprep.subr.bf16.mxu0 0
  %2609 = vmatpush1.bf16.msra.mxu0 0
  %2610 = vmatprep.subr.bf16.mxu0 0
  %2611 = vmatpush1.bf16.msra.mxu0 0
  %2612 = vmatprep.subr.bf16.mxu0 0
  %2613 = vmatpush1.bf16.msra.mxu0 0
  %2614 = vmatprep.subr.bf16.mxu0 0
  %2615 = vmatpush1.bf16.msra.mxu0 0
  %2616 = vmatprep.subr.bf16.mxu0 0
  %2617 = vmatpush1.bf16.msra.mxu0 0
  %2618 = vmatprep.subr.bf16.mxu0 0
  %2619 = vmatpush1.bf16.msra.mxu0 0
  %2620 = vmatprep.subr.bf16.mxu0 0
  %2621 = vmatpush1.bf16.msra.mxu0 0
  %2622 = vmatprep.subr.bf16.mxu0 0
  %2623 = vmatpush1.bf16.msra.mxu0 0
  %2624 = vmatprep.subr.bf16.mxu0 0
  %2625 = vmatpush1.bf16.msra.mxu0 0
  %2626 = vmatprep.subr.bf16.mxu0 0
  %2627 = vmatpush1.bf16.msra.mxu0 0
  %2628 = vmatprep.subr.bf16.mxu0 0
  %2629 = vmatpush1.bf16.msra.mxu0 0
  %2630 = vmatprep.mubr.bf16.mxu0 0
  %2631 = vmatmul.mubr.bf16.gmra.mrb[0].mxu0 %v2596
  %v2632 = vpop.f32.mrb[0].mxu0
  %v2633 = vadd.f32 0.0, %v2632
  %v2634 = vpop.f32.mrb[0].mxu0
  %v2635 = vpop.f32.mrb[0].mxu0
  %v2636 = vadd.f32 0.0, %v2635
  %v2637 = vpop.f32.mrb[0].mxu0
  %2638 = vdwg.mxu0
  %v2639 = vpack.c.bf16 %v2307, %v2304
  %v2640 = vpack.c.bf16 %v2354, %v2351
  %v2641 = vpack.c.bf16 %v2401, %v2398
  %v2642 = vpack.c.bf16 %v2448, %v2445
  %v2643 = vpack.c.bf16 %v2495, %v2492
  %v2644 = vpack.c.bf16 %v2542, %v2539
  %v2645 = vpack.c.bf16 %v2589, %v2586
  %v2646 = vpack.c.bf16 %v2636, %v2633
  %v2647 = vld [vmem:[%s5 + $0x4] sm:$0xf]
  %v2649 = vsel %vm498, %v2639, 0
  %v2652 = vsel %vm498, %v2640, 0
  %v2655 = vsel %vm498, %v2641, 0
  %v2658 = vsel %vm498, %v2642, 0
  %v2661 = vsel %vm498, %v2643, 0
  %v2664 = vsel %vm498, %v2644, 0
  %v2667 = vsel %vm498, %v2645, 0
  %v2670 = vsel %vm498, %v2646, 0
  %v2673 = vsel %vm1522, %v2647, 0
  %2675 = vmatprep.subr.bf16.mxu0 0
  %2676 = vmatpush1.bf16.msra.mxu0 %v2673
  %2677 = vmatprep.subr.bf16.mxu0 0
  %2678 = vmatpush1.bf16.msra.mxu0 0
  %2679 = vmatprep.subr.bf16.mxu0 0
  %2680 = vmatpush1.bf16.msra.mxu0 0
  %2681 = vmatprep.subr.bf16.mxu0 0
  %2682 = vmatpush1.bf16.msra.mxu0 0
  %2683 = vmatprep.subr.bf16.mxu0 0
  %2684 = vmatpush1.bf16.msra.mxu0 0
  %2685 = vmatprep.subr.bf16.mxu0 0
  %2686 = vmatpush1.bf16.msra.mxu0 0
  %2687 = vmatprep.subr.bf16.mxu0 0
  %2688 = vmatpush1.bf16.msra.mxu0 0
  %2689 = vmatprep.subr.bf16.mxu0 0
  %2690 = vmatpush1.bf16.msra.mxu0 0
  %2691 = vmatprep.subr.bf16.mxu0 0
  %2692 = vmatpush1.bf16.msra.mxu0 0
  %2693 = vmatprep.subr.bf16.mxu0 0
  %2694 = vmatpush1.bf16.msra.mxu0 0
  %2695 = vmatprep.subr.bf16.mxu0 0
  %2696 = vmatpush1.bf16.msra.mxu0 0
  %2697 = vmatprep.subr.bf16.mxu0 0
  %2698 = vmatpush1.bf16.msra.mxu0 0
  %2699 = vmatprep.subr.bf16.mxu0 0
  %2700 = vmatpush1.bf16.msra.mxu0 0
  %2701 = vmatprep.subr.bf16.mxu0 0
  %2702 = vmatpush1.bf16.msra.mxu0 0
  %2703 = vmatprep.subr.bf16.mxu0 0
  %2704 = vmatpush1.bf16.msra.mxu0 0
  %2705 = vmatprep.subr.bf16.mxu0 0
  %2706 = vmatpush1.bf16.msra.mxu0 0
  %2707 = vmatprep.mubr.bf16.mxu0 0
  %2708 = vmatmul.mubr.bf16.gmra.mrb[0].mxu0 %v2649
  %v2709 = vpop.f32.mrb[0].mxu0
  %v2710 = vadd.f32 0.0, %v2709
  %v2711 = vpop.f32.mrb[0].mxu0
  %v2712 = vpop.f32.mrb[0].mxu0
  %v2713 = vadd.f32 0.0, %v2712
  %v2714 = vpop.f32.mrb[0].mxu0
  %2715 = vmatprep.mubr.bf16.mxu0 0
  %2716 = vmatmul.mubr.bf16.gmra.mrb[0].mxu0 %v2652
  %v2717 = vpop.f32.mrb[0].mxu0
  %v2718 = vadd.f32 0.0, %v2717
  %v2719 = vpop.f32.mrb[0].mxu0
  %v2720 = vpop.f32.mrb[0].mxu0
  %v2721 = vadd.f32 0.0, %v2720
  %v2722 = vpop.f32.mrb[0].mxu0
  %2723 = vmatprep.mubr.bf16.mxu0 0
  %2724 = vmatmul.mubr.bf16.gmra.mrb[0].mxu0 %v2655
  %v2725 = vpop.f32.mrb[0].mxu0
  %v2726 = vadd.f32 0.0, %v2725
  %v2727 = vpop.f32.mrb[0].mxu0
  %v2728 = vpop.f32.mrb[0].mxu0
  %v2729 = vadd.f32 0.0, %v2728
  %v2730 = vpop.f32.mrb[0].mxu0
  %2731 = vmatprep.mubr.bf16.mxu0 0
  %2732 = vmatmul.mubr.bf16.gmra.mrb[0].mxu0 %v2658
  %v2733 = vpop.f32.mrb[0].mxu0
  %v2734 = vadd.f32 0.0, %v2733
  %v2735 = vpop.f32.mrb[0].mxu0
  %v2736 = vpop.f32.mrb[0].mxu0
  %v2737 = vadd.f32 0.0, %v2736
  %v2738 = vpop.f32.mrb[0].mxu0
  %2739 = vmatprep.mubr.bf16.mxu0 0
  %2740 = vmatmul.mubr.bf16.gmra.mrb[0].mxu0 %v2661
  %v2741 = vpop.f32.mrb[0].mxu0
  %v2742 = vadd.f32 0.0, %v2741
  %v2743 = vpop.f32.mrb[0].mxu0
  %v2744 = vpop.f32.mrb[0].mxu0
  %v2745 = vadd.f32 0.0, %v2744
  %v2746 = vpop.f32.mrb[0].mxu0
  %2747 = vmatprep.mubr.bf16.mxu0 0
  %2748 = vmatmul.mubr.bf16.gmra.mrb[0].mxu0 %v2664
  %v2749 = vpop.f32.mrb[0].mxu0
  %v2750 = vadd.f32 0.0, %v2749
  %v2751 = vpop.f32.mrb[0].mxu0
  %v2752 = vpop.f32.mrb[0].mxu0
  %v2753 = vadd.f32 0.0, %v2752
  %v2754 = vpop.f32.mrb[0].mxu0
  %2755 = vmatprep.mubr.bf16.mxu0 0
  %2756 = vmatmul.mubr.bf16.gmra.mrb[0].mxu0 %v2667
  %v2757 = vpop.f32.mrb[0].mxu0
  %v2758 = vadd.f32 0.0, %v2757
  %v2759 = vpop.f32.mrb[0].mxu0
  %v2760 = vpop.f32.mrb[0].mxu0
  %v2761 = vadd.f32 0.0, %v2760
  %v2762 = vpop.f32.mrb[0].mxu0
  %2763 = vmatprep.mubr.bf16.mxu0 0
  %2764 = vmatmul.mubr.bf16.gmra.mrb[0].mxu0 %v2670
  %v2765 = vpop.f32.mrb[0].mxu0
  %v2766 = vadd.f32 0.0, %v2765
  %v2767 = vpop.f32.mrb[0].mxu0
  %v2768 = vpop.f32.mrb[0].mxu0
  %v2769 = vadd.f32 0.0, %v2768
  %v2770 = vpop.f32.mrb[0].mxu0
  %2771 = vdwg.mxu0
  %v2772 = vadd.f32 %v1623, %v2710
  %v2773 = vadd.f32 %v1624, %v2713
  %v2774 = vadd.f32 %v1625, %v2718
  %v2775 = vadd.f32 %v1626, %v2721
  %v2776 = vadd.f32 %v1627, %v2726
  %v2777 = vadd.f32 %v1628, %v2729
  %v2778 = vadd.f32 %v1629, %v2734
  %v2779 = vadd.f32 %v1630, %v2737
  %v2780 = vadd.f32 %v1631, %v2742
  %v2781 = vadd.f32 %v1632, %v2745
  %v2782 = vadd.f32 %v1633, %v2750
  %v2783 = vadd.f32 %v1634, %v2753
  %v2784 = vadd.f32 %v1635, %v2758
  %v2785 = vadd.f32 %v1636, %v2761
  %v2786 = vadd.f32 %v1637, %v2766
  %v2787 = vadd.f32 %v1638, %v2769
  %2788 = vrot.lane.b32.xlu0 %v487, 112
  %v2789 = vpop.permute.xlu0 %2788
  %2790 = vrot.lane.b32.xlu0 %v487, 80
  %v2791 = vpop.permute.xlu0 %2790
  %v2793 = vsel %vm498, %v2789, 0
  %v2796 = vsel %vm498, %v2791, 0
  %2798 = vmatprep.subr.bf16.mxu0 0
  %2799 = vmatpush1.bf16.xpose.msra.mxu0 %v2796
  %2800 = vmatprep.subr.bf16.mxu0 0
  %2801 = vmatpush1.bf16.xpose.msra.mxu0 0
  %2802 = vmatprep.subr.bf16.mxu0 0
  %2803 = vmatpush1.bf16.xpose.msra.mxu0 0
  %2804 = vmatprep.subr.bf16.mxu0 0
  %2805 = vmatpush1.bf16.xpose.msra.mxu0 0
  %2806 = vmatprep.subr.bf16.mxu0 0
  %2807 = vmatpush1.bf16.xpose.msra.mxu0 0
  %2808 = vmatprep.subr.bf16.mxu0 0
  %2809 = vmatpush1.bf16.xpose.msra.mxu0 0
  %2810 = vmatprep.subr.bf16.mxu0 0
  %2811 = vmatpush1.bf16.xpose.msra.mxu0 0
  %2812 = vmatprep.subr.bf16.mxu0 0
  %2813 = vmatpush1.bf16.xpose.msra.mxu0 0
  %2814 = vmatprep.subr.bf16.mxu0 0
  %2815 = vmatpush1.bf16.xpose.msra.mxu0 0
  %2816 = vmatprep.subr.bf16.mxu0 0
  %2817 = vmatpush1.bf16.xpose.msra.mxu0 0
  %2818 = vmatprep.subr.bf16.mxu0 0
  %2819 = vmatpush1.bf16.xpose.msra.mxu0 0
  %2820 = vmatprep.subr.bf16.mxu0 0
  %2821 = vmatpush1.bf16.xpose.msra.mxu0 0
  %2822 = vmatprep.subr.bf16.mxu0 0
  %2823 = vmatpush1.bf16.xpose.msra.mxu0 0
  %2824 = vmatprep.subr.bf16.mxu0 0
  %2825 = vmatpush1.bf16.xpose.msra.mxu0 0
  %2826 = vmatprep.subr.bf16.mxu0 0
  %2827 = vmatpush1.bf16.xpose.msra.mxu0 0
  %2828 = vmatprep.subr.bf16.mxu0 0
  %2829 = vmatpush1.bf16.xpose.msra.mxu0 0
  %2830 = vmatprep.mubr.bf16.mxu0 0
  %2831 = vmatmul.mubr.bf16.gmra.mrb[0].mxu0 %v2793
  %v2832 = vpop.f32.mrb[0].mxu0
  %v2833 = vadd.f32 0.0, %v2832
  %v2834 = vpop.f32.mrb[0].mxu0
  %v2835 = vpop.f32.mrb[0].mxu0
  %v2836 = vadd.f32 0.0, %v2835
  %v2837 = vpop.f32.mrb[0].mxu0
  %2838 = vdwg.mxu0
  %2839 = vrot.lane.b32.xlu0 %v488, 112
  %v2840 = vpop.permute.xlu0 %2839
  %2841 = vrot.lane.b32.xlu0 %v488, 80
  %v2842 = vpop.permute.xlu0 %2841
  %v2844 = vsel %vm498, %v2840, 0
  %v2847 = vsel %vm498, %v2842, 0
  %2849 = vmatprep.subr.bf16.mxu0 0
  %2850 = vmatpush1.bf16.xpose.msra.mxu0 %v2847
  %2851 = vmatprep.subr.bf16.mxu0 0
  %2852 = vmatpush1.bf16.xpose.msra.mxu0 0
  %2853 = vmatprep.subr.bf16.mxu0 0
  %2854 = vmatpush1.bf16.xpose.msra.mxu0 0
  %2855 = vmatprep.subr.bf16.mxu0 0
  %2856 = vmatpush1.bf16.xpose.msra.mxu0 0
  %2857 = vmatprep.subr.bf16.mxu0 0
  %2858 = vmatpush1.bf16.xpose.msra.mxu0 0
  %2859 = vmatprep.subr.bf16.mxu0 0
  %2860 = vmatpush1.bf16.xpose.msra.mxu0 0
  %2861 = vmatprep.subr.bf16.mxu0 0
  %2862 = vmatpush1.bf16.xpose.msra.mxu0 0
  %2863 = vmatprep.subr.bf16.mxu0 0
  %2864 = vmatpush1.bf16.xpose.msra.mxu0 0
  %2865 = vmatprep.subr.bf16.mxu0 0
  %2866 = vmatpush1.bf16.xpose.msra.mxu0 0
  %2867 = vmatprep.subr.bf16.mxu0 0
  %2868 = vmatpush1.bf16.xpose.msra.mxu0 0
  %2869 = vmatprep.subr.bf16.mxu0 0
  %2870 = vmatpush1.bf16.xpose.msra.mxu0 0
  %2871 = vmatprep.subr.bf16.mxu0 0
  %2872 = vmatpush1.bf16.xpose.msra.mxu0 0
  %2873 = vmatprep.subr.bf16.mxu0 0
  %2874 = vmatpush1.bf16.xpose.msra.mxu0 0
  %2875 = vmatprep.subr.bf16.mxu0 0
  %2876 = vmatpush1.bf16.xpose.msra.mxu0 0
  %2877 = vmatprep.subr.bf16.mxu0 0
  %2878 = vmatpush1.bf16.xpose.msra.mxu0 0
  %2879 = vmatprep.subr.bf16.mxu0 0
  %2880 = vmatpush1.bf16.xpose.msra.mxu0 0
  %2881 = vmatprep.mubr.bf16.mxu0 0
  %2882 = vmatmul.mubr.bf16.gmra.mrb[0].mxu0 %v2844
  %v2883 = vpop.f32.mrb[0].mxu0
  %v2884 = vadd.f32 0.0, %v2883
  %v2885 = vpop.f32.mrb[0].mxu0
  %v2886 = vpop.f32.mrb[0].mxu0
  %v2887 = vadd.f32 0.0, %v2886
  %v2888 = vpop.f32.mrb[0].mxu0
  %2889 = vdwg.mxu0
  %2890 = vrot.lane.b32.xlu0 %v489, 112
  %v2891 = vpop.permute.xlu0 %2890
  %2892 = vrot.lane.b32.xlu0 %v489, 80
  %v2893 = vpop.permute.xlu0 %2892
  %v2895 = vsel %vm498, %v2891, 0
  %v2898 = vsel %vm498, %v2893, 0
  %2900 = vmatprep.subr.bf16.mxu0 0
  %2901 = vmatpush1.bf16.xpose.msra.mxu0 %v2898
  %2902 = vmatprep.subr.bf16.mxu0 0
  %2903 = vmatpush1.bf16.xpose.msra.mxu0 0
  %2904 = vmatprep.subr.bf16.mxu0 0
  %2905 = vmatpush1.bf16.xpose.msra.mxu0 0
  %2906 = vmatprep.subr.bf16.mxu0 0
  %2907 = vmatpush1.bf16.xpose.msra.mxu0 0
  %2908 = vmatprep.subr.bf16.mxu0 0
  %2909 = vmatpush1.bf16.xpose.msra.mxu0 0
  %2910 = vmatprep.subr.bf16.mxu0 0
  %2911 = vmatpush1.bf16.xpose.msra.mxu0 0
  %2912 = vmatprep.subr.bf16.mxu0 0
  %2913 = vmatpush1.bf16.xpose.msra.mxu0 0
  %2914 = vmatprep.subr.bf16.mxu0 0
  %2915 = vmatpush1.bf16.xpose.msra.mxu0 0
  %2916 = vmatprep.subr.bf16.mxu0 0
  %2917 = vmatpush1.bf16.xpose.msra.mxu0 0
  %2918 = vmatprep.subr.bf16.mxu0 0
  %2919 = vmatpush1.bf16.xpose.msra.mxu0 0
  %2920 = vmatprep.subr.bf16.mxu0 0
  %2921 = vmatpush1.bf16.xpose.msra.mxu0 0
  %2922 = vmatprep.subr.bf16.mxu0 0
  %2923 = vmatpush1.bf16.xpose.msra.mxu0 0
  %2924 = vmatprep.subr.bf16.mxu0 0
  %2925 = vmatpush1.bf16.xpose.msra.mxu0 0
  %2926 = vmatprep.subr.bf16.mxu0 0
  %2927 = vmatpush1.bf16.xpose.msra.mxu0 0
  %2928 = vmatprep.subr.bf16.mxu0 0
  %2929 = vmatpush1.bf16.xpose.msra.mxu0 0
  %2930 = vmatprep.subr.bf16.mxu0 0
  %2931 = vmatpush1.bf16.xpose.msra.mxu0 0
  %2932 = vmatprep.mubr.bf16.mxu0 0
  %2933 = vmatmul.mubr.bf16.gmra.mrb[0].mxu0 %v2895
  %v2934 = vpop.f32.mrb[0].mxu0
  %v2935 = vadd.f32 0.0, %v2934
  %v2936 = vpop.f32.mrb[0].mxu0
  %v2937 = vpop.f32.mrb[0].mxu0
  %v2938 = vadd.f32 0.0, %v2937
  %v2939 = vpop.f32.mrb[0].mxu0
  %2940 = vdwg.mxu0
  %2941 = vrot.lane.b32.xlu0 %v490, 112
  %v2942 = vpop.permute.xlu0 %2941
  %2943 = vrot.lane.b32.xlu0 %v490, 80
  %v2944 = vpop.permute.xlu0 %2943
  %v2946 = vsel %vm498, %v2942, 0
  %v2949 = vsel %vm498, %v2944, 0
  %2951 = vmatprep.subr.bf16.mxu0 0
  %2952 = vmatpush1.bf16.xpose.msra.mxu0 %v2949
  %2953 = vmatprep.subr.bf16.mxu0 0
  %2954 = vmatpush1.bf16.xpose.msra.mxu0 0
  %2955 = vmatprep.subr.bf16.mxu0 0
  %2956 = vmatpush1.bf16.xpose.msra.mxu0 0
  %2957 = vmatprep.subr.bf16.mxu0 0
  %2958 = vmatpush1.bf16.xpose.msra.mxu0 0
  %2959 = vmatprep.subr.bf16.mxu0 0
  %2960 = vmatpush1.bf16.xpose.msra.mxu0 0
  %2961 = vmatprep.subr.bf16.mxu0 0
  %2962 = vmatpush1.bf16.xpose.msra.mxu0 0
  %2963 = vmatprep.subr.bf16.mxu0 0
  %2964 = vmatpush1.bf16.xpose.msra.mxu0 0
  %2965 = vmatprep.subr.bf16.mxu0 0
  %2966 = vmatpush1.bf16.xpose.msra.mxu0 0
  %2967 = vmatprep.subr.bf16.mxu0 0
  %2968 = vmatpush1.bf16.xpose.msra.mxu0 0
  %2969 = vmatprep.subr.bf16.mxu0 0
  %2970 = vmatpush1.bf16.xpose.msra.mxu0 0
  %2971 = vmatprep.subr.bf16.mxu0 0
  %2972 = vmatpush1.bf16.xpose.msra.mxu0 0
  %2973 = vmatprep.subr.bf16.mxu0 0
  %2974 = vmatpush1.bf16.xpose.msra.mxu0 0
  %2975 = vmatprep.subr.bf16.mxu0 0
  %2976 = vmatpush1.bf16.xpose.msra.mxu0 0
  %2977 = vmatprep.subr.bf16.mxu0 0
  %2978 = vmatpush1.bf16.xpose.msra.mxu0 0
  %2979 = vmatprep.subr.bf16.mxu0 0
  %2980 = vmatpush1.bf16.xpose.msra.mxu0 0
  %2981 = vmatprep.subr.bf16.mxu0 0
  %2982 = vmatpush1.bf16.xpose.msra.mxu0 0
  %2983 = vmatprep.mubr.bf16.mxu0 0
  %2984 = vmatmul.mubr.bf16.gmra.mrb[0].mxu0 %v2946
  %v2985 = vpop.f32.mrb[0].mxu0
  %v2986 = vadd.f32 0.0, %v2985
  %v2987 = vpop.f32.mrb[0].mxu0
  %v2988 = vpop.f32.mrb[0].mxu0
  %v2989 = vadd.f32 0.0, %v2988
  %v2990 = vpop.f32.mrb[0].mxu0
  %2991 = vdwg.mxu0
  %2992 = vrot.lane.b32.xlu0 %v491, 112
  %v2993 = vpop.permute.xlu0 %2992
  %2994 = vrot.lane.b32.xlu0 %v491, 80
  %v2995 = vpop.permute.xlu0 %2994
  %v2997 = vsel %vm498, %v2993, 0
  %v3000 = vsel %vm498, %v2995, 0
  %3002 = vmatprep.subr.bf16.mxu0 0
  %3003 = vmatpush1.bf16.xpose.msra.mxu0 %v3000
  %3004 = vmatprep.subr.bf16.mxu0 0
  %3005 = vmatpush1.bf16.xpose.msra.mxu0 0
  %3006 = vmatprep.subr.bf16.mxu0 0
  %3007 = vmatpush1.bf16.xpose.msra.mxu0 0
  %3008 = vmatprep.subr.bf16.mxu0 0
  %3009 = vmatpush1.bf16.xpose.msra.mxu0 0
  %3010 = vmatprep.subr.bf16.mxu0 0
  %3011 = vmatpush1.bf16.xpose.msra.mxu0 0
  %3012 = vmatprep.subr.bf16.mxu0 0
  %3013 = vmatpush1.bf16.xpose.msra.mxu0 0
  %3014 = vmatprep.subr.bf16.mxu0 0
  %3015 = vmatpush1.bf16.xpose.msra.mxu0 0
  %3016 = vmatprep.subr.bf16.mxu0 0
  %3017 = vmatpush1.bf16.xpose.msra.mxu0 0
  %3018 = vmatprep.subr.bf16.mxu0 0
  %3019 = vmatpush1.bf16.xpose.msra.mxu0 0
  %3020 = vmatprep.subr.bf16.mxu0 0
  %3021 = vmatpush1.bf16.xpose.msra.mxu0 0
  %3022 = vmatprep.subr.bf16.mxu0 0
  %3023 = vmatpush1.bf16.xpose.msra.mxu0 0
  %3024 = vmatprep.subr.bf16.mxu0 0
  %3025 = vmatpush1.bf16.xpose.msra.mxu0 0
  %3026 = vmatprep.subr.bf16.mxu0 0
  %3027 = vmatpush1.bf16.xpose.msra.mxu0 0
  %3028 = vmatprep.subr.bf16.mxu0 0
  %3029 = vmatpush1.bf16.xpose.msra.mxu0 0
  %3030 = vmatprep.subr.bf16.mxu0 0
  %3031 = vmatpush1.bf16.xpose.msra.mxu0 0
  %3032 = vmatprep.subr.bf16.mxu0 0
  %3033 = vmatpush1.bf16.xpose.msra.mxu0 0
  %3034 = vmatprep.mubr.bf16.mxu0 0
  %3035 = vmatmul.mubr.bf16.gmra.mrb[0].mxu0 %v2997
  %v3036 = vpop.f32.mrb[0].mxu0
  %v3037 = vadd.f32 0.0, %v3036
  %v3038 = vpop.f32.mrb[0].mxu0
  %v3039 = vpop.f32.mrb[0].mxu0
  %v3040 = vadd.f32 0.0, %v3039
  %v3041 = vpop.f32.mrb[0].mxu0
  %3042 = vdwg.mxu0
  %3043 = vrot.lane.b32.xlu0 %v492, 112
  %v3044 = vpop.permute.xlu0 %3043
  %3045 = vrot.lane.b32.xlu0 %v492, 80
  %v3046 = vpop.permute.xlu0 %3045
  %v3048 = vsel %vm498, %v3044, 0
  %v3051 = vsel %vm498, %v3046, 0
  %3053 = vmatprep.subr.bf16.mxu0 0
  %3054 = vmatpush1.bf16.xpose.msra.mxu0 %v3051
  %3055 = vmatprep.subr.bf16.mxu0 0
  %3056 = vmatpush1.bf16.xpose.msra.mxu0 0
  %3057 = vmatprep.subr.bf16.mxu0 0
  %3058 = vmatpush1.bf16.xpose.msra.mxu0 0
  %3059 = vmatprep.subr.bf16.mxu0 0
  %3060 = vmatpush1.bf16.xpose.msra.mxu0 0
  %3061 = vmatprep.subr.bf16.mxu0 0
  %3062 = vmatpush1.bf16.xpose.msra.mxu0 0
  %3063 = vmatprep.subr.bf16.mxu0 0
  %3064 = vmatpush1.bf16.xpose.msra.mxu0 0
  %3065 = vmatprep.subr.bf16.mxu0 0
  %3066 = vmatpush1.bf16.xpose.msra.mxu0 0
  %3067 = vmatprep.subr.bf16.mxu0 0
  %3068 = vmatpush1.bf16.xpose.msra.mxu0 0
  %3069 = vmatprep.subr.bf16.mxu0 0
  %3070 = vmatpush1.bf16.xpose.msra.mxu0 0
  %3071 = vmatprep.subr.bf16.mxu0 0
  %3072 = vmatpush1.bf16.xpose.msra.mxu0 0
  %3073 = vmatprep.subr.bf16.mxu0 0
  %3074 = vmatpush1.bf16.xpose.msra.mxu0 0
  %3075 = vmatprep.subr.bf16.mxu0 0
  %3076 = vmatpush1.bf16.xpose.msra.mxu0 0
  %3077 = vmatprep.subr.bf16.mxu0 0
  %3078 = vmatpush1.bf16.xpose.msra.mxu0 0
  %3079 = vmatprep.subr.bf16.mxu0 0
  %3080 = vmatpush1.bf16.xpose.msra.mxu0 0
  %3081 = vmatprep.subr.bf16.mxu0 0
  %3082 = vmatpush1.bf16.xpose.msra.mxu0 0
  %3083 = vmatprep.subr.bf16.mxu0 0
  %3084 = vmatpush1.bf16.xpose.msra.mxu0 0
  %3085 = vmatprep.mubr.bf16.mxu0 0
  %3086 = vmatmul.mubr.bf16.gmra.mrb[0].mxu0 %v3048
  %v3087 = vpop.f32.mrb[0].mxu0
  %v3088 = vadd.f32 0.0, %v3087
  %v3089 = vpop.f32.mrb[0].mxu0
  %v3090 = vpop.f32.mrb[0].mxu0
  %v3091 = vadd.f32 0.0, %v3090
  %v3092 = vpop.f32.mrb[0].mxu0
  %3093 = vdwg.mxu0
  %3094 = vrot.lane.b32.xlu0 %v493, 112
  %v3095 = vpop.permute.xlu0 %3094
  %3096 = vrot.lane.b32.xlu0 %v493, 80
  %v3097 = vpop.permute.xlu0 %3096
  %v3099 = vsel %vm498, %v3095, 0
  %v3102 = vsel %vm498, %v3097, 0
  %3104 = vmatprep.subr.bf16.mxu0 0
  %3105 = vmatpush1.bf16.xpose.msra.mxu0 %v3102
  %3106 = vmatprep.subr.bf16.mxu0 0
  %3107 = vmatpush1.bf16.xpose.msra.mxu0 0
  %3108 = vmatprep.subr.bf16.mxu0 0
  %3109 = vmatpush1.bf16.xpose.msra.mxu0 0
  %3110 = vmatprep.subr.bf16.mxu0 0
  %3111 = vmatpush1.bf16.xpose.msra.mxu0 0
  %3112 = vmatprep.subr.bf16.mxu0 0
  %3113 = vmatpush1.bf16.xpose.msra.mxu0 0
  %3114 = vmatprep.subr.bf16.mxu0 0
  %3115 = vmatpush1.bf16.xpose.msra.mxu0 0
  %3116 = vmatprep.subr.bf16.mxu0 0
  %3117 = vmatpush1.bf16.xpose.msra.mxu0 0
  %3118 = vmatprep.subr.bf16.mxu0 0
  %3119 = vmatpush1.bf16.xpose.msra.mxu0 0
  %3120 = vmatprep.subr.bf16.mxu0 0
  %3121 = vmatpush1.bf16.xpose.msra.mxu0 0
  %3122 = vmatprep.subr.bf16.mxu0 0
  %3123 = vmatpush1.bf16.xpose.msra.mxu0 0
  %3124 = vmatprep.subr.bf16.mxu0 0
  %3125 = vmatpush1.bf16.xpose.msra.mxu0 0
  %3126 = vmatprep.subr.bf16.mxu0 0
  %3127 = vmatpush1.bf16.xpose.msra.mxu0 0
  %3128 = vmatprep.subr.bf16.mxu0 0
  %3129 = vmatpush1.bf16.xpose.msra.mxu0 0
  %3130 = vmatprep.subr.bf16.mxu0 0
  %3131 = vmatpush1.bf16.xpose.msra.mxu0 0
  %3132 = vmatprep.subr.bf16.mxu0 0
  %3133 = vmatpush1.bf16.xpose.msra.mxu0 0
  %3134 = vmatprep.subr.bf16.mxu0 0
  %3135 = vmatpush1.bf16.xpose.msra.mxu0 0
  %3136 = vmatprep.mubr.bf16.mxu0 0
  %3137 = vmatmul.mubr.bf16.gmra.mrb[0].mxu0 %v3099
  %v3138 = vpop.f32.mrb[0].mxu0
  %v3139 = vadd.f32 0.0, %v3138
  %v3140 = vpop.f32.mrb[0].mxu0
  %v3141 = vpop.f32.mrb[0].mxu0
  %v3142 = vadd.f32 0.0, %v3141
  %v3143 = vpop.f32.mrb[0].mxu0
  %3144 = vdwg.mxu0
  %3145 = vrot.lane.b32.xlu0 %v494, 112
  %v3146 = vpop.permute.xlu0 %3145
  %3147 = vrot.lane.b32.xlu0 %v494, 80
  %v3148 = vpop.permute.xlu0 %3147
  %v3150 = vsel %vm498, %v3146, 0
  %v3153 = vsel %vm498, %v3148, 0
  %3155 = vmatprep.subr.bf16.mxu0 0
  %3156 = vmatpush1.bf16.xpose.msra.mxu0 %v3153
  %3157 = vmatprep.subr.bf16.mxu0 0
  %3158 = vmatpush1.bf16.xpose.msra.mxu0 0
  %3159 = vmatprep.subr.bf16.mxu0 0
  %3160 = vmatpush1.bf16.xpose.msra.mxu0 0
  %3161 = vmatprep.subr.bf16.mxu0 0
  %3162 = vmatpush1.bf16.xpose.msra.mxu0 0
  %3163 = vmatprep.subr.bf16.mxu0 0
  %3164 = vmatpush1.bf16.xpose.msra.mxu0 0
  %3165 = vmatprep.subr.bf16.mxu0 0
  %3166 = vmatpush1.bf16.xpose.msra.mxu0 0
  %3167 = vmatprep.subr.bf16.mxu0 0
  %3168 = vmatpush1.bf16.xpose.msra.mxu0 0
  %3169 = vmatprep.subr.bf16.mxu0 0
  %3170 = vmatpush1.bf16.xpose.msra.mxu0 0
  %3171 = vmatprep.subr.bf16.mxu0 0
  %3172 = vmatpush1.bf16.xpose.msra.mxu0 0
  %3173 = vmatprep.subr.bf16.mxu0 0
  %3174 = vmatpush1.bf16.xpose.msra.mxu0 0
  %3175 = vmatprep.subr.bf16.mxu0 0
  %3176 = vmatpush1.bf16.xpose.msra.mxu0 0
  %3177 = vmatprep.subr.bf16.mxu0 0
  %3178 = vmatpush1.bf16.xpose.msra.mxu0 0
  %3179 = vmatprep.subr.bf16.mxu0 0
  %3180 = vmatpush1.bf16.xpose.msra.mxu0 0
  %3181 = vmatprep.subr.bf16.mxu0 0
  %3182 = vmatpush1.bf16.xpose.msra.mxu0 0
  %3183 = vmatprep.subr.bf16.mxu0 0
  %3184 = vmatpush1.bf16.xpose.msra.mxu0 0
  %3185 = vmatprep.subr.bf16.mxu0 0
  %3186 = vmatpush1.bf16.xpose.msra.mxu0 0
  %3187 = vmatprep.mubr.bf16.mxu0 0
  %3188 = vmatmul.mubr.bf16.gmra.mrb[0].mxu0 %v3150
  %v3189 = vpop.f32.mrb[0].mxu0
  %v3190 = vadd.f32 0.0, %v3189
  %v3191 = vpop.f32.mrb[0].mxu0
  %v3192 = vpop.f32.mrb[0].mxu0
  %v3193 = vadd.f32 0.0, %v3192
  %v3194 = vpop.f32.mrb[0].mxu0
  %3195 = vdwg.mxu0
  %v3196 = vmul.f32 %v2833, 0.35355338
  %v3197 = vmul.f32 %v2836, 0.35355338
  %v3198 = vmul.f32 %v2884, 0.35355338
  %v3199 = vmul.f32 %v2887, 0.35355338
  %v3200 = vmul.f32 %v2935, 0.35355338
  %v3201 = vmul.f32 %v2938, 0.35355338
  %v3202 = vmul.f32 %v2986, 0.35355338
  %v3203 = vmul.f32 %v2989, 0.35355338
  %v3204 = vmul.f32 %v3037, 0.35355338
  %v3205 = vmul.f32 %v3040, 0.35355338
  %v3206 = vmul.f32 %v3088, 0.35355338
  %v3207 = vmul.f32 %v3091, 0.35355338
  %v3208 = vmul.f32 %v3139, 0.35355338
  %v3209 = vmul.f32 %v3142, 0.35355338
  %v3210 = vmul.f32 %v3190, 0.35355338
  %v3211 = vmul.f32 %v3193, 0.35355338
  %v3212 = vadd.f32 %v3196, %v476
  %v3213 = vadd.f32 %v3197, %v477
  %v3214 = vadd.f32 %v3198, %v476
  %v3215 = vadd.f32 %v3199, %v477
  %v3216 = vadd.f32 %v3200, %v476
  %v3217 = vadd.f32 %v3201, %v477
  %v3218 = vadd.f32 %v3202, %v476
  %v3219 = vadd.f32 %v3203, %v477
  %v3220 = vadd.f32 %v3204, %v476
  %v3221 = vadd.f32 %v3205, %v477
  %v3222 = vadd.f32 %v3206, %v476
  %v3223 = vadd.f32 %v3207, %v477
  %v3224 = vadd.f32 %v3208, %v476
  %v3225 = vadd.f32 %v3209, %v477
  %v3226 = vadd.f32 %v3210, %v476
  %v3227 = vadd.f32 %v3211, %v477
  %v3228 = vsel %vm928, %v3212, -inf
  %3229 = vmax.xlane.f32.xlu0 %v3228
  %v3230 = vpop.xlane.xlu0 %3229
  %v3231 = vsel %vm928, %v3213, -inf
  %3232 = vmax.xlane.f32.xlu0 %v3231
  %v3233 = vpop.xlane.xlu0 %3232
  %v3234 = vsel %vm928, %v3214, -inf
  %3235 = vmax.xlane.f32.xlu0 %v3234
  %v3236 = vpop.xlane.xlu0 %3235
  %v3237 = vsel %vm928, %v3215, -inf
  %3238 = vmax.xlane.f32.xlu0 %v3237
  %v3239 = vpop.xlane.xlu0 %3238
  %v3240 = vsel %vm928, %v3216, -inf
  %3241 = vmax.xlane.f32.xlu0 %v3240
  %v3242 = vpop.xlane.xlu0 %3241
  %v3243 = vsel %vm928, %v3217, -inf
  %3244 = vmax.xlane.f32.xlu0 %v3243
  %v3245 = vpop.xlane.xlu0 %3244
  %v3246 = vsel %vm928, %v3218, -inf
  %3247 = vmax.xlane.f32.xlu0 %v3246
  %v3248 = vpop.xlane.xlu0 %3247
  %v3249 = vsel %vm928, %v3219, -inf
  %3250 = vmax.xlane.f32.xlu0 %v3249
  %v3251 = vpop.xlane.xlu0 %3250
  %v3252 = vsel %vm928, %v3220, -inf
  %3253 = vmax.xlane.f32.xlu0 %v3252
  %v3254 = vpop.xlane.xlu0 %3253
  %v3255 = vsel %vm928, %v3221, -inf
  %3256 = vmax.xlane.f32.xlu0 %v3255
  %v3257 = vpop.xlane.xlu0 %3256
  %v3258 = vsel %vm928, %v3222, -inf
  %3259 = vmax.xlane.f32.xlu0 %v3258
  %v3260 = vpop.xlane.xlu0 %3259
  %v3261 = vsel %vm928, %v3223, -inf
  %3262 = vmax.xlane.f32.xlu0 %v3261
  %v3263 = vpop.xlane.xlu0 %3262
  %v3264 = vsel %vm928, %v3224, -inf
  %3265 = vmax.xlane.f32.xlu0 %v3264
  %v3266 = vpop.xlane.xlu0 %3265
  %v3267 = vsel %vm928, %v3225, -inf
  %3268 = vmax.xlane.f32.xlu0 %v3267
  %v3269 = vpop.xlane.xlu0 %3268
  %v3270 = vsel %vm928, %v3226, -inf
  %3271 = vmax.xlane.f32.xlu0 %v3270
  %v3272 = vpop.xlane.xlu0 %3271
  %v3273 = vsel %vm928, %v3227, -inf
  %3274 = vmax.xlane.f32.xlu0 %v3273
  %v3275 = vpop.xlane.xlu0 %3274
  %v3276 = vsub.f32 %v3212, %v3230
  %v3277 = vsub.f32 %v3213, %v3233
  %v3278 = vsub.f32 %v3214, %v3236
  %v3279 = vsub.f32 %v3215, %v3239
  %v3280 = vsub.f32 %v3216, %v3242
  %v3281 = vsub.f32 %v3217, %v3245
  %v3282 = vsub.f32 %v3218, %v3248
  %v3283 = vsub.f32 %v3219, %v3251
  %v3284 = vsub.f32 %v3220, %v3254
  %v3285 = vsub.f32 %v3221, %v3257
  %v3286 = vsub.f32 %v3222, %v3260
  %v3287 = vsub.f32 %v3223, %v3263
  %v3288 = vsub.f32 %v3224, %v3266
  %v3289 = vsub.f32 %v3225, %v3269
  %v3290 = vsub.f32 %v3226, %v3272
  %v3291 = vsub.f32 %v3227, %v3275
  %v3292 = vmul.f32 %v3276, 1.442695
  %v3293 = vpow.pop %v3292
  %v3294 = vmul.f32 %v3277, 1.442695
  %v3295 = vpow.pop %v3294
  %v3296 = vmul.f32 %v3278, 1.442695
  %v3297 = vpow.pop %v3296
  %v3298 = vmul.f32 %v3279, 1.442695
  %v3299 = vpow.pop %v3298
  %v3300 = vmul.f32 %v3280, 1.442695
  %v3301 = vpow.pop %v3300
  %v3302 = vmul.f32 %v3281, 1.442695
  %v3303 = vpow.pop %v3302
  %v3304 = vmul.f32 %v3282, 1.442695
  %v3305 = vpow.pop %v3304
  %v3306 = vmul.f32 %v3283, 1.442695
  %v3307 = vpow.pop %v3306
  %v3308 = vmul.f32 %v3284, 1.442695
  %v3309 = vpow.pop %v3308
  %v3310 = vmul.f32 %v3285, 1.442695
  %v3311 = vpow.pop %v3310
  %v3312 = vmul.f32 %v3286, 1.442695
  %v3313 = vpow.pop %v3312
  %v3314 = vmul.f32 %v3287, 1.442695
  %v3315 = vpow.pop %v3314
  %v3316 = vmul.f32 %v3288, 1.442695
  %v3317 = vpow.pop %v3316
  %v3318 = vmul.f32 %v3289, 1.442695
  %v3319 = vpow.pop %v3318
  %v3320 = vmul.f32 %v3290, 1.442695
  %v3321 = vpow.pop %v3320
  %v3322 = vmul.f32 %v3291, 1.442695
  %v3323 = vpow.pop %v3322
  %v3324 = vsel %vm928, %v3293, 0.0
  %3325 = vadd.xlane.f32.xlu0 %v3324
  %v3326 = vpop.xlane.xlu0 %3325
  %v3327 = vsel %vm928, %v3295, 0.0
  %3328 = vadd.xlane.f32.xlu0 %v3327
  %v3329 = vpop.xlane.xlu0 %3328
  %v3330 = vsel %vm928, %v3297, 0.0
  %3331 = vadd.xlane.f32.xlu0 %v3330
  %v3332 = vpop.xlane.xlu0 %3331
  %v3333 = vsel %vm928, %v3299, 0.0
  %3334 = vadd.xlane.f32.xlu0 %v3333
  %v3335 = vpop.xlane.xlu0 %3334
  %v3336 = vsel %vm928, %v3301, 0.0
  %3337 = vadd.xlane.f32.xlu0 %v3336
  %v3338 = vpop.xlane.xlu0 %3337
  %v3339 = vsel %vm928, %v3303, 0.0
  %3340 = vadd.xlane.f32.xlu0 %v3339
  %v3341 = vpop.xlane.xlu0 %3340
  %v3342 = vsel %vm928, %v3305, 0.0
  %3343 = vadd.xlane.f32.xlu0 %v3342
  %v3344 = vpop.xlane.xlu0 %3343
  %v3345 = vsel %vm928, %v3307, 0.0
  %3346 = vadd.xlane.f32.xlu0 %v3345
  %v3347 = vpop.xlane.xlu0 %3346
  %v3348 = vsel %vm928, %v3309, 0.0
  %3349 = vadd.xlane.f32.xlu0 %v3348
  %v3350 = vpop.xlane.xlu0 %3349
  %v3351 = vsel %vm928, %v3311, 0.0
  %3352 = vadd.xlane.f32.xlu0 %v3351
  %v3353 = vpop.xlane.xlu0 %3352
  %v3354 = vsel %vm928, %v3313, 0.0
  %3355 = vadd.xlane.f32.xlu0 %v3354
  %v3356 = vpop.xlane.xlu0 %3355
  %v3357 = vsel %vm928, %v3315, 0.0
  %3358 = vadd.xlane.f32.xlu0 %v3357
  %v3359 = vpop.xlane.xlu0 %3358
  %v3360 = vsel %vm928, %v3317, 0.0
  %3361 = vadd.xlane.f32.xlu0 %v3360
  %v3362 = vpop.xlane.xlu0 %3361
  %v3363 = vsel %vm928, %v3319, 0.0
  %3364 = vadd.xlane.f32.xlu0 %v3363
  %v3365 = vpop.xlane.xlu0 %3364
  %v3366 = vsel %vm928, %v3321, 0.0
  %3367 = vadd.xlane.f32.xlu0 %v3366
  %v3368 = vpop.xlane.xlu0 %3367
  %v3369 = vsel %vm928, %v3323, 0.0
  %3370 = vadd.xlane.f32.xlu0 %v3369
  %v3371 = vpop.xlane.xlu0 %3370
  %v3372 = vrcp.pop %v3326
  %v3373 = vrcp.pop %v3329
  %v3374 = vrcp.pop %v3332
  %v3375 = vrcp.pop %v3335
  %v3376 = vrcp.pop %v3338
  %v3377 = vrcp.pop %v3341
  %v3378 = vrcp.pop %v3344
  %v3379 = vrcp.pop %v3347
  %v3380 = vrcp.pop %v3350
  %v3381 = vrcp.pop %v3353
  %v3382 = vrcp.pop %v3356
  %v3383 = vrcp.pop %v3359
  %v3384 = vrcp.pop %v3362
  %v3385 = vrcp.pop %v3365
  %v3386 = vrcp.pop %v3368
  %v3387 = vrcp.pop %v3371
  %v3388 = vmul.f32 %v3293, %v3372
  %v3389 = vmul.f32 %v3295, %v3373
  %v3390 = vmul.f32 %v3297, %v3374
  %v3391 = vmul.f32 %v3299, %v3375
  %v3392 = vmul.f32 %v3301, %v3376
  %v3393 = vmul.f32 %v3303, %v3377
  %v3394 = vmul.f32 %v3305, %v3378
  %v3395 = vmul.f32 %v3307, %v3379
  %v3396 = vmul.f32 %v3309, %v3380
  %v3397 = vmul.f32 %v3311, %v3381
  %v3398 = vmul.f32 %v3313, %v3382
  %v3399 = vmul.f32 %v3315, %v3383
  %v3400 = vmul.f32 %v3317, %v3384
  %v3401 = vmul.f32 %v3319, %v3385
  %v3402 = vmul.f32 %v3321, %v3386
  %v3403 = vmul.f32 %v3323, %v3387
  %v3404 = vpack.c.bf16 %v3389, %v3388
  %v3405 = vpack.c.bf16 %v3391, %v3390
  %v3406 = vpack.c.bf16 %v3393, %v3392
  %v3407 = vpack.c.bf16 %v3395, %v3394
  %v3408 = vpack.c.bf16 %v3397, %v3396
  %v3409 = vpack.c.bf16 %v3399, %v3398
  %v3410 = vpack.c.bf16 %v3401, %v3400
  %v3411 = vpack.c.bf16 %v3403, %v3402
  %3412 = vrot.lane.b32.xlu0 %v487, 48
  %v3413 = vpop.permute.xlu0 %3412
  %v3416 = vsel %vm928, %v3404, 0
  %3418 = vmatprep.subr.bf16.mxu0 0
  %3419 = vmatpush1.bf16.msra.mxu0 %v3413
  %3420 = vmatprep.subr.bf16.mxu0 0
  %3421 = vmatpush1.bf16.msra.mxu0 0
  %3422 = vmatprep.subr.bf16.mxu0 0
  %3423 = vmatpush1.bf16.msra.mxu0 0
  %3424 = vmatprep.subr.bf16.mxu0 0
  %3425 = vmatpush1.bf16.msra.mxu0 0
  %3426 = vmatprep.subr.bf16.mxu0 0
  %3427 = vmatpush1.bf16.msra.mxu0 0
  %3428 = vmatprep.subr.bf16.mxu0 0
  %3429 = vmatpush1.bf16.msra.mxu0 0
  %3430 = vmatprep.subr.bf16.mxu0 0
  %3431 = vmatpush1.bf16.msra.mxu0 0
  %3432 = vmatprep.subr.bf16.mxu0 0
  %3433 = vmatpush1.bf16.msra.mxu0 0
  %3434 = vmatprep.subr.bf16.mxu0 0
  %3435 = vmatpush1.bf16.msra.mxu0 0
  %3436 = vmatprep.subr.bf16.mxu0 0
  %3437 = vmatpush1.bf16.msra.mxu0 0
  %3438 = vmatprep.subr.bf16.mxu0 0
  %3439 = vmatpush1.bf16.msra.mxu0 0
  %3440 = vmatprep.subr.bf16.mxu0 0
  %3441 = vmatpush1.bf16.msra.mxu0 0
  %3442 = vmatprep.subr.bf16.mxu0 0
  %3443 = vmatpush1.bf16.msra.mxu0 0
  %3444 = vmatprep.subr.bf16.mxu0 0
  %3445 = vmatpush1.bf16.msra.mxu0 0
  %3446 = vmatprep.subr.bf16.mxu0 0
  %3447 = vmatpush1.bf16.msra.mxu0 0
  %3448 = vmatprep.subr.bf16.mxu0 0
  %3449 = vmatpush1.bf16.msra.mxu0 0
  %3450 = vmatprep.mubr.bf16.mxu0 0
  %3451 = vmatmul.mubr.bf16.gmra.mrb[0].mxu0 %v3416
  %v3452 = vpop.f32.mrb[0].mxu0
  %v3453 = vadd.f32 0.0, %v3452
  %v3454 = vpop.f32.mrb[0].mxu0
  %v3455 = vpop.f32.mrb[0].mxu0
  %v3456 = vadd.f32 0.0, %v3455
  %v3457 = vpop.f32.mrb[0].mxu0
  %3458 = vdwg.mxu0
  %3459 = vrot.lane.b32.xlu0 %v488, 48
  %v3460 = vpop.permute.xlu0 %3459
  %v3463 = vsel %vm928, %v3405, 0
  %3465 = vmatprep.subr.bf16.mxu0 0
  %3466 = vmatpush1.bf16.msra.mxu0 %v3460
  %3467 = vmatprep.subr.bf16.mxu0 0
  %3468 = vmatpush1.bf16.msra.mxu0 0
  %3469 = vmatprep.subr.bf16.mxu0 0
  %3470 = vmatpush1.bf16.msra.mxu0 0
  %3471 = vmatprep.subr.bf16.mxu0 0
  %3472 = vmatpush1.bf16.msra.mxu0 0
  %3473 = vmatprep.subr.bf16.mxu0 0
  %3474 = vmatpush1.bf16.msra.mxu0 0
  %3475 = vmatprep.subr.bf16.mxu0 0
  %3476 = vmatpush1.bf16.msra.mxu0 0
  %3477 = vmatprep.subr.bf16.mxu0 0
  %3478 = vmatpush1.bf16.msra.mxu0 0
  %3479 = vmatprep.subr.bf16.mxu0 0
  %3480 = vmatpush1.bf16.msra.mxu0 0
  %3481 = vmatprep.subr.bf16.mxu0 0
  %3482 = vmatpush1.bf16.msra.mxu0 0
  %3483 = vmatprep.subr.bf16.mxu0 0
  %3484 = vmatpush1.bf16.msra.mxu0 0
  %3485 = vmatprep.subr.bf16.mxu0 0
  %3486 = vmatpush1.bf16.msra.mxu0 0
  %3487 = vmatprep.subr.bf16.mxu0 0
  %3488 = vmatpush1.bf16.msra.mxu0 0
  %3489 = vmatprep.subr.bf16.mxu0 0
  %3490 = vmatpush1.bf16.msra.mxu0 0
  %3491 = vmatprep.subr.bf16.mxu0 0
  %3492 = vmatpush1.bf16.msra.mxu0 0
  %3493 = vmatprep.subr.bf16.mxu0 0
  %3494 = vmatpush1.bf16.msra.mxu0 0
  %3495 = vmatprep.subr.bf16.mxu0 0
  %3496 = vmatpush1.bf16.msra.mxu0 0
  %3497 = vmatprep.mubr.bf16.mxu0 0
  %3498 = vmatmul.mubr.bf16.gmra.mrb[0].mxu0 %v3463
  %v3499 = vpop.f32.mrb[0].mxu0
  %v3500 = vadd.f32 0.0, %v3499
  %v3501 = vpop.f32.mrb[0].mxu0
  %v3502 = vpop.f32.mrb[0].mxu0
  %v3503 = vadd.f32 0.0, %v3502
  %v3504 = vpop.f32.mrb[0].mxu0
  %3505 = vdwg.mxu0
  %3506 = vrot.lane.b32.xlu0 %v489, 48
  %v3507 = vpop.permute.xlu0 %3506
  %v3510 = vsel %vm928, %v3406, 0
  %3512 = vmatprep.subr.bf16.mxu0 0
  %3513 = vmatpush1.bf16.msra.mxu0 %v3507
  %3514 = vmatprep.subr.bf16.mxu0 0
  %3515 = vmatpush1.bf16.msra.mxu0 0
  %3516 = vmatprep.subr.bf16.mxu0 0
  %3517 = vmatpush1.bf16.msra.mxu0 0
  %3518 = vmatprep.subr.bf16.mxu0 0
  %3519 = vmatpush1.bf16.msra.mxu0 0
  %3520 = vmatprep.subr.bf16.mxu0 0
  %3521 = vmatpush1.bf16.msra.mxu0 0
  %3522 = vmatprep.subr.bf16.mxu0 0
  %3523 = vmatpush1.bf16.msra.mxu0 0
  %3524 = vmatprep.subr.bf16.mxu0 0
  %3525 = vmatpush1.bf16.msra.mxu0 0
  %3526 = vmatprep.subr.bf16.mxu0 0
  %3527 = vmatpush1.bf16.msra.mxu0 0
  %3528 = vmatprep.subr.bf16.mxu0 0
  %3529 = vmatpush1.bf16.msra.mxu0 0
  %3530 = vmatprep.subr.bf16.mxu0 0
  %3531 = vmatpush1.bf16.msra.mxu0 0
  %3532 = vmatprep.subr.bf16.mxu0 0
  %3533 = vmatpush1.bf16.msra.mxu0 0
  %3534 = vmatprep.subr.bf16.mxu0 0
  %3535 = vmatpush1.bf16.msra.mxu0 0
  %3536 = vmatprep.subr.bf16.mxu0 0
  %3537 = vmatpush1.bf16.msra.mxu0 0
  %3538 = vmatprep.subr.bf16.mxu0 0
  %3539 = vmatpush1.bf16.msra.mxu0 0
  %3540 = vmatprep.subr.bf16.mxu0 0
  %3541 = vmatpush1.bf16.msra.mxu0 0
  %3542 = vmatprep.subr.bf16.mxu0 0
  %3543 = vmatpush1.bf16.msra.mxu0 0
  %3544 = vmatprep.mubr.bf16.mxu0 0
  %3545 = vmatmul.mubr.bf16.gmra.mrb[0].mxu0 %v3510
  %v3546 = vpop.f32.mrb[0].mxu0
  %v3547 = vadd.f32 0.0, %v3546
  %v3548 = vpop.f32.mrb[0].mxu0
  %v3549 = vpop.f32.mrb[0].mxu0
  %v3550 = vadd.f32 0.0, %v3549
  %v3551 = vpop.f32.mrb[0].mxu0
  %3552 = vdwg.mxu0
  %3553 = vrot.lane.b32.xlu0 %v490, 48
  %v3554 = vpop.permute.xlu0 %3553
  %v3557 = vsel %vm928, %v3407, 0
  %3559 = vmatprep.subr.bf16.mxu0 0
  %3560 = vmatpush1.bf16.msra.mxu0 %v3554
  %3561 = vmatprep.subr.bf16.mxu0 0
  %3562 = vmatpush1.bf16.msra.mxu0 0
  %3563 = vmatprep.subr.bf16.mxu0 0
  %3564 = vmatpush1.bf16.msra.mxu0 0
  %3565 = vmatprep.subr.bf16.mxu0 0
  %3566 = vmatpush1.bf16.msra.mxu0 0
  %3567 = vmatprep.subr.bf16.mxu0 0
  %3568 = vmatpush1.bf16.msra.mxu0 0
  %3569 = vmatprep.subr.bf16.mxu0 0
  %3570 = vmatpush1.bf16.msra.mxu0 0
  %3571 = vmatprep.subr.bf16.mxu0 0
  %3572 = vmatpush1.bf16.msra.mxu0 0
  %3573 = vmatprep.subr.bf16.mxu0 0
  %3574 = vmatpush1.bf16.msra.mxu0 0
  %3575 = vmatprep.subr.bf16.mxu0 0
  %3576 = vmatpush1.bf16.msra.mxu0 0
  %3577 = vmatprep.subr.bf16.mxu0 0
  %3578 = vmatpush1.bf16.msra.mxu0 0
  %3579 = vmatprep.subr.bf16.mxu0 0
  %3580 = vmatpush1.bf16.msra.mxu0 0
  %3581 = vmatprep.subr.bf16.mxu0 0
  %3582 = vmatpush1.bf16.msra.mxu0 0
  %3583 = vmatprep.subr.bf16.mxu0 0
  %3584 = vmatpush1.bf16.msra.mxu0 0
  %3585 = vmatprep.subr.bf16.mxu0 0
  %3586 = vmatpush1.bf16.msra.mxu0 0
  %3587 = vmatprep.subr.bf16.mxu0 0
  %3588 = vmatpush1.bf16.msra.mxu0 0
  %3589 = vmatprep.subr.bf16.mxu0 0
  %3590 = vmatpush1.bf16.msra.mxu0 0
  %3591 = vmatprep.mubr.bf16.mxu0 0
  %3592 = vmatmul.mubr.bf16.gmra.mrb[0].mxu0 %v3557
  %v3593 = vpop.f32.mrb[0].mxu0
  %v3594 = vadd.f32 0.0, %v3593
  %v3595 = vpop.f32.mrb[0].mxu0
  %v3596 = vpop.f32.mrb[0].mxu0
  %v3597 = vadd.f32 0.0, %v3596
  %v3598 = vpop.f32.mrb[0].mxu0
  %3599 = vdwg.mxu0
  %3600 = vrot.lane.b32.xlu0 %v491, 48
  %v3601 = vpop.permute.xlu0 %3600
  %v3604 = vsel %vm928, %v3408, 0
  %3606 = vmatprep.subr.bf16.mxu0 0
  %3607 = vmatpush1.bf16.msra.mxu0 %v3601
  %3608 = vmatprep.subr.bf16.mxu0 0
  %3609 = vmatpush1.bf16.msra.mxu0 0
  %3610 = vmatprep.subr.bf16.mxu0 0
  %3611 = vmatpush1.bf16.msra.mxu0 0
  %3612 = vmatprep.subr.bf16.mxu0 0
  %3613 = vmatpush1.bf16.msra.mxu0 0
  %3614 = vmatprep.subr.bf16.mxu0 0
  %3615 = vmatpush1.bf16.msra.mxu0 0
  %3616 = vmatprep.subr.bf16.mxu0 0
  %3617 = vmatpush1.bf16.msra.mxu0 0
  %3618 = vmatprep.subr.bf16.mxu0 0
  %3619 = vmatpush1.bf16.msra.mxu0 0
  %3620 = vmatprep.subr.bf16.mxu0 0
  %3621 = vmatpush1.bf16.msra.mxu0 0
  %3622 = vmatprep.subr.bf16.mxu0 0
  %3623 = vmatpush1.bf16.msra.mxu0 0
  %3624 = vmatprep.subr.bf16.mxu0 0
  %3625 = vmatpush1.bf16.msra.mxu0 0
  %3626 = vmatprep.subr.bf16.mxu0 0
  %3627 = vmatpush1.bf16.msra.mxu0 0
  %3628 = vmatprep.subr.bf16.mxu0 0
  %3629 = vmatpush1.bf16.msra.mxu0 0
  %3630 = vmatprep.subr.bf16.mxu0 0
  %3631 = vmatpush1.bf16.msra.mxu0 0
  %3632 = vmatprep.subr.bf16.mxu0 0
  %3633 = vmatpush1.bf16.msra.mxu0 0
  %3634 = vmatprep.subr.bf16.mxu0 0
  %3635 = vmatpush1.bf16.msra.mxu0 0
  %3636 = vmatprep.subr.bf16.mxu0 0
  %3637 = vmatpush1.bf16.msra.mxu0 0
  %3638 = vmatprep.mubr.bf16.mxu0 0
  %3639 = vmatmul.mubr.bf16.gmra.mrb[0].mxu0 %v3604
  %v3640 = vpop.f32.mrb[0].mxu0
  %v3641 = vadd.f32 0.0, %v3640
  %v3642 = vpop.f32.mrb[0].mxu0
  %v3643 = vpop.f32.mrb[0].mxu0
  %v3644 = vadd.f32 0.0, %v3643
  %v3645 = vpop.f32.mrb[0].mxu0
  %3646 = vdwg.mxu0
  %3647 = vrot.lane.b32.xlu0 %v492, 48
  %v3648 = vpop.permute.xlu0 %3647
  %v3651 = vsel %vm928, %v3409, 0
  %3653 = vmatprep.subr.bf16.mxu0 0
  %3654 = vmatpush1.bf16.msra.mxu0 %v3648
  %3655 = vmatprep.subr.bf16.mxu0 0
  %3656 = vmatpush1.bf16.msra.mxu0 0
  %3657 = vmatprep.subr.bf16.mxu0 0
  %3658 = vmatpush1.bf16.msra.mxu0 0
  %3659 = vmatprep.subr.bf16.mxu0 0
  %3660 = vmatpush1.bf16.msra.mxu0 0
  %3661 = vmatprep.subr.bf16.mxu0 0
  %3662 = vmatpush1.bf16.msra.mxu0 0
  %3663 = vmatprep.subr.bf16.mxu0 0
  %3664 = vmatpush1.bf16.msra.mxu0 0
  %3665 = vmatprep.subr.bf16.mxu0 0
  %3666 = vmatpush1.bf16.msra.mxu0 0
  %3667 = vmatprep.subr.bf16.mxu0 0
  %3668 = vmatpush1.bf16.msra.mxu0 0
  %3669 = vmatprep.subr.bf16.mxu0 0
  %3670 = vmatpush1.bf16.msra.mxu0 0
  %3671 = vmatprep.subr.bf16.mxu0 0
  %3672 = vmatpush1.bf16.msra.mxu0 0
  %3673 = vmatprep.subr.bf16.mxu0 0
  %3674 = vmatpush1.bf16.msra.mxu0 0
  %3675 = vmatprep.subr.bf16.mxu0 0
  %3676 = vmatpush1.bf16.msra.mxu0 0
  %3677 = vmatprep.subr.bf16.mxu0 0
  %3678 = vmatpush1.bf16.msra.mxu0 0
  %3679 = vmatprep.subr.bf16.mxu0 0
  %3680 = vmatpush1.bf16.msra.mxu0 0
  %3681 = vmatprep.subr.bf16.mxu0 0
  %3682 = vmatpush1.bf16.msra.mxu0 0
  %3683 = vmatprep.subr.bf16.mxu0 0
  %3684 = vmatpush1.bf16.msra.mxu0 0
  %3685 = vmatprep.mubr.bf16.mxu0 0
  %3686 = vmatmul.mubr.bf16.gmra.mrb[0].mxu0 %v3651
  %v3687 = vpop.f32.mrb[0].mxu0
  %v3688 = vadd.f32 0.0, %v3687
  %v3689 = vpop.f32.mrb[0].mxu0
  %v3690 = vpop.f32.mrb[0].mxu0
  %v3691 = vadd.f32 0.0, %v3690
  %v3692 = vpop.f32.mrb[0].mxu0
  %3693 = vdwg.mxu0
  %3694 = vrot.lane.b32.xlu0 %v493, 48
  %v3695 = vpop.permute.xlu0 %3694
  %v3698 = vsel %vm928, %v3410, 0
  %3700 = vmatprep.subr.bf16.mxu0 0
  %3701 = vmatpush1.bf16.msra.mxu0 %v3695
  %3702 = vmatprep.subr.bf16.mxu0 0
  %3703 = vmatpush1.bf16.msra.mxu0 0
  %3704 = vmatprep.subr.bf16.mxu0 0
  %3705 = vmatpush1.bf16.msra.mxu0 0
  %3706 = vmatprep.subr.bf16.mxu0 0
  %3707 = vmatpush1.bf16.msra.mxu0 0
  %3708 = vmatprep.subr.bf16.mxu0 0
  %3709 = vmatpush1.bf16.msra.mxu0 0
  %3710 = vmatprep.subr.bf16.mxu0 0
  %3711 = vmatpush1.bf16.msra.mxu0 0
  %3712 = vmatprep.subr.bf16.mxu0 0
  %3713 = vmatpush1.bf16.msra.mxu0 0
  %3714 = vmatprep.subr.bf16.mxu0 0
  %3715 = vmatpush1.bf16.msra.mxu0 0
  %3716 = vmatprep.subr.bf16.mxu0 0
  %3717 = vmatpush1.bf16.msra.mxu0 0
  %3718 = vmatprep.subr.bf16.mxu0 0
  %3719 = vmatpush1.bf16.msra.mxu0 0
  %3720 = vmatprep.subr.bf16.mxu0 0
  %3721 = vmatpush1.bf16.msra.mxu0 0
  %3722 = vmatprep.subr.bf16.mxu0 0
  %3723 = vmatpush1.bf16.msra.mxu0 0
  %3724 = vmatprep.subr.bf16.mxu0 0
  %3725 = vmatpush1.bf16.msra.mxu0 0
  %3726 = vmatprep.subr.bf16.mxu0 0
  %3727 = vmatpush1.bf16.msra.mxu0 0
  %3728 = vmatprep.subr.bf16.mxu0 0
  %3729 = vmatpush1.bf16.msra.mxu0 0
  %3730 = vmatprep.subr.bf16.mxu0 0
  %3731 = vmatpush1.bf16.msra.mxu0 0
  %3732 = vmatprep.mubr.bf16.mxu0 0
  %3733 = vmatmul.mubr.bf16.gmra.mrb[0].mxu0 %v3698
  %v3734 = vpop.f32.mrb[0].mxu0
  %v3735 = vadd.f32 0.0, %v3734
  %v3736 = vpop.f32.mrb[0].mxu0
  %v3737 = vpop.f32.mrb[0].mxu0
  %v3738 = vadd.f32 0.0, %v3737
  %v3739 = vpop.f32.mrb[0].mxu0
  %3740 = vdwg.mxu0
  %3741 = vrot.lane.b32.xlu0 %v494, 48
  %v3742 = vpop.permute.xlu0 %3741
  %v3745 = vsel %vm928, %v3411, 0
  %3747 = vmatprep.subr.bf16.mxu0 0
  %3748 = vmatpush1.bf16.msra.mxu0 %v3742
  %3749 = vmatprep.subr.bf16.mxu0 0
  %3750 = vmatpush1.bf16.msra.mxu0 0
  %3751 = vmatprep.subr.bf16.mxu0 0
  %3752 = vmatpush1.bf16.msra.mxu0 0
  %3753 = vmatprep.subr.bf16.mxu0 0
  %3754 = vmatpush1.bf16.msra.mxu0 0
  %3755 = vmatprep.subr.bf16.mxu0 0
  %3756 = vmatpush1.bf16.msra.mxu0 0
  %3757 = vmatprep.subr.bf16.mxu0 0
  %3758 = vmatpush1.bf16.msra.mxu0 0
  %3759 = vmatprep.subr.bf16.mxu0 0
  %3760 = vmatpush1.bf16.msra.mxu0 0
  %3761 = vmatprep.subr.bf16.mxu0 0
  %3762 = vmatpush1.bf16.msra.mxu0 0
  %3763 = vmatprep.subr.bf16.mxu0 0
  %3764 = vmatpush1.bf16.msra.mxu0 0
  %3765 = vmatprep.subr.bf16.mxu0 0
  %3766 = vmatpush1.bf16.msra.mxu0 0
  %3767 = vmatprep.subr.bf16.mxu0 0
  %3768 = vmatpush1.bf16.msra.mxu0 0
  %3769 = vmatprep.subr.bf16.mxu0 0
  %3770 = vmatpush1.bf16.msra.mxu0 0
  %3771 = vmatprep.subr.bf16.mxu0 0
  %3772 = vmatpush1.bf16.msra.mxu0 0
  %3773 = vmatprep.subr.bf16.mxu0 0
  %3774 = vmatpush1.bf16.msra.mxu0 0
  %3775 = vmatprep.subr.bf16.mxu0 0
  %3776 = vmatpush1.bf16.msra.mxu0 0
  %3777 = vmatprep.subr.bf16.mxu0 0
  %3778 = vmatpush1.bf16.msra.mxu0 0
  %3779 = vmatprep.mubr.bf16.mxu0 0
  %3780 = vmatmul.mubr.bf16.gmra.mrb[0].mxu0 %v3745
  %v3781 = vpop.f32.mrb[0].mxu0
  %v3782 = vadd.f32 0.0, %v3781
  %v3783 = vpop.f32.mrb[0].mxu0
  %v3784 = vpop.f32.mrb[0].mxu0
  %v3785 = vadd.f32 0.0, %v3784
  %v3786 = vpop.f32.mrb[0].mxu0
  %3787 = vdwg.mxu0
  %v3788 = vpack.c.bf16 %v3456, %v3453
  %v3789 = vpack.c.bf16 %v3503, %v3500
  %v3790 = vpack.c.bf16 %v3550, %v3547
  %v3791 = vpack.c.bf16 %v3597, %v3594
  %v3792 = vpack.c.bf16 %v3644, %v3641
  %v3793 = vpack.c.bf16 %v3691, %v3688
  %v3794 = vpack.c.bf16 %v3738, %v3735
  %v3795 = vpack.c.bf16 %v3785, %v3782
  %v3796 = vld [vmem:[%s5 + $0x8] sm:$0xf]
  %v3798 = vsel %vm498, %v3788, 0
  %v3801 = vsel %vm498, %v3789, 0
  %v3804 = vsel %vm498, %v3790, 0
  %v3807 = vsel %vm498, %v3791, 0
  %v3810 = vsel %vm498, %v3792, 0
  %v3813 = vsel %vm498, %v3793, 0
  %v3816 = vsel %vm498, %v3794, 0
  %v3819 = vsel %vm498, %v3795, 0
  %v3822 = vsel %vm1522, %v3796, 0
  %3824 = vmatprep.subr.bf16.mxu0 0
  %3825 = vmatpush1.bf16.msra.mxu0 %v3822
  %3826 = vmatprep.subr.bf16.mxu0 0
  %3827 = vmatpush1.bf16.msra.mxu0 0
  %3828 = vmatprep.subr.bf16.mxu0 0
  %3829 = vmatpush1.bf16.msra.mxu0 0
  %3830 = vmatprep.subr.bf16.mxu0 0
  %3831 = vmatpush1.bf16.msra.mxu0 0
  %3832 = vmatprep.subr.bf16.mxu0 0
  %3833 = vmatpush1.bf16.msra.mxu0 0
  %3834 = vmatprep.subr.bf16.mxu0 0
  %3835 = vmatpush1.bf16.msra.mxu0 0
  %3836 = vmatprep.subr.bf16.mxu0 0
  %3837 = vmatpush1.bf16.msra.mxu0 0
  %3838 = vmatprep.subr.bf16.mxu0 0
  %3839 = vmatpush1.bf16.msra.mxu0 0
  %3840 = vmatprep.subr.bf16.mxu0 0
  %3841 = vmatpush1.bf16.msra.mxu0 0
  %3842 = vmatprep.subr.bf16.mxu0 0
  %3843 = vmatpush1.bf16.msra.mxu0 0
  %3844 = vmatprep.subr.bf16.mxu0 0
  %3845 = vmatpush1.bf16.msra.mxu0 0
  %3846 = vmatprep.subr.bf16.mxu0 0
  %3847 = vmatpush1.bf16.msra.mxu0 0
  %3848 = vmatprep.subr.bf16.mxu0 0
  %3849 = vmatpush1.bf16.msra.mxu0 0
  %3850 = vmatprep.subr.bf16.mxu0 0
  %3851 = vmatpush1.bf16.msra.mxu0 0
  %3852 = vmatprep.subr.bf16.mxu0 0
  %3853 = vmatpush1.bf16.msra.mxu0 0
  %3854 = vmatprep.subr.bf16.mxu0 0
  %3855 = vmatpush1.bf16.msra.mxu0 0
  %3856 = vmatprep.mubr.bf16.mxu0 0
  %3857 = vmatmul.mubr.bf16.gmra.mrb[0].mxu0 %v3798
  %v3858 = vpop.f32.mrb[0].mxu0
  %v3859 = vadd.f32 0.0, %v3858
  %v3860 = vpop.f32.mrb[0].mxu0
  %v3861 = vpop.f32.mrb[0].mxu0
  %v3862 = vadd.f32 0.0, %v3861
  %v3863 = vpop.f32.mrb[0].mxu0
  %3864 = vmatprep.mubr.bf16.mxu0 0
  %3865 = vmatmul.mubr.bf16.gmra.mrb[0].mxu0 %v3801
  %v3866 = vpop.f32.mrb[0].mxu0
  %v3867 = vadd.f32 0.0, %v3866
  %v3868 = vpop.f32.mrb[0].mxu0
  %v3869 = vpop.f32.mrb[0].mxu0
  %v3870 = vadd.f32 0.0, %v3869
  %v3871 = vpop.f32.mrb[0].mxu0
  %3872 = vmatprep.mubr.bf16.mxu0 0
  %3873 = vmatmul.mubr.bf16.gmra.mrb[0].mxu0 %v3804
  %v3874 = vpop.f32.mrb[0].mxu0
  %v3875 = vadd.f32 0.0, %v3874
  %v3876 = vpop.f32.mrb[0].mxu0
  %v3877 = vpop.f32.mrb[0].mxu0
  %v3878 = vadd.f32 0.0, %v3877
  %v3879 = vpop.f32.mrb[0].mxu0
  %3880 = vmatprep.mubr.bf16.mxu0 0
  %3881 = vmatmul.mubr.bf16.gmra.mrb[0].mxu0 %v3807
  %v3882 = vpop.f32.mrb[0].mxu0
  %v3883 = vadd.f32 0.0, %v3882
  %v3884 = vpop.f32.mrb[0].mxu0
  %v3885 = vpop.f32.mrb[0].mxu0
  %v3886 = vadd.f32 0.0, %v3885
  %v3887 = vpop.f32.mrb[0].mxu0
  %3888 = vmatprep.mubr.bf16.mxu0 0
  %3889 = vmatmul.mubr.bf16.gmra.mrb[0].mxu0 %v3810
  %v3890 = vpop.f32.mrb[0].mxu0
  %v3891 = vadd.f32 0.0, %v3890
  %v3892 = vpop.f32.mrb[0].mxu0
  %v3893 = vpop.f32.mrb[0].mxu0
  %v3894 = vadd.f32 0.0, %v3893
  %v3895 = vpop.f32.mrb[0].mxu0
  %3896 = vmatprep.mubr.bf16.mxu0 0
  %3897 = vmatmul.mubr.bf16.gmra.mrb[0].mxu0 %v3813
  %v3898 = vpop.f32.mrb[0].mxu0
  %v3899 = vadd.f32 0.0, %v3898
  %v3900 = vpop.f32.mrb[0].mxu0
  %v3901 = vpop.f32.mrb[0].mxu0
  %v3902 = vadd.f32 0.0, %v3901
  %v3903 = vpop.f32.mrb[0].mxu0
  %3904 = vmatprep.mubr.bf16.mxu0 0
  %3905 = vmatmul.mubr.bf16.gmra.mrb[0].mxu0 %v3816
  %v3906 = vpop.f32.mrb[0].mxu0
  %v3907 = vadd.f32 0.0, %v3906
  %v3908 = vpop.f32.mrb[0].mxu0
  %v3909 = vpop.f32.mrb[0].mxu0
  %v3910 = vadd.f32 0.0, %v3909
  %v3911 = vpop.f32.mrb[0].mxu0
  %3912 = vmatprep.mubr.bf16.mxu0 0
  %3913 = vmatmul.mubr.bf16.gmra.mrb[0].mxu0 %v3819
  %v3914 = vpop.f32.mrb[0].mxu0
  %v3915 = vadd.f32 0.0, %v3914
  %v3916 = vpop.f32.mrb[0].mxu0
  %v3917 = vpop.f32.mrb[0].mxu0
  %v3918 = vadd.f32 0.0, %v3917
  %v3919 = vpop.f32.mrb[0].mxu0
  %3920 = vdwg.mxu0
  %v3921 = vadd.f32 %v2772, %v3859
  %v3922 = vadd.f32 %v2773, %v3862
  %v3923 = vadd.f32 %v2774, %v3867
  %v3924 = vadd.f32 %v2775, %v3870
  %v3925 = vadd.f32 %v2776, %v3875
  %v3926 = vadd.f32 %v2777, %v3878
  %v3927 = vadd.f32 %v2778, %v3883
  %v3928 = vadd.f32 %v2779, %v3886
  %v3929 = vadd.f32 %v2780, %v3891
  %v3930 = vadd.f32 %v2781, %v3894
  %v3931 = vadd.f32 %v2782, %v3899
  %v3932 = vadd.f32 %v2783, %v3902
  %v3933 = vadd.f32 %v2784, %v3907
  %v3934 = vadd.f32 %v2785, %v3910
  %v3935 = vadd.f32 %v2786, %v3915
  %v3936 = vadd.f32 %v2787, %v3918
  %3937 = vrot.lane.b32.xlu0 %v487, 104
  %v3938 = vpop.permute.xlu0 %3937
  %3939 = vrot.lane.b32.xlu0 %v487, 72
  %v3940 = vpop.permute.xlu0 %3939
  %v3942 = vsel %vm498, %v3938, 0
  %v3945 = vsel %vm498, %v3940, 0
  %3947 = vmatprep.subr.bf16.mxu0 0
  %3948 = vmatpush1.bf16.xpose.msra.mxu0 %v3945
  %3949 = vmatprep.subr.bf16.mxu0 0
  %3950 = vmatpush1.bf16.xpose.msra.mxu0 0
  %3951 = vmatprep.subr.bf16.mxu0 0
  %3952 = vmatpush1.bf16.xpose.msra.mxu0 0
  %3953 = vmatprep.subr.bf16.mxu0 0
  %3954 = vmatpush1.bf16.xpose.msra.mxu0 0
  %3955 = vmatprep.subr.bf16.mxu0 0
  %3956 = vmatpush1.bf16.xpose.msra.mxu0 0
  %3957 = vmatprep.subr.bf16.mxu0 0
  %3958 = vmatpush1.bf16.xpose.msra.mxu0 0
  %3959 = vmatprep.subr.bf16.mxu0 0
  %3960 = vmatpush1.bf16.xpose.msra.mxu0 0
  %3961 = vmatprep.subr.bf16.mxu0 0
  %3962 = vmatpush1.bf16.xpose.msra.mxu0 0
  %3963 = vmatprep.subr.bf16.mxu0 0
  %3964 = vmatpush1.bf16.xpose.msra.mxu0 0
  %3965 = vmatprep.subr.bf16.mxu0 0
  %3966 = vmatpush1.bf16.xpose.msra.mxu0 0
  %3967 = vmatprep.subr.bf16.mxu0 0
  %3968 = vmatpush1.bf16.xpose.msra.mxu0 0
  %3969 = vmatprep.subr.bf16.mxu0 0
  %3970 = vmatpush1.bf16.xpose.msra.mxu0 0
  %3971 = vmatprep.subr.bf16.mxu0 0
  %3972 = vmatpush1.bf16.xpose.msra.mxu0 0
  %3973 = vmatprep.subr.bf16.mxu0 0
  %3974 = vmatpush1.bf16.xpose.msra.mxu0 0
  %3975 = vmatprep.subr.bf16.mxu0 0
  %3976 = vmatpush1.bf16.xpose.msra.mxu0 0
  %3977 = vmatprep.subr.bf16.mxu0 0
  %3978 = vmatpush1.bf16.xpose.msra.mxu0 0
  %3979 = vmatprep.mubr.bf16.mxu0 0
  %3980 = vmatmul.mubr.bf16.gmra.mrb[0].mxu0 %v3942
  %v3981 = vpop.f32.mrb[0].mxu0
  %v3982 = vadd.f32 0.0, %v3981
  %v3983 = vpop.f32.mrb[0].mxu0
  %v3984 = vpop.f32.mrb[0].mxu0
  %v3985 = vadd.f32 0.0, %v3984
  %v3986 = vpop.f32.mrb[0].mxu0
  %3987 = vdwg.mxu0
  %3988 = vrot.lane.b32.xlu0 %v488, 104
  %v3989 = vpop.permute.xlu0 %3988
  %3990 = vrot.lane.b32.xlu0 %v488, 72
  %v3991 = vpop.permute.xlu0 %3990
  %v3993 = vsel %vm498, %v3989, 0
  %v3996 = vsel %vm498, %v3991, 0
  %3998 = vmatprep.subr.bf16.mxu0 0
  %3999 = vmatpush1.bf16.xpose.msra.mxu0 %v3996
  %4000 = vmatprep.subr.bf16.mxu0 0
  %4001 = vmatpush1.bf16.xpose.msra.mxu0 0
  %4002 = vmatprep.subr.bf16.mxu0 0
  %4003 = vmatpush1.bf16.xpose.msra.mxu0 0
  %4004 = vmatprep.subr.bf16.mxu0 0
  %4005 = vmatpush1.bf16.xpose.msra.mxu0 0
  %4006 = vmatprep.subr.bf16.mxu0 0
  %4007 = vmatpush1.bf16.xpose.msra.mxu0 0
  %4008 = vmatprep.subr.bf16.mxu0 0
  %4009 = vmatpush1.bf16.xpose.msra.mxu0 0
  %4010 = vmatprep.subr.bf16.mxu0 0
  %4011 = vmatpush1.bf16.xpose.msra.mxu0 0
  %4012 = vmatprep.subr.bf16.mxu0 0
  %4013 = vmatpush1.bf16.xpose.msra.mxu0 0
  %4014 = vmatprep.subr.bf16.mxu0 0
  %4015 = vmatpush1.bf16.xpose.msra.mxu0 0
  %4016 = vmatprep.subr.bf16.mxu0 0
  %4017 = vmatpush1.bf16.xpose.msra.mxu0 0
  %4018 = vmatprep.subr.bf16.mxu0 0
  %4019 = vmatpush1.bf16.xpose.msra.mxu0 0
  %4020 = vmatprep.subr.bf16.mxu0 0
  %4021 = vmatpush1.bf16.xpose.msra.mxu0 0
  %4022 = vmatprep.subr.bf16.mxu0 0
  %4023 = vmatpush1.bf16.xpose.msra.mxu0 0
  %4024 = vmatprep.subr.bf16.mxu0 0
  %4025 = vmatpush1.bf16.xpose.msra.mxu0 0
  %4026 = vmatprep.subr.bf16.mxu0 0
  %4027 = vmatpush1.bf16.xpose.msra.mxu0 0
  %4028 = vmatprep.subr.bf16.mxu0 0
  %4029 = vmatpush1.bf16.xpose.msra.mxu0 0
  %4030 = vmatprep.mubr.bf16.mxu0 0
  %4031 = vmatmul.mubr.bf16.gmra.mrb[0].mxu0 %v3993
  %v4032 = vpop.f32.mrb[0].mxu0
  %v4033 = vadd.f32 0.0, %v4032
  %v4034 = vpop.f32.mrb[0].mxu0
  %v4035 = vpop.f32.mrb[0].mxu0
  %v4036 = vadd.f32 0.0, %v4035
  %v4037 = vpop.f32.mrb[0].mxu0
  %4038 = vdwg.mxu0
  %4039 = vrot.lane.b32.xlu0 %v489, 104
  %v4040 = vpop.permute.xlu0 %4039
  %4041 = vrot.lane.b32.xlu0 %v489, 72
  %v4042 = vpop.permute.xlu0 %4041
  %v4044 = vsel %vm498, %v4040, 0
  %v4047 = vsel %vm498, %v4042, 0
  %4049 = vmatprep.subr.bf16.mxu0 0
  %4050 = vmatpush1.bf16.xpose.msra.mxu0 %v4047
  %4051 = vmatprep.subr.bf16.mxu0 0
  %4052 = vmatpush1.bf16.xpose.msra.mxu0 0
  %4053 = vmatprep.subr.bf16.mxu0 0
  %4054 = vmatpush1.bf16.xpose.msra.mxu0 0
  %4055 = vmatprep.subr.bf16.mxu0 0
  %4056 = vmatpush1.bf16.xpose.msra.mxu0 0
  %4057 = vmatprep.subr.bf16.mxu0 0
  %4058 = vmatpush1.bf16.xpose.msra.mxu0 0
  %4059 = vmatprep.subr.bf16.mxu0 0
  %4060 = vmatpush1.bf16.xpose.msra.mxu0 0
  %4061 = vmatprep.subr.bf16.mxu0 0
  %4062 = vmatpush1.bf16.xpose.msra.mxu0 0
  %4063 = vmatprep.subr.bf16.mxu0 0
  %4064 = vmatpush1.bf16.xpose.msra.mxu0 0
  %4065 = vmatprep.subr.bf16.mxu0 0
  %4066 = vmatpush1.bf16.xpose.msra.mxu0 0
  %4067 = vmatprep.subr.bf16.mxu0 0
  %4068 = vmatpush1.bf16.xpose.msra.mxu0 0
  %4069 = vmatprep.subr.bf16.mxu0 0
  %4070 = vmatpush1.bf16.xpose.msra.mxu0 0
  %4071 = vmatprep.subr.bf16.mxu0 0
  %4072 = vmatpush1.bf16.xpose.msra.mxu0 0
  %4073 = vmatprep.subr.bf16.mxu0 0
  %4074 = vmatpush1.bf16.xpose.msra.mxu0 0
  %4075 = vmatprep.subr.bf16.mxu0 0
  %4076 = vmatpush1.bf16.xpose.msra.mxu0 0
  %4077 = vmatprep.subr.bf16.mxu0 0
  %4078 = vmatpush1.bf16.xpose.msra.mxu0 0
  %4079 = vmatprep.subr.bf16.mxu0 0
  %4080 = vmatpush1.bf16.xpose.msra.mxu0 0
  %4081 = vmatprep.mubr.bf16.mxu0 0
  %4082 = vmatmul.mubr.bf16.gmra.mrb[0].mxu0 %v4044
  %v4083 = vpop.f32.mrb[0].mxu0
  %v4084 = vadd.f32 0.0, %v4083
  %v4085 = vpop.f32.mrb[0].mxu0
  %v4086 = vpop.f32.mrb[0].mxu0
  %v4087 = vadd.f32 0.0, %v4086
  %v4088 = vpop.f32.mrb[0].mxu0
  %4089 = vdwg.mxu0
  %4090 = vrot.lane.b32.xlu0 %v490, 104
  %v4091 = vpop.permute.xlu0 %4090
  %4092 = vrot.lane.b32.xlu0 %v490, 72
  %v4093 = vpop.permute.xlu0 %4092
  %v4095 = vsel %vm498, %v4091, 0
  %v4098 = vsel %vm498, %v4093, 0
  %4100 = vmatprep.subr.bf16.mxu0 0
  %4101 = vmatpush1.bf16.xpose.msra.mxu0 %v4098
  %4102 = vmatprep.subr.bf16.mxu0 0
  %4103 = vmatpush1.bf16.xpose.msra.mxu0 0
  %4104 = vmatprep.subr.bf16.mxu0 0
  %4105 = vmatpush1.bf16.xpose.msra.mxu0 0
  %4106 = vmatprep.subr.bf16.mxu0 0
  %4107 = vmatpush1.bf16.xpose.msra.mxu0 0
  %4108 = vmatprep.subr.bf16.mxu0 0
  %4109 = vmatpush1.bf16.xpose.msra.mxu0 0
  %4110 = vmatprep.subr.bf16.mxu0 0
  %4111 = vmatpush1.bf16.xpose.msra.mxu0 0
  %4112 = vmatprep.subr.bf16.mxu0 0
  %4113 = vmatpush1.bf16.xpose.msra.mxu0 0
  %4114 = vmatprep.subr.bf16.mxu0 0
  %4115 = vmatpush1.bf16.xpose.msra.mxu0 0
  %4116 = vmatprep.subr.bf16.mxu0 0
  %4117 = vmatpush1.bf16.xpose.msra.mxu0 0
  %4118 = vmatprep.subr.bf16.mxu0 0
  %4119 = vmatpush1.bf16.xpose.msra.mxu0 0
  %4120 = vmatprep.subr.bf16.mxu0 0
  %4121 = vmatpush1.bf16.xpose.msra.mxu0 0
  %4122 = vmatprep.subr.bf16.mxu0 0
  %4123 = vmatpush1.bf16.xpose.msra.mxu0 0
  %4124 = vmatprep.subr.bf16.mxu0 0
  %4125 = vmatpush1.bf16.xpose.msra.mxu0 0
  %4126 = vmatprep.subr.bf16.mxu0 0
  %4127 = vmatpush1.bf16.xpose.msra.mxu0 0
  %4128 = vmatprep.subr.bf16.mxu0 0
  %4129 = vmatpush1.bf16.xpose.msra.mxu0 0
  %4130 = vmatprep.subr.bf16.mxu0 0
  %4131 = vmatpush1.bf16.xpose.msra.mxu0 0
  %4132 = vmatprep.mubr.bf16.mxu0 0
  %4133 = vmatmul.mubr.bf16.gmra.mrb[0].mxu0 %v4095
  %v4134 = vpop.f32.mrb[0].mxu0
  %v4135 = vadd.f32 0.0, %v4134
  %v4136 = vpop.f32.mrb[0].mxu0
  %v4137 = vpop.f32.mrb[0].mxu0
  %v4138 = vadd.f32 0.0, %v4137
  %v4139 = vpop.f32.mrb[0].mxu0
  %4140 = vdwg.mxu0
  %4141 = vrot.lane.b32.xlu0 %v491, 104
  %v4142 = vpop.permute.xlu0 %4141
  %4143 = vrot.lane.b32.xlu0 %v491, 72
  %v4144 = vpop.permute.xlu0 %4143
  %v4146 = vsel %vm498, %v4142, 0
  %v4149 = vsel %vm498, %v4144, 0
  %4151 = vmatprep.subr.bf16.mxu0 0
  %4152 = vmatpush1.bf16.xpose.msra.mxu0 %v4149
  %4153 = vmatprep.subr.bf16.mxu0 0
  %4154 = vmatpush1.bf16.xpose.msra.mxu0 0
  %4155 = vmatprep.subr.bf16.mxu0 0
  %4156 = vmatpush1.bf16.xpose.msra.mxu0 0
  %4157 = vmatprep.subr.bf16.mxu0 0
  %4158 = vmatpush1.bf16.xpose.msra.mxu0 0
  %4159 = vmatprep.subr.bf16.mxu0 0
  %4160 = vmatpush1.bf16.xpose.msra.mxu0 0
  %4161 = vmatprep.subr.bf16.mxu0 0
  %4162 = vmatpush1.bf16.xpose.msra.mxu0 0
  %4163 = vmatprep.subr.bf16.mxu0 0
  %4164 = vmatpush1.bf16.xpose.msra.mxu0 0
  %4165 = vmatprep.subr.bf16.mxu0 0
  %4166 = vmatpush1.bf16.xpose.msra.mxu0 0
  %4167 = vmatprep.subr.bf16.mxu0 0
  %4168 = vmatpush1.bf16.xpose.msra.mxu0 0
  %4169 = vmatprep.subr.bf16.mxu0 0
  %4170 = vmatpush1.bf16.xpose.msra.mxu0 0
  %4171 = vmatprep.subr.bf16.mxu0 0
  %4172 = vmatpush1.bf16.xpose.msra.mxu0 0
  %4173 = vmatprep.subr.bf16.mxu0 0
  %4174 = vmatpush1.bf16.xpose.msra.mxu0 0
  %4175 = vmatprep.subr.bf16.mxu0 0
  %4176 = vmatpush1.bf16.xpose.msra.mxu0 0
  %4177 = vmatprep.subr.bf16.mxu0 0
  %4178 = vmatpush1.bf16.xpose.msra.mxu0 0
  %4179 = vmatprep.subr.bf16.mxu0 0
  %4180 = vmatpush1.bf16.xpose.msra.mxu0 0
  %4181 = vmatprep.subr.bf16.mxu0 0
  %4182 = vmatpush1.bf16.xpose.msra.mxu0 0
  %4183 = vmatprep.mubr.bf16.mxu0 0
  %4184 = vmatmul.mubr.bf16.gmra.mrb[0].mxu0 %v4146
  %v4185 = vpop.f32.mrb[0].mxu0
  %v4186 = vadd.f32 0.0, %v4185
  %v4187 = vpop.f32.mrb[0].mxu0
  %v4188 = vpop.f32.mrb[0].mxu0
  %v4189 = vadd.f32 0.0, %v4188
  %v4190 = vpop.f32.mrb[0].mxu0
  %4191 = vdwg.mxu0
  %4192 = vrot.lane.b32.xlu0 %v492, 104
  %v4193 = vpop.permute.xlu0 %4192
  %4194 = vrot.lane.b32.xlu0 %v492, 72
  %v4195 = vpop.permute.xlu0 %4194
  %v4197 = vsel %vm498, %v4193, 0
  %v4200 = vsel %vm498, %v4195, 0
  %4202 = vmatprep.subr.bf16.mxu0 0
  %4203 = vmatpush1.bf16.xpose.msra.mxu0 %v4200
  %4204 = vmatprep.subr.bf16.mxu0 0
  %4205 = vmatpush1.bf16.xpose.msra.mxu0 0
  %4206 = vmatprep.subr.bf16.mxu0 0
  %4207 = vmatpush1.bf16.xpose.msra.mxu0 0
  %4208 = vmatprep.subr.bf16.mxu0 0
  %4209 = vmatpush1.bf16.xpose.msra.mxu0 0
  %4210 = vmatprep.subr.bf16.mxu0 0
  %4211 = vmatpush1.bf16.xpose.msra.mxu0 0
  %4212 = vmatprep.subr.bf16.mxu0 0
  %4213 = vmatpush1.bf16.xpose.msra.mxu0 0
  %4214 = vmatprep.subr.bf16.mxu0 0
  %4215 = vmatpush1.bf16.xpose.msra.mxu0 0
  %4216 = vmatprep.subr.bf16.mxu0 0
  %4217 = vmatpush1.bf16.xpose.msra.mxu0 0
  %4218 = vmatprep.subr.bf16.mxu0 0
  %4219 = vmatpush1.bf16.xpose.msra.mxu0 0
  %4220 = vmatprep.subr.bf16.mxu0 0
  %4221 = vmatpush1.bf16.xpose.msra.mxu0 0
  %4222 = vmatprep.subr.bf16.mxu0 0
  %4223 = vmatpush1.bf16.xpose.msra.mxu0 0
  %4224 = vmatprep.subr.bf16.mxu0 0
  %4225 = vmatpush1.bf16.xpose.msra.mxu0 0
  %4226 = vmatprep.subr.bf16.mxu0 0
  %4227 = vmatpush1.bf16.xpose.msra.mxu0 0
  %4228 = vmatprep.subr.bf16.mxu0 0
  %4229 = vmatpush1.bf16.xpose.msra.mxu0 0
  %4230 = vmatprep.subr.bf16.mxu0 0
  %4231 = vmatpush1.bf16.xpose.msra.mxu0 0
  %4232 = vmatprep.subr.bf16.mxu0 0
  %4233 = vmatpush1.bf16.xpose.msra.mxu0 0
  %4234 = vmatprep.mubr.bf16.mxu0 0
  %4235 = vmatmul.mubr.bf16.gmra.mrb[0].mxu0 %v4197
  %v4236 = vpop.f32.mrb[0].mxu0
  %v4237 = vadd.f32 0.0, %v4236
  %v4238 = vpop.f32.mrb[0].mxu0
  %v4239 = vpop.f32.mrb[0].mxu0
  %v4240 = vadd.f32 0.0, %v4239
  %v4241 = vpop.f32.mrb[0].mxu0
  %4242 = vdwg.mxu0
  %4243 = vrot.lane.b32.xlu0 %v493, 104
  %v4244 = vpop.permute.xlu0 %4243
  %4245 = vrot.lane.b32.xlu0 %v493, 72
  %v4246 = vpop.permute.xlu0 %4245
  %v4248 = vsel %vm498, %v4244, 0
  %v4251 = vsel %vm498, %v4246, 0
  %4253 = vmatprep.subr.bf16.mxu0 0
  %4254 = vmatpush1.bf16.xpose.msra.mxu0 %v4251
  %4255 = vmatprep.subr.bf16.mxu0 0
  %4256 = vmatpush1.bf16.xpose.msra.mxu0 0
  %4257 = vmatprep.subr.bf16.mxu0 0
  %4258 = vmatpush1.bf16.xpose.msra.mxu0 0
  %4259 = vmatprep.subr.bf16.mxu0 0
  %4260 = vmatpush1.bf16.xpose.msra.mxu0 0
  %4261 = vmatprep.subr.bf16.mxu0 0
  %4262 = vmatpush1.bf16.xpose.msra.mxu0 0
  %4263 = vmatprep.subr.bf16.mxu0 0
  %4264 = vmatpush1.bf16.xpose.msra.mxu0 0
  %4265 = vmatprep.subr.bf16.mxu0 0
  %4266 = vmatpush1.bf16.xpose.msra.mxu0 0
  %4267 = vmatprep.subr.bf16.mxu0 0
  %4268 = vmatpush1.bf16.xpose.msra.mxu0 0
  %4269 = vmatprep.subr.bf16.mxu0 0
  %4270 = vmatpush1.bf16.xpose.msra.mxu0 0
  %4271 = vmatprep.subr.bf16.mxu0 0
  %4272 = vmatpush1.bf16.xpose.msra.mxu0 0
  %4273 = vmatprep.subr.bf16.mxu0 0
  %4274 = vmatpush1.bf16.xpose.msra.mxu0 0
  %4275 = vmatprep.subr.bf16.mxu0 0
  %4276 = vmatpush1.bf16.xpose.msra.mxu0 0
  %4277 = vmatprep.subr.bf16.mxu0 0
  %4278 = vmatpush1.bf16.xpose.msra.mxu0 0
  %4279 = vmatprep.subr.bf16.mxu0 0
  %4280 = vmatpush1.bf16.xpose.msra.mxu0 0
  %4281 = vmatprep.subr.bf16.mxu0 0
  %4282 = vmatpush1.bf16.xpose.msra.mxu0 0
  %4283 = vmatprep.subr.bf16.mxu0 0
  %4284 = vmatpush1.bf16.xpose.msra.mxu0 0
  %4285 = vmatprep.mubr.bf16.mxu0 0
  %4286 = vmatmul.mubr.bf16.gmra.mrb[0].mxu0 %v4248
  %v4287 = vpop.f32.mrb[0].mxu0
  %v4288 = vadd.f32 0.0, %v4287
  %v4289 = vpop.f32.mrb[0].mxu0
  %v4290 = vpop.f32.mrb[0].mxu0
  %v4291 = vadd.f32 0.0, %v4290
  %v4292 = vpop.f32.mrb[0].mxu0
  %4293 = vdwg.mxu0
  %4294 = vrot.lane.b32.xlu0 %v494, 104
  %v4295 = vpop.permute.xlu0 %4294
  %4296 = vrot.lane.b32.xlu0 %v494, 72
  %v4297 = vpop.permute.xlu0 %4296
  %v4299 = vsel %vm498, %v4295, 0
  %v4302 = vsel %vm498, %v4297, 0
  %4304 = vmatprep.subr.bf16.mxu0 0
  %4305 = vmatpush1.bf16.xpose.msra.mxu0 %v4302
  %4306 = vmatprep.subr.bf16.mxu0 0
  %4307 = vmatpush1.bf16.xpose.msra.mxu0 0
  %4308 = vmatprep.subr.bf16.mxu0 0
  %4309 = vmatpush1.bf16.xpose.msra.mxu0 0
  %4310 = vmatprep.subr.bf16.mxu0 0
  %4311 = vmatpush1.bf16.xpose.msra.mxu0 0
  %4312 = vmatprep.subr.bf16.mxu0 0
  %4313 = vmatpush1.bf16.xpose.msra.mxu0 0
  %4314 = vmatprep.subr.bf16.mxu0 0
  %4315 = vmatpush1.bf16.xpose.msra.mxu0 0
  %4316 = vmatprep.subr.bf16.mxu0 0
  %4317 = vmatpush1.bf16.xpose.msra.mxu0 0
  %4318 = vmatprep.subr.bf16.mxu0 0
  %4319 = vmatpush1.bf16.xpose.msra.mxu0 0
  %4320 = vmatprep.subr.bf16.mxu0 0
  %4321 = vmatpush1.bf16.xpose.msra.mxu0 0
  %4322 = vmatprep.subr.bf16.mxu0 0
  %4323 = vmatpush1.bf16.xpose.msra.mxu0 0
  %4324 = vmatprep.subr.bf16.mxu0 0
  %4325 = vmatpush1.bf16.xpose.msra.mxu0 0
  %4326 = vmatprep.subr.bf16.mxu0 0
  %4327 = vmatpush1.bf16.xpose.msra.mxu0 0
  %4328 = vmatprep.subr.bf16.mxu0 0
  %4329 = vmatpush1.bf16.xpose.msra.mxu0 0
  %4330 = vmatprep.subr.bf16.mxu0 0
  %4331 = vmatpush1.bf16.xpose.msra.mxu0 0
  %4332 = vmatprep.subr.bf16.mxu0 0
  %4333 = vmatpush1.bf16.xpose.msra.mxu0 0
  %4334 = vmatprep.subr.bf16.mxu0 0
  %4335 = vmatpush1.bf16.xpose.msra.mxu0 0
  %4336 = vmatprep.mubr.bf16.mxu0 0
  %4337 = vmatmul.mubr.bf16.gmra.mrb[0].mxu0 %v4299
  %v4338 = vpop.f32.mrb[0].mxu0
  %v4339 = vadd.f32 0.0, %v4338
  %v4340 = vpop.f32.mrb[0].mxu0
  %v4341 = vpop.f32.mrb[0].mxu0
  %v4342 = vadd.f32 0.0, %v4341
  %v4343 = vpop.f32.mrb[0].mxu0
  %4344 = vdwg.mxu0
  %v4345 = vmul.f32 %v3982, 0.35355338
  %v4346 = vmul.f32 %v3985, 0.35355338
  %v4347 = vmul.f32 %v4033, 0.35355338
  %v4348 = vmul.f32 %v4036, 0.35355338
  %v4349 = vmul.f32 %v4084, 0.35355338
  %v4350 = vmul.f32 %v4087, 0.35355338
  %v4351 = vmul.f32 %v4135, 0.35355338
  %v4352 = vmul.f32 %v4138, 0.35355338
  %v4353 = vmul.f32 %v4186, 0.35355338
  %v4354 = vmul.f32 %v4189, 0.35355338
  %v4355 = vmul.f32 %v4237, 0.35355338
  %v4356 = vmul.f32 %v4240, 0.35355338
  %v4357 = vmul.f32 %v4288, 0.35355338
  %v4358 = vmul.f32 %v4291, 0.35355338
  %v4359 = vmul.f32 %v4339, 0.35355338
  %v4360 = vmul.f32 %v4342, 0.35355338
  %v4361 = vadd.f32 %v4345, %v478
  %v4362 = vadd.f32 %v4346, %v479
  %v4363 = vadd.f32 %v4347, %v478
  %v4364 = vadd.f32 %v4348, %v479
  %v4365 = vadd.f32 %v4349, %v478
  %v4366 = vadd.f32 %v4350, %v479
  %v4367 = vadd.f32 %v4351, %v478
  %v4368 = vadd.f32 %v4352, %v479
  %v4369 = vadd.f32 %v4353, %v478
  %v4370 = vadd.f32 %v4354, %v479
  %v4371 = vadd.f32 %v4355, %v478
  %v4372 = vadd.f32 %v4356, %v479
  %v4373 = vadd.f32 %v4357, %v478
  %v4374 = vadd.f32 %v4358, %v479
  %v4375 = vadd.f32 %v4359, %v478
  %v4376 = vadd.f32 %v4360, %v479
  %v4377 = vsel %vm928, %v4361, -inf
  %4378 = vmax.xlane.f32.xlu0 %v4377
  %v4379 = vpop.xlane.xlu0 %4378
  %v4380 = vsel %vm928, %v4362, -inf
  %4381 = vmax.xlane.f32.xlu0 %v4380
  %v4382 = vpop.xlane.xlu0 %4381
  %v4383 = vsel %vm928, %v4363, -inf
  %4384 = vmax.xlane.f32.xlu0 %v4383
  %v4385 = vpop.xlane.xlu0 %4384
  %v4386 = vsel %vm928, %v4364, -inf
  %4387 = vmax.xlane.f32.xlu0 %v4386
  %v4388 = vpop.xlane.xlu0 %4387
  %v4389 = vsel %vm928, %v4365, -inf
  %4390 = vmax.xlane.f32.xlu0 %v4389
  %v4391 = vpop.xlane.xlu0 %4390
  %v4392 = vsel %vm928, %v4366, -inf
  %4393 = vmax.xlane.f32.xlu0 %v4392
  %v4394 = vpop.xlane.xlu0 %4393
  %v4395 = vsel %vm928, %v4367, -inf
  %4396 = vmax.xlane.f32.xlu0 %v4395
  %v4397 = vpop.xlane.xlu0 %4396
  %v4398 = vsel %vm928, %v4368, -inf
  %4399 = vmax.xlane.f32.xlu0 %v4398
  %v4400 = vpop.xlane.xlu0 %4399
  %v4401 = vsel %vm928, %v4369, -inf
  %4402 = vmax.xlane.f32.xlu0 %v4401
  %v4403 = vpop.xlane.xlu0 %4402
  %v4404 = vsel %vm928, %v4370, -inf
  %4405 = vmax.xlane.f32.xlu0 %v4404
  %v4406 = vpop.xlane.xlu0 %4405
  %v4407 = vsel %vm928, %v4371, -inf
  %4408 = vmax.xlane.f32.xlu0 %v4407
  %v4409 = vpop.xlane.xlu0 %4408
  %v4410 = vsel %vm928, %v4372, -inf
  %4411 = vmax.xlane.f32.xlu0 %v4410
  %v4412 = vpop.xlane.xlu0 %4411
  %v4413 = vsel %vm928, %v4373, -inf
  %4414 = vmax.xlane.f32.xlu0 %v4413
  %v4415 = vpop.xlane.xlu0 %4414
  %v4416 = vsel %vm928, %v4374, -inf
  %4417 = vmax.xlane.f32.xlu0 %v4416
  %v4418 = vpop.xlane.xlu0 %4417
  %v4419 = vsel %vm928, %v4375, -inf
  %4420 = vmax.xlane.f32.xlu0 %v4419
  %v4421 = vpop.xlane.xlu0 %4420
  %v4422 = vsel %vm928, %v4376, -inf
  %4423 = vmax.xlane.f32.xlu0 %v4422
  %v4424 = vpop.xlane.xlu0 %4423
  %v4425 = vsub.f32 %v4361, %v4379
  %v4426 = vsub.f32 %v4362, %v4382
  %v4427 = vsub.f32 %v4363, %v4385
  %v4428 = vsub.f32 %v4364, %v4388
  %v4429 = vsub.f32 %v4365, %v4391
  %v4430 = vsub.f32 %v4366, %v4394
  %v4431 = vsub.f32 %v4367, %v4397
  %v4432 = vsub.f32 %v4368, %v4400
  %v4433 = vsub.f32 %v4369, %v4403
  %v4434 = vsub.f32 %v4370, %v4406
  %v4435 = vsub.f32 %v4371, %v4409
  %v4436 = vsub.f32 %v4372, %v4412
  %v4437 = vsub.f32 %v4373, %v4415
  %v4438 = vsub.f32 %v4374, %v4418
  %v4439 = vsub.f32 %v4375, %v4421
  %v4440 = vsub.f32 %v4376, %v4424
  %v4441 = vmul.f32 %v4425, 1.442695
  %v4442 = vpow.pop %v4441
  %v4443 = vmul.f32 %v4426, 1.442695
  %v4444 = vpow.pop %v4443
  %v4445 = vmul.f32 %v4427, 1.442695
  %v4446 = vpow.pop %v4445
  %v4447 = vmul.f32 %v4428, 1.442695
  %v4448 = vpow.pop %v4447
  %v4449 = vmul.f32 %v4429, 1.442695
  %v4450 = vpow.pop %v4449
  %v4451 = vmul.f32 %v4430, 1.442695
  %v4452 = vpow.pop %v4451
  %v4453 = vmul.f32 %v4431, 1.442695
  %v4454 = vpow.pop %v4453
  %v4455 = vmul.f32 %v4432, 1.442695
  %v4456 = vpow.pop %v4455
  %v4457 = vmul.f32 %v4433, 1.442695
  %v4458 = vpow.pop %v4457
  %v4459 = vmul.f32 %v4434, 1.442695
  %v4460 = vpow.pop %v4459
  %v4461 = vmul.f32 %v4435, 1.442695
  %v4462 = vpow.pop %v4461
  %v4463 = vmul.f32 %v4436, 1.442695
  %v4464 = vpow.pop %v4463
  %v4465 = vmul.f32 %v4437, 1.442695
  %v4466 = vpow.pop %v4465
  %v4467 = vmul.f32 %v4438, 1.442695
  %v4468 = vpow.pop %v4467
  %v4469 = vmul.f32 %v4439, 1.442695
  %v4470 = vpow.pop %v4469
  %v4471 = vmul.f32 %v4440, 1.442695
  %v4472 = vpow.pop %v4471
  %v4473 = vsel %vm928, %v4442, 0.0
  %4474 = vadd.xlane.f32.xlu0 %v4473
  %v4475 = vpop.xlane.xlu0 %4474
  %v4476 = vsel %vm928, %v4444, 0.0
  %4477 = vadd.xlane.f32.xlu0 %v4476
  %v4478 = vpop.xlane.xlu0 %4477
  %v4479 = vsel %vm928, %v4446, 0.0
  %4480 = vadd.xlane.f32.xlu0 %v4479
  %v4481 = vpop.xlane.xlu0 %4480
  %v4482 = vsel %vm928, %v4448, 0.0
  %4483 = vadd.xlane.f32.xlu0 %v4482
  %v4484 = vpop.xlane.xlu0 %4483
  %v4485 = vsel %vm928, %v4450, 0.0
  %4486 = vadd.xlane.f32.xlu0 %v4485
  %v4487 = vpop.xlane.xlu0 %4486
  %v4488 = vsel %vm928, %v4452, 0.0
  %4489 = vadd.xlane.f32.xlu0 %v4488
  %v4490 = vpop.xlane.xlu0 %4489
  %v4491 = vsel %vm928, %v4454, 0.0
  %4492 = vadd.xlane.f32.xlu0 %v4491
  %v4493 = vpop.xlane.xlu0 %4492
  %v4494 = vsel %vm928, %v4456, 0.0
  %4495 = vadd.xlane.f32.xlu0 %v4494
  %v4496 = vpop.xlane.xlu0 %4495
  %v4497 = vsel %vm928, %v4458, 0.0
  %4498 = vadd.xlane.f32.xlu0 %v4497
  %v4499 = vpop.xlane.xlu0 %4498
  %v4500 = vsel %vm928, %v4460, 0.0
  %4501 = vadd.xlane.f32.xlu0 %v4500
  %v4502 = vpop.xlane.xlu0 %4501
  %v4503 = vsel %vm928, %v4462, 0.0
  %4504 = vadd.xlane.f32.xlu0 %v4503
  %v4505 = vpop.xlane.xlu0 %4504
  %v4506 = vsel %vm928, %v4464, 0.0
  %4507 = vadd.xlane.f32.xlu0 %v4506
  %v4508 = vpop.xlane.xlu0 %4507
  %v4509 = vsel %vm928, %v4466, 0.0
  %4510 = vadd.xlane.f32.xlu0 %v4509
  %v4511 = vpop.xlane.xlu0 %4510
  %v4512 = vsel %vm928, %v4468, 0.0
  %4513 = vadd.xlane.f32.xlu0 %v4512
  %v4514 = vpop.xlane.xlu0 %4513
  %v4515 = vsel %vm928, %v4470, 0.0
  %4516 = vadd.xlane.f32.xlu0 %v4515
  %v4517 = vpop.xlane.xlu0 %4516
  %v4518 = vsel %vm928, %v4472, 0.0
  %4519 = vadd.xlane.f32.xlu0 %v4518
  %v4520 = vpop.xlane.xlu0 %4519
  %v4521 = vrcp.pop %v4475
  %v4522 = vrcp.pop %v4478
  %v4523 = vrcp.pop %v4481
  %v4524 = vrcp.pop %v4484
  %v4525 = vrcp.pop %v4487
  %v4526 = vrcp.pop %v4490
  %v4527 = vrcp.pop %v4493
  %v4528 = vrcp.pop %v4496
  %v4529 = vrcp.pop %v4499
  %v4530 = vrcp.pop %v4502
  %v4531 = vrcp.pop %v4505
  %v4532 = vrcp.pop %v4508
  %v4533 = vrcp.pop %v4511
  %v4534 = vrcp.pop %v4514
  %v4535 = vrcp.pop %v4517
  %v4536 = vrcp.pop %v4520
  %v4537 = vmul.f32 %v4442, %v4521
  %v4538 = vmul.f32 %v4444, %v4522
  %v4539 = vmul.f32 %v4446, %v4523
  %v4540 = vmul.f32 %v4448, %v4524
  %v4541 = vmul.f32 %v4450, %v4525
  %v4542 = vmul.f32 %v4452, %v4526
  %v4543 = vmul.f32 %v4454, %v4527
  %v4544 = vmul.f32 %v4456, %v4528
  %v4545 = vmul.f32 %v4458, %v4529
  %v4546 = vmul.f32 %v4460, %v4530
  %v4547 = vmul.f32 %v4462, %v4531
  %v4548 = vmul.f32 %v4464, %v4532
  %v4549 = vmul.f32 %v4466, %v4533
  %v4550 = vmul.f32 %v4468, %v4534
  %v4551 = vmul.f32 %v4470, %v4535
  %v4552 = vmul.f32 %v4472, %v4536
  %v4553 = vpack.c.bf16 %v4538, %v4537
  %v4554 = vpack.c.bf16 %v4540, %v4539
  %v4555 = vpack.c.bf16 %v4542, %v4541
  %v4556 = vpack.c.bf16 %v4544, %v4543
  %v4557 = vpack.c.bf16 %v4546, %v4545
  %v4558 = vpack.c.bf16 %v4548, %v4547
  %v4559 = vpack.c.bf16 %v4550, %v4549
  %v4560 = vpack.c.bf16 %v4552, %v4551
  %4561 = vrot.lane.b32.xlu0 %v487, 40
  %v4562 = vpop.permute.xlu0 %4561
  %v4565 = vsel %vm928, %v4553, 0
  %4567 = vmatprep.subr.bf16.mxu0 0
  %4568 = vmatpush1.bf16.msra.mxu0 %v4562
  %4569 = vmatprep.subr.bf16.mxu0 0
  %4570 = vmatpush1.bf16.msra.mxu0 0
  %4571 = vmatprep.subr.bf16.mxu0 0
  %4572 = vmatpush1.bf16.msra.mxu0 0
  %4573 = vmatprep.subr.bf16.mxu0 0
  %4574 = vmatpush1.bf16.msra.mxu0 0
  %4575 = vmatprep.subr.bf16.mxu0 0
  %4576 = vmatpush1.bf16.msra.mxu0 0
  %4577 = vmatprep.subr.bf16.mxu0 0
  %4578 = vmatpush1.bf16.msra.mxu0 0
  %4579 = vmatprep.subr.bf16.mxu0 0
  %4580 = vmatpush1.bf16.msra.mxu0 0
  %4581 = vmatprep.subr.bf16.mxu0 0
  %4582 = vmatpush1.bf16.msra.mxu0 0
  %4583 = vmatprep.subr.bf16.mxu0 0
  %4584 = vmatpush1.bf16.msra.mxu0 0
  %4585 = vmatprep.subr.bf16.mxu0 0
  %4586 = vmatpush1.bf16.msra.mxu0 0
  %4587 = vmatprep.subr.bf16.mxu0 0
  %4588 = vmatpush1.bf16.msra.mxu0 0
  %4589 = vmatprep.subr.bf16.mxu0 0
  %4590 = vmatpush1.bf16.msra.mxu0 0
  %4591 = vmatprep.subr.bf16.mxu0 0
  %4592 = vmatpush1.bf16.msra.mxu0 0
  %4593 = vmatprep.subr.bf16.mxu0 0
  %4594 = vmatpush1.bf16.msra.mxu0 0
  %4595 = vmatprep.subr.bf16.mxu0 0
  %4596 = vmatpush1.bf16.msra.mxu0 0
  %4597 = vmatprep.subr.bf16.mxu0 0
  %4598 = vmatpush1.bf16.msra.mxu0 0
  %4599 = vmatprep.mubr.bf16.mxu0 0
  %4600 = vmatmul.mubr.bf16.gmra.mrb[0].mxu0 %v4565
  %v4601 = vpop.f32.mrb[0].mxu0
  %v4602 = vadd.f32 0.0, %v4601
  %v4603 = vpop.f32.mrb[0].mxu0
  %v4604 = vpop.f32.mrb[0].mxu0
  %v4605 = vadd.f32 0.0, %v4604
  %v4606 = vpop.f32.mrb[0].mxu0
  %4607 = vdwg.mxu0
  %4608 = vrot.lane.b32.xlu0 %v488, 40
  %v4609 = vpop.permute.xlu0 %4608
  %v4612 = vsel %vm928, %v4554, 0
  %4614 = vmatprep.subr.bf16.mxu0 0
  %4615 = vmatpush1.bf16.msra.mxu0 %v4609
  %4616 = vmatprep.subr.bf16.mxu0 0
  %4617 = vmatpush1.bf16.msra.mxu0 0
  %4618 = vmatprep.subr.bf16.mxu0 0
  %4619 = vmatpush1.bf16.msra.mxu0 0
  %4620 = vmatprep.subr.bf16.mxu0 0
  %4621 = vmatpush1.bf16.msra.mxu0 0
  %4622 = vmatprep.subr.bf16.mxu0 0
  %4623 = vmatpush1.bf16.msra.mxu0 0
  %4624 = vmatprep.subr.bf16.mxu0 0
  %4625 = vmatpush1.bf16.msra.mxu0 0
  %4626 = vmatprep.subr.bf16.mxu0 0
  %4627 = vmatpush1.bf16.msra.mxu0 0
  %4628 = vmatprep.subr.bf16.mxu0 0
  %4629 = vmatpush1.bf16.msra.mxu0 0
  %4630 = vmatprep.subr.bf16.mxu0 0
  %4631 = vmatpush1.bf16.msra.mxu0 0
  %4632 = vmatprep.subr.bf16.mxu0 0
  %4633 = vmatpush1.bf16.msra.mxu0 0
  %4634 = vmatprep.subr.bf16.mxu0 0
  %4635 = vmatpush1.bf16.msra.mxu0 0
  %4636 = vmatprep.subr.bf16.mxu0 0
  %4637 = vmatpush1.bf16.msra.mxu0 0
  %4638 = vmatprep.subr.bf16.mxu0 0
  %4639 = vmatpush1.bf16.msra.mxu0 0
  %4640 = vmatprep.subr.bf16.mxu0 0
  %4641 = vmatpush1.bf16.msra.mxu0 0
  %4642 = vmatprep.subr.bf16.mxu0 0
  %4643 = vmatpush1.bf16.msra.mxu0 0
  %4644 = vmatprep.subr.bf16.mxu0 0
  %4645 = vmatpush1.bf16.msra.mxu0 0
  %4646 = vmatprep.mubr.bf16.mxu0 0
  %4647 = vmatmul.mubr.bf16.gmra.mrb[0].mxu0 %v4612
  %v4648 = vpop.f32.mrb[0].mxu0
  %v4649 = vadd.f32 0.0, %v4648
  %v4650 = vpop.f32.mrb[0].mxu0
  %v4651 = vpop.f32.mrb[0].mxu0
  %v4652 = vadd.f32 0.0, %v4651
  %v4653 = vpop.f32.mrb[0].mxu0
  %4654 = vdwg.mxu0
  %4655 = vrot.lane.b32.xlu0 %v489, 40
  %v4656 = vpop.permute.xlu0 %4655
  %v4659 = vsel %vm928, %v4555, 0
  %4661 = vmatprep.subr.bf16.mxu0 0
  %4662 = vmatpush1.bf16.msra.mxu0 %v4656
  %4663 = vmatprep.subr.bf16.mxu0 0
  %4664 = vmatpush1.bf16.msra.mxu0 0
  %4665 = vmatprep.subr.bf16.mxu0 0
  %4666 = vmatpush1.bf16.msra.mxu0 0
  %4667 = vmatprep.subr.bf16.mxu0 0
  %4668 = vmatpush1.bf16.msra.mxu0 0
  %4669 = vmatprep.subr.bf16.mxu0 0
  %4670 = vmatpush1.bf16.msra.mxu0 0
  %4671 = vmatprep.subr.bf16.mxu0 0
  %4672 = vmatpush1.bf16.msra.mxu0 0
  %4673 = vmatprep.subr.bf16.mxu0 0
  %4674 = vmatpush1.bf16.msra.mxu0 0
  %4675 = vmatprep.subr.bf16.mxu0 0
  %4676 = vmatpush1.bf16.msra.mxu0 0
  %4677 = vmatprep.subr.bf16.mxu0 0
  %4678 = vmatpush1.bf16.msra.mxu0 0
  %4679 = vmatprep.subr.bf16.mxu0 0
  %4680 = vmatpush1.bf16.msra.mxu0 0
  %4681 = vmatprep.subr.bf16.mxu0 0
  %4682 = vmatpush1.bf16.msra.mxu0 0
  %4683 = vmatprep.subr.bf16.mxu0 0
  %4684 = vmatpush1.bf16.msra.mxu0 0
  %4685 = vmatprep.subr.bf16.mxu0 0
  %4686 = vmatpush1.bf16.msra.mxu0 0
  %4687 = vmatprep.subr.bf16.mxu0 0
  %4688 = vmatpush1.bf16.msra.mxu0 0
  %4689 = vmatprep.subr.bf16.mxu0 0
  %4690 = vmatpush1.bf16.msra.mxu0 0
  %4691 = vmatprep.subr.bf16.mxu0 0
  %4692 = vmatpush1.bf16.msra.mxu0 0
  %4693 = vmatprep.mubr.bf16.mxu0 0
  %4694 = vmatmul.mubr.bf16.gmra.mrb[0].mxu0 %v4659
  %v4695 = vpop.f32.mrb[0].mxu0
  %v4696 = vadd.f32 0.0, %v4695
  %v4697 = vpop.f32.mrb[0].mxu0
  %v4698 = vpop.f32.mrb[0].mxu0
  %v4699 = vadd.f32 0.0, %v4698
  %v4700 = vpop.f32.mrb[0].mxu0
  %4701 = vdwg.mxu0
  %4702 = vrot.lane.b32.xlu0 %v490, 40
  %v4703 = vpop.permute.xlu0 %4702
  %v4706 = vsel %vm928, %v4556, 0
  %4708 = vmatprep.subr.bf16.mxu0 0
  %4709 = vmatpush1.bf16.msra.mxu0 %v4703
  %4710 = vmatprep.subr.bf16.mxu0 0
  %4711 = vmatpush1.bf16.msra.mxu0 0
  %4712 = vmatprep.subr.bf16.mxu0 0
  %4713 = vmatpush1.bf16.msra.mxu0 0
  %4714 = vmatprep.subr.bf16.mxu0 0
  %4715 = vmatpush1.bf16.msra.mxu0 0
  %4716 = vmatprep.subr.bf16.mxu0 0
  %4717 = vmatpush1.bf16.msra.mxu0 0
  %4718 = vmatprep.subr.bf16.mxu0 0
  %4719 = vmatpush1.bf16.msra.mxu0 0
  %4720 = vmatprep.subr.bf16.mxu0 0
  %4721 = vmatpush1.bf16.msra.mxu0 0
  %4722 = vmatprep.subr.bf16.mxu0 0
  %4723 = vmatpush1.bf16.msra.mxu0 0
  %4724 = vmatprep.subr.bf16.mxu0 0
  %4725 = vmatpush1.bf16.msra.mxu0 0
  %4726 = vmatprep.subr.bf16.mxu0 0
  %4727 = vmatpush1.bf16.msra.mxu0 0
  %4728 = vmatprep.subr.bf16.mxu0 0
  %4729 = vmatpush1.bf16.msra.mxu0 0
  %4730 = vmatprep.subr.bf16.mxu0 0
  %4731 = vmatpush1.bf16.msra.mxu0 0
  %4732 = vmatprep.subr.bf16.mxu0 0
  %4733 = vmatpush1.bf16.msra.mxu0 0
  %4734 = vmatprep.subr.bf16.mxu0 0
  %4735 = vmatpush1.bf16.msra.mxu0 0
  %4736 = vmatprep.subr.bf16.mxu0 0
  %4737 = vmatpush1.bf16.msra.mxu0 0
  %4738 = vmatprep.subr.bf16.mxu0 0
  %4739 = vmatpush1.bf16.msra.mxu0 0
  %4740 = vmatprep.mubr.bf16.mxu0 0
  %4741 = vmatmul.mubr.bf16.gmra.mrb[0].mxu0 %v4706
  %v4742 = vpop.f32.mrb[0].mxu0
  %v4743 = vadd.f32 0.0, %v4742
  %v4744 = vpop.f32.mrb[0].mxu0
  %v4745 = vpop.f32.mrb[0].mxu0
  %v4746 = vadd.f32 0.0, %v4745
  %v4747 = vpop.f32.mrb[0].mxu0
  %4748 = vdwg.mxu0
  %4749 = vrot.lane.b32.xlu0 %v491, 40
  %v4750 = vpop.permute.xlu0 %4749
  %v4753 = vsel %vm928, %v4557, 0
  %4755 = vmatprep.subr.bf16.mxu0 0
  %4756 = vmatpush1.bf16.msra.mxu0 %v4750
  %4757 = vmatprep.subr.bf16.mxu0 0
  %4758 = vmatpush1.bf16.msra.mxu0 0
  %4759 = vmatprep.subr.bf16.mxu0 0
  %4760 = vmatpush1.bf16.msra.mxu0 0
  %4761 = vmatprep.subr.bf16.mxu0 0
  %4762 = vmatpush1.bf16.msra.mxu0 0
  %4763 = vmatprep.subr.bf16.mxu0 0
  %4764 = vmatpush1.bf16.msra.mxu0 0
  %4765 = vmatprep.subr.bf16.mxu0 0
  %4766 = vmatpush1.bf16.msra.mxu0 0
  %4767 = vmatprep.subr.bf16.mxu0 0
  %4768 = vmatpush1.bf16.msra.mxu0 0
  %4769 = vmatprep.subr.bf16.mxu0 0
  %4770 = vmatpush1.bf16.msra.mxu0 0
  %4771 = vmatprep.subr.bf16.mxu0 0
  %4772 = vmatpush1.bf16.msra.mxu0 0
  %4773 = vmatprep.subr.bf16.mxu0 0
  %4774 = vmatpush1.bf16.msra.mxu0 0
  %4775 = vmatprep.subr.bf16.mxu0 0
  %4776 = vmatpush1.bf16.msra.mxu0 0
  %4777 = vmatprep.subr.bf16.mxu0 0
  %4778 = vmatpush1.bf16.msra.mxu0 0
  %4779 = vmatprep.subr.bf16.mxu0 0
  %4780 = vmatpush1.bf16.msra.mxu0 0
  %4781 = vmatprep.subr.bf16.mxu0 0
  %4782 = vmatpush1.bf16.msra.mxu0 0
  %4783 = vmatprep.subr.bf16.mxu0 0
  %4784 = vmatpush1.bf16.msra.mxu0 0
  %4785 = vmatprep.subr.bf16.mxu0 0
  %4786 = vmatpush1.bf16.msra.mxu0 0
  %4787 = vmatprep.mubr.bf16.mxu0 0
  %4788 = vmatmul.mubr.bf16.gmra.mrb[0].mxu0 %v4753
  %v4789 = vpop.f32.mrb[0].mxu0
  %v4790 = vadd.f32 0.0, %v4789
  %v4791 = vpop.f32.mrb[0].mxu0
  %v4792 = vpop.f32.mrb[0].mxu0
  %v4793 = vadd.f32 0.0, %v4792
  %v4794 = vpop.f32.mrb[0].mxu0
  %4795 = vdwg.mxu0
  %4796 = vrot.lane.b32.xlu0 %v492, 40
  %v4797 = vpop.permute.xlu0 %4796
  %v4800 = vsel %vm928, %v4558, 0
  %4802 = vmatprep.subr.bf16.mxu0 0
  %4803 = vmatpush1.bf16.msra.mxu0 %v4797
  %4804 = vmatprep.subr.bf16.mxu0 0
  %4805 = vmatpush1.bf16.msra.mxu0 0
  %4806 = vmatprep.subr.bf16.mxu0 0
  %4807 = vmatpush1.bf16.msra.mxu0 0
  %4808 = vmatprep.subr.bf16.mxu0 0
  %4809 = vmatpush1.bf16.msra.mxu0 0
  %4810 = vmatprep.subr.bf16.mxu0 0
  %4811 = vmatpush1.bf16.msra.mxu0 0
  %4812 = vmatprep.subr.bf16.mxu0 0
  %4813 = vmatpush1.bf16.msra.mxu0 0
  %4814 = vmatprep.subr.bf16.mxu0 0
  %4815 = vmatpush1.bf16.msra.mxu0 0
  %4816 = vmatprep.subr.bf16.mxu0 0
  %4817 = vmatpush1.bf16.msra.mxu0 0
  %4818 = vmatprep.subr.bf16.mxu0 0
  %4819 = vmatpush1.bf16.msra.mxu0 0
  %4820 = vmatprep.subr.bf16.mxu0 0
  %4821 = vmatpush1.bf16.msra.mxu0 0
  %4822 = vmatprep.subr.bf16.mxu0 0
  %4823 = vmatpush1.bf16.msra.mxu0 0
  %4824 = vmatprep.subr.bf16.mxu0 0
  %4825 = vmatpush1.bf16.msra.mxu0 0
  %4826 = vmatprep.subr.bf16.mxu0 0
  %4827 = vmatpush1.bf16.msra.mxu0 0
  %4828 = vmatprep.subr.bf16.mxu0 0
  %4829 = vmatpush1.bf16.msra.mxu0 0
  %4830 = vmatprep.subr.bf16.mxu0 0
  %4831 = vmatpush1.bf16.msra.mxu0 0
  %4832 = vmatprep.subr.bf16.mxu0 0
  %4833 = vmatpush1.bf16.msra.mxu0 0
  %4834 = vmatprep.mubr.bf16.mxu0 0
  %4835 = vmatmul.mubr.bf16.gmra.mrb[0].mxu0 %v4800
  %v4836 = vpop.f32.mrb[0].mxu0
  %v4837 = vadd.f32 0.0, %v4836
  %v4838 = vpop.f32.mrb[0].mxu0
  %v4839 = vpop.f32.mrb[0].mxu0
  %v4840 = vadd.f32 0.0, %v4839
  %v4841 = vpop.f32.mrb[0].mxu0
  %4842 = vdwg.mxu0
  %4843 = vrot.lane.b32.xlu0 %v493, 40
  %v4844 = vpop.permute.xlu0 %4843
  %v4847 = vsel %vm928, %v4559, 0
  %4849 = vmatprep.subr.bf16.mxu0 0
  %4850 = vmatpush1.bf16.msra.mxu0 %v4844
  %4851 = vmatprep.subr.bf16.mxu0 0
  %4852 = vmatpush1.bf16.msra.mxu0 0
  %4853 = vmatprep.subr.bf16.mxu0 0
  %4854 = vmatpush1.bf16.msra.mxu0 0
  %4855 = vmatprep.subr.bf16.mxu0 0
  %4856 = vmatpush1.bf16.msra.mxu0 0
  %4857 = vmatprep.subr.bf16.mxu0 0
  %4858 = vmatpush1.bf16.msra.mxu0 0
  %4859 = vmatprep.subr.bf16.mxu0 0
  %4860 = vmatpush1.bf16.msra.mxu0 0
  %4861 = vmatprep.subr.bf16.mxu0 0
  %4862 = vmatpush1.bf16.msra.mxu0 0
  %4863 = vmatprep.subr.bf16.mxu0 0
  %4864 = vmatpush1.bf16.msra.mxu0 0
  %4865 = vmatprep.subr.bf16.mxu0 0
  %4866 = vmatpush1.bf16.msra.mxu0 0
  %4867 = vmatprep.subr.bf16.mxu0 0
  %4868 = vmatpush1.bf16.msra.mxu0 0
  %4869 = vmatprep.subr.bf16.mxu0 0
  %4870 = vmatpush1.bf16.msra.mxu0 0
  %4871 = vmatprep.subr.bf16.mxu0 0
  %4872 = vmatpush1.bf16.msra.mxu0 0
  %4873 = vmatprep.subr.bf16.mxu0 0
  %4874 = vmatpush1.bf16.msra.mxu0 0
  %4875 = vmatprep.subr.bf16.mxu0 0
  %4876 = vmatpush1.bf16.msra.mxu0 0
  %4877 = vmatprep.subr.bf16.mxu0 0
  %4878 = vmatpush1.bf16.msra.mxu0 0
  %4879 = vmatprep.subr.bf16.mxu0 0
  %4880 = vmatpush1.bf16.msra.mxu0 0
  %4881 = vmatprep.mubr.bf16.mxu0 0
  %4882 = vmatmul.mubr.bf16.gmra.mrb[0].mxu0 %v4847
  %v4883 = vpop.f32.mrb[0].mxu0
  %v4884 = vadd.f32 0.0, %v4883
  %v4885 = vpop.f32.mrb[0].mxu0
  %v4886 = vpop.f32.mrb[0].mxu0
  %v4887 = vadd.f32 0.0, %v4886
  %v4888 = vpop.f32.mrb[0].mxu0
  %4889 = vdwg.mxu0
  %4890 = vrot.lane.b32.xlu0 %v494, 40
  %v4891 = vpop.permute.xlu0 %4890
  %v4894 = vsel %vm928, %v4560, 0
  %4896 = vmatprep.subr.bf16.mxu0 0
  %4897 = vmatpush1.bf16.msra.mxu0 %v4891
  %4898 = vmatprep.subr.bf16.mxu0 0
  %4899 = vmatpush1.bf16.msra.mxu0 0
  %4900 = vmatprep.subr.bf16.mxu0 0
  %4901 = vmatpush1.bf16.msra.mxu0 0
  %4902 = vmatprep.subr.bf16.mxu0 0
  %4903 = vmatpush1.bf16.msra.mxu0 0
  %4904 = vmatprep.subr.bf16.mxu0 0
  %4905 = vmatpush1.bf16.msra.mxu0 0
  %4906 = vmatprep.subr.bf16.mxu0 0
  %4907 = vmatpush1.bf16.msra.mxu0 0
  %4908 = vmatprep.subr.bf16.mxu0 0
  %4909 = vmatpush1.bf16.msra.mxu0 0
  %4910 = vmatprep.subr.bf16.mxu0 0
  %4911 = vmatpush1.bf16.msra.mxu0 0
  %4912 = vmatprep.subr.bf16.mxu0 0
  %4913 = vmatpush1.bf16.msra.mxu0 0
  %4914 = vmatprep.subr.bf16.mxu0 0
  %4915 = vmatpush1.bf16.msra.mxu0 0
  %4916 = vmatprep.subr.bf16.mxu0 0
  %4917 = vmatpush1.bf16.msra.mxu0 0
  %4918 = vmatprep.subr.bf16.mxu0 0
  %4919 = vmatpush1.bf16.msra.mxu0 0
  %4920 = vmatprep.subr.bf16.mxu0 0
  %4921 = vmatpush1.bf16.msra.mxu0 0
  %4922 = vmatprep.subr.bf16.mxu0 0
  %4923 = vmatpush1.bf16.msra.mxu0 0
  %4924 = vmatprep.subr.bf16.mxu0 0
  %4925 = vmatpush1.bf16.msra.mxu0 0
  %4926 = vmatprep.subr.bf16.mxu0 0
  %4927 = vmatpush1.bf16.msra.mxu0 0
  %4928 = vmatprep.mubr.bf16.mxu0 0
  %4929 = vmatmul.mubr.bf16.gmra.mrb[0].mxu0 %v4894
  %v4930 = vpop.f32.mrb[0].mxu0
  %v4931 = vadd.f32 0.0, %v4930
  %v4932 = vpop.f32.mrb[0].mxu0
  %v4933 = vpop.f32.mrb[0].mxu0
  %v4934 = vadd.f32 0.0, %v4933
  %v4935 = vpop.f32.mrb[0].mxu0
  %4936 = vdwg.mxu0
  %v4937 = vpack.c.bf16 %v4605, %v4602
  %v4938 = vpack.c.bf16 %v4652, %v4649
  %v4939 = vpack.c.bf16 %v4699, %v4696
  %v4940 = vpack.c.bf16 %v4746, %v4743
  %v4941 = vpack.c.bf16 %v4793, %v4790
  %v4942 = vpack.c.bf16 %v4840, %v4837
  %v4943 = vpack.c.bf16 %v4887, %v4884
  %v4944 = vpack.c.bf16 %v4934, %v4931
  %v4945 = vld [vmem:[%s5 + $0xc] sm:$0xf]
  %v4947 = vsel %vm498, %v4937, 0
  %v4950 = vsel %vm498, %v4938, 0
  %v4953 = vsel %vm498, %v4939, 0
  %v4956 = vsel %vm498, %v4940, 0
  %v4959 = vsel %vm498, %v4941, 0
  %v4962 = vsel %vm498, %v4942, 0
  %v4965 = vsel %vm498, %v4943, 0
  %v4968 = vsel %vm498, %v4944, 0
  %v4971 = vsel %vm1522, %v4945, 0
  %4973 = vmatprep.subr.bf16.mxu0 0
  %4974 = vmatpush1.bf16.msra.mxu0 %v4971
  %4975 = vmatprep.subr.bf16.mxu0 0
  %4976 = vmatpush1.bf16.msra.mxu0 0
  %4977 = vmatprep.subr.bf16.mxu0 0
  %4978 = vmatpush1.bf16.msra.mxu0 0
  %4979 = vmatprep.subr.bf16.mxu0 0
  %4980 = vmatpush1.bf16.msra.mxu0 0
  %4981 = vmatprep.subr.bf16.mxu0 0
  %4982 = vmatpush1.bf16.msra.mxu0 0
  %4983 = vmatprep.subr.bf16.mxu0 0
  %4984 = vmatpush1.bf16.msra.mxu0 0
  %4985 = vmatprep.subr.bf16.mxu0 0
  %4986 = vmatpush1.bf16.msra.mxu0 0
  %4987 = vmatprep.subr.bf16.mxu0 0
  %4988 = vmatpush1.bf16.msra.mxu0 0
  %4989 = vmatprep.subr.bf16.mxu0 0
  %4990 = vmatpush1.bf16.msra.mxu0 0
  %4991 = vmatprep.subr.bf16.mxu0 0
  %4992 = vmatpush1.bf16.msra.mxu0 0
  %4993 = vmatprep.subr.bf16.mxu0 0
  %4994 = vmatpush1.bf16.msra.mxu0 0
  %4995 = vmatprep.subr.bf16.mxu0 0
  %4996 = vmatpush1.bf16.msra.mxu0 0
  %4997 = vmatprep.subr.bf16.mxu0 0
  %4998 = vmatpush1.bf16.msra.mxu0 0
  %4999 = vmatprep.subr.bf16.mxu0 0
  %5000 = vmatpush1.bf16.msra.mxu0 0
  %5001 = vmatprep.subr.bf16.mxu0 0
  %5002 = vmatpush1.bf16.msra.mxu0 0
  %5003 = vmatprep.subr.bf16.mxu0 0
  %5004 = vmatpush1.bf16.msra.mxu0 0
  %5005 = vmatprep.mubr.bf16.mxu0 0
  %5006 = vmatmul.mubr.bf16.gmra.mrb[0].mxu0 %v4947
  %v5007 = vpop.f32.mrb[0].mxu0
  %v5008 = vadd.f32 0.0, %v5007
  %v5009 = vpop.f32.mrb[0].mxu0
  %v5010 = vpop.f32.mrb[0].mxu0
  %v5011 = vadd.f32 0.0, %v5010
  %v5012 = vpop.f32.mrb[0].mxu0
  %5013 = vmatprep.mubr.bf16.mxu0 0
  %5014 = vmatmul.mubr.bf16.gmra.mrb[0].mxu0 %v4950
  %v5015 = vpop.f32.mrb[0].mxu0
  %v5016 = vadd.f32 0.0, %v5015
  %v5017 = vpop.f32.mrb[0].mxu0
  %v5018 = vpop.f32.mrb[0].mxu0
  %v5019 = vadd.f32 0.0, %v5018
  %v5020 = vpop.f32.mrb[0].mxu0
  %5021 = vmatprep.mubr.bf16.mxu0 0
  %5022 = vmatmul.mubr.bf16.gmra.mrb[0].mxu0 %v4953
  %v5023 = vpop.f32.mrb[0].mxu0
  %v5024 = vadd.f32 0.0, %v5023
  %v5025 = vpop.f32.mrb[0].mxu0
  %v5026 = vpop.f32.mrb[0].mxu0
  %v5027 = vadd.f32 0.0, %v5026
  %v5028 = vpop.f32.mrb[0].mxu0
  %5029 = vmatprep.mubr.bf16.mxu0 0
  %5030 = vmatmul.mubr.bf16.gmra.mrb[0].mxu0 %v4956
  %v5031 = vpop.f32.mrb[0].mxu0
  %v5032 = vadd.f32 0.0, %v5031
  %v5033 = vpop.f32.mrb[0].mxu0
  %v5034 = vpop.f32.mrb[0].mxu0
  %v5035 = vadd.f32 0.0, %v5034
  %v5036 = vpop.f32.mrb[0].mxu0
  %5037 = vmatprep.mubr.bf16.mxu0 0
  %5038 = vmatmul.mubr.bf16.gmra.mrb[0].mxu0 %v4959
  %v5039 = vpop.f32.mrb[0].mxu0
  %v5040 = vadd.f32 0.0, %v5039
  %v5041 = vpop.f32.mrb[0].mxu0
  %v5042 = vpop.f32.mrb[0].mxu0
  %v5043 = vadd.f32 0.0, %v5042
  %v5044 = vpop.f32.mrb[0].mxu0
  %5045 = vmatprep.mubr.bf16.mxu0 0
  %5046 = vmatmul.mubr.bf16.gmra.mrb[0].mxu0 %v4962
  %v5047 = vpop.f32.mrb[0].mxu0
  %v5048 = vadd.f32 0.0, %v5047
  %v5049 = vpop.f32.mrb[0].mxu0
  %v5050 = vpop.f32.mrb[0].mxu0
  %v5051 = vadd.f32 0.0, %v5050
  %v5052 = vpop.f32.mrb[0].mxu0
  %5053 = vmatprep.mubr.bf16.mxu0 0
  %5054 = vmatmul.mubr.bf16.gmra.mrb[0].mxu0 %v4965
  %v5055 = vpop.f32.mrb[0].mxu0
  %v5056 = vadd.f32 0.0, %v5055
  %v5057 = vpop.f32.mrb[0].mxu0
  %v5058 = vpop.f32.mrb[0].mxu0
  %v5059 = vadd.f32 0.0, %v5058
  %v5060 = vpop.f32.mrb[0].mxu0
  %5061 = vmatprep.mubr.bf16.mxu0 0
  %5062 = vmatmul.mubr.bf16.gmra.mrb[0].mxu0 %v4968
  %v5063 = vpop.f32.mrb[0].mxu0
  %v5064 = vadd.f32 0.0, %v5063
  %v5065 = vpop.f32.mrb[0].mxu0
  %v5066 = vpop.f32.mrb[0].mxu0
  %v5067 = vadd.f32 0.0, %v5066
  %v5068 = vpop.f32.mrb[0].mxu0
  %5069 = vdwg.mxu0
  %v5070 = vadd.f32 %v3921, %v5008
  %v5071 = vadd.f32 %v3922, %v5011
  %v5072 = vadd.f32 %v3923, %v5016
  %v5073 = vadd.f32 %v3924, %v5019
  %v5074 = vadd.f32 %v3925, %v5024
  %v5075 = vadd.f32 %v3926, %v5027
  %v5076 = vadd.f32 %v3927, %v5032
  %v5077 = vadd.f32 %v3928, %v5035
  %v5078 = vadd.f32 %v3929, %v5040
  %v5079 = vadd.f32 %v3930, %v5043
  %v5080 = vadd.f32 %v3931, %v5048
  %v5081 = vadd.f32 %v3932, %v5051
  %v5082 = vadd.f32 %v3933, %v5056
  %v5083 = vadd.f32 %v3934, %v5059
  %v5084 = vadd.f32 %v3935, %v5064
  %v5085 = vadd.f32 %v3936, %v5067
  %v5086 = vadd.f32 %v48, %v5070
  %v5087 = vadd.f32 %v49, %v5071
  %v5088 = vadd.f32 %v50, %v5072
  %v5089 = vadd.f32 %v51, %v5073
  %v5090 = vadd.f32 %v52, %v5074
  %v5091 = vadd.f32 %v53, %v5075
  %v5092 = vadd.f32 %v54, %v5076
  %v5093 = vadd.f32 %v55, %v5077
  %v5094 = vadd.f32 %v56, %v5078
  %v5095 = vadd.f32 %v57, %v5079
  %v5096 = vadd.f32 %v58, %v5080
  %v5097 = vadd.f32 %v59, %v5081
  %v5098 = vadd.f32 %v60, %v5082
  %v5099 = vadd.f32 %v61, %v5083
  %v5100 = vadd.f32 %v62, %v5084
  %v5101 = vadd.f32 %v63, %v5085
  %v5102 = vld [vmem:[%s8] sm:$0x1]
  %v5103 = vld [vmem:[%s9] sm:$0x1]
  %v5104 = vsel %vm66, %v5086, 0.0
  %5105 = vadd.xlane.f32.xlu0 %v5104
  %v5106 = vpop.xlane.xlu0 %5105
  %v5107 = vsel %vm66, %v5087, 0.0
  %5108 = vadd.xlane.f32.xlu0 %v5107
  %v5109 = vpop.xlane.xlu0 %5108
  %v5110 = vsel %vm66, %v5088, 0.0
  %5111 = vadd.xlane.f32.xlu0 %v5110
  %v5112 = vpop.xlane.xlu0 %5111
  %v5113 = vsel %vm66, %v5089, 0.0
  %5114 = vadd.xlane.f32.xlu0 %v5113
  %v5115 = vpop.xlane.xlu0 %5114
  %v5116 = vsel %vm66, %v5090, 0.0
  %5117 = vadd.xlane.f32.xlu0 %v5116
  %v5118 = vpop.xlane.xlu0 %5117
  %v5119 = vsel %vm66, %v5091, 0.0
  %5120 = vadd.xlane.f32.xlu0 %v5119
  %v5121 = vpop.xlane.xlu0 %5120
  %v5122 = vsel %vm66, %v5092, 0.0
  %5123 = vadd.xlane.f32.xlu0 %v5122
  %v5124 = vpop.xlane.xlu0 %5123
  %v5125 = vsel %vm66, %v5093, 0.0
  %5126 = vadd.xlane.f32.xlu0 %v5125
  %v5127 = vpop.xlane.xlu0 %5126
  %v5128 = vsel %vm66, %v5094, 0.0
  %5129 = vadd.xlane.f32.xlu0 %v5128
  %v5130 = vpop.xlane.xlu0 %5129
  %v5131 = vsel %vm66, %v5095, 0.0
  %5132 = vadd.xlane.f32.xlu0 %v5131
  %v5133 = vpop.xlane.xlu0 %5132
  %v5134 = vsel %vm66, %v5096, 0.0
  %5135 = vadd.xlane.f32.xlu0 %v5134
  %v5136 = vpop.xlane.xlu0 %5135
  %v5137 = vsel %vm66, %v5097, 0.0
  %5138 = vadd.xlane.f32.xlu0 %v5137
  %v5139 = vpop.xlane.xlu0 %5138
  %v5140 = vsel %vm66, %v5098, 0.0
  %5141 = vadd.xlane.f32.xlu0 %v5140
  %v5142 = vpop.xlane.xlu0 %5141
  %v5143 = vsel %vm66, %v5099, 0.0
  %5144 = vadd.xlane.f32.xlu0 %v5143
  %v5145 = vpop.xlane.xlu0 %5144
  %v5146 = vsel %vm66, %v5100, 0.0
  %5147 = vadd.xlane.f32.xlu0 %v5146
  %v5148 = vpop.xlane.xlu0 %5147
  %v5149 = vsel %vm66, %v5101, 0.0
  %5150 = vadd.xlane.f32.xlu0 %v5149
  %v5151 = vpop.xlane.xlu0 %5150
  %v5152 = vmul.f32 %v5106, %v115
  %v5153 = vmul.f32 %v5109, %v115
  %v5154 = vmul.f32 %v5112, %v115
  %v5155 = vmul.f32 %v5115, %v115
  %v5156 = vmul.f32 %v5118, %v115
  %v5157 = vmul.f32 %v5121, %v115
  %v5158 = vmul.f32 %v5124, %v115
  %v5159 = vmul.f32 %v5127, %v115
  %v5160 = vmul.f32 %v5130, %v115
  %v5161 = vmul.f32 %v5133, %v115
  %v5162 = vmul.f32 %v5136, %v115
  %v5163 = vmul.f32 %v5139, %v115
  %v5164 = vmul.f32 %v5142, %v115
  %v5165 = vmul.f32 %v5145, %v115
  %v5166 = vmul.f32 %v5148, %v115
  %v5167 = vmul.f32 %v5151, %v115
  %v5168 = vsub.f32 %v5086, %v5152
  %v5169 = vsub.f32 %v5087, %v5153
  %v5170 = vsub.f32 %v5088, %v5154
  %v5171 = vsub.f32 %v5089, %v5155
  %v5172 = vsub.f32 %v5090, %v5156
  %v5173 = vsub.f32 %v5091, %v5157
  %v5174 = vsub.f32 %v5092, %v5158
  %v5175 = vsub.f32 %v5093, %v5159
  %v5176 = vsub.f32 %v5094, %v5160
  %v5177 = vsub.f32 %v5095, %v5161
  %v5178 = vsub.f32 %v5096, %v5162
  %v5179 = vsub.f32 %v5097, %v5163
  %v5180 = vsub.f32 %v5098, %v5164
  %v5181 = vsub.f32 %v5099, %v5165
  %v5182 = vsub.f32 %v5100, %v5166
  %v5183 = vsub.f32 %v5101, %v5167
  %v5184 = vmul.f32 %v5168, %v5168
  %v5185 = vmul.f32 %v5169, %v5169
  %v5186 = vmul.f32 %v5170, %v5170
  %v5187 = vmul.f32 %v5171, %v5171
  %v5188 = vmul.f32 %v5172, %v5172
  %v5189 = vmul.f32 %v5173, %v5173
  %v5190 = vmul.f32 %v5174, %v5174
  %v5191 = vmul.f32 %v5175, %v5175
  %v5192 = vmul.f32 %v5176, %v5176
  %v5193 = vmul.f32 %v5177, %v5177
  %v5194 = vmul.f32 %v5178, %v5178
  %v5195 = vmul.f32 %v5179, %v5179
  %v5196 = vmul.f32 %v5180, %v5180
  %v5197 = vmul.f32 %v5181, %v5181
  %v5198 = vmul.f32 %v5182, %v5182
  %v5199 = vmul.f32 %v5183, %v5183
  %v5200 = vsel %vm66, %v5184, 0.0
  %5201 = vadd.xlane.f32.xlu0 %v5200
  %v5202 = vpop.xlane.xlu0 %5201
  %v5203 = vsel %vm66, %v5185, 0.0
  %5204 = vadd.xlane.f32.xlu0 %v5203
  %v5205 = vpop.xlane.xlu0 %5204
  %v5206 = vsel %vm66, %v5186, 0.0
  %5207 = vadd.xlane.f32.xlu0 %v5206
  %v5208 = vpop.xlane.xlu0 %5207
  %v5209 = vsel %vm66, %v5187, 0.0
  %5210 = vadd.xlane.f32.xlu0 %v5209
  %v5211 = vpop.xlane.xlu0 %5210
  %v5212 = vsel %vm66, %v5188, 0.0
  %5213 = vadd.xlane.f32.xlu0 %v5212
  %v5214 = vpop.xlane.xlu0 %5213
  %v5215 = vsel %vm66, %v5189, 0.0
  %5216 = vadd.xlane.f32.xlu0 %v5215
  %v5217 = vpop.xlane.xlu0 %5216
  %v5218 = vsel %vm66, %v5190, 0.0
  %5219 = vadd.xlane.f32.xlu0 %v5218
  %v5220 = vpop.xlane.xlu0 %5219
  %v5221 = vsel %vm66, %v5191, 0.0
  %5222 = vadd.xlane.f32.xlu0 %v5221
  %v5223 = vpop.xlane.xlu0 %5222
  %v5224 = vsel %vm66, %v5192, 0.0
  %5225 = vadd.xlane.f32.xlu0 %v5224
  %v5226 = vpop.xlane.xlu0 %5225
  %v5227 = vsel %vm66, %v5193, 0.0
  %5228 = vadd.xlane.f32.xlu0 %v5227
  %v5229 = vpop.xlane.xlu0 %5228
  %v5230 = vsel %vm66, %v5194, 0.0
  %5231 = vadd.xlane.f32.xlu0 %v5230
  %v5232 = vpop.xlane.xlu0 %5231
  %v5233 = vsel %vm66, %v5195, 0.0
  %5234 = vadd.xlane.f32.xlu0 %v5233
  %v5235 = vpop.xlane.xlu0 %5234
  %v5236 = vsel %vm66, %v5196, 0.0
  %5237 = vadd.xlane.f32.xlu0 %v5236
  %v5238 = vpop.xlane.xlu0 %5237
  %v5239 = vsel %vm66, %v5197, 0.0
  %5240 = vadd.xlane.f32.xlu0 %v5239
  %v5241 = vpop.xlane.xlu0 %5240
  %v5242 = vsel %vm66, %v5198, 0.0
  %5243 = vadd.xlane.f32.xlu0 %v5242
  %v5244 = vpop.xlane.xlu0 %5243
  %v5245 = vsel %vm66, %v5199, 0.0
  %5246 = vadd.xlane.f32.xlu0 %v5245
  %v5247 = vpop.xlane.xlu0 %5246
  %v5248 = vmul.f32 %v5202, %v115
  %v5249 = vmul.f32 %v5205, %v115
  %v5250 = vmul.f32 %v5208, %v115
  %v5251 = vmul.f32 %v5211, %v115
  %v5252 = vmul.f32 %v5214, %v115
  %v5253 = vmul.f32 %v5217, %v115
  %v5254 = vmul.f32 %v5220, %v115
  %v5255 = vmul.f32 %v5223, %v115
  %v5256 = vmul.f32 %v5226, %v115
  %v5257 = vmul.f32 %v5229, %v115
  %v5258 = vmul.f32 %v5232, %v115
  %v5259 = vmul.f32 %v5235, %v115
  %v5260 = vmul.f32 %v5238, %v115
  %v5261 = vmul.f32 %v5241, %v115
  %v5262 = vmul.f32 %v5244, %v115
  %v5263 = vmul.f32 %v5247, %v115
  %v5264 = vadd.f32 %v5248, 1e-05
  %v5265 = vadd.f32 %v5249, 1e-05
  %v5266 = vadd.f32 %v5250, 1e-05
  %v5267 = vadd.f32 %v5251, 1e-05
  %v5268 = vadd.f32 %v5252, 1e-05
  %v5269 = vadd.f32 %v5253, 1e-05
  %v5270 = vadd.f32 %v5254, 1e-05
  %v5271 = vadd.f32 %v5255, 1e-05
  %v5272 = vadd.f32 %v5256, 1e-05
  %v5273 = vadd.f32 %v5257, 1e-05
  %v5274 = vadd.f32 %v5258, 1e-05
  %v5275 = vadd.f32 %v5259, 1e-05
  %v5276 = vadd.f32 %v5260, 1e-05
  %v5277 = vadd.f32 %v5261, 1e-05
  %v5278 = vadd.f32 %v5262, 1e-05
  %v5279 = vadd.f32 %v5263, 1e-05
  %v5280 = vrsqrt.pop %v5264
  %v5281 = vrsqrt.pop %v5265
  %v5282 = vrsqrt.pop %v5266
  %v5283 = vrsqrt.pop %v5267
  %v5284 = vrsqrt.pop %v5268
  %v5285 = vrsqrt.pop %v5269
  %v5286 = vrsqrt.pop %v5270
  %v5287 = vrsqrt.pop %v5271
  %v5288 = vrsqrt.pop %v5272
  %v5289 = vrsqrt.pop %v5273
  %v5290 = vrsqrt.pop %v5274
  %v5291 = vrsqrt.pop %v5275
  %v5292 = vrsqrt.pop %v5276
  %v5293 = vrsqrt.pop %v5277
  %v5294 = vrsqrt.pop %v5278
  %v5295 = vrsqrt.pop %v5279
  %v5296 = vmul.f32 %v5168, %v5280
  %v5297 = vmul.f32 %v5169, %v5281
  %v5298 = vmul.f32 %v5170, %v5282
  %v5299 = vmul.f32 %v5171, %v5283
  %v5300 = vmul.f32 %v5172, %v5284
  %v5301 = vmul.f32 %v5173, %v5285
  %v5302 = vmul.f32 %v5174, %v5286
  %v5303 = vmul.f32 %v5175, %v5287
  %v5304 = vmul.f32 %v5176, %v5288
  %v5305 = vmul.f32 %v5177, %v5289
  %v5306 = vmul.f32 %v5178, %v5290
  %v5307 = vmul.f32 %v5179, %v5291
  %v5308 = vmul.f32 %v5180, %v5292
  %v5309 = vmul.f32 %v5181, %v5293
  %v5310 = vmul.f32 %v5182, %v5294
  %v5311 = vmul.f32 %v5183, %v5295
  %v5313 = vlaneseq
  %v5314 = vshrl.u32 %v5313, 7
  %v5315 = vsub.s32 0, %v5314
  %v5316 = vrot.slane %v5102, %v5315
  %v5318 = vmul.f32 %v5296, %v5316
  %v5319 = vmul.f32 %v5297, %v5316
  %v5320 = vmul.f32 %v5298, %v5316
  %v5321 = vmul.f32 %v5299, %v5316
  %v5322 = vmul.f32 %v5300, %v5316
  %v5323 = vmul.f32 %v5301, %v5316
  %v5324 = vmul.f32 %v5302, %v5316
  %v5325 = vmul.f32 %v5303, %v5316
  %v5326 = vmul.f32 %v5304, %v5316
  %v5327 = vmul.f32 %v5305, %v5316
  %v5328 = vmul.f32 %v5306, %v5316
  %v5329 = vmul.f32 %v5307, %v5316
  %v5330 = vmul.f32 %v5308, %v5316
  %v5331 = vmul.f32 %v5309, %v5316
  %v5332 = vmul.f32 %v5310, %v5316
  %v5333 = vmul.f32 %v5311, %v5316
  %v5335 = vlaneseq
  %v5336 = vshrl.u32 %v5335, 7
  %v5337 = vsub.s32 0, %v5336
  %v5338 = vrot.slane %v5103, %v5337
  %v5340 = vadd.f32 %v5318, %v5338
  %v5341 = vadd.f32 %v5319, %v5338
  %v5342 = vadd.f32 %v5320, %v5338
  %v5343 = vadd.f32 %v5321, %v5338
  %v5344 = vadd.f32 %v5322, %v5338
  %v5345 = vadd.f32 %v5323, %v5338
  %v5346 = vadd.f32 %v5324, %v5338
  %v5347 = vadd.f32 %v5325, %v5338
  %v5348 = vadd.f32 %v5326, %v5338
  %v5349 = vadd.f32 %v5327, %v5338
  %v5350 = vadd.f32 %v5328, %v5338
  %v5351 = vadd.f32 %v5329, %v5338
  %v5352 = vadd.f32 %v5330, %v5338
  %v5353 = vadd.f32 %v5331, %v5338
  %v5354 = vadd.f32 %v5332, %v5338
  %v5355 = vadd.f32 %v5333, %v5338
  %v5356 = vpack.c.bf16 %v5341, %v5340
  %v5357 = vpack.c.bf16 %v5343, %v5342
  %v5358 = vpack.c.bf16 %v5345, %v5344
  %v5359 = vpack.c.bf16 %v5347, %v5346
  %v5360 = vpack.c.bf16 %v5349, %v5348
  %v5361 = vpack.c.bf16 %v5351, %v5350
  %v5362 = vpack.c.bf16 %v5353, %v5352
  %v5363 = vpack.c.bf16 %v5355, %v5354
  %v5364 = vld [vmem:[%s10] sm:$0xf]
  %v5365 = vld [vmem:[%s10 + $0x4] sm:$0xf]
  %v5366 = vld [vmem:[%s10 + $0x8] sm:$0xf]
  %v5367 = vld [vmem:[%s10 + $0xc] sm:$0xf]
  %v5368 = vld [vmem:[%s11] sm:$0x1]
  %v5370 = vlaneseq
  %v5371 = vshrl.u32 %v5370, 7
  %v5372 = vsub.s32 0, %v5371
  %v5373 = vrot.slane %v5368, %v5372
  %v5379 = vunpack.c.l.b16 %v5364
  %v5380 = vunpack.c.l.b16 %v5365
  %v5381 = vunpack.c.l.b16 %v5366
  %v5382 = vunpack.c.l.b16 %v5367
  %v5383 = vpack.c.b16 %v5380, %v5379
  %v5384 = vpack.c.b16 %v5382, %v5381
  %v5388 = vsel %vm66, %v5356, 0
  %v5391 = vsel %vm66, %v5357, 0
  %v5394 = vsel %vm66, %v5358, 0
  %v5397 = vsel %vm66, %v5359, 0
  %v5400 = vsel %vm66, %v5360, 0
  %v5403 = vsel %vm66, %v5361, 0
  %v5406 = vsel %vm66, %v5362, 0
  %v5409 = vsel %vm66, %v5363, 0
  %5411 = vmatprep.subr.bf16.mxu0 0
  %5412 = vmatpush1.bf16.msra.mxu0 %v5383
  %5413 = vmatprep.subr.bf16.mxu0 0
  %5414 = vmatpush1.bf16.msra.mxu0 %v5384
  %5415 = vmatprep.subr.bf16.mxu0 0
  %5416 = vmatpush1.bf16.msra.mxu0 0
  %5417 = vmatprep.subr.bf16.mxu0 0
  %5418 = vmatpush1.bf16.msra.mxu0 0
  %5419 = vmatprep.subr.bf16.mxu0 0
  %5420 = vmatpush1.bf16.msra.mxu0 0
  %5421 = vmatprep.subr.bf16.mxu0 0
  %5422 = vmatpush1.bf16.msra.mxu0 0
  %5423 = vmatprep.subr.bf16.mxu0 0
  %5424 = vmatpush1.bf16.msra.mxu0 0
  %5425 = vmatprep.subr.bf16.mxu0 0
  %5426 = vmatpush1.bf16.msra.mxu0 0
  %5427 = vmatprep.subr.bf16.mxu0 0
  %5428 = vmatpush1.bf16.msra.mxu0 0
  %5429 = vmatprep.subr.bf16.mxu0 0
  %5430 = vmatpush1.bf16.msra.mxu0 0
  %5431 = vmatprep.subr.bf16.mxu0 0
  %5432 = vmatpush1.bf16.msra.mxu0 0
  %5433 = vmatprep.subr.bf16.mxu0 0
  %5434 = vmatpush1.bf16.msra.mxu0 0
  %5435 = vmatprep.subr.bf16.mxu0 0
  %5436 = vmatpush1.bf16.msra.mxu0 0
  %5437 = vmatprep.subr.bf16.mxu0 0
  %5438 = vmatpush1.bf16.msra.mxu0 0
  %5439 = vmatprep.subr.bf16.mxu0 0
  %5440 = vmatpush1.bf16.msra.mxu0 0
  %5441 = vmatprep.subr.bf16.mxu0 0
  %5442 = vmatpush1.bf16.msra.mxu0 0
  %5443 = vmatprep.mubr.bf16.mxu0 0
  %5444 = vmatmul.mubr.bf16.gmra.mrb[0].mxu0 %v5388
  %v5445 = vpop.f32.mrb[0].mxu0
  %v5446 = vadd.f32 %v5373, %v5445
  %v5447 = vpop.f32.mrb[0].mxu0
  %v5448 = vpop.f32.mrb[0].mxu0
  %v5449 = vadd.f32 %v5373, %v5448
  %v5450 = vpop.f32.mrb[0].mxu0
  %5451 = vmatprep.mubr.bf16.mxu0 0
  %5452 = vmatmul.mubr.bf16.gmra.mrb[0].mxu0 %v5391
  %v5453 = vpop.f32.mrb[0].mxu0
  %v5454 = vadd.f32 %v5373, %v5453
  %v5455 = vpop.f32.mrb[0].mxu0
  %v5456 = vpop.f32.mrb[0].mxu0
  %v5457 = vadd.f32 %v5373, %v5456
  %v5458 = vpop.f32.mrb[0].mxu0
  %5459 = vmatprep.mubr.bf16.mxu0 0
  %5460 = vmatmul.mubr.bf16.gmra.mrb[0].mxu0 %v5394
  %v5461 = vpop.f32.mrb[0].mxu0
  %v5462 = vadd.f32 %v5373, %v5461
  %v5463 = vpop.f32.mrb[0].mxu0
  %v5464 = vpop.f32.mrb[0].mxu0
  %v5465 = vadd.f32 %v5373, %v5464
  %v5466 = vpop.f32.mrb[0].mxu0
  %5467 = vmatprep.mubr.bf16.mxu0 0
  %5468 = vmatmul.mubr.bf16.gmra.mrb[0].mxu0 %v5397
  %v5469 = vpop.f32.mrb[0].mxu0
  %v5470 = vadd.f32 %v5373, %v5469
  %v5471 = vpop.f32.mrb[0].mxu0
  %v5472 = vpop.f32.mrb[0].mxu0
  %v5473 = vadd.f32 %v5373, %v5472
  %v5474 = vpop.f32.mrb[0].mxu0
  %5475 = vmatprep.mubr.bf16.mxu0 0
  %5476 = vmatmul.mubr.bf16.gmra.mrb[0].mxu0 %v5400
  %v5477 = vpop.f32.mrb[0].mxu0
  %v5478 = vadd.f32 %v5373, %v5477
  %v5479 = vpop.f32.mrb[0].mxu0
  %v5480 = vpop.f32.mrb[0].mxu0
  %v5481 = vadd.f32 %v5373, %v5480
  %v5482 = vpop.f32.mrb[0].mxu0
  %5483 = vmatprep.mubr.bf16.mxu0 0
  %5484 = vmatmul.mubr.bf16.gmra.mrb[0].mxu0 %v5403
  %v5485 = vpop.f32.mrb[0].mxu0
  %v5486 = vadd.f32 %v5373, %v5485
  %v5487 = vpop.f32.mrb[0].mxu0
  %v5488 = vpop.f32.mrb[0].mxu0
  %v5489 = vadd.f32 %v5373, %v5488
  %v5490 = vpop.f32.mrb[0].mxu0
  %5491 = vmatprep.mubr.bf16.mxu0 0
  %5492 = vmatmul.mubr.bf16.gmra.mrb[0].mxu0 %v5406
  %v5493 = vpop.f32.mrb[0].mxu0
  %v5494 = vadd.f32 %v5373, %v5493
  %v5495 = vpop.f32.mrb[0].mxu0
  %v5496 = vpop.f32.mrb[0].mxu0
  %v5497 = vadd.f32 %v5373, %v5496
  %v5498 = vpop.f32.mrb[0].mxu0
  %5499 = vmatprep.mubr.bf16.mxu0 0
  %5500 = vmatmul.mubr.bf16.gmra.mrb[0].mxu0 %v5409
  %v5501 = vpop.f32.mrb[0].mxu0
  %v5502 = vadd.f32 %v5373, %v5501
  %v5503 = vpop.f32.mrb[0].mxu0
  %v5504 = vpop.f32.mrb[0].mxu0
  %v5505 = vadd.f32 %v5373, %v5504
  %v5506 = vpop.f32.mrb[0].mxu0
  %5507 = vdwg.mxu0
  %v5508 = vmul.f32 %v5446, 0.5
  %v5509 = vmul.f32 %v5449, 0.5
  %v5510 = vmul.f32 %v5454, 0.5
  %v5511 = vmul.f32 %v5457, 0.5
  %v5512 = vmul.f32 %v5462, 0.5
  %v5513 = vmul.f32 %v5465, 0.5
  %v5514 = vmul.f32 %v5470, 0.5
  %v5515 = vmul.f32 %v5473, 0.5
  %v5516 = vmul.f32 %v5478, 0.5
  %v5517 = vmul.f32 %v5481, 0.5
  %v5518 = vmul.f32 %v5486, 0.5
  %v5519 = vmul.f32 %v5489, 0.5
  %v5520 = vmul.f32 %v5494, 0.5
  %v5521 = vmul.f32 %v5497, 0.5
  %v5522 = vmul.f32 %v5502, 0.5
  %v5523 = vmul.f32 %v5505, 0.5
  %v5524 = vmul.f32 %v5446, 0.70710677
  %v5525 = vmul.f32 %v5449, 0.70710677
  %v5526 = vmul.f32 %v5454, 0.70710677
  %v5527 = vmul.f32 %v5457, 0.70710677
  %v5528 = vmul.f32 %v5462, 0.70710677
  %v5529 = vmul.f32 %v5465, 0.70710677
  %v5530 = vmul.f32 %v5470, 0.70710677
  %v5531 = vmul.f32 %v5473, 0.70710677
  %v5532 = vmul.f32 %v5478, 0.70710677
  %v5533 = vmul.f32 %v5481, 0.70710677
  %v5534 = vmul.f32 %v5486, 0.70710677
  %v5535 = vmul.f32 %v5489, 0.70710677
  %v5536 = vmul.f32 %v5494, 0.70710677
  %v5537 = vmul.f32 %v5497, 0.70710677
  %v5538 = vmul.f32 %v5502, 0.70710677
  %v5539 = vmul.f32 %v5505, 0.70710677
  %v5540 = verf.f32.pop %v5524
  %v5541 = verf.f32.pop %v5525
  %v5542 = verf.f32.pop %v5526
  %v5543 = verf.f32.pop %v5527
  %v5544 = verf.f32.pop %v5528
  %v5545 = verf.f32.pop %v5529
  %v5546 = verf.f32.pop %v5530
  %v5547 = verf.f32.pop %v5531
  %v5548 = verf.f32.pop %v5532
  %v5549 = verf.f32.pop %v5533
  %v5550 = verf.f32.pop %v5534
  %v5551 = verf.f32.pop %v5535
  %v5552 = verf.f32.pop %v5536
  %v5553 = verf.f32.pop %v5537
  %v5554 = verf.f32.pop %v5538
  %v5555 = verf.f32.pop %v5539
  %v5556 = vadd.f32 %v5540, 1.0
  %v5557 = vadd.f32 %v5541, 1.0
  %v5558 = vadd.f32 %v5542, 1.0
  %v5559 = vadd.f32 %v5543, 1.0
  %v5560 = vadd.f32 %v5544, 1.0
  %v5561 = vadd.f32 %v5545, 1.0
  %v5562 = vadd.f32 %v5546, 1.0
  %v5563 = vadd.f32 %v5547, 1.0
  %v5564 = vadd.f32 %v5548, 1.0
  %v5565 = vadd.f32 %v5549, 1.0
  %v5566 = vadd.f32 %v5550, 1.0
  %v5567 = vadd.f32 %v5551, 1.0
  %v5568 = vadd.f32 %v5552, 1.0
  %v5569 = vadd.f32 %v5553, 1.0
  %v5570 = vadd.f32 %v5554, 1.0
  %v5571 = vadd.f32 %v5555, 1.0
  %v5572 = vmul.f32 %v5508, %v5556
  %v5573 = vmul.f32 %v5509, %v5557
  %v5574 = vmul.f32 %v5510, %v5558
  %v5575 = vmul.f32 %v5511, %v5559
  %v5576 = vmul.f32 %v5512, %v5560
  %v5577 = vmul.f32 %v5513, %v5561
  %v5578 = vmul.f32 %v5514, %v5562
  %v5579 = vmul.f32 %v5515, %v5563
  %v5580 = vmul.f32 %v5516, %v5564
  %v5581 = vmul.f32 %v5517, %v5565
  %v5582 = vmul.f32 %v5518, %v5566
  %v5583 = vmul.f32 %v5519, %v5567
  %v5584 = vmul.f32 %v5520, %v5568
  %v5585 = vmul.f32 %v5521, %v5569
  %v5586 = vmul.f32 %v5522, %v5570
  %v5587 = vmul.f32 %v5523, %v5571
  %v5588 = vpack.c.bf16 %v5573, %v5572
  %v5589 = vpack.c.bf16 %v5575, %v5574
  %v5590 = vpack.c.bf16 %v5577, %v5576
  %v5591 = vpack.c.bf16 %v5579, %v5578
  %v5592 = vpack.c.bf16 %v5581, %v5580
  %v5593 = vpack.c.bf16 %v5583, %v5582
  %v5594 = vpack.c.bf16 %v5585, %v5584
  %v5595 = vpack.c.bf16 %v5587, %v5586
  %v5596 = vld [vmem:[%s12] sm:$0xf]
  %v5597 = vld [vmem:[%s12 + $0x4] sm:$0xf]
  %v5598 = vld [vmem:[%s12 + $0x8] sm:$0xf]
  %v5599 = vld [vmem:[%s12 + $0xc] sm:$0xf]
  %v5600 = vld [vmem:[%s12 + $0x10] sm:$0xf]
  %v5601 = vld [vmem:[%s12 + $0x14] sm:$0xf]
  %v5602 = vld [vmem:[%s12 + $0x18] sm:$0xf]
  %v5603 = vld [vmem:[%s12 + $0x1c] sm:$0xf]
  %v5604 = vld [vmem:[%s12 + $0x20] sm:$0xf]
  %v5605 = vld [vmem:[%s12 + $0x24] sm:$0xf]
  %v5606 = vld [vmem:[%s12 + $0x28] sm:$0xf]
  %v5607 = vld [vmem:[%s12 + $0x2c] sm:$0xf]
  %v5608 = vld [vmem:[%s12 + $0x30] sm:$0xf]
  %v5609 = vld [vmem:[%s12 + $0x34] sm:$0xf]
  %v5610 = vld [vmem:[%s12 + $0x38] sm:$0xf]
  %v5611 = vld [vmem:[%s12 + $0x3c] sm:$0xf]
  %v5612 = vld [vmem:[%s13] sm:$0x1]
  %v5614 = vlaneseq
  %v5615 = vshrl.u32 %v5614, 7
  %v5616 = vsub.s32 0, %v5615
  %v5617 = vrot.slane %v5612, %v5616
  %v5635 = vunpack.c.l.b16 %v5596
  %v5636 = vunpack.c.l.b16 %v5597
  %v5637 = vunpack.c.l.b16 %v5598
  %v5638 = vunpack.c.l.b16 %v5599
  %v5639 = vunpack.c.l.b16 %v5600
  %v5640 = vunpack.c.l.b16 %v5601
  %v5641 = vunpack.c.l.b16 %v5602
  %v5642 = vunpack.c.l.b16 %v5603
  %v5643 = vunpack.c.l.b16 %v5604
  %v5644 = vunpack.c.l.b16 %v5605
  %v5645 = vunpack.c.l.b16 %v5606
  %v5646 = vunpack.c.l.b16 %v5607
  %v5647 = vunpack.c.l.b16 %v5608
  %v5648 = vunpack.c.l.b16 %v5609
  %v5649 = vunpack.c.l.b16 %v5610
  %v5650 = vunpack.c.l.b16 %v5611
  %v5651 = vpack.c.b16 %v5636, %v5635
  %v5652 = vpack.c.b16 %v5638, %v5637
  %v5653 = vpack.c.b16 %v5640, %v5639
  %v5654 = vpack.c.b16 %v5642, %v5641
  %v5655 = vpack.c.b16 %v5644, %v5643
  %v5656 = vpack.c.b16 %v5646, %v5645
  %v5657 = vpack.c.b16 %v5648, %v5647
  %v5658 = vpack.c.b16 %v5650, %v5649
  %5667 = vmatprep.subr.bf16.mxu0 0
  %5668 = vmatpush1.bf16.msra.mxu0 %v5651
  %5669 = vmatprep.subr.bf16.mxu0 0
  %5670 = vmatpush1.bf16.msra.mxu0 %v5652
  %5671 = vmatprep.subr.bf16.mxu0 0
  %5672 = vmatpush1.bf16.msra.mxu0 %v5653
  %5673 = vmatprep.subr.bf16.mxu0 0
  %5674 = vmatpush1.bf16.msra.mxu0 %v5654
  %5675 = vmatprep.subr.bf16.mxu0 0
  %5676 = vmatpush1.bf16.msra.mxu0 %v5655
  %5677 = vmatprep.subr.bf16.mxu0 0
  %5678 = vmatpush1.bf16.msra.mxu0 %v5656
  %5679 = vmatprep.subr.bf16.mxu0 0
  %5680 = vmatpush1.bf16.msra.mxu0 %v5657
  %5681 = vmatprep.subr.bf16.mxu0 0
  %5682 = vmatpush1.bf16.msra.mxu0 %v5658
  %5683 = vmatprep.subr.bf16.mxu0 0
  %5684 = vmatpush1.bf16.msra.mxu0 0
  %5685 = vmatprep.subr.bf16.mxu0 0
  %5686 = vmatpush1.bf16.msra.mxu0 0
  %5687 = vmatprep.subr.bf16.mxu0 0
  %5688 = vmatpush1.bf16.msra.mxu0 0
  %5689 = vmatprep.subr.bf16.mxu0 0
  %5690 = vmatpush1.bf16.msra.mxu0 0
  %5691 = vmatprep.subr.bf16.mxu0 0
  %5692 = vmatpush1.bf16.msra.mxu0 0
  %5693 = vmatprep.subr.bf16.mxu0 0
  %5694 = vmatpush1.bf16.msra.mxu0 0
  %5695 = vmatprep.subr.bf16.mxu0 0
  %5696 = vmatpush1.bf16.msra.mxu0 0
  %5697 = vmatprep.subr.bf16.mxu0 0
  %5698 = vmatpush1.bf16.msra.mxu0 0
  %5699 = vmatprep.mubr.bf16.mxu0 0
  %5700 = vmatmul.mubr.bf16.gmra.mrb[0].mxu0 %v5588
  %v5701 = vpop.f32.mrb[0].mxu0
  %v5702 = vadd.f32 %v5617, %v5701
  %v5703 = vpop.f32.mrb[0].mxu0
  %v5704 = vpop.f32.mrb[0].mxu0
  %v5705 = vadd.f32 %v5617, %v5704
  %v5706 = vpop.f32.mrb[0].mxu0
  %5707 = vmatprep.mubr.bf16.mxu0 0
  %5708 = vmatmul.mubr.bf16.gmra.mrb[0].mxu0 %v5589
  %v5709 = vpop.f32.mrb[0].mxu0
  %v5710 = vadd.f32 %v5617, %v5709
  %v5711 = vpop.f32.mrb[0].mxu0
  %v5712 = vpop.f32.mrb[0].mxu0
  %v5713 = vadd.f32 %v5617, %v5712
  %v5714 = vpop.f32.mrb[0].mxu0
  %5715 = vmatprep.mubr.bf16.mxu0 0
  %5716 = vmatmul.mubr.bf16.gmra.mrb[0].mxu0 %v5590
  %v5717 = vpop.f32.mrb[0].mxu0
  %v5718 = vadd.f32 %v5617, %v5717
  %v5719 = vpop.f32.mrb[0].mxu0
  %v5720 = vpop.f32.mrb[0].mxu0
  %v5721 = vadd.f32 %v5617, %v5720
  %v5722 = vpop.f32.mrb[0].mxu0
  %5723 = vmatprep.mubr.bf16.mxu0 0
  %5724 = vmatmul.mubr.bf16.gmra.mrb[0].mxu0 %v5591
  %v5725 = vpop.f32.mrb[0].mxu0
  %v5726 = vadd.f32 %v5617, %v5725
  %v5727 = vpop.f32.mrb[0].mxu0
  %v5728 = vpop.f32.mrb[0].mxu0
  %v5729 = vadd.f32 %v5617, %v5728
  %v5730 = vpop.f32.mrb[0].mxu0
  %5731 = vmatprep.mubr.bf16.mxu0 0
  %5732 = vmatmul.mubr.bf16.gmra.mrb[0].mxu0 %v5592
  %v5733 = vpop.f32.mrb[0].mxu0
  %v5734 = vadd.f32 %v5617, %v5733
  %v5735 = vpop.f32.mrb[0].mxu0
  %v5736 = vpop.f32.mrb[0].mxu0
  %v5737 = vadd.f32 %v5617, %v5736
  %v5738 = vpop.f32.mrb[0].mxu0
  %5739 = vmatprep.mubr.bf16.mxu0 0
  %5740 = vmatmul.mubr.bf16.gmra.mrb[0].mxu0 %v5593
  %v5741 = vpop.f32.mrb[0].mxu0
  %v5742 = vadd.f32 %v5617, %v5741
  %v5743 = vpop.f32.mrb[0].mxu0
  %v5744 = vpop.f32.mrb[0].mxu0
  %v5745 = vadd.f32 %v5617, %v5744
  %v5746 = vpop.f32.mrb[0].mxu0
  %5747 = vmatprep.mubr.bf16.mxu0 0
  %5748 = vmatmul.mubr.bf16.gmra.mrb[0].mxu0 %v5594
  %v5749 = vpop.f32.mrb[0].mxu0
  %v5750 = vadd.f32 %v5617, %v5749
  %v5751 = vpop.f32.mrb[0].mxu0
  %v5752 = vpop.f32.mrb[0].mxu0
  %v5753 = vadd.f32 %v5617, %v5752
  %v5754 = vpop.f32.mrb[0].mxu0
  %5755 = vmatprep.mubr.bf16.mxu0 0
  %5756 = vmatmul.mubr.bf16.gmra.mrb[0].mxu0 %v5595
  %v5757 = vpop.f32.mrb[0].mxu0
  %v5758 = vadd.f32 %v5617, %v5757
  %v5759 = vpop.f32.mrb[0].mxu0
  %v5760 = vpop.f32.mrb[0].mxu0
  %v5761 = vadd.f32 %v5617, %v5760
  %v5762 = vpop.f32.mrb[0].mxu0
  %5763 = vdwg.mxu0
  %v5764 = vadd.f32 %v5086, %v5702
  %v5765 = vadd.f32 %v5087, %v5705
  %v5766 = vadd.f32 %v5088, %v5710
  %v5767 = vadd.f32 %v5089, %v5713
  %v5768 = vadd.f32 %v5090, %v5718
  %v5769 = vadd.f32 %v5091, %v5721
  %v5770 = vadd.f32 %v5092, %v5726
  %v5771 = vadd.f32 %v5093, %v5729
  %v5772 = vadd.f32 %v5094, %v5734
  %v5773 = vadd.f32 %v5095, %v5737
  %v5774 = vadd.f32 %v5096, %v5742
  %v5775 = vadd.f32 %v5097, %v5745
  %v5776 = vadd.f32 %v5098, %v5750
  %v5777 = vadd.f32 %v5099, %v5753
  %v5778 = vadd.f32 %v5100, %v5758
  %v5779 = vadd.f32 %v5101, %v5761
  %5780 = vst.msk [vmem:[%s14] sm:$0xff] %vm66, %v5764
  %5781 = vst.msk [vmem:[%s14 + $0x8] sm:$0xff] %vm66, %v5765
  %5782 = vst.msk [vmem:[%s14 + $0x10] sm:$0xff] %vm66, %v5766
  %5783 = vst.msk [vmem:[%s14 + $0x18] sm:$0xff] %vm66, %v5767
  %5784 = vst.msk [vmem:[%s14 + $0x20] sm:$0xff] %vm66, %v5768
  %5785 = vst.msk [vmem:[%s14 + $0x28] sm:$0xff] %vm66, %v5769
  %5786 = vst.msk [vmem:[%s14 + $0x30] sm:$0xff] %vm66, %v5770
  %5787 = vst.msk [vmem:[%s14 + $0x38] sm:$0xff] %vm66, %v5771
  %5788 = vst.msk [vmem:[%s14 + $0x40] sm:$0xff] %vm66, %v5772
  %5789 = vst.msk [vmem:[%s14 + $0x48] sm:$0xff] %vm66, %v5773
  %5790 = vst.msk [vmem:[%s14 + $0x50] sm:$0xff] %vm66, %v5774
  %5791 = vst.msk [vmem:[%s14 + $0x58] sm:$0xff] %vm66, %v5775
  %5792 = vst.msk [vmem:[%s14 + $0x60] sm:$0xff] %vm66, %v5776
  %5793 = vst.msk [vmem:[%s14 + $0x68] sm:$0xff] %vm66, %v5777
  %5794 = vst.msk [vmem:[%s14 + $0x70] sm:$0xff] %vm66, %v5778
  %5795 = vst.msk [vmem:[%s14 + $0x78] sm:$0xff] %vm66, %v5779
  // Predicated region
  $region58: #{_lambda_.4} parent=0 // pred_check
    _
  $region59: #{_lambda_.4} parent=0 // pred_check_branch
    %5797 = sbr.rel (0) target = $region61
  $region60: #{_lambda_.4} parent=0 // pred_region
    _
  $region61: #{_lambda_.4} parent=0 // pred_fallthru
    _
  // Predicated region
  $region62: #{_lambda_.4} parent=0 // pred_check
    _
  $region63: #{_lambda_.4} parent=0 // pred_check_branch
    %5799 = sbr.rel (0) target = $region65
  $region64: #{_lambda_.4} parent=0 // pred_region
    _
  $region65: #{_lambda_.4} parent=0 // pred_fallthru
    _

</llo_original>
